<compile_context>
chip_gen: v7x
topology: tpu7x:2x2x1
jax: 0.10.0
libtpu: 0.0.40
codegen_flags: <defaults>
</compile_context>

<pallas_src>
import jax
import jax.numpy as jnp
from jax.experimental import pallas as pl
from jax.experimental.pallas import tpu as pltpu

# Layer sizes of the encoder/decoder stack (from the nn.Sequential definition).
DIMS = [784, 256, 64, 32, 16, 32, 64, 256, 784]


def autoencoder_kernel(x_ref,
                       w1, b1, w2, b2, w3, b3, w4, b4,
                       w5, b5, w6, b6, w7, b7, w8, b8,
                       out_ref):
    """Full forward pass for one batch tile.

    encoder: 784->256->64->32->16 with ReLU between layers
    decoder: 16->32->64->256->784 with ReLU between layers, Sigmoid at the end
    Matmuls: bf16 inputs, f32 accumulation. ReLU/max and bias add in f32,
    inter-layer activations stored in bf16.
    """
    cd = w1.dtype  # compute dtype (bf16)

    def linear(h, w_ref, b_ref):
        # h is already in the compute dtype; accumulate in f32, f32 bias add.
        return (jnp.dot(h, w_ref[...], preferred_element_type=jnp.float32)
                + b_ref[...])

    h = x_ref[...]                                            # bf16 tile, no cast
    # encoder
    h = jnp.maximum(linear(h, w1, b1), 0.0).astype(cd)
    h = jnp.maximum(linear(h, w2, b2), 0.0).astype(cd)
    h = jnp.maximum(linear(h, w3, b3), 0.0).astype(cd)
    h = linear(h, w4, b4).astype(cd)                          # latent Linear(32,16): no activation
    # decoder
    h = jnp.maximum(linear(h, w5, b5), 0.0).astype(cd)
    h = jnp.maximum(linear(h, w6, b6), 0.0).astype(cd)
    h = jnp.maximum(linear(h, w7, b7), 0.0).astype(cd)
    out_ref[...] = jax.nn.sigmoid(linear(h, w8, b8)).astype(out_ref.dtype)


def init_params(key, dtype=jnp.float32):
    """PyTorch-style (uniform +/- 1/sqrt(fan_in)) init.

    Returns weights already transposed to [in, out] and biases as [1, out], f32.
    """
    params = []
    for fan_in, fan_out in zip(DIMS[:-1], DIMS[1:]):
        kw, kb, key = jax.random.split(key, 3)
        bound = 1.0 / jnp.sqrt(fan_in)
        w = jax.random.uniform(kw, (fan_in, fan_out), dtype, minval=-bound, maxval=bound)
        b = jax.random.uniform(kb, (1, fan_out), dtype, minval=-bound, maxval=bound)
        params.append((w, b))
    return params


def prepare_params(params, *, compute_dtype=jnp.bfloat16):
    """Cast weights to the MXU compute dtype (bf16); keep biases in f32."""
    return [(w.astype(compute_dtype), b.astype(jnp.float32)) for w, b in params]


def _vmem_budget(batch_tile, feat, prepared_params, io_itemsize=2):
    io = 2 * 2 * batch_tile * feat * io_itemsize                     # double-buffered bf16 x + out tiles
    par = 2 * sum(w.nbytes + b.nbytes for w, b in prepared_params)   # worst-case double-buffered params
    acts = 4 * batch_tile * (feat + 256) * 4                         # f32 accumulator temporaries (generous)
    budget = int(1.5 * (io + par + acts)) + (8 << 20)                # + headroom for compiler scratch
    # Cap well below v7x's 64 MiB physical VMEM; no artificial 32 MiB floor.
    return min(budget, 48 << 20)


def autoencoder_forward(x, prepared_params, *, batch_tile=256,
                        out_dtype=jnp.bfloat16):
    B, F = x.shape
    assert F == DIMS[0], f"expected {DIMS[0]} input features, got {F}"
    compute_dtype = prepared_params[0][0].dtype

    if batch_tile > B:
        batch_tile = B
    assert batch_tile % 16 == 0, "batch_tile must be a multiple of 16 (bf16 sublane packing)"
    assert B % batch_tile == 0, "batch must be divisible by batch_tile"

    # bf16 x: halves the x HBM DMA bytes and the VMEM pipeline buffers.
    x = x.astype(compute_dtype)

    in_specs = [pl.BlockSpec((batch_tile, F), lambda i: (i, 0))]
    flat_args = [x]
    for (w, b) in prepared_params:
        in_specs.append(pl.BlockSpec(w.shape, lambda i: (0, 0)))
        in_specs.append(pl.BlockSpec(b.shape, lambda i: (0, 0)))
        flat_args.extend([w, b])
    # Full-extent 784 last dim (legal: equals array dim). No post-slice pass needed.
    out_spec = pl.BlockSpec((batch_tile, F), lambda i: (i, 0))

    flops = 2 * B * sum(w.shape[0] * w.shape[1] for w, _ in prepared_params)
    bytes_accessed = (x.nbytes + B * F * jnp.dtype(out_dtype).itemsize
                      + sum(w.nbytes + b.nbytes for w, b in prepared_params))
    cost = pl.CostEstimate(flops=flops,
                           transcendentals=B * DIMS[-1],   # sigmoid exp
                           bytes_accessed=bytes_accessed)

    out = pl.pallas_call(
        autoencoder_kernel,
        out_shape=jax.ShapeDtypeStruct((B, F), out_dtype),
        grid_spec=pltpu.PrefetchScalarGridSpec(
            num_scalar_prefetch=0,
            grid=(B // batch_tile,),
            in_specs=in_specs,
            out_specs=out_spec,
        ),
        compiler_params=pltpu.CompilerParams(
            dimension_semantics=("parallel",),
            vmem_limit_bytes=_vmem_budget(batch_tile, F, prepared_params),
        ),
        cost_estimate=cost,
    )(*flat_args)

    return out


def autoencoder_ref(x, params, *, matmul_dtype=jnp.float32, act_dtype=jnp.float32):
    """Pure-JAX reference. Use bf16 matmul/act dtypes to mirror the kernel exactly."""
    h = x.astype(matmul_dtype)
    n = len(params)
    for li, (w, b) in enumerate(params):
        acc = (jnp.dot(h.astype(matmul_dtype), w.astype(matmul_dtype),
                       preferred_element_type=jnp.float32)
               + b.astype(jnp.float32))
        if li == n - 1:
            h = jax.nn.sigmoid(acc)                      # final layer: Sigmoid
        elif li == 3:
            h = acc.astype(act_dtype)                    # latent Linear(32,16): no activation
        else:
            h = jnp.maximum(acc, 0.0).astype(act_dtype)  # ReLU
    return h.astype(jnp.float32)


if __name__ == "__main__":
    key = jax.random.PRNGKey(0)
    kx, kp = jax.random.split(key)

    # batch_tile=256 fills the 256-row MXU on v6e/v7x; B=1024 keeps 4 grid steps
    # so v7x's two TensorCores each get >=2 steps and still pipeline x/out DMA.
    B, batch_tile = 1024, 256
    x = jax.random.uniform(kx, (B, 784), jnp.float32)   # MNIST-flattened-style input

    raw_params = init_params(kp)            # f32, [in, out] weights, [1, out] biases
    params = prepare_params(raw_params)     # bf16 weights, f32 biases

    out = jax.block_until_ready(
        autoencoder_forward(x, params, batch_tile=batch_tile))
    assert out.shape == (B, 784), out.shape

    out_f32 = out.astype(jnp.float32)
    ref_mixed = autoencoder_ref(x, raw_params,
                                matmul_dtype=jnp.bfloat16, act_dtype=jnp.bfloat16)
    ref_f32 = autoencoder_ref(x, raw_params)
    err_mixed = float(jnp.max(jnp.abs(out_f32 - ref_mixed)))
    err_f32 = float(jnp.max(jnp.abs(out_f32 - ref_f32)))
    assert err_mixed < 1e-2, f"mismatch vs bf16 (kernel-mirroring) reference: {err_mixed}"
    assert err_f32 < 5e-2, f"mismatch vs f32 reference: {err_f32}"

    print("KERNEL_OK")
</pallas_src>

<mosaic_0001>
module attributes {stable_mosaic.version = 11 : i64} {
  func.func @autoencoder_kernel(%arg0: i32, %arg1: memref<256x784xbf16, #tpu.memory_space<vmem>>, %arg2: memref<784x256xbf16, #tpu.memory_space<vmem>>, %arg3: memref<1x256xf32, #tpu.memory_space<vmem>>, %arg4: memref<256x64xbf16, #tpu.memory_space<vmem>>, %arg5: memref<1x64xf32, #tpu.memory_space<vmem>>, %arg6: memref<64x32xbf16, #tpu.memory_space<vmem>>, %arg7: memref<1x32xf32, #tpu.memory_space<vmem>>, %arg8: memref<32x16xbf16, #tpu.memory_space<vmem>>, %arg9: memref<1x16xf32, #tpu.memory_space<vmem>>, %arg10: memref<16x32xbf16, #tpu.memory_space<vmem>>, %arg11: memref<1x32xf32, #tpu.memory_space<vmem>>, %arg12: memref<32x64xbf16, #tpu.memory_space<vmem>>, %arg13: memref<1x64xf32, #tpu.memory_space<vmem>>, %arg14: memref<64x256xbf16, #tpu.memory_space<vmem>>, %arg15: memref<1x256xf32, #tpu.memory_space<vmem>>, %arg16: memref<256x784xbf16, #tpu.memory_space<vmem>>, %arg17: memref<1x784xf32, #tpu.memory_space<vmem>>, %arg18: memref<256x784xbf16, #tpu.memory_space<vmem>>) attributes {dimension_semantics = [#tpu.dimension_semantics<parallel>], iteration_bounds = array<i64: 4>, scalar_prefetch = 0 : i64, scratch_operands = 0 : i64, tpu.core_type = #tpu.core_type<tc>, window_params = [{transform_indices = @transform_0, window_bounds = array<i64: 256, 784>}, {pipeline_mode = #tpu.pipeline_mode<synchronous>, transform_indices = @transform_1, window_bounds = array<i64: 784, 256>}, {pipeline_mode = #tpu.pipeline_mode<synchronous>, transform_indices = @transform_2, window_bounds = array<i64: 1, 256>}, {pipeline_mode = #tpu.pipeline_mode<synchronous>, transform_indices = @transform_3, window_bounds = array<i64: 256, 64>}, {pipeline_mode = #tpu.pipeline_mode<synchronous>, transform_indices = @transform_4, window_bounds = array<i64: 1, 64>}, {pipeline_mode = #tpu.pipeline_mode<synchronous>, transform_indices = @transform_5, window_bounds = array<i64: 64, 32>}, {pipeline_mode = #tpu.pipeline_mode<synchronous>, transform_indices = @transform_6, window_bounds = array<i64: 1, 32>}, {pipeline_mode = #tpu.pipeline_mode<synchronous>, transform_indices = @transform_7, window_bounds = array<i64: 32, 16>}, {pipeline_mode = #tpu.pipeline_mode<synchronous>, transform_indices = @transform_8, window_bounds = array<i64: 1, 16>}, {pipeline_mode = #tpu.pipeline_mode<synchronous>, transform_indices = @transform_9, window_bounds = array<i64: 16, 32>}, {pipeline_mode = #tpu.pipeline_mode<synchronous>, transform_indices = @transform_10, window_bounds = array<i64: 1, 32>}, {pipeline_mode = #tpu.pipeline_mode<synchronous>, transform_indices = @transform_11, window_bounds = array<i64: 32, 64>}, {pipeline_mode = #tpu.pipeline_mode<synchronous>, transform_indices = @transform_12, window_bounds = array<i64: 1, 64>}, {pipeline_mode = #tpu.pipeline_mode<synchronous>, transform_indices = @transform_13, window_bounds = array<i64: 64, 256>}, {pipeline_mode = #tpu.pipeline_mode<synchronous>, transform_indices = @transform_14, window_bounds = array<i64: 1, 256>}, {pipeline_mode = #tpu.pipeline_mode<synchronous>, transform_indices = @transform_15, window_bounds = array<i64: 256, 784>}, {pipeline_mode = #tpu.pipeline_mode<synchronous>, transform_indices = @transform_16, window_bounds = array<i64: 1, 784>}, {transform_indices = @transform_17, window_bounds = array<i64: 256, 784>}]} {
    %c0 = arith.constant 0 : index
    %c0_0 = arith.constant 0 : index
    %0 = vector.load %arg1[%c0, %c0_0] : memref<256x784xbf16, #tpu.memory_space<vmem>>, vector<256x784xbf16>
    %c0_1 = arith.constant 0 : index
    %c0_2 = arith.constant 0 : index
    %1 = vector.load %arg2[%c0_1, %c0_2] : memref<784x256xbf16, #tpu.memory_space<vmem>>, vector<784x256xbf16>
    %cst = arith.constant dense<0.000000e+00> : vector<256x256xf32>
    %2 = tpu.matmul %0, %1, %cst {dimension_numbers = #tpu.dot_dimension_numbers<[1], [0], [0], [1], [0, 0, 1, 1], [], []>} : vector<256x784xbf16>, vector<784x256xbf16>, vector<256x256xf32> -> vector<256x256xf32>
    %c0_3 = arith.constant 0 : index
    %c0_4 = arith.constant 0 : index
    %3 = vector.load %arg3[%c0_3, %c0_4] : memref<1x256xf32, #tpu.memory_space<vmem>>, vector<1x256xf32>
    %4 = vector.broadcast %3 : vector<1x256xf32> to vector<256x256xf32>
    %5 = arith.addf %2, %4 : vector<256x256xf32>
    %cst_5 = arith.constant 0.000000e+00 : f32
    %6 = vector.broadcast %cst_5 : f32 to vector<256x256xf32>
    %7 = arith.maximumf %5, %6 : vector<256x256xf32>
    %8 = arith.truncf %7 : vector<256x256xf32> to vector<256x256xbf16>
    %c0_6 = arith.constant 0 : index
    %c0_7 = arith.constant 0 : index
    %9 = vector.load %arg4[%c0_6, %c0_7] : memref<256x64xbf16, #tpu.memory_space<vmem>>, vector<256x64xbf16>
    %cst_8 = arith.constant dense<0.000000e+00> : vector<256x64xf32>
    %10 = tpu.matmul %8, %9, %cst_8 {dimension_numbers = #tpu.dot_dimension_numbers<[1], [0], [0], [1], [0, 0, 1, 1], [], []>} : vector<256x256xbf16>, vector<256x64xbf16>, vector<256x64xf32> -> vector<256x64xf32>
    %c0_9 = arith.constant 0 : index
    %c0_10 = arith.constant 0 : index
    %11 = vector.load %arg5[%c0_9, %c0_10] : memref<1x64xf32, #tpu.memory_space<vmem>>, vector<1x64xf32>
    %12 = vector.broadcast %11 : vector<1x64xf32> to vector<256x64xf32>
    %13 = arith.addf %10, %12 : vector<256x64xf32>
    %cst_11 = arith.constant 0.000000e+00 : f32
    %14 = vector.broadcast %cst_11 : f32 to vector<256x64xf32>
    %15 = arith.maximumf %13, %14 : vector<256x64xf32>
    %16 = arith.truncf %15 : vector<256x64xf32> to vector<256x64xbf16>
    %c0_12 = arith.constant 0 : index
    %c0_13 = arith.constant 0 : index
    %17 = vector.load %arg6[%c0_12, %c0_13] : memref<64x32xbf16, #tpu.memory_space<vmem>>, vector<64x32xbf16>
    %cst_14 = arith.constant dense<0.000000e+00> : vector<256x32xf32>
    %18 = tpu.matmul %16, %17, %cst_14 {dimension_numbers = #tpu.dot_dimension_numbers<[1], [0], [0], [1], [0, 0, 1, 1], [], []>} : vector<256x64xbf16>, vector<64x32xbf16>, vector<256x32xf32> -> vector<256x32xf32>
    %c0_15 = arith.constant 0 : index
    %c0_16 = arith.constant 0 : index
    %19 = vector.load %arg7[%c0_15, %c0_16] : memref<1x32xf32, #tpu.memory_space<vmem>>, vector<1x32xf32>
    %20 = vector.broadcast %19 : vector<1x32xf32> to vector<256x32xf32>
    %21 = arith.addf %18, %20 : vector<256x32xf32>
    %cst_17 = arith.constant 0.000000e+00 : f32
    %22 = vector.broadcast %cst_17 : f32 to vector<256x32xf32>
    %23 = arith.maximumf %21, %22 : vector<256x32xf32>
    %24 = arith.truncf %23 : vector<256x32xf32> to vector<256x32xbf16>
    %c0_18 = arith.constant 0 : index
    %c0_19 = arith.constant 0 : index
    %25 = vector.load %arg8[%c0_18, %c0_19] : memref<32x16xbf16, #tpu.memory_space<vmem>>, vector<32x16xbf16>
    %cst_20 = arith.constant dense<0.000000e+00> : vector<256x16xf32>
    %26 = tpu.matmul %24, %25, %cst_20 {dimension_numbers = #tpu.dot_dimension_numbers<[1], [0], [0], [1], [0, 0, 1, 1], [], []>} : vector<256x32xbf16>, vector<32x16xbf16>, vector<256x16xf32> -> vector<256x16xf32>
    %c0_21 = arith.constant 0 : index
    %c0_22 = arith.constant 0 : index
    %27 = vector.load %arg9[%c0_21, %c0_22] : memref<1x16xf32, #tpu.memory_space<vmem>>, vector<1x16xf32>
    %28 = vector.broadcast %27 : vector<1x16xf32> to vector<256x16xf32>
    %29 = arith.addf %26, %28 : vector<256x16xf32>
    %30 = arith.truncf %29 : vector<256x16xf32> to vector<256x16xbf16>
    %c0_23 = arith.constant 0 : index
    %c0_24 = arith.constant 0 : index
    %31 = vector.load %arg10[%c0_23, %c0_24] : memref<16x32xbf16, #tpu.memory_space<vmem>>, vector<16x32xbf16>
    %cst_25 = arith.constant dense<0.000000e+00> : vector<256x32xf32>
    %32 = tpu.matmul %30, %31, %cst_25 {dimension_numbers = #tpu.dot_dimension_numbers<[1], [0], [0], [1], [0, 0, 1, 1], [], []>} : vector<256x16xbf16>, vector<16x32xbf16>, vector<256x32xf32> -> vector<256x32xf32>
    %c0_26 = arith.constant 0 : index
    %c0_27 = arith.constant 0 : index
    %33 = vector.load %arg11[%c0_26, %c0_27] : memref<1x32xf32, #tpu.memory_space<vmem>>, vector<1x32xf32>
    %34 = vector.broadcast %33 : vector<1x32xf32> to vector<256x32xf32>
    %35 = arith.addf %32, %34 : vector<256x32xf32>
    %cst_28 = arith.constant 0.000000e+00 : f32
    %36 = vector.broadcast %cst_28 : f32 to vector<256x32xf32>
    %37 = arith.maximumf %35, %36 : vector<256x32xf32>
    %38 = arith.truncf %37 : vector<256x32xf32> to vector<256x32xbf16>
    %c0_29 = arith.constant 0 : index
    %c0_30 = arith.constant 0 : index
    %39 = vector.load %arg12[%c0_29, %c0_30] : memref<32x64xbf16, #tpu.memory_space<vmem>>, vector<32x64xbf16>
    %cst_31 = arith.constant dense<0.000000e+00> : vector<256x64xf32>
    %40 = tpu.matmul %38, %39, %cst_31 {dimension_numbers = #tpu.dot_dimension_numbers<[1], [0], [0], [1], [0, 0, 1, 1], [], []>} : vector<256x32xbf16>, vector<32x64xbf16>, vector<256x64xf32> -> vector<256x64xf32>
    %c0_32 = arith.constant 0 : index
    %c0_33 = arith.constant 0 : index
    %41 = vector.load %arg13[%c0_32, %c0_33] : memref<1x64xf32, #tpu.memory_space<vmem>>, vector<1x64xf32>
    %42 = vector.broadcast %41 : vector<1x64xf32> to vector<256x64xf32>
    %43 = arith.addf %40, %42 : vector<256x64xf32>
    %cst_34 = arith.constant 0.000000e+00 : f32
    %44 = vector.broadcast %cst_34 : f32 to vector<256x64xf32>
    %45 = arith.maximumf %43, %44 : vector<256x64xf32>
    %46 = arith.truncf %45 : vector<256x64xf32> to vector<256x64xbf16>
    %c0_35 = arith.constant 0 : index
    %c0_36 = arith.constant 0 : index
    %47 = vector.load %arg14[%c0_35, %c0_36] : memref<64x256xbf16, #tpu.memory_space<vmem>>, vector<64x256xbf16>
    %cst_37 = arith.constant dense<0.000000e+00> : vector<256x256xf32>
    %48 = tpu.matmul %46, %47, %cst_37 {dimension_numbers = #tpu.dot_dimension_numbers<[1], [0], [0], [1], [0, 0, 1, 1], [], []>} : vector<256x64xbf16>, vector<64x256xbf16>, vector<256x256xf32> -> vector<256x256xf32>
    %c0_38 = arith.constant 0 : index
    %c0_39 = arith.constant 0 : index
    %49 = vector.load %arg15[%c0_38, %c0_39] : memref<1x256xf32, #tpu.memory_space<vmem>>, vector<1x256xf32>
    %50 = vector.broadcast %49 : vector<1x256xf32> to vector<256x256xf32>
    %51 = arith.addf %48, %50 : vector<256x256xf32>
    %cst_40 = arith.constant 0.000000e+00 : f32
    %52 = vector.broadcast %cst_40 : f32 to vector<256x256xf32>
    %53 = arith.maximumf %51, %52 : vector<256x256xf32>
    %54 = arith.truncf %53 : vector<256x256xf32> to vector<256x256xbf16>
    %c0_41 = arith.constant 0 : index
    %c0_42 = arith.constant 0 : index
    %55 = vector.load %arg16[%c0_41, %c0_42] : memref<256x784xbf16, #tpu.memory_space<vmem>>, vector<256x784xbf16>
    %cst_43 = arith.constant dense<0.000000e+00> : vector<256x784xf32>
    %56 = tpu.matmul %54, %55, %cst_43 {dimension_numbers = #tpu.dot_dimension_numbers<[1], [0], [0], [1], [0, 0, 1, 1], [], []>} : vector<256x256xbf16>, vector<256x784xbf16>, vector<256x784xf32> -> vector<256x784xf32>
    %c0_44 = arith.constant 0 : index
    %c0_45 = arith.constant 0 : index
    %57 = vector.load %arg17[%c0_44, %c0_45] : memref<1x784xf32, #tpu.memory_space<vmem>>, vector<1x784xf32>
    %58 = vector.broadcast %57 : vector<1x784xf32> to vector<256x784xf32>
    %59 = arith.addf %56, %58 : vector<256x784xf32>
    %60 = arith.negf %59 : vector<256x784xf32>
    %61 = math.exp %60 : vector<256x784xf32>
    %cst_46 = arith.constant 1.000000e+00 : f32
    %62 = vector.broadcast %cst_46 : f32 to vector<256x784xf32>
    %63 = arith.addf %62, %61 : vector<256x784xf32>
    %64 = arith.divf %62, %63 : vector<256x784xf32>
    %65 = arith.truncf %64 : vector<256x784xf32> to vector<256x784xbf16>
    %c0_47 = arith.constant 0 : index
    %c0_48 = arith.constant 0 : index
    %66 = vector.load %arg18[%c0_47, %c0_48] : memref<256x784xbf16, #tpu.memory_space<vmem>>, vector<256x784xbf16>
    tpu.vector_store %arg18[%c0_47, %c0_48], %65 {strides = array<i32>} : memref<256x784xbf16, #tpu.memory_space<vmem>>, vector<256x784xbf16>,
    return
  }
  func.func @transform_0(%arg0: i32) -> (i32, i32) {
    %c0_i32 = arith.constant 0 : i32
    %c0_i32_0 = arith.constant 0 : i32
    return %arg0, %c0_i32 : i32, i32
  }
  func.func @transform_1(%arg0: i32) -> (i32, i32) {
    %c0_i32 = arith.constant 0 : i32
    %c0_i32_0 = arith.constant 0 : i32
    %c0_i32_1 = arith.constant 0 : i32
    return %c0_i32, %c0_i32_0 : i32, i32
  }
  func.func @transform_2(%arg0: i32) -> (i32, i32) {
    %c0_i32 = arith.constant 0 : i32
    %c0_i32_0 = arith.constant 0 : i32
    %c0_i32_1 = arith.constant 0 : i32
    return %c0_i32, %c0_i32_0 : i32, i32
  }
  func.func @transform_3(%arg0: i32) -> (i32, i32) {
    %c0_i32 = arith.constant 0 : i32
    %c0_i32_0 = arith.constant 0 : i32
    %c0_i32_1 = arith.constant 0 : i32
    return %c0_i32, %c0_i32_0 : i32, i32
  }
  func.func @transform_4(%arg0: i32) -> (i32, i32) {
    %c0_i32 = arith.constant 0 : i32
    %c0_i32_0 = arith.constant 0 : i32
    %c0_i32_1 = arith.constant 0 : i32
    return %c0_i32, %c0_i32_0 : i32, i32
  }
  func.func @transform_5(%arg0: i32) -> (i32, i32) {
    %c0_i32 = arith.constant 0 : i32
    %c0_i32_0 = arith.constant 0 : i32
    %c0_i32_1 = arith.constant 0 : i32
    return %c0_i32, %c0_i32_0 : i32, i32
  }
  func.func @transform_6(%arg0: i32) -> (i32, i32) {
    %c0_i32 = arith.constant 0 : i32
    %c0_i32_0 = arith.constant 0 : i32
    %c0_i32_1 = arith.constant 0 : i32
    return %c0_i32, %c0_i32_0 : i32, i32
  }
  func.func @transform_7(%arg0: i32) -> (i32, i32) {
    %c0_i32 = arith.constant 0 : i32
    %c0_i32_0 = arith.constant 0 : i32
    %c0_i32_1 = arith.constant 0 : i32
    return %c0_i32, %c0_i32_0 : i32, i32
  }
  func.func @transform_8(%arg0: i32) -> (i32, i32) {
    %c0_i32 = arith.constant 0 : i32
    %c0_i32_0 = arith.constant 0 : i32
    %c0_i32_1 = arith.constant 0 : i32
    return %c0_i32, %c0_i32_0 : i32, i32
  }
  func.func @transform_9(%arg0: i32) -> (i32, i32) {
    %c0_i32 = arith.constant 0 : i32
    %c0_i32_0 = arith.constant 0 : i32
    %c0_i32_1 = arith.constant 0 : i32
    return %c0_i32, %c0_i32_0 : i32, i32
  }
  func.func @transform_10(%arg0: i32) -> (i32, i32) {
    %c0_i32 = arith.constant 0 : i32
    %c0_i32_0 = arith.constant 0 : i32
    %c0_i32_1 = arith.constant 0 : i32
    return %c0_i32, %c0_i32_0 : i32, i32
  }
  func.func @transform_11(%arg0: i32) -> (i32, i32) {
    %c0_i32 = arith.constant 0 : i32
    %c0_i32_0 = arith.constant 0 : i32
    %c0_i32_1 = arith.constant 0 : i32
    return %c0_i32, %c0_i32_0 : i32, i32
  }
  func.func @transform_12(%arg0: i32) -> (i32, i32) {
    %c0_i32 = arith.constant 0 : i32
    %c0_i32_0 = arith.constant 0 : i32
    %c0_i32_1 = arith.constant 0 : i32
    return %c0_i32, %c0_i32_0 : i32, i32
  }
  func.func @transform_13(%arg0: i32) -> (i32, i32) {
    %c0_i32 = arith.constant 0 : i32
    %c0_i32_0 = arith.constant 0 : i32
    %c0_i32_1 = arith.constant 0 : i32
    return %c0_i32, %c0_i32_0 : i32, i32
  }
  func.func @transform_14(%arg0: i32) -> (i32, i32) {
    %c0_i32 = arith.constant 0 : i32
    %c0_i32_0 = arith.constant 0 : i32
    %c0_i32_1 = arith.constant 0 : i32
    return %c0_i32, %c0_i32_0 : i32, i32
  }
  func.func @transform_15(%arg0: i32) -> (i32, i32) {
    %c0_i32 = arith.constant 0 : i32
    %c0_i32_0 = arith.constant 0 : i32
    %c0_i32_1 = arith.constant 0 : i32
    return %c0_i32, %c0_i32_0 : i32, i32
  }
  func.func @transform_16(%arg0: i32) -> (i32, i32) {
    %c0_i32 = arith.constant 0 : i32
    %c0_i32_0 = arith.constant 0 : i32
    %c0_i32_1 = arith.constant 0 : i32
    return %c0_i32, %c0_i32_0 : i32, i32
  }
  func.func @transform_17(%arg0: i32) -> (i32, i32) {
    %c0_i32 = arith.constant 0 : i32
    %c0_i32_0 = arith.constant 0 : i32
    return %arg0, %c0_i32 : i32, i32
  }
}

</mosaic_0001>

<llo_original>
// kernel: tpu_custom_call.1
$region0: #{tpu_custom_call.1}
  #allocation0 [shape = 'u32[]', space=smem, size = 0x4, offset = 0x4, fixed_abs, tag = 'smem constant byte address 0x4 - core index']
  #allocation1 [shape = 'u32[144,128]{1,0:T(1,128)}', space=vmem, size = 0x12000, scoped, tag = 'internal scratch']
  %s0 = inlined_call_operand.vmem [shape: bf16[1024,784], index: 0, kind: input, shape index: {}]
  %s1 = inlined_call_operand.vmem [shape: bf16[784,256], index: 1, kind: input, shape index: {}]
  %s2 = inlined_call_operand.vmem [shape: f32[1,256], index: 2, kind: input, shape index: {}]
  %s3 = inlined_call_operand.vmem [shape: bf16[256,64], index: 3, kind: input, shape index: {}]
  %s4 = inlined_call_operand.vmem [shape: f32[1,64], index: 4, kind: input, shape index: {}]
  %s5 = inlined_call_operand.vmem [shape: bf16[64,32], index: 5, kind: input, shape index: {}]
  %s6 = inlined_call_operand.vmem [shape: f32[1,32], index: 6, kind: input, shape index: {}]
  %s7 = inlined_call_operand.vmem [shape: bf16[32,16], index: 7, kind: input, shape index: {}]
  %s8 = inlined_call_operand.vmem [shape: f32[1,16], index: 8, kind: input, shape index: {}]
  %s9 = inlined_call_operand.vmem [shape: bf16[16,32], index: 9, kind: input, shape index: {}]
  %s10 = inlined_call_operand.vmem [shape: f32[1,32], index: 10, kind: input, shape index: {}]
  %s11 = inlined_call_operand.vmem [shape: bf16[32,64], index: 11, kind: input, shape index: {}]
  %s12 = inlined_call_operand.vmem [shape: f32[1,64], index: 12, kind: input, shape index: {}]
  %s13 = inlined_call_operand.vmem [shape: bf16[64,256], index: 13, kind: input, shape index: {}]
  %s14 = inlined_call_operand.vmem [shape: f32[1,256], index: 14, kind: input, shape index: {}]
  %s15 = inlined_call_operand.vmem [shape: bf16[256,784], index: 15, kind: input, shape index: {}]
  %s16 = inlined_call_operand.vmem [shape: f32[1,784], index: 16, kind: input, shape index: {}]
  %s17 = inlined_call_operand.vmem [shape: bf16[1024,784], index: 17, kind: output, shape index: {}]
  %s18 = sld [smem:[#allocation0]]
  $region101: #{tpu_custom_call.1} parent=0
    _
  %s20 = ssub.s32 1, %s18
  %s21 = scalar_select 0, %s20, %s18
  loop: start=0, step=1, limit=6
  $region2: #{tpu_custom_call.1} parent=0 // loop_pre_header
    _
  $region3: #{tpu_custom_call.1} parent=0 // loop_header
    %s23 = sphi 0, %s27
    %p24 = scmp.ge.s32.totalorder %s23, 6
    %s33 = sphi 0, %s35
    %s36 = sphi 0, %s33
    %s37 = sphi 0, %s36
    %s53 = sphi 0, %s37
    %s57 = sphi 0, %s57
    %s59 = sphi 0, %s57
    %s60 = sphi 0, %s59
    %s74 = sphi 0, %s60
    %s78 = sphi 0, %s78
    %s80 = sphi 0, %s78
    %s81 = sphi 0, %s80
    %s95 = sphi 0, %s81
    %s99 = sphi 0, %s99
    %s101 = sphi 0, %s99
    %s102 = sphi 0, %s101
    %s116 = sphi 0, %s102
    %s120 = sphi 0, %s120
    %s122 = sphi 0, %s120
    %s123 = sphi 0, %s122
    %s137 = sphi 0, %s123
    %s141 = sphi 0, %s141
    %s143 = sphi 0, %s141
    %s144 = sphi 0, %s143
    %s158 = sphi 0, %s144
    %s162 = sphi 0, %s162
    %s164 = sphi 0, %s162
    %s165 = sphi 0, %s164
    %s179 = sphi 0, %s165
    %s183 = sphi 0, %s183
    %s185 = sphi 0, %s183
    %s186 = sphi 0, %s185
    %s200 = sphi 0, %s186
    %s204 = sphi 0, %s204
    %s206 = sphi 0, %s204
    %s207 = sphi 0, %s206
    %s221 = sphi 0, %s207
    %s225 = sphi 0, %s225
    %s227 = sphi 0, %s225
    %s228 = sphi 0, %s227
    %s242 = sphi 0, %s228
    %s246 = sphi 0, %s246
    %s248 = sphi 0, %s246
    %s249 = sphi 0, %s248
    %s263 = sphi 0, %s249
    %s267 = sphi 0, %s267
    %s269 = sphi 0, %s267
    %s270 = sphi 0, %s269
    %s284 = sphi 0, %s270
    %s288 = sphi 0, %s288
    %s290 = sphi 0, %s288
    %s291 = sphi 0, %s290
    %s305 = sphi 0, %s291
    %s309 = sphi 0, %s309
    %s311 = sphi 0, %s309
    %s312 = sphi 0, %s311
    %s326 = sphi 0, %s312
    %s330 = sphi 0, %s330
    %s332 = sphi 0, %s330
    %s333 = sphi 0, %s332
    %s347 = sphi 0, %s333
    %s351 = sphi 0, %s351
    %s353 = sphi 0, %s351
    %s354 = sphi 0, %s353
    %s368 = sphi 0, %s354
    %s372 = sphi 0, %s372
    %s374 = sphi 0, %s372
    %s375 = sphi 0, %s374
    %s389 = sphi 0, %s375
    %s395 = sphi 0, %s397
    %s398 = sphi 0, %s395
    %s399 = sphi 0, %s398
    %s415 = sphi 0, %s399
  $region4: #{tpu_custom_call.1} parent=0 // loop_header_branch
    %26 = sbr.rel (%p24) target = $region8
  $region5: #{tpu_custom_call.1} parent=0 // loop_body
    %s28 = ssub.s32 %s23, 1
    %s29 = ssub.s32 %s23, 2
    %s30 = sadd.s32 %s23, 1
    %s31 = ssub.s32 %s23, %s30
    %p32 = scmp.eq.s32.totalorder %s31, 0
    %s34 = sadd.s32 %s33, 1
    %s35 = scalar_select %p32, %s33, %s34
    %p38 = pneg %p32
    %p39 = scmp.eq.s32.totalorder %s23, 3
    %p40 = por %p38, %p39
    %p41 = scmp.ne.s32.totalorder %s33, %s36
    %p42 = scmp.eq.s32.totalorder %s23, 0
    %p43 = por %p41, %p42
    %p44 = scmp.ne.s32.totalorder %s33, %s36
    %p45 = scmp.eq.s32.totalorder %s28, 3
    %p46 = por %p44, %p45
    %p47 = scmp.ne.s32.totalorder %s36, %s37
    %p48 = scmp.eq.s32.totalorder %s28, 0
    %p49 = por %p47, %p48
    %p50 = scmp.ne.s32.totalorder %s36, %s37
    %p51 = scmp.eq.s32.totalorder %s29, 3
    %p52 = por %p50, %p51
    %p54 = scmp.ne.s32.totalorder %s37, %s53
    %p55 = scmp.eq.s32.totalorder %s29, 0
    %p56 = por %p54, %p55
    %s58 = sadd.s32 %s57, 1
    %p61 = scmp.eq.s32.totalorder %s23, 3
    %p62 = scmp.ne.s32.totalorder %s57, %s59
    %p63 = scmp.eq.s32.totalorder %s23, 0
    %p64 = por %p62, %p63
    %p65 = scmp.ne.s32.totalorder %s57, %s59
    %p66 = scmp.eq.s32.totalorder %s28, 3
    %p67 = por %p65, %p66
    %p68 = scmp.ne.s32.totalorder %s59, %s60
    %p69 = scmp.eq.s32.totalorder %s28, 0
    %p70 = por %p68, %p69
    %p71 = scmp.ne.s32.totalorder %s59, %s60
    %p72 = scmp.eq.s32.totalorder %s29, 3
    %p73 = por %p71, %p72
    %p75 = scmp.ne.s32.totalorder %s60, %s74
    %p76 = scmp.eq.s32.totalorder %s29, 0
    %p77 = por %p75, %p76
    %s79 = sadd.s32 %s78, 1
    %p82 = scmp.eq.s32.totalorder %s23, 3
    %p83 = scmp.ne.s32.totalorder %s78, %s80
    %p84 = scmp.eq.s32.totalorder %s23, 0
    %p85 = por %p83, %p84
    %p86 = scmp.ne.s32.totalorder %s78, %s80
    %p87 = scmp.eq.s32.totalorder %s28, 3
    %p88 = por %p86, %p87
    %p89 = scmp.ne.s32.totalorder %s80, %s81
    %p90 = scmp.eq.s32.totalorder %s28, 0
    %p91 = por %p89, %p90
    %p92 = scmp.ne.s32.totalorder %s80, %s81
    %p93 = scmp.eq.s32.totalorder %s29, 3
    %p94 = por %p92, %p93
    %p96 = scmp.ne.s32.totalorder %s81, %s95
    %p97 = scmp.eq.s32.totalorder %s29, 0
    %p98 = por %p96, %p97
    %s100 = sadd.s32 %s99, 1
    %p103 = scmp.eq.s32.totalorder %s23, 3
    %p104 = scmp.ne.s32.totalorder %s99, %s101
    %p105 = scmp.eq.s32.totalorder %s23, 0
    %p106 = por %p104, %p105
    %p107 = scmp.ne.s32.totalorder %s99, %s101
    %p108 = scmp.eq.s32.totalorder %s28, 3
    %p109 = por %p107, %p108
    %p110 = scmp.ne.s32.totalorder %s101, %s102
    %p111 = scmp.eq.s32.totalorder %s28, 0
    %p112 = por %p110, %p111
    %p113 = scmp.ne.s32.totalorder %s101, %s102
    %p114 = scmp.eq.s32.totalorder %s29, 3
    %p115 = por %p113, %p114
    %p117 = scmp.ne.s32.totalorder %s102, %s116
    %p118 = scmp.eq.s32.totalorder %s29, 0
    %p119 = por %p117, %p118
    %s121 = sadd.s32 %s120, 1
    %p124 = scmp.eq.s32.totalorder %s23, 3
    %p125 = scmp.ne.s32.totalorder %s120, %s122
    %p126 = scmp.eq.s32.totalorder %s23, 0
    %p127 = por %p125, %p126
    %p128 = scmp.ne.s32.totalorder %s120, %s122
    %p129 = scmp.eq.s32.totalorder %s28, 3
    %p130 = por %p128, %p129
    %p131 = scmp.ne.s32.totalorder %s122, %s123
    %p132 = scmp.eq.s32.totalorder %s28, 0
    %p133 = por %p131, %p132
    %p134 = scmp.ne.s32.totalorder %s122, %s123
    %p135 = scmp.eq.s32.totalorder %s29, 3
    %p136 = por %p134, %p135
    %p138 = scmp.ne.s32.totalorder %s123, %s137
    %p139 = scmp.eq.s32.totalorder %s29, 0
    %p140 = por %p138, %p139
    %s142 = sadd.s32 %s141, 1
    %p145 = scmp.eq.s32.totalorder %s23, 3
    %p146 = scmp.ne.s32.totalorder %s141, %s143
    %p147 = scmp.eq.s32.totalorder %s23, 0
    %p148 = por %p146, %p147
    %p149 = scmp.ne.s32.totalorder %s141, %s143
    %p150 = scmp.eq.s32.totalorder %s28, 3
    %p151 = por %p149, %p150
    %p152 = scmp.ne.s32.totalorder %s143, %s144
    %p153 = scmp.eq.s32.totalorder %s28, 0
    %p154 = por %p152, %p153
    %p155 = scmp.ne.s32.totalorder %s143, %s144
    %p156 = scmp.eq.s32.totalorder %s29, 3
    %p157 = por %p155, %p156
    %p159 = scmp.ne.s32.totalorder %s144, %s158
    %p160 = scmp.eq.s32.totalorder %s29, 0
    %p161 = por %p159, %p160
    %s163 = sadd.s32 %s162, 1
    %p166 = scmp.eq.s32.totalorder %s23, 3
    %p167 = scmp.ne.s32.totalorder %s162, %s164
    %p168 = scmp.eq.s32.totalorder %s23, 0
    %p169 = por %p167, %p168
    %p170 = scmp.ne.s32.totalorder %s162, %s164
    %p171 = scmp.eq.s32.totalorder %s28, 3
    %p172 = por %p170, %p171
    %p173 = scmp.ne.s32.totalorder %s164, %s165
    %p174 = scmp.eq.s32.totalorder %s28, 0
    %p175 = por %p173, %p174
    %p176 = scmp.ne.s32.totalorder %s164, %s165
    %p177 = scmp.eq.s32.totalorder %s29, 3
    %p178 = por %p176, %p177
    %p180 = scmp.ne.s32.totalorder %s165, %s179
    %p181 = scmp.eq.s32.totalorder %s29, 0
    %p182 = por %p180, %p181
    %s184 = sadd.s32 %s183, 1
    %p187 = scmp.eq.s32.totalorder %s23, 3
    %p188 = scmp.ne.s32.totalorder %s183, %s185
    %p189 = scmp.eq.s32.totalorder %s23, 0
    %p190 = por %p188, %p189
    %p191 = scmp.ne.s32.totalorder %s183, %s185
    %p192 = scmp.eq.s32.totalorder %s28, 3
    %p193 = por %p191, %p192
    %p194 = scmp.ne.s32.totalorder %s185, %s186
    %p195 = scmp.eq.s32.totalorder %s28, 0
    %p196 = por %p194, %p195
    %p197 = scmp.ne.s32.totalorder %s185, %s186
    %p198 = scmp.eq.s32.totalorder %s29, 3
    %p199 = por %p197, %p198
    %p201 = scmp.ne.s32.totalorder %s186, %s200
    %p202 = scmp.eq.s32.totalorder %s29, 0
    %p203 = por %p201, %p202
    %s205 = sadd.s32 %s204, 1
    %p208 = scmp.eq.s32.totalorder %s23, 3
    %p209 = scmp.ne.s32.totalorder %s204, %s206
    %p210 = scmp.eq.s32.totalorder %s23, 0
    %p211 = por %p209, %p210
    %p212 = scmp.ne.s32.totalorder %s204, %s206
    %p213 = scmp.eq.s32.totalorder %s28, 3
    %p214 = por %p212, %p213
    %p215 = scmp.ne.s32.totalorder %s206, %s207
    %p216 = scmp.eq.s32.totalorder %s28, 0
    %p217 = por %p215, %p216
    %p218 = scmp.ne.s32.totalorder %s206, %s207
    %p219 = scmp.eq.s32.totalorder %s29, 3
    %p220 = por %p218, %p219
    %p222 = scmp.ne.s32.totalorder %s207, %s221
    %p223 = scmp.eq.s32.totalorder %s29, 0
    %p224 = por %p222, %p223
    %s226 = sadd.s32 %s225, 1
    %p229 = scmp.eq.s32.totalorder %s23, 3
    %p230 = scmp.ne.s32.totalorder %s225, %s227
    %p231 = scmp.eq.s32.totalorder %s23, 0
    %p232 = por %p230, %p231
    %p233 = scmp.ne.s32.totalorder %s225, %s227
    %p234 = scmp.eq.s32.totalorder %s28, 3
    %p235 = por %p233, %p234
    %p236 = scmp.ne.s32.totalorder %s227, %s228
    %p237 = scmp.eq.s32.totalorder %s28, 0
    %p238 = por %p236, %p237
    %p239 = scmp.ne.s32.totalorder %s227, %s228
    %p240 = scmp.eq.s32.totalorder %s29, 3
    %p241 = por %p239, %p240
    %p243 = scmp.ne.s32.totalorder %s228, %s242
    %p244 = scmp.eq.s32.totalorder %s29, 0
    %p245 = por %p243, %p244
    %s247 = sadd.s32 %s246, 1
    %p250 = scmp.eq.s32.totalorder %s23, 3
    %p251 = scmp.ne.s32.totalorder %s246, %s248
    %p252 = scmp.eq.s32.totalorder %s23, 0
    %p253 = por %p251, %p252
    %p254 = scmp.ne.s32.totalorder %s246, %s248
    %p255 = scmp.eq.s32.totalorder %s28, 3
    %p256 = por %p254, %p255
    %p257 = scmp.ne.s32.totalorder %s248, %s249
    %p258 = scmp.eq.s32.totalorder %s28, 0
    %p259 = por %p257, %p258
    %p260 = scmp.ne.s32.totalorder %s248, %s249
    %p261 = scmp.eq.s32.totalorder %s29, 3
    %p262 = por %p260, %p261
    %p264 = scmp.ne.s32.totalorder %s249, %s263
    %p265 = scmp.eq.s32.totalorder %s29, 0
    %p266 = por %p264, %p265
    %s268 = sadd.s32 %s267, 1
    %p271 = scmp.eq.s32.totalorder %s23, 3
    %p272 = scmp.ne.s32.totalorder %s267, %s269
    %p273 = scmp.eq.s32.totalorder %s23, 0
    %p274 = por %p272, %p273
    %p275 = scmp.ne.s32.totalorder %s267, %s269
    %p276 = scmp.eq.s32.totalorder %s28, 3
    %p277 = por %p275, %p276
    %p278 = scmp.ne.s32.totalorder %s269, %s270
    %p279 = scmp.eq.s32.totalorder %s28, 0
    %p280 = por %p278, %p279
    %p281 = scmp.ne.s32.totalorder %s269, %s270
    %p282 = scmp.eq.s32.totalorder %s29, 3
    %p283 = por %p281, %p282
    %p285 = scmp.ne.s32.totalorder %s270, %s284
    %p286 = scmp.eq.s32.totalorder %s29, 0
    %p287 = por %p285, %p286
    %s289 = sadd.s32 %s288, 1
    %p292 = scmp.eq.s32.totalorder %s23, 3
    %p293 = scmp.ne.s32.totalorder %s288, %s290
    %p294 = scmp.eq.s32.totalorder %s23, 0
    %p295 = por %p293, %p294
    %p296 = scmp.ne.s32.totalorder %s288, %s290
    %p297 = scmp.eq.s32.totalorder %s28, 3
    %p298 = por %p296, %p297
    %p299 = scmp.ne.s32.totalorder %s290, %s291
    %p300 = scmp.eq.s32.totalorder %s28, 0
    %p301 = por %p299, %p300
    %p302 = scmp.ne.s32.totalorder %s290, %s291
    %p303 = scmp.eq.s32.totalorder %s29, 3
    %p304 = por %p302, %p303
    %p306 = scmp.ne.s32.totalorder %s291, %s305
    %p307 = scmp.eq.s32.totalorder %s29, 0
    %p308 = por %p306, %p307
    %s310 = sadd.s32 %s309, 1
    %p313 = scmp.eq.s32.totalorder %s23, 3
    %p314 = scmp.ne.s32.totalorder %s309, %s311
    %p315 = scmp.eq.s32.totalorder %s23, 0
    %p316 = por %p314, %p315
    %p317 = scmp.ne.s32.totalorder %s309, %s311
    %p318 = scmp.eq.s32.totalorder %s28, 3
    %p319 = por %p317, %p318
    %p320 = scmp.ne.s32.totalorder %s311, %s312
    %p321 = scmp.eq.s32.totalorder %s28, 0
    %p322 = por %p320, %p321
    %p323 = scmp.ne.s32.totalorder %s311, %s312
    %p324 = scmp.eq.s32.totalorder %s29, 3
    %p325 = por %p323, %p324
    %p327 = scmp.ne.s32.totalorder %s312, %s326
    %p328 = scmp.eq.s32.totalorder %s29, 0
    %p329 = por %p327, %p328
    %s331 = sadd.s32 %s330, 1
    %p334 = scmp.eq.s32.totalorder %s23, 3
    %p335 = scmp.ne.s32.totalorder %s330, %s332
    %p336 = scmp.eq.s32.totalorder %s23, 0
    %p337 = por %p335, %p336
    %p338 = scmp.ne.s32.totalorder %s330, %s332
    %p339 = scmp.eq.s32.totalorder %s28, 3
    %p340 = por %p338, %p339
    %p341 = scmp.ne.s32.totalorder %s332, %s333
    %p342 = scmp.eq.s32.totalorder %s28, 0
    %p343 = por %p341, %p342
    %p344 = scmp.ne.s32.totalorder %s332, %s333
    %p345 = scmp.eq.s32.totalorder %s29, 3
    %p346 = por %p344, %p345
    %p348 = scmp.ne.s32.totalorder %s333, %s347
    %p349 = scmp.eq.s32.totalorder %s29, 0
    %p350 = por %p348, %p349
    %s352 = sadd.s32 %s351, 1
    %p355 = scmp.eq.s32.totalorder %s23, 3
    %p356 = scmp.ne.s32.totalorder %s351, %s353
    %p357 = scmp.eq.s32.totalorder %s23, 0
    %p358 = por %p356, %p357
    %p359 = scmp.ne.s32.totalorder %s351, %s353
    %p360 = scmp.eq.s32.totalorder %s28, 3
    %p361 = por %p359, %p360
    %p362 = scmp.ne.s32.totalorder %s353, %s354
    %p363 = scmp.eq.s32.totalorder %s28, 0
    %p364 = por %p362, %p363
    %p365 = scmp.ne.s32.totalorder %s353, %s354
    %p366 = scmp.eq.s32.totalorder %s29, 3
    %p367 = por %p365, %p366
    %p369 = scmp.ne.s32.totalorder %s354, %s368
    %p370 = scmp.eq.s32.totalorder %s29, 0
    %p371 = por %p369, %p370
    %s373 = sadd.s32 %s372, 1
    %p376 = scmp.eq.s32.totalorder %s23, 3
    %p377 = scmp.ne.s32.totalorder %s372, %s374
    %p378 = scmp.eq.s32.totalorder %s23, 0
    %p379 = por %p377, %p378
    %p380 = scmp.ne.s32.totalorder %s372, %s374
    %p381 = scmp.eq.s32.totalorder %s28, 3
    %p382 = por %p380, %p381
    %p383 = scmp.ne.s32.totalorder %s374, %s375
    %p384 = scmp.eq.s32.totalorder %s28, 0
    %p385 = por %p383, %p384
    %p386 = scmp.ne.s32.totalorder %s374, %s375
    %p387 = scmp.eq.s32.totalorder %s29, 3
    %p388 = por %p386, %p387
    %p390 = scmp.ne.s32.totalorder %s375, %s389
    %p391 = scmp.eq.s32.totalorder %s29, 0
    %p392 = por %p390, %p391
    %s393 = ssub.s32 %s23, %s30
    %p394 = scmp.eq.s32.totalorder %s393, 0
    %s396 = sadd.s32 %s395, 1
    %s397 = scalar_select %p394, %s395, %s396
    %p400 = pneg %p394
    %p401 = scmp.eq.s32.totalorder %s23, 3
    %p402 = por %p400, %p401
    %p403 = scmp.ne.s32.totalorder %s395, %s398
    %p404 = scmp.eq.s32.totalorder %s23, 0
    %p405 = por %p403, %p404
    %p406 = scmp.ne.s32.totalorder %s395, %s398
    %p407 = scmp.eq.s32.totalorder %s28, 3
    %p408 = por %p406, %p407
    %p409 = scmp.ne.s32.totalorder %s398, %s399
    %p410 = scmp.eq.s32.totalorder %s28, 0
    %p411 = por %p409, %p410
    %p412 = scmp.ne.s32.totalorder %s398, %s399
    %p413 = scmp.eq.s32.totalorder %s29, 3
    %p414 = por %p412, %p413
    %p416 = scmp.ne.s32.totalorder %s399, %s415
    %p417 = scmp.eq.s32.totalorder %s29, 0
    %p418 = por %p416, %p417
    %p419 = scmp.le.s32.totalorder 1, %s23
    %p420 = scmp.lt.s32.totalorder %s23, 5
    %p421 = pnand %p419, %p420
    %p422 = pneg %p421
    // Predicated region
    $region9: #{tpu_custom_call.1} parent=5 // pred_check
      _
    $region10: #{tpu_custom_call.1} parent=5 // pred_check_branch
      %424 = sbr.rel (%p421) target = $region12
    $region11: #{tpu_custom_call.1} parent=5 // pred_region
      %s425 = ssub.s32 %s23, 1
      // Predicated region
      $region13: #{tpu_custom_call.1} parent=11 // pred_check
        %p426 = pneg %p70
      $region14: #{tpu_custom_call.1} parent=11 // pred_check_branch
        %428 = sbr.rel (%p426) target = $region16
      $region15: #{tpu_custom_call.1} parent=11 // pred_region
        _
      $region16: #{tpu_custom_call.1} parent=11 // pred_fallthru
        _
      // Predicated region
      $region17: #{tpu_custom_call.1} parent=11 // pred_check
        %p429 = pneg %p91
      $region18: #{tpu_custom_call.1} parent=11 // pred_check_branch
        %431 = sbr.rel (%p429) target = $region20
      $region19: #{tpu_custom_call.1} parent=11 // pred_region
        _
      $region20: #{tpu_custom_call.1} parent=11 // pred_fallthru
        _
      // Predicated region
      $region21: #{tpu_custom_call.1} parent=11 // pred_check
        %p432 = pneg %p112
      $region22: #{tpu_custom_call.1} parent=11 // pred_check_branch
        %434 = sbr.rel (%p432) target = $region24
      $region23: #{tpu_custom_call.1} parent=11 // pred_region
        _
      $region24: #{tpu_custom_call.1} parent=11 // pred_fallthru
        _
      // Predicated region
      $region25: #{tpu_custom_call.1} parent=11 // pred_check
        %p435 = pneg %p133
      $region26: #{tpu_custom_call.1} parent=11 // pred_check_branch
        %437 = sbr.rel (%p435) target = $region28
      $region27: #{tpu_custom_call.1} parent=11 // pred_region
        _
      $region28: #{tpu_custom_call.1} parent=11 // pred_fallthru
        _
      // Predicated region
      $region29: #{tpu_custom_call.1} parent=11 // pred_check
        %p438 = pneg %p154
      $region30: #{tpu_custom_call.1} parent=11 // pred_check_branch
        %440 = sbr.rel (%p438) target = $region32
      $region31: #{tpu_custom_call.1} parent=11 // pred_region
        _
      $region32: #{tpu_custom_call.1} parent=11 // pred_fallthru
        _
      // Predicated region
      $region33: #{tpu_custom_call.1} parent=11 // pred_check
        %p441 = pneg %p175
      $region34: #{tpu_custom_call.1} parent=11 // pred_check_branch
        %443 = sbr.rel (%p441) target = $region36
      $region35: #{tpu_custom_call.1} parent=11 // pred_region
        _
      $region36: #{tpu_custom_call.1} parent=11 // pred_fallthru
        _
      // Predicated region
      $region37: #{tpu_custom_call.1} parent=11 // pred_check
        %p444 = pneg %p196
      $region38: #{tpu_custom_call.1} parent=11 // pred_check_branch
        %446 = sbr.rel (%p444) target = $region40
      $region39: #{tpu_custom_call.1} parent=11 // pred_region
        _
      $region40: #{tpu_custom_call.1} parent=11 // pred_fallthru
        _
      // Predicated region
      $region41: #{tpu_custom_call.1} parent=11 // pred_check
        %p447 = pneg %p217
      $region42: #{tpu_custom_call.1} parent=11 // pred_check_branch
        %449 = sbr.rel (%p447) target = $region44
      $region43: #{tpu_custom_call.1} parent=11 // pred_region
        _
      $region44: #{tpu_custom_call.1} parent=11 // pred_fallthru
        _
      // Predicated region
      $region45: #{tpu_custom_call.1} parent=11 // pred_check
        %p450 = pneg %p238
      $region46: #{tpu_custom_call.1} parent=11 // pred_check_branch
        %452 = sbr.rel (%p450) target = $region48
      $region47: #{tpu_custom_call.1} parent=11 // pred_region
        _
      $region48: #{tpu_custom_call.1} parent=11 // pred_fallthru
        _
      // Predicated region
      $region49: #{tpu_custom_call.1} parent=11 // pred_check
        %p453 = pneg %p259
      $region50: #{tpu_custom_call.1} parent=11 // pred_check_branch
        %455 = sbr.rel (%p453) target = $region52
      $region51: #{tpu_custom_call.1} parent=11 // pred_region
        _
      $region52: #{tpu_custom_call.1} parent=11 // pred_fallthru
        _
      // Predicated region
      $region53: #{tpu_custom_call.1} parent=11 // pred_check
        %p456 = pneg %p280
      $region54: #{tpu_custom_call.1} parent=11 // pred_check_branch
        %458 = sbr.rel (%p456) target = $region56
      $region55: #{tpu_custom_call.1} parent=11 // pred_region
        _
      $region56: #{tpu_custom_call.1} parent=11 // pred_fallthru
        _
      // Predicated region
      $region57: #{tpu_custom_call.1} parent=11 // pred_check
        %p459 = pneg %p301
      $region58: #{tpu_custom_call.1} parent=11 // pred_check_branch
        %461 = sbr.rel (%p459) target = $region60
      $region59: #{tpu_custom_call.1} parent=11 // pred_region
        _
      $region60: #{tpu_custom_call.1} parent=11 // pred_fallthru
        _
      // Predicated region
      $region61: #{tpu_custom_call.1} parent=11 // pred_check
        %p462 = pneg %p322
      $region62: #{tpu_custom_call.1} parent=11 // pred_check_branch
        %464 = sbr.rel (%p462) target = $region64
      $region63: #{tpu_custom_call.1} parent=11 // pred_region
        _
      $region64: #{tpu_custom_call.1} parent=11 // pred_fallthru
        _
      // Predicated region
      $region65: #{tpu_custom_call.1} parent=11 // pred_check
        %p465 = pneg %p343
      $region66: #{tpu_custom_call.1} parent=11 // pred_check_branch
        %467 = sbr.rel (%p465) target = $region68
      $region67: #{tpu_custom_call.1} parent=11 // pred_region
        _
      $region68: #{tpu_custom_call.1} parent=11 // pred_fallthru
        _
      // Predicated region
      $region69: #{tpu_custom_call.1} parent=11 // pred_check
        %p468 = pneg %p364
      $region70: #{tpu_custom_call.1} parent=11 // pred_check_branch
        %470 = sbr.rel (%p468) target = $region72
      $region71: #{tpu_custom_call.1} parent=11 // pred_region
        _
      $region72: #{tpu_custom_call.1} parent=11 // pred_fallthru
        _
      // Predicated region
      $region73: #{tpu_custom_call.1} parent=11 // pred_check
        %p471 = pneg %p385
      $region74: #{tpu_custom_call.1} parent=11 // pred_check_branch
        %473 = sbr.rel (%p471) target = $region76
      $region75: #{tpu_custom_call.1} parent=11 // pred_region
        _
      $region76: #{tpu_custom_call.1} parent=11 // pred_fallthru
        _
    $region12: #{tpu_custom_call.1} parent=5 // pred_fallthru
      _
    %p474 = scmp.lt.s32.totalorder %s23, 4
    // Predicated region
    $region77: #{tpu_custom_call.1} parent=5 // pred_check
      %p475 = pneg %p474
    $region78: #{tpu_custom_call.1} parent=5 // pred_check_branch
      %477 = sbr.rel (%p475) target = $region80
    $region79: #{tpu_custom_call.1} parent=5 // pred_region
      // Predicated region
      $region81: #{tpu_custom_call.1} parent=79 // pred_check
        %p478 = pneg %p43
      $region82: #{tpu_custom_call.1} parent=79 // pred_check_branch
        %480 = sbr.rel (%p478) target = $region84
      $region83: #{tpu_custom_call.1} parent=79 // pred_region
        %s481 = smul.u32 32, %s23
        %p482 = scmp.lt.s32.totalorder %s481, 127
        %s483 = scalar_select %p482, %s481, 127
        %s484 = smul.addr %s483, 7
        %s485 = smul.addr %s484, 4
        %s486 = scalar_lea.vmem %s0, %s485
        %s487 = smul.u32 32, %s23
      $region84: #{tpu_custom_call.1} parent=79 // pred_fallthru
        _
    $region80: #{tpu_custom_call.1} parent=5 // pred_fallthru
      _
    %p488 = scmp.le.s32.totalorder 1, %s23
    %p489 = scmp.lt.s32.totalorder %s23, 5
    %p490 = pnand %p488, %p489
    %p491 = pneg %p490
    // Predicated region
    $region85: #{tpu_custom_call.1} parent=5 // pred_check
      _
    $region86: #{tpu_custom_call.1} parent=5 // pred_check_branch
      %493 = sbr.rel (%p490) target = $region88
    $region87: #{tpu_custom_call.1} parent=5 // pred_region
      %s494 = ssub.s32 %s23, 1
      %s495 = smul.u32 32, %s28
      %p496 = scmp.lt.s32.totalorder %s495, 127
      %s497 = scalar_select %p496, %s495, 127
      %s498 = smul.addr %s497, 7
      %s499 = smul.addr %s498, 4
      %s500 = scalar_lea.vmem %s0, %s499
      %p501 = pneg %p49
      %p502 = pneg %p46
      %p503 = pneg %p70
      %p504 = pneg %p67
      %p505 = pneg %p91
      %p506 = pneg %p88
      %p507 = pneg %p112
      %p508 = pneg %p109
      %p509 = pneg %p133
      %p510 = pneg %p130
      %p511 = pneg %p154
      %p512 = pneg %p151
      %p513 = pneg %p175
      %p514 = pneg %p172
      %p515 = pneg %p196
      %p516 = pneg %p193
      %p517 = pneg %p217
      %p518 = pneg %p214
      %p519 = pneg %p238
      %p520 = pneg %p235
      %p521 = pneg %p259
      %p522 = pneg %p256
      %p523 = pneg %p280
      %p524 = pneg %p277
      %p525 = pneg %p301
      %p526 = pneg %p298
      %p527 = pneg %p322
      %p528 = pneg %p319
      %p529 = pneg %p343
      %p530 = pneg %p340
      %p531 = pneg %p364
      %p532 = pneg %p361
      %p533 = pneg %p385
      %p534 = pneg %p382
      %p535 = pneg %p411
      %p536 = pneg %p408
      %s537 = smul.u32 32, %s28
      %p538 = scmp.lt.s32.totalorder %s537, 127
      %s539 = scalar_select %p538, %s537, 127
      %s540 = smul.addr %s539, 7
      %s541 = smul.addr %s540, 4
      %s542 = scalar_lea.vmem %s17, %s541
      %s543 = smul.u32 32, %s28
      %p544 = scmp.lt.s32.totalorder %s543, 127
      %s545 = scalar_select %p544, %s543, 127
      %s546 = smul.addr %s545, 7
      %s547 = smul.addr %s546, 4
      %s548 = scalar_lea.vmem %s0, %s547
      %s549 = smul.u32 32, %s28
      %s550 = smul.u32 32, %s28
      %p551 = scmp.lt.s32.totalorder %s550, 127
      %s552 = scalar_select %p551, %s550, 127
      %s553 = smul.addr %s552, 7
      %s554 = smul.addr %s553, 4
      %s555 = scalar_lea.vmem %s17, %s554
      %s556 = smul.u32 32, %s28
      %v558 = vld [vmem:[%s548] sm:$0xff]
      %v559 = vld [vmem:[%s548 + $0x8] sm:$0xff]
      %v560 = vld [vmem:[%s548 + $0x10] sm:$0xff]
      %v561 = vld [vmem:[%s548 + $0x18] sm:$0xf]
      %v562 = vld [vmem:[%s548 + $0x1c] sm:$0xff]
      %v563 = vld [vmem:[%s548 + $0x24] sm:$0xff]
      %v564 = vld [vmem:[%s548 + $0x2c] sm:$0xff]
      %v565 = vld [vmem:[%s548 + $0x34] sm:$0xf]
      %v566 = vld [vmem:[%s548 + $0x38] sm:$0xff]
      %v567 = vld [vmem:[%s548 + $0x40] sm:$0xff]
      %v568 = vld [vmem:[%s548 + $0x48] sm:$0xff]
      %v569 = vld [vmem:[%s548 + $0x50] sm:$0xf]
      %v570 = vld [vmem:[%s548 + $0x54] sm:$0xff]
      %v571 = vld [vmem:[%s548 + $0x5c] sm:$0xff]
      %v572 = vld [vmem:[%s548 + $0x64] sm:$0xff]
      %v573 = vld [vmem:[%s548 + $0x6c] sm:$0xf]
      %v574 = vld [vmem:[%s548 + $0x70] sm:$0xff]
      %v575 = vld [vmem:[%s548 + $0x78] sm:$0xff]
      %v576 = vld [vmem:[%s548 + $0x80] sm:$0xff]
      %v577 = vld [vmem:[%s548 + $0x88] sm:$0xf]
      %v578 = vld [vmem:[%s548 + $0x8c] sm:$0xff]
      %v579 = vld [vmem:[%s548 + $0x94] sm:$0xff]
      %v580 = vld [vmem:[%s548 + $0x9c] sm:$0xff]
      %v581 = vld [vmem:[%s548 + $0xa4] sm:$0xf]
      %v582 = vld [vmem:[%s548 + $0xa8] sm:$0xff]
      %v583 = vld [vmem:[%s548 + $0xb0] sm:$0xff]
      %v584 = vld [vmem:[%s548 + $0xb8] sm:$0xff]
      %v585 = vld [vmem:[%s548 + $0xc0] sm:$0xf]
      %v586 = vld [vmem:[%s548 + $0xc4] sm:$0xff]
      %v587 = vld [vmem:[%s548 + $0xcc] sm:$0xff]
      %v588 = vld [vmem:[%s548 + $0xd4] sm:$0xff]
      %v589 = vld [vmem:[%s548 + $0xdc] sm:$0xf]
      %v590 = vld [vmem:[%s548 + $0xe0] sm:$0xff]
      %v591 = vld [vmem:[%s548 + $0xe8] sm:$0xff]
      %v592 = vld [vmem:[%s548 + $0xf0] sm:$0xff]
      %v593 = vld [vmem:[%s548 + $0xf8] sm:$0xf]
      %v594 = vld [vmem:[%s548 + $0xfc] sm:$0xff]
      %v595 = vld [vmem:[%s548 + $0x104] sm:$0xff]
      %v596 = vld [vmem:[%s548 + $0x10c] sm:$0xff]
      %v597 = vld [vmem:[%s548 + $0x114] sm:$0xf]
      %v598 = vld [vmem:[%s548 + $0x118] sm:$0xff]
      %v599 = vld [vmem:[%s548 + $0x120] sm:$0xff]
      %v600 = vld [vmem:[%s548 + $0x128] sm:$0xff]
      %v601 = vld [vmem:[%s548 + $0x130] sm:$0xf]
      %v602 = vld [vmem:[%s548 + $0x134] sm:$0xff]
      %v603 = vld [vmem:[%s548 + $0x13c] sm:$0xff]
      %v604 = vld [vmem:[%s548 + $0x144] sm:$0xff]
      %v605 = vld [vmem:[%s548 + $0x14c] sm:$0xf]
      %v606 = vld [vmem:[%s548 + $0x150] sm:$0xff]
      %v607 = vld [vmem:[%s548 + $0x158] sm:$0xff]
      %v608 = vld [vmem:[%s548 + $0x160] sm:$0xff]
      %v609 = vld [vmem:[%s548 + $0x168] sm:$0xf]
      %v610 = vld [vmem:[%s548 + $0x16c] sm:$0xff]
      %v611 = vld [vmem:[%s548 + $0x174] sm:$0xff]
      %v612 = vld [vmem:[%s548 + $0x17c] sm:$0xff]
      %v613 = vld [vmem:[%s548 + $0x184] sm:$0xf]
      %v614 = vld [vmem:[%s548 + $0x188] sm:$0xff]
      %v615 = vld [vmem:[%s548 + $0x190] sm:$0xff]
      %v616 = vld [vmem:[%s548 + $0x198] sm:$0xff]
      %v617 = vld [vmem:[%s548 + $0x1a0] sm:$0xf]
      %v618 = vld [vmem:[%s548 + $0x1a4] sm:$0xff]
      %v619 = vld [vmem:[%s548 + $0x1ac] sm:$0xff]
      %v620 = vld [vmem:[%s548 + $0x1b4] sm:$0xff]
      %v621 = vld [vmem:[%s548 + $0x1bc] sm:$0xf]
      %v622 = vld [vmem:[%s548 + $0x1c0] sm:$0xff]
      %v623 = vld [vmem:[%s548 + $0x1c8] sm:$0xff]
      %v624 = vld [vmem:[%s548 + $0x1d0] sm:$0xff]
      %v625 = vld [vmem:[%s548 + $0x1d8] sm:$0xf]
      %v626 = vld [vmem:[%s548 + $0x1dc] sm:$0xff]
      %v627 = vld [vmem:[%s548 + $0x1e4] sm:$0xff]
      %v628 = vld [vmem:[%s548 + $0x1ec] sm:$0xff]
      %v629 = vld [vmem:[%s548 + $0x1f4] sm:$0xf]
      %v630 = vld [vmem:[%s548 + $0x1f8] sm:$0xff]
      %v631 = vld [vmem:[%s548 + $0x200] sm:$0xff]
      %v632 = vld [vmem:[%s548 + $0x208] sm:$0xff]
      %v633 = vld [vmem:[%s548 + $0x210] sm:$0xf]
      %v634 = vld [vmem:[%s548 + $0x214] sm:$0xff]
      %v635 = vld [vmem:[%s548 + $0x21c] sm:$0xff]
      %v636 = vld [vmem:[%s548 + $0x224] sm:$0xff]
      %v637 = vld [vmem:[%s548 + $0x22c] sm:$0xf]
      %v638 = vld [vmem:[%s548 + $0x230] sm:$0xff]
      %v639 = vld [vmem:[%s548 + $0x238] sm:$0xff]
      %v640 = vld [vmem:[%s548 + $0x240] sm:$0xff]
      %v641 = vld [vmem:[%s548 + $0x248] sm:$0xf]
      %v642 = vld [vmem:[%s548 + $0x24c] sm:$0xff]
      %v643 = vld [vmem:[%s548 + $0x254] sm:$0xff]
      %v644 = vld [vmem:[%s548 + $0x25c] sm:$0xff]
      %v645 = vld [vmem:[%s548 + $0x264] sm:$0xf]
      %v646 = vld [vmem:[%s548 + $0x268] sm:$0xff]
      %v647 = vld [vmem:[%s548 + $0x270] sm:$0xff]
      %v648 = vld [vmem:[%s548 + $0x278] sm:$0xff]
      %v649 = vld [vmem:[%s548 + $0x280] sm:$0xf]
      %v650 = vld [vmem:[%s548 + $0x284] sm:$0xff]
      %v651 = vld [vmem:[%s548 + $0x28c] sm:$0xff]
      %v652 = vld [vmem:[%s548 + $0x294] sm:$0xff]
      %v653 = vld [vmem:[%s548 + $0x29c] sm:$0xf]
      %v654 = vld [vmem:[%s548 + $0x2a0] sm:$0xff]
      %v655 = vld [vmem:[%s548 + $0x2a8] sm:$0xff]
      %v656 = vld [vmem:[%s548 + $0x2b0] sm:$0xff]
      %v657 = vld [vmem:[%s548 + $0x2b8] sm:$0xf]
      %v658 = vld [vmem:[%s548 + $0x2bc] sm:$0xff]
      %v659 = vld [vmem:[%s548 + $0x2c4] sm:$0xff]
      %v660 = vld [vmem:[%s548 + $0x2cc] sm:$0xff]
      %v661 = vld [vmem:[%s548 + $0x2d4] sm:$0xf]
      %v662 = vld [vmem:[%s548 + $0x2d8] sm:$0xff]
      %v663 = vld [vmem:[%s548 + $0x2e0] sm:$0xff]
      %v664 = vld [vmem:[%s548 + $0x2e8] sm:$0xff]
      %v665 = vld [vmem:[%s548 + $0x2f0] sm:$0xf]
      %v666 = vld [vmem:[%s548 + $0x2f4] sm:$0xff]
      %v667 = vld [vmem:[%s548 + $0x2fc] sm:$0xff]
      %v668 = vld [vmem:[%s548 + $0x304] sm:$0xff]
      %v669 = vld [vmem:[%s548 + $0x30c] sm:$0xf]
      %v670 = vld [vmem:[%s548 + $0x310] sm:$0xff]
      %v671 = vld [vmem:[%s548 + $0x318] sm:$0xff]
      %v672 = vld [vmem:[%s548 + $0x320] sm:$0xff]
      %v673 = vld [vmem:[%s548 + $0x328] sm:$0xf]
      %v674 = vld [vmem:[%s548 + $0x32c] sm:$0xff]
      %v675 = vld [vmem:[%s548 + $0x334] sm:$0xff]
      %v676 = vld [vmem:[%s548 + $0x33c] sm:$0xff]
      %v677 = vld [vmem:[%s548 + $0x344] sm:$0xf]
      %v678 = vld [vmem:[%s548 + $0x348] sm:$0xff]
      %v679 = vld [vmem:[%s548 + $0x350] sm:$0xff]
      %v680 = vld [vmem:[%s548 + $0x358] sm:$0xff]
      %v681 = vld [vmem:[%s548 + $0x360] sm:$0xf]
      %v682 = vld [vmem:[%s548 + $0x364] sm:$0xff]
      %v683 = vld [vmem:[%s548 + $0x36c] sm:$0xff]
      %v684 = vld [vmem:[%s548 + $0x374] sm:$0xff]
      %v685 = vld [vmem:[%s548 + $0x37c] sm:$0xf]
      %v686 = vld [vmem:[%s1] sm:$0xff]
      %v687 = vld [vmem:[%s1 + $0x8] sm:$0xff]
      %v688 = vld [vmem:[%s1 + $0x10] sm:$0xff]
      %v689 = vld [vmem:[%s1 + $0x18] sm:$0xff]
      %v690 = vld [vmem:[%s1 + $0x20] sm:$0xff]
      %v691 = vld [vmem:[%s1 + $0x28] sm:$0xff]
      %v692 = vld [vmem:[%s1 + $0x30] sm:$0xff]
      %v693 = vld [vmem:[%s1 + $0x38] sm:$0xff]
      %v694 = vld [vmem:[%s1 + $0x40] sm:$0xff]
      %v695 = vld [vmem:[%s1 + $0x48] sm:$0xff]
      %v696 = vld [vmem:[%s1 + $0x50] sm:$0xff]
      %v697 = vld [vmem:[%s1 + $0x58] sm:$0xff]
      %v698 = vld [vmem:[%s1 + $0x60] sm:$0xff]
      %v699 = vld [vmem:[%s1 + $0x68] sm:$0xff]
      %v700 = vld [vmem:[%s1 + $0x70] sm:$0xff]
      %v701 = vld [vmem:[%s1 + $0x78] sm:$0xff]
      %v702 = vld [vmem:[%s1 + $0x80] sm:$0xff]
      %v703 = vld [vmem:[%s1 + $0x88] sm:$0xff]
      %v704 = vld [vmem:[%s1 + $0x90] sm:$0xff]
      %v705 = vld [vmem:[%s1 + $0x98] sm:$0xff]
      %v706 = vld [vmem:[%s1 + $0xa0] sm:$0xff]
      %v707 = vld [vmem:[%s1 + $0xa8] sm:$0xff]
      %v708 = vld [vmem:[%s1 + $0xb0] sm:$0xff]
      %v709 = vld [vmem:[%s1 + $0xb8] sm:$0xff]
      %v710 = vld [vmem:[%s1 + $0xc0] sm:$0xff]
      %v711 = vld [vmem:[%s1 + $0xc8] sm:$0xff]
      %v712 = vld [vmem:[%s1 + $0xd0] sm:$0xff]
      %v713 = vld [vmem:[%s1 + $0xd8] sm:$0xff]
      %v714 = vld [vmem:[%s1 + $0xe0] sm:$0xff]
      %v715 = vld [vmem:[%s1 + $0xe8] sm:$0xff]
      %v716 = vld [vmem:[%s1 + $0xf0] sm:$0xff]
      %v717 = vld [vmem:[%s1 + $0xf8] sm:$0xff]
      %v718 = vld [vmem:[%s1 + $0x100] sm:$0xff]
      %v719 = vld [vmem:[%s1 + $0x108] sm:$0xff]
      %v720 = vld [vmem:[%s1 + $0x110] sm:$0xff]
      %v721 = vld [vmem:[%s1 + $0x118] sm:$0xff]
      %v722 = vld [vmem:[%s1 + $0x120] sm:$0xff]
      %v723 = vld [vmem:[%s1 + $0x128] sm:$0xff]
      %v724 = vld [vmem:[%s1 + $0x130] sm:$0xff]
      %v725 = vld [vmem:[%s1 + $0x138] sm:$0xff]
      %v726 = vld [vmem:[%s1 + $0x140] sm:$0xff]
      %v727 = vld [vmem:[%s1 + $0x148] sm:$0xff]
      %v728 = vld [vmem:[%s1 + $0x150] sm:$0xff]
      %v729 = vld [vmem:[%s1 + $0x158] sm:$0xff]
      %v730 = vld [vmem:[%s1 + $0x160] sm:$0xff]
      %v731 = vld [vmem:[%s1 + $0x168] sm:$0xff]
      %v732 = vld [vmem:[%s1 + $0x170] sm:$0xff]
      %v733 = vld [vmem:[%s1 + $0x178] sm:$0xff]
      %v734 = vld [vmem:[%s1 + $0x180] sm:$0xff]
      %v735 = vld [vmem:[%s1 + $0x188] sm:$0xff]
      %v736 = vld [vmem:[%s1 + $0x190] sm:$0xff]
      %v737 = vld [vmem:[%s1 + $0x198] sm:$0xff]
      %v738 = vld [vmem:[%s1 + $0x1a0] sm:$0xff]
      %v739 = vld [vmem:[%s1 + $0x1a8] sm:$0xff]
      %v740 = vld [vmem:[%s1 + $0x1b0] sm:$0xff]
      %v741 = vld [vmem:[%s1 + $0x1b8] sm:$0xff]
      %v742 = vld [vmem:[%s1 + $0x1c0] sm:$0xff]
      %v743 = vld [vmem:[%s1 + $0x1c8] sm:$0xff]
      %v744 = vld [vmem:[%s1 + $0x1d0] sm:$0xff]
      %v745 = vld [vmem:[%s1 + $0x1d8] sm:$0xff]
      %v746 = vld [vmem:[%s1 + $0x1e0] sm:$0xff]
      %v747 = vld [vmem:[%s1 + $0x1e8] sm:$0xff]
      %v748 = vld [vmem:[%s1 + $0x1f0] sm:$0xff]
      %v749 = vld [vmem:[%s1 + $0x1f8] sm:$0xff]
      %v750 = vld [vmem:[%s1 + $0x200] sm:$0xff]
      %v751 = vld [vmem:[%s1 + $0x208] sm:$0xff]
      %v752 = vld [vmem:[%s1 + $0x210] sm:$0xff]
      %v753 = vld [vmem:[%s1 + $0x218] sm:$0xff]
      %v754 = vld [vmem:[%s1 + $0x220] sm:$0xff]
      %v755 = vld [vmem:[%s1 + $0x228] sm:$0xff]
      %v756 = vld [vmem:[%s1 + $0x230] sm:$0xff]
      %v757 = vld [vmem:[%s1 + $0x238] sm:$0xff]
      %v758 = vld [vmem:[%s1 + $0x240] sm:$0xff]
      %v759 = vld [vmem:[%s1 + $0x248] sm:$0xff]
      %v760 = vld [vmem:[%s1 + $0x250] sm:$0xff]
      %v761 = vld [vmem:[%s1 + $0x258] sm:$0xff]
      %v762 = vld [vmem:[%s1 + $0x260] sm:$0xff]
      %v763 = vld [vmem:[%s1 + $0x268] sm:$0xff]
      %v764 = vld [vmem:[%s1 + $0x270] sm:$0xff]
      %v765 = vld [vmem:[%s1 + $0x278] sm:$0xff]
      %v766 = vld [vmem:[%s1 + $0x280] sm:$0xff]
      %v767 = vld [vmem:[%s1 + $0x288] sm:$0xff]
      %v768 = vld [vmem:[%s1 + $0x290] sm:$0xff]
      %v769 = vld [vmem:[%s1 + $0x298] sm:$0xff]
      %v770 = vld [vmem:[%s1 + $0x2a0] sm:$0xff]
      %v771 = vld [vmem:[%s1 + $0x2a8] sm:$0xff]
      %v772 = vld [vmem:[%s1 + $0x2b0] sm:$0xff]
      %v773 = vld [vmem:[%s1 + $0x2b8] sm:$0xff]
      %v774 = vld [vmem:[%s1 + $0x2c0] sm:$0xff]
      %v775 = vld [vmem:[%s1 + $0x2c8] sm:$0xff]
      %v776 = vld [vmem:[%s1 + $0x2d0] sm:$0xff]
      %v777 = vld [vmem:[%s1 + $0x2d8] sm:$0xff]
      %v778 = vld [vmem:[%s1 + $0x2e0] sm:$0xff]
      %v779 = vld [vmem:[%s1 + $0x2e8] sm:$0xff]
      %v780 = vld [vmem:[%s1 + $0x2f0] sm:$0xff]
      %v781 = vld [vmem:[%s1 + $0x2f8] sm:$0xff]
      %v782 = vld [vmem:[%s1 + $0x300] sm:$0xff]
      %v783 = vld [vmem:[%s1 + $0x308] sm:$0xff]
      %v784 = vld [vmem:[%s2] sm:$0x3]
      %v786 = vlaneseq
      %v787 = vshrl.u32 %v786, 7
      %v788 = vsub.s32 0, %v787
      %v789 = vrot.slane %v784, %v788
      %v790 = vlaneseq
      %v791 = vshrl.u32 %v790, 7
      %v792 = vsub.s32 1, %v791
      %v793 = vrot.slane %v784, %v792
      %v924 = vunpack.c.l.b16 %v558
      %v925 = vunpack.c.h.b16 %v558
      %v926 = vunpack.c.l.b16 %v559
      %v927 = vunpack.c.h.b16 %v559
      %v928 = vunpack.c.l.b16 %v560
      %v929 = vunpack.c.h.b16 %v560
      %v930 = vunpack.c.l.b16 %v561
      %v931 = vunpack.c.l.b16 %v562
      %v932 = vunpack.c.h.b16 %v562
      %v933 = vunpack.c.l.b16 %v563
      %v934 = vunpack.c.h.b16 %v563
      %v935 = vunpack.c.l.b16 %v564
      %v936 = vunpack.c.h.b16 %v564
      %v937 = vunpack.c.l.b16 %v565
      %v938 = vunpack.c.l.b16 %v566
      %v939 = vunpack.c.h.b16 %v566
      %v940 = vunpack.c.l.b16 %v567
      %v941 = vunpack.c.h.b16 %v567
      %v942 = vunpack.c.l.b16 %v568
      %v943 = vunpack.c.h.b16 %v568
      %v944 = vunpack.c.l.b16 %v569
      %v945 = vunpack.c.l.b16 %v570
      %v946 = vunpack.c.h.b16 %v570
      %v947 = vunpack.c.l.b16 %v571
      %v948 = vunpack.c.h.b16 %v571
      %v949 = vunpack.c.l.b16 %v572
      %v950 = vunpack.c.h.b16 %v572
      %v951 = vunpack.c.l.b16 %v573
      %v952 = vunpack.c.l.b16 %v574
      %v953 = vunpack.c.h.b16 %v574
      %v954 = vunpack.c.l.b16 %v575
      %v955 = vunpack.c.h.b16 %v575
      %v956 = vunpack.c.l.b16 %v576
      %v957 = vunpack.c.h.b16 %v576
      %v958 = vunpack.c.l.b16 %v577
      %v959 = vunpack.c.l.b16 %v578
      %v960 = vunpack.c.h.b16 %v578
      %v961 = vunpack.c.l.b16 %v579
      %v962 = vunpack.c.h.b16 %v579
      %v963 = vunpack.c.l.b16 %v580
      %v964 = vunpack.c.h.b16 %v580
      %v965 = vunpack.c.l.b16 %v581
      %v966 = vunpack.c.l.b16 %v582
      %v967 = vunpack.c.h.b16 %v582
      %v968 = vunpack.c.l.b16 %v583
      %v969 = vunpack.c.h.b16 %v583
      %v970 = vunpack.c.l.b16 %v584
      %v971 = vunpack.c.h.b16 %v584
      %v972 = vunpack.c.l.b16 %v585
      %v973 = vunpack.c.l.b16 %v586
      %v974 = vunpack.c.h.b16 %v586
      %v975 = vunpack.c.l.b16 %v587
      %v976 = vunpack.c.h.b16 %v587
      %v977 = vunpack.c.l.b16 %v588
      %v978 = vunpack.c.h.b16 %v588
      %v979 = vunpack.c.l.b16 %v589
      %v980 = vunpack.c.l.b16 %v590
      %v981 = vunpack.c.h.b16 %v590
      %v982 = vunpack.c.l.b16 %v591
      %v983 = vunpack.c.h.b16 %v591
      %v984 = vunpack.c.l.b16 %v592
      %v985 = vunpack.c.h.b16 %v592
      %v986 = vunpack.c.l.b16 %v593
      %v987 = vunpack.c.l.b16 %v594
      %v988 = vunpack.c.h.b16 %v594
      %v989 = vunpack.c.l.b16 %v595
      %v990 = vunpack.c.h.b16 %v595
      %v991 = vunpack.c.l.b16 %v596
      %v992 = vunpack.c.h.b16 %v596
      %v993 = vunpack.c.l.b16 %v597
      %v994 = vunpack.c.l.b16 %v598
      %v995 = vunpack.c.h.b16 %v598
      %v996 = vunpack.c.l.b16 %v599
      %v997 = vunpack.c.h.b16 %v599
      %v998 = vunpack.c.l.b16 %v600
      %v999 = vunpack.c.h.b16 %v600
      %v1000 = vunpack.c.l.b16 %v601
      %v1001 = vunpack.c.l.b16 %v602
      %v1002 = vunpack.c.h.b16 %v602
      %v1003 = vunpack.c.l.b16 %v603
      %v1004 = vunpack.c.h.b16 %v603
      %v1005 = vunpack.c.l.b16 %v604
      %v1006 = vunpack.c.h.b16 %v604
      %v1007 = vunpack.c.l.b16 %v605
      %v1008 = vunpack.c.l.b16 %v606
      %v1009 = vunpack.c.h.b16 %v606
      %v1010 = vunpack.c.l.b16 %v607
      %v1011 = vunpack.c.h.b16 %v607
      %v1012 = vunpack.c.l.b16 %v608
      %v1013 = vunpack.c.h.b16 %v608
      %v1014 = vunpack.c.l.b16 %v609
      %v1015 = vunpack.c.l.b16 %v610
      %v1016 = vunpack.c.h.b16 %v610
      %v1017 = vunpack.c.l.b16 %v611
      %v1018 = vunpack.c.h.b16 %v611
      %v1019 = vunpack.c.l.b16 %v612
      %v1020 = vunpack.c.h.b16 %v612
      %v1021 = vunpack.c.l.b16 %v613
      %v1022 = vunpack.c.l.b16 %v614
      %v1023 = vunpack.c.h.b16 %v614
      %v1024 = vunpack.c.l.b16 %v615
      %v1025 = vunpack.c.h.b16 %v615
      %v1026 = vunpack.c.l.b16 %v616
      %v1027 = vunpack.c.h.b16 %v616
      %v1028 = vunpack.c.l.b16 %v617
      %v1029 = vunpack.c.l.b16 %v618
      %v1030 = vunpack.c.h.b16 %v618
      %v1031 = vunpack.c.l.b16 %v619
      %v1032 = vunpack.c.h.b16 %v619
      %v1033 = vunpack.c.l.b16 %v620
      %v1034 = vunpack.c.h.b16 %v620
      %v1035 = vunpack.c.l.b16 %v621
      %v1036 = vunpack.c.l.b16 %v622
      %v1037 = vunpack.c.h.b16 %v622
      %v1038 = vunpack.c.l.b16 %v623
      %v1039 = vunpack.c.h.b16 %v623
      %v1040 = vunpack.c.l.b16 %v624
      %v1041 = vunpack.c.h.b16 %v624
      %v1042 = vunpack.c.l.b16 %v625
      %v1043 = vunpack.c.l.b16 %v626
      %v1044 = vunpack.c.h.b16 %v626
      %v1045 = vunpack.c.l.b16 %v627
      %v1046 = vunpack.c.h.b16 %v627
      %v1047 = vunpack.c.l.b16 %v628
      %v1048 = vunpack.c.h.b16 %v628
      %v1049 = vunpack.c.l.b16 %v629
      %v1050 = vunpack.c.l.b16 %v630
      %v1051 = vunpack.c.h.b16 %v630
      %v1052 = vunpack.c.l.b16 %v631
      %v1053 = vunpack.c.h.b16 %v631
      %v1054 = vunpack.c.l.b16 %v632
      %v1055 = vunpack.c.h.b16 %v632
      %v1056 = vunpack.c.l.b16 %v633
      %v1057 = vunpack.c.l.b16 %v634
      %v1058 = vunpack.c.h.b16 %v634
      %v1059 = vunpack.c.l.b16 %v635
      %v1060 = vunpack.c.h.b16 %v635
      %v1061 = vunpack.c.l.b16 %v636
      %v1062 = vunpack.c.h.b16 %v636
      %v1063 = vunpack.c.l.b16 %v637
      %v1064 = vunpack.c.l.b16 %v638
      %v1065 = vunpack.c.h.b16 %v638
      %v1066 = vunpack.c.l.b16 %v639
      %v1067 = vunpack.c.h.b16 %v639
      %v1068 = vunpack.c.l.b16 %v640
      %v1069 = vunpack.c.h.b16 %v640
      %v1070 = vunpack.c.l.b16 %v641
      %v1071 = vunpack.c.l.b16 %v642
      %v1072 = vunpack.c.h.b16 %v642
      %v1073 = vunpack.c.l.b16 %v643
      %v1074 = vunpack.c.h.b16 %v643
      %v1075 = vunpack.c.l.b16 %v644
      %v1076 = vunpack.c.h.b16 %v644
      %v1077 = vunpack.c.l.b16 %v645
      %v1078 = vunpack.c.l.b16 %v646
      %v1079 = vunpack.c.h.b16 %v646
      %v1080 = vunpack.c.l.b16 %v647
      %v1081 = vunpack.c.h.b16 %v647
      %v1082 = vunpack.c.l.b16 %v648
      %v1083 = vunpack.c.h.b16 %v648
      %v1084 = vunpack.c.l.b16 %v649
      %v1085 = vunpack.c.l.b16 %v650
      %v1086 = vunpack.c.h.b16 %v650
      %v1087 = vunpack.c.l.b16 %v651
      %v1088 = vunpack.c.h.b16 %v651
      %v1089 = vunpack.c.l.b16 %v652
      %v1090 = vunpack.c.h.b16 %v652
      %v1091 = vunpack.c.l.b16 %v653
      %v1092 = vunpack.c.l.b16 %v654
      %v1093 = vunpack.c.h.b16 %v654
      %v1094 = vunpack.c.l.b16 %v655
      %v1095 = vunpack.c.h.b16 %v655
      %v1096 = vunpack.c.l.b16 %v656
      %v1097 = vunpack.c.h.b16 %v656
      %v1098 = vunpack.c.l.b16 %v657
      %v1099 = vunpack.c.l.b16 %v658
      %v1100 = vunpack.c.h.b16 %v658
      %v1101 = vunpack.c.l.b16 %v659
      %v1102 = vunpack.c.h.b16 %v659
      %v1103 = vunpack.c.l.b16 %v660
      %v1104 = vunpack.c.h.b16 %v660
      %v1105 = vunpack.c.l.b16 %v661
      %v1106 = vunpack.c.l.b16 %v662
      %v1107 = vunpack.c.h.b16 %v662
      %v1108 = vunpack.c.l.b16 %v663
      %v1109 = vunpack.c.h.b16 %v663
      %v1110 = vunpack.c.l.b16 %v664
      %v1111 = vunpack.c.h.b16 %v664
      %v1112 = vunpack.c.l.b16 %v665
      %v1113 = vunpack.c.l.b16 %v666
      %v1114 = vunpack.c.h.b16 %v666
      %v1115 = vunpack.c.l.b16 %v667
      %v1116 = vunpack.c.h.b16 %v667
      %v1117 = vunpack.c.l.b16 %v668
      %v1118 = vunpack.c.h.b16 %v668
      %v1119 = vunpack.c.l.b16 %v669
      %v1120 = vunpack.c.l.b16 %v670
      %v1121 = vunpack.c.h.b16 %v670
      %v1122 = vunpack.c.l.b16 %v671
      %v1123 = vunpack.c.h.b16 %v671
      %v1124 = vunpack.c.l.b16 %v672
      %v1125 = vunpack.c.h.b16 %v672
      %v1126 = vunpack.c.l.b16 %v673
      %v1127 = vunpack.c.l.b16 %v674
      %v1128 = vunpack.c.h.b16 %v674
      %v1129 = vunpack.c.l.b16 %v675
      %v1130 = vunpack.c.h.b16 %v675
      %v1131 = vunpack.c.l.b16 %v676
      %v1132 = vunpack.c.h.b16 %v676
      %v1133 = vunpack.c.l.b16 %v677
      %v1134 = vunpack.c.l.b16 %v678
      %v1135 = vunpack.c.h.b16 %v678
      %v1136 = vunpack.c.l.b16 %v679
      %v1137 = vunpack.c.h.b16 %v679
      %v1138 = vunpack.c.l.b16 %v680
      %v1139 = vunpack.c.h.b16 %v680
      %v1140 = vunpack.c.l.b16 %v681
      %v1141 = vunpack.c.l.b16 %v682
      %v1142 = vunpack.c.h.b16 %v682
      %v1143 = vunpack.c.l.b16 %v683
      %v1144 = vunpack.c.h.b16 %v683
      %v1145 = vunpack.c.l.b16 %v684
      %v1146 = vunpack.c.h.b16 %v684
      %v1147 = vunpack.c.l.b16 %v685
      %v1148 = vpack.c.b16 %v931, %v924
      %v1149 = vpack.c.b16 %v932, %v925
      %v1150 = vpack.c.b16 %v933, %v926
      %v1151 = vpack.c.b16 %v934, %v927
      %v1152 = vpack.c.b16 %v935, %v928
      %v1153 = vpack.c.b16 %v936, %v929
      %v1154 = vpack.c.b16 %v937, %v930
      %v1155 = vpack.c.b16 %v945, %v938
      %v1156 = vpack.c.b16 %v946, %v939
      %v1157 = vpack.c.b16 %v947, %v940
      %v1158 = vpack.c.b16 %v948, %v941
      %v1159 = vpack.c.b16 %v949, %v942
      %v1160 = vpack.c.b16 %v950, %v943
      %v1161 = vpack.c.b16 %v951, %v944
      %v1162 = vpack.c.b16 %v959, %v952
      %v1163 = vpack.c.b16 %v960, %v953
      %v1164 = vpack.c.b16 %v961, %v954
      %v1165 = vpack.c.b16 %v962, %v955
      %v1166 = vpack.c.b16 %v963, %v956
      %v1167 = vpack.c.b16 %v964, %v957
      %v1168 = vpack.c.b16 %v965, %v958
      %v1169 = vpack.c.b16 %v973, %v966
      %v1170 = vpack.c.b16 %v974, %v967
      %v1171 = vpack.c.b16 %v975, %v968
      %v1172 = vpack.c.b16 %v976, %v969
      %v1173 = vpack.c.b16 %v977, %v970
      %v1174 = vpack.c.b16 %v978, %v971
      %v1175 = vpack.c.b16 %v979, %v972
      %v1176 = vpack.c.b16 %v987, %v980
      %v1177 = vpack.c.b16 %v988, %v981
      %v1178 = vpack.c.b16 %v989, %v982
      %v1179 = vpack.c.b16 %v990, %v983
      %v1180 = vpack.c.b16 %v991, %v984
      %v1181 = vpack.c.b16 %v992, %v985
      %v1182 = vpack.c.b16 %v993, %v986
      %v1183 = vpack.c.b16 %v1001, %v994
      %v1184 = vpack.c.b16 %v1002, %v995
      %v1185 = vpack.c.b16 %v1003, %v996
      %v1186 = vpack.c.b16 %v1004, %v997
      %v1187 = vpack.c.b16 %v1005, %v998
      %v1188 = vpack.c.b16 %v1006, %v999
      %v1189 = vpack.c.b16 %v1007, %v1000
      %v1190 = vpack.c.b16 %v1015, %v1008
      %v1191 = vpack.c.b16 %v1016, %v1009
      %v1192 = vpack.c.b16 %v1017, %v1010
      %v1193 = vpack.c.b16 %v1018, %v1011
      %v1194 = vpack.c.b16 %v1019, %v1012
      %v1195 = vpack.c.b16 %v1020, %v1013
      %v1196 = vpack.c.b16 %v1021, %v1014
      %v1197 = vpack.c.b16 %v1029, %v1022
      %v1198 = vpack.c.b16 %v1030, %v1023
      %v1199 = vpack.c.b16 %v1031, %v1024
      %v1200 = vpack.c.b16 %v1032, %v1025
      %v1201 = vpack.c.b16 %v1033, %v1026
      %v1202 = vpack.c.b16 %v1034, %v1027
      %v1203 = vpack.c.b16 %v1035, %v1028
      %v1204 = vpack.c.b16 %v1043, %v1036
      %v1205 = vpack.c.b16 %v1044, %v1037
      %v1206 = vpack.c.b16 %v1045, %v1038
      %v1207 = vpack.c.b16 %v1046, %v1039
      %v1208 = vpack.c.b16 %v1047, %v1040
      %v1209 = vpack.c.b16 %v1048, %v1041
      %v1210 = vpack.c.b16 %v1049, %v1042
      %v1211 = vpack.c.b16 %v1057, %v1050
      %v1212 = vpack.c.b16 %v1058, %v1051
      %v1213 = vpack.c.b16 %v1059, %v1052
      %v1214 = vpack.c.b16 %v1060, %v1053
      %v1215 = vpack.c.b16 %v1061, %v1054
      %v1216 = vpack.c.b16 %v1062, %v1055
      %v1217 = vpack.c.b16 %v1063, %v1056
      %v1218 = vpack.c.b16 %v1071, %v1064
      %v1219 = vpack.c.b16 %v1072, %v1065
      %v1220 = vpack.c.b16 %v1073, %v1066
      %v1221 = vpack.c.b16 %v1074, %v1067
      %v1222 = vpack.c.b16 %v1075, %v1068
      %v1223 = vpack.c.b16 %v1076, %v1069
      %v1224 = vpack.c.b16 %v1077, %v1070
      %v1225 = vpack.c.b16 %v1085, %v1078
      %v1226 = vpack.c.b16 %v1086, %v1079
      %v1227 = vpack.c.b16 %v1087, %v1080
      %v1228 = vpack.c.b16 %v1088, %v1081
      %v1229 = vpack.c.b16 %v1089, %v1082
      %v1230 = vpack.c.b16 %v1090, %v1083
      %v1231 = vpack.c.b16 %v1091, %v1084
      %v1232 = vpack.c.b16 %v1099, %v1092
      %v1233 = vpack.c.b16 %v1100, %v1093
      %v1234 = vpack.c.b16 %v1101, %v1094
      %v1235 = vpack.c.b16 %v1102, %v1095
      %v1236 = vpack.c.b16 %v1103, %v1096
      %v1237 = vpack.c.b16 %v1104, %v1097
      %v1238 = vpack.c.b16 %v1105, %v1098
      %v1239 = vpack.c.b16 %v1113, %v1106
      %v1240 = vpack.c.b16 %v1114, %v1107
      %v1241 = vpack.c.b16 %v1115, %v1108
      %v1242 = vpack.c.b16 %v1116, %v1109
      %v1243 = vpack.c.b16 %v1117, %v1110
      %v1244 = vpack.c.b16 %v1118, %v1111
      %v1245 = vpack.c.b16 %v1119, %v1112
      %v1246 = vpack.c.b16 %v1127, %v1120
      %v1247 = vpack.c.b16 %v1128, %v1121
      %v1248 = vpack.c.b16 %v1129, %v1122
      %v1249 = vpack.c.b16 %v1130, %v1123
      %v1250 = vpack.c.b16 %v1131, %v1124
      %v1251 = vpack.c.b16 %v1132, %v1125
      %v1252 = vpack.c.b16 %v1133, %v1126
      %v1253 = vpack.c.b16 %v1141, %v1134
      %v1254 = vpack.c.b16 %v1142, %v1135
      %v1255 = vpack.c.b16 %v1143, %v1136
      %v1256 = vpack.c.b16 %v1144, %v1137
      %v1257 = vpack.c.b16 %v1145, %v1138
      %v1258 = vpack.c.b16 %v1146, %v1139
      %v1259 = vpack.c.b16 %v1147, %v1140
      %v1454 = vunpack.c.l.b16 %v686
      %v1455 = vunpack.c.h.b16 %v686
      %v1456 = vunpack.c.l.b16 %v687
      %v1457 = vunpack.c.h.b16 %v687
      %v1458 = vunpack.c.l.b16 %v688
      %v1459 = vunpack.c.h.b16 %v688
      %v1460 = vunpack.c.l.b16 %v689
      %v1461 = vunpack.c.h.b16 %v689
      %v1462 = vunpack.c.l.b16 %v690
      %v1463 = vunpack.c.h.b16 %v690
      %v1464 = vunpack.c.l.b16 %v691
      %v1465 = vunpack.c.h.b16 %v691
      %v1466 = vunpack.c.l.b16 %v692
      %v1467 = vunpack.c.h.b16 %v692
      %v1468 = vunpack.c.l.b16 %v693
      %v1469 = vunpack.c.h.b16 %v693
      %v1470 = vunpack.c.l.b16 %v694
      %v1471 = vunpack.c.h.b16 %v694
      %v1472 = vunpack.c.l.b16 %v695
      %v1473 = vunpack.c.h.b16 %v695
      %v1474 = vunpack.c.l.b16 %v696
      %v1475 = vunpack.c.h.b16 %v696
      %v1476 = vunpack.c.l.b16 %v697
      %v1477 = vunpack.c.h.b16 %v697
      %v1478 = vunpack.c.l.b16 %v698
      %v1479 = vunpack.c.h.b16 %v698
      %v1480 = vunpack.c.l.b16 %v699
      %v1481 = vunpack.c.h.b16 %v699
      %v1482 = vunpack.c.l.b16 %v700
      %v1483 = vunpack.c.h.b16 %v700
      %v1484 = vunpack.c.l.b16 %v701
      %v1485 = vunpack.c.h.b16 %v701
      %v1486 = vunpack.c.l.b16 %v702
      %v1487 = vunpack.c.h.b16 %v702
      %v1488 = vunpack.c.l.b16 %v703
      %v1489 = vunpack.c.h.b16 %v703
      %v1490 = vunpack.c.l.b16 %v704
      %v1491 = vunpack.c.h.b16 %v704
      %v1492 = vunpack.c.l.b16 %v705
      %v1493 = vunpack.c.h.b16 %v705
      %v1494 = vunpack.c.l.b16 %v706
      %v1495 = vunpack.c.h.b16 %v706
      %v1496 = vunpack.c.l.b16 %v707
      %v1497 = vunpack.c.h.b16 %v707
      %v1498 = vunpack.c.l.b16 %v708
      %v1499 = vunpack.c.h.b16 %v708
      %v1500 = vunpack.c.l.b16 %v709
      %v1501 = vunpack.c.h.b16 %v709
      %v1502 = vunpack.c.l.b16 %v710
      %v1503 = vunpack.c.h.b16 %v710
      %v1504 = vunpack.c.l.b16 %v711
      %v1505 = vunpack.c.h.b16 %v711
      %v1506 = vunpack.c.l.b16 %v712
      %v1507 = vunpack.c.h.b16 %v712
      %v1508 = vunpack.c.l.b16 %v713
      %v1509 = vunpack.c.h.b16 %v713
      %v1510 = vunpack.c.l.b16 %v714
      %v1511 = vunpack.c.h.b16 %v714
      %v1512 = vunpack.c.l.b16 %v715
      %v1513 = vunpack.c.h.b16 %v715
      %v1514 = vunpack.c.l.b16 %v716
      %v1515 = vunpack.c.h.b16 %v716
      %v1516 = vunpack.c.l.b16 %v717
      %v1517 = vunpack.c.h.b16 %v717
      %v1518 = vunpack.c.l.b16 %v718
      %v1519 = vunpack.c.h.b16 %v718
      %v1520 = vunpack.c.l.b16 %v719
      %v1521 = vunpack.c.h.b16 %v719
      %v1522 = vunpack.c.l.b16 %v720
      %v1523 = vunpack.c.h.b16 %v720
      %v1524 = vunpack.c.l.b16 %v721
      %v1525 = vunpack.c.h.b16 %v721
      %v1526 = vunpack.c.l.b16 %v722
      %v1527 = vunpack.c.h.b16 %v722
      %v1528 = vunpack.c.l.b16 %v723
      %v1529 = vunpack.c.h.b16 %v723
      %v1530 = vunpack.c.l.b16 %v724
      %v1531 = vunpack.c.h.b16 %v724
      %v1532 = vunpack.c.l.b16 %v725
      %v1533 = vunpack.c.h.b16 %v725
      %v1534 = vunpack.c.l.b16 %v726
      %v1535 = vunpack.c.h.b16 %v726
      %v1536 = vunpack.c.l.b16 %v727
      %v1537 = vunpack.c.h.b16 %v727
      %v1538 = vunpack.c.l.b16 %v728
      %v1539 = vunpack.c.h.b16 %v728
      %v1540 = vunpack.c.l.b16 %v729
      %v1541 = vunpack.c.h.b16 %v729
      %v1542 = vunpack.c.l.b16 %v730
      %v1543 = vunpack.c.h.b16 %v730
      %v1544 = vunpack.c.l.b16 %v731
      %v1545 = vunpack.c.h.b16 %v731
      %v1546 = vunpack.c.l.b16 %v732
      %v1547 = vunpack.c.h.b16 %v732
      %v1548 = vunpack.c.l.b16 %v733
      %v1549 = vunpack.c.h.b16 %v733
      %v1550 = vunpack.c.l.b16 %v734
      %v1551 = vunpack.c.h.b16 %v734
      %v1552 = vunpack.c.l.b16 %v735
      %v1553 = vunpack.c.h.b16 %v735
      %v1554 = vunpack.c.l.b16 %v736
      %v1555 = vunpack.c.h.b16 %v736
      %v1556 = vunpack.c.l.b16 %v737
      %v1557 = vunpack.c.h.b16 %v737
      %v1558 = vunpack.c.l.b16 %v738
      %v1559 = vunpack.c.h.b16 %v738
      %v1560 = vunpack.c.l.b16 %v739
      %v1561 = vunpack.c.h.b16 %v739
      %v1562 = vunpack.c.l.b16 %v740
      %v1563 = vunpack.c.h.b16 %v740
      %v1564 = vunpack.c.l.b16 %v741
      %v1565 = vunpack.c.h.b16 %v741
      %v1566 = vunpack.c.l.b16 %v742
      %v1567 = vunpack.c.h.b16 %v742
      %v1568 = vunpack.c.l.b16 %v743
      %v1569 = vunpack.c.h.b16 %v743
      %v1570 = vunpack.c.l.b16 %v744
      %v1571 = vunpack.c.h.b16 %v744
      %v1572 = vunpack.c.l.b16 %v745
      %v1573 = vunpack.c.h.b16 %v745
      %v1574 = vunpack.c.l.b16 %v746
      %v1575 = vunpack.c.h.b16 %v746
      %v1576 = vunpack.c.l.b16 %v747
      %v1577 = vunpack.c.h.b16 %v747
      %v1578 = vunpack.c.l.b16 %v748
      %v1579 = vunpack.c.h.b16 %v748
      %v1580 = vunpack.c.l.b16 %v749
      %v1581 = vunpack.c.h.b16 %v749
      %v1582 = vunpack.c.l.b16 %v750
      %v1583 = vunpack.c.h.b16 %v750
      %v1584 = vunpack.c.l.b16 %v751
      %v1585 = vunpack.c.h.b16 %v751
      %v1586 = vunpack.c.l.b16 %v752
      %v1587 = vunpack.c.h.b16 %v752
      %v1588 = vunpack.c.l.b16 %v753
      %v1589 = vunpack.c.h.b16 %v753
      %v1590 = vunpack.c.l.b16 %v754
      %v1591 = vunpack.c.h.b16 %v754
      %v1592 = vunpack.c.l.b16 %v755
      %v1593 = vunpack.c.h.b16 %v755
      %v1594 = vunpack.c.l.b16 %v756
      %v1595 = vunpack.c.h.b16 %v756
      %v1596 = vunpack.c.l.b16 %v757
      %v1597 = vunpack.c.h.b16 %v757
      %v1598 = vunpack.c.l.b16 %v758
      %v1599 = vunpack.c.h.b16 %v758
      %v1600 = vunpack.c.l.b16 %v759
      %v1601 = vunpack.c.h.b16 %v759
      %v1602 = vunpack.c.l.b16 %v760
      %v1603 = vunpack.c.h.b16 %v760
      %v1604 = vunpack.c.l.b16 %v761
      %v1605 = vunpack.c.h.b16 %v761
      %v1606 = vunpack.c.l.b16 %v762
      %v1607 = vunpack.c.h.b16 %v762
      %v1608 = vunpack.c.l.b16 %v763
      %v1609 = vunpack.c.h.b16 %v763
      %v1610 = vunpack.c.l.b16 %v764
      %v1611 = vunpack.c.h.b16 %v764
      %v1612 = vunpack.c.l.b16 %v765
      %v1613 = vunpack.c.h.b16 %v765
      %v1614 = vunpack.c.l.b16 %v766
      %v1615 = vunpack.c.h.b16 %v766
      %v1616 = vunpack.c.l.b16 %v767
      %v1617 = vunpack.c.h.b16 %v767
      %v1618 = vunpack.c.l.b16 %v768
      %v1619 = vunpack.c.h.b16 %v768
      %v1620 = vunpack.c.l.b16 %v769
      %v1621 = vunpack.c.h.b16 %v769
      %v1622 = vunpack.c.l.b16 %v770
      %v1623 = vunpack.c.h.b16 %v770
      %v1624 = vunpack.c.l.b16 %v771
      %v1625 = vunpack.c.h.b16 %v771
      %v1626 = vunpack.c.l.b16 %v772
      %v1627 = vunpack.c.h.b16 %v772
      %v1628 = vunpack.c.l.b16 %v773
      %v1629 = vunpack.c.h.b16 %v773
      %v1630 = vunpack.c.l.b16 %v774
      %v1631 = vunpack.c.h.b16 %v774
      %v1632 = vunpack.c.l.b16 %v775
      %v1633 = vunpack.c.h.b16 %v775
      %v1634 = vunpack.c.l.b16 %v776
      %v1635 = vunpack.c.h.b16 %v776
      %v1636 = vunpack.c.l.b16 %v777
      %v1637 = vunpack.c.h.b16 %v777
      %v1638 = vunpack.c.l.b16 %v778
      %v1639 = vunpack.c.h.b16 %v778
      %v1640 = vunpack.c.l.b16 %v779
      %v1641 = vunpack.c.h.b16 %v779
      %v1642 = vunpack.c.l.b16 %v780
      %v1643 = vunpack.c.h.b16 %v780
      %v1644 = vunpack.c.l.b16 %v781
      %v1645 = vunpack.c.h.b16 %v781
      %v1646 = vunpack.c.l.b16 %v782
      %v1647 = vunpack.c.h.b16 %v782
      %v1648 = vunpack.c.l.b16 %v783
      %v1649 = vunpack.c.h.b16 %v783
      %v1650 = vpack.c.b16 %v1456, %v1454
      %v1651 = vpack.c.b16 %v1457, %v1455
      %v1652 = vpack.c.b16 %v1460, %v1458
      %v1653 = vpack.c.b16 %v1461, %v1459
      %v1654 = vpack.c.b16 %v1464, %v1462
      %v1655 = vpack.c.b16 %v1465, %v1463
      %v1656 = vpack.c.b16 %v1468, %v1466
      %v1657 = vpack.c.b16 %v1469, %v1467
      %v1658 = vpack.c.b16 %v1472, %v1470
      %v1659 = vpack.c.b16 %v1473, %v1471
      %v1660 = vpack.c.b16 %v1476, %v1474
      %v1661 = vpack.c.b16 %v1477, %v1475
      %v1662 = vpack.c.b16 %v1480, %v1478
      %v1663 = vpack.c.b16 %v1481, %v1479
      %v1664 = vpack.c.b16 %v1484, %v1482
      %v1665 = vpack.c.b16 %v1485, %v1483
      %v1666 = vpack.c.b16 %v1488, %v1486
      %v1667 = vpack.c.b16 %v1489, %v1487
      %v1668 = vpack.c.b16 %v1492, %v1490
      %v1669 = vpack.c.b16 %v1493, %v1491
      %v1670 = vpack.c.b16 %v1496, %v1494
      %v1671 = vpack.c.b16 %v1497, %v1495
      %v1672 = vpack.c.b16 %v1500, %v1498
      %v1673 = vpack.c.b16 %v1501, %v1499
      %v1674 = vpack.c.b16 %v1504, %v1502
      %v1675 = vpack.c.b16 %v1505, %v1503
      %v1676 = vpack.c.b16 %v1508, %v1506
      %v1677 = vpack.c.b16 %v1509, %v1507
      %v1678 = vpack.c.b16 %v1512, %v1510
      %v1679 = vpack.c.b16 %v1513, %v1511
      %v1680 = vpack.c.b16 %v1516, %v1514
      %v1681 = vpack.c.b16 %v1517, %v1515
      %v1682 = vpack.c.b16 %v1520, %v1518
      %v1683 = vpack.c.b16 %v1521, %v1519
      %v1684 = vpack.c.b16 %v1524, %v1522
      %v1685 = vpack.c.b16 %v1525, %v1523
      %v1686 = vpack.c.b16 %v1528, %v1526
      %v1687 = vpack.c.b16 %v1529, %v1527
      %v1688 = vpack.c.b16 %v1532, %v1530
      %v1689 = vpack.c.b16 %v1533, %v1531
      %v1690 = vpack.c.b16 %v1536, %v1534
      %v1691 = vpack.c.b16 %v1537, %v1535
      %v1692 = vpack.c.b16 %v1540, %v1538
      %v1693 = vpack.c.b16 %v1541, %v1539
      %v1694 = vpack.c.b16 %v1544, %v1542
      %v1695 = vpack.c.b16 %v1545, %v1543
      %v1696 = vpack.c.b16 %v1548, %v1546
      %v1697 = vpack.c.b16 %v1549, %v1547
      %v1698 = vpack.c.b16 %v1552, %v1550
      %v1699 = vpack.c.b16 %v1553, %v1551
      %v1700 = vpack.c.b16 %v1556, %v1554
      %v1701 = vpack.c.b16 %v1557, %v1555
      %v1702 = vpack.c.b16 %v1560, %v1558
      %v1703 = vpack.c.b16 %v1561, %v1559
      %v1704 = vpack.c.b16 %v1564, %v1562
      %v1705 = vpack.c.b16 %v1565, %v1563
      %v1706 = vpack.c.b16 %v1568, %v1566
      %v1707 = vpack.c.b16 %v1569, %v1567
      %v1708 = vpack.c.b16 %v1572, %v1570
      %v1709 = vpack.c.b16 %v1573, %v1571
      %v1710 = vpack.c.b16 %v1576, %v1574
      %v1711 = vpack.c.b16 %v1577, %v1575
      %v1712 = vpack.c.b16 %v1580, %v1578
      %v1713 = vpack.c.b16 %v1581, %v1579
      %v1714 = vpack.c.b16 %v1584, %v1582
      %v1715 = vpack.c.b16 %v1585, %v1583
      %v1716 = vpack.c.b16 %v1588, %v1586
      %v1717 = vpack.c.b16 %v1589, %v1587
      %v1718 = vpack.c.b16 %v1592, %v1590
      %v1719 = vpack.c.b16 %v1593, %v1591
      %v1720 = vpack.c.b16 %v1596, %v1594
      %v1721 = vpack.c.b16 %v1597, %v1595
      %v1722 = vpack.c.b16 %v1600, %v1598
      %v1723 = vpack.c.b16 %v1601, %v1599
      %v1724 = vpack.c.b16 %v1604, %v1602
      %v1725 = vpack.c.b16 %v1605, %v1603
      %v1726 = vpack.c.b16 %v1608, %v1606
      %v1727 = vpack.c.b16 %v1609, %v1607
      %v1728 = vpack.c.b16 %v1612, %v1610
      %v1729 = vpack.c.b16 %v1613, %v1611
      %v1730 = vpack.c.b16 %v1616, %v1614
      %v1731 = vpack.c.b16 %v1617, %v1615
      %v1732 = vpack.c.b16 %v1620, %v1618
      %v1733 = vpack.c.b16 %v1621, %v1619
      %v1734 = vpack.c.b16 %v1624, %v1622
      %v1735 = vpack.c.b16 %v1625, %v1623
      %v1736 = vpack.c.b16 %v1628, %v1626
      %v1737 = vpack.c.b16 %v1629, %v1627
      %v1738 = vpack.c.b16 %v1632, %v1630
      %v1739 = vpack.c.b16 %v1633, %v1631
      %v1740 = vpack.c.b16 %v1636, %v1634
      %v1741 = vpack.c.b16 %v1637, %v1635
      %v1742 = vpack.c.b16 %v1640, %v1638
      %v1743 = vpack.c.b16 %v1641, %v1639
      %v1744 = vpack.c.b16 %v1644, %v1642
      %v1745 = vpack.c.b16 %v1645, %v1643
      %v1746 = vpack.c.b16 %v1648, %v1646
      %v1747 = vpack.c.b16 %v1649, %v1647
      %vm1846 = vcmask 130048
      %v1848 = vsel %vm1846, %v1154, 0
      %v1851 = vsel %vm1846, %v1161, 0
      %v1854 = vsel %vm1846, %v1168, 0
      %v1857 = vsel %vm1846, %v1175, 0
      %v1860 = vsel %vm1846, %v1182, 0
      %v1863 = vsel %vm1846, %v1189, 0
      %v1866 = vsel %vm1846, %v1196, 0
      %v1869 = vsel %vm1846, %v1203, 0
      %v1872 = vsel %vm1846, %v1210, 0
      %v1875 = vsel %vm1846, %v1217, 0
      %v1878 = vsel %vm1846, %v1224, 0
      %v1881 = vsel %vm1846, %v1231, 0
      %v1884 = vsel %vm1846, %v1238, 0
      %v1887 = vsel %vm1846, %v1245, 0
      %v1890 = vsel %vm1846, %v1252, 0
      %v1893 = vsel %vm1846, %v1259, 0
      %1895 = vmatprep.subr.bf16.mxu0 %v1651
      %1896 = vmatpush1.bf16.msra.mxu0 %v1650
      %1897 = vmatprep.subr.bf16.mxu0 %v1653
      %1898 = vmatpush1.bf16.msra.mxu0 %v1652
      %1899 = vmatprep.subr.bf16.mxu0 %v1655
      %1900 = vmatpush1.bf16.msra.mxu0 %v1654
      %1901 = vmatprep.subr.bf16.mxu0 %v1657
      %1902 = vmatpush1.bf16.msra.mxu0 %v1656
      %1903 = vmatprep.subr.bf16.mxu0 %v1659
      %1904 = vmatpush1.bf16.msra.mxu0 %v1658
      %1905 = vmatprep.subr.bf16.mxu0 %v1661
      %1906 = vmatpush1.bf16.msra.mxu0 %v1660
      %1907 = vmatprep.subr.bf16.mxu0 %v1663
      %1908 = vmatpush1.bf16.msra.mxu0 %v1662
      %1909 = vmatprep.subr.bf16.mxu0 %v1665
      %1910 = vmatpush1.bf16.msra.mxu0 %v1664
      %1911 = vmatprep.subr.bf16.mxu0 %v1667
      %1912 = vmatpush1.bf16.msra.mxu0 %v1666
      %1913 = vmatprep.subr.bf16.mxu0 %v1669
      %1914 = vmatpush1.bf16.msra.mxu0 %v1668
      %1915 = vmatprep.subr.bf16.mxu0 %v1671
      %1916 = vmatpush1.bf16.msra.mxu0 %v1670
      %1917 = vmatprep.subr.bf16.mxu0 %v1673
      %1918 = vmatpush1.bf16.msra.mxu0 %v1672
      %1919 = vmatprep.subr.bf16.mxu0 %v1675
      %1920 = vmatpush1.bf16.msra.mxu0 %v1674
      %1921 = vmatprep.subr.bf16.mxu0 %v1677
      %1922 = vmatpush1.bf16.msra.mxu0 %v1676
      %1923 = vmatprep.subr.bf16.mxu0 %v1679
      %1924 = vmatpush1.bf16.msra.mxu0 %v1678
      %1925 = vmatprep.subr.bf16.mxu0 %v1681
      %1926 = vmatpush1.bf16.msra.mxu0 %v1680
      %1927 = vmatprep.mubr.bf16.mxu0 %v1149
      %1928 = vmatmul.mubr.bf16.gmra.mrb[0].mxu0 %v1148
      %v1929 = vpop.f32.mrb[0].mxu0
      %v1930 = vadd.f32 %v789, %v1929
      %v1931 = vpop.f32.mrb[0].mxu0
      %v1932 = vadd.f32 %v793, %v1931
      %v1933 = vpop.f32.mrb[0].mxu0
      %v1934 = vadd.f32 %v789, %v1933
      %v1935 = vpop.f32.mrb[0].mxu0
      %v1936 = vadd.f32 %v793, %v1935
      %1937 = vmatprep.mubr.bf16.mxu0 %v1156
      %1938 = vmatmul.mubr.bf16.gmra.mrb[0].mxu0 %v1155
      %v1939 = vpop.f32.mrb[0].mxu0
      %v1940 = vadd.f32 %v789, %v1939
      %v1941 = vpop.f32.mrb[0].mxu0
      %v1942 = vadd.f32 %v793, %v1941
      %v1943 = vpop.f32.mrb[0].mxu0
      %v1944 = vadd.f32 %v789, %v1943
      %v1945 = vpop.f32.mrb[0].mxu0
      %v1946 = vadd.f32 %v793, %v1945
      %1947 = vmatprep.mubr.bf16.mxu0 %v1163
      %1948 = vmatmul.mubr.bf16.gmra.mrb[0].mxu0 %v1162
      %v1949 = vpop.f32.mrb[0].mxu0
      %v1950 = vadd.f32 %v789, %v1949
      %v1951 = vpop.f32.mrb[0].mxu0
      %v1952 = vadd.f32 %v793, %v1951
      %v1953 = vpop.f32.mrb[0].mxu0
      %v1954 = vadd.f32 %v789, %v1953
      %v1955 = vpop.f32.mrb[0].mxu0
      %v1956 = vadd.f32 %v793, %v1955
      %1957 = vmatprep.mubr.bf16.mxu0 %v1170
      %1958 = vmatmul.mubr.bf16.gmra.mrb[0].mxu0 %v1169
      %v1959 = vpop.f32.mrb[0].mxu0
      %v1960 = vadd.f32 %v789, %v1959
      %v1961 = vpop.f32.mrb[0].mxu0
      %v1962 = vadd.f32 %v793, %v1961
      %v1963 = vpop.f32.mrb[0].mxu0
      %v1964 = vadd.f32 %v789, %v1963
      %v1965 = vpop.f32.mrb[0].mxu0
      %v1966 = vadd.f32 %v793, %v1965
      %1967 = vmatprep.mubr.bf16.mxu0 %v1177
      %1968 = vmatmul.mubr.bf16.gmra.mrb[0].mxu0 %v1176
      %v1969 = vpop.f32.mrb[0].mxu0
      %v1970 = vadd.f32 %v789, %v1969
      %v1971 = vpop.f32.mrb[0].mxu0
      %v1972 = vadd.f32 %v793, %v1971
      %v1973 = vpop.f32.mrb[0].mxu0
      %v1974 = vadd.f32 %v789, %v1973
      %v1975 = vpop.f32.mrb[0].mxu0
      %v1976 = vadd.f32 %v793, %v1975
      %1977 = vmatprep.mubr.bf16.mxu0 %v1184
      %1978 = vmatmul.mubr.bf16.gmra.mrb[0].mxu0 %v1183
      %v1979 = vpop.f32.mrb[0].mxu0
      %v1980 = vadd.f32 %v789, %v1979
      %v1981 = vpop.f32.mrb[0].mxu0
      %v1982 = vadd.f32 %v793, %v1981
      %v1983 = vpop.f32.mrb[0].mxu0
      %v1984 = vadd.f32 %v789, %v1983
      %v1985 = vpop.f32.mrb[0].mxu0
      %v1986 = vadd.f32 %v793, %v1985
      %1987 = vmatprep.mubr.bf16.mxu0 %v1191
      %1988 = vmatmul.mubr.bf16.gmra.mrb[0].mxu0 %v1190
      %v1989 = vpop.f32.mrb[0].mxu0
      %v1990 = vadd.f32 %v789, %v1989
      %v1991 = vpop.f32.mrb[0].mxu0
      %v1992 = vadd.f32 %v793, %v1991
      %v1993 = vpop.f32.mrb[0].mxu0
      %v1994 = vadd.f32 %v789, %v1993
      %v1995 = vpop.f32.mrb[0].mxu0
      %v1996 = vadd.f32 %v793, %v1995
      %1997 = vmatprep.mubr.bf16.mxu0 %v1198
      %1998 = vmatmul.mubr.bf16.gmra.mrb[0].mxu0 %v1197
      %v1999 = vpop.f32.mrb[0].mxu0
      %v2000 = vadd.f32 %v789, %v1999
      %v2001 = vpop.f32.mrb[0].mxu0
      %v2002 = vadd.f32 %v793, %v2001
      %v2003 = vpop.f32.mrb[0].mxu0
      %v2004 = vadd.f32 %v789, %v2003
      %v2005 = vpop.f32.mrb[0].mxu0
      %v2006 = vadd.f32 %v793, %v2005
      %2007 = vmatprep.mubr.bf16.mxu0 %v1205
      %2008 = vmatmul.mubr.bf16.gmra.mrb[0].mxu0 %v1204
      %v2009 = vpop.f32.mrb[0].mxu0
      %v2010 = vadd.f32 %v789, %v2009
      %v2011 = vpop.f32.mrb[0].mxu0
      %v2012 = vadd.f32 %v793, %v2011
      %v2013 = vpop.f32.mrb[0].mxu0
      %v2014 = vadd.f32 %v789, %v2013
      %v2015 = vpop.f32.mrb[0].mxu0
      %v2016 = vadd.f32 %v793, %v2015
      %2017 = vmatprep.mubr.bf16.mxu0 %v1212
      %2018 = vmatmul.mubr.bf16.gmra.mrb[0].mxu0 %v1211
      %v2019 = vpop.f32.mrb[0].mxu0
      %v2020 = vadd.f32 %v789, %v2019
      %v2021 = vpop.f32.mrb[0].mxu0
      %v2022 = vadd.f32 %v793, %v2021
      %v2023 = vpop.f32.mrb[0].mxu0
      %v2024 = vadd.f32 %v789, %v2023
      %v2025 = vpop.f32.mrb[0].mxu0
      %v2026 = vadd.f32 %v793, %v2025
      %2027 = vmatprep.mubr.bf16.mxu0 %v1219
      %2028 = vmatmul.mubr.bf16.gmra.mrb[0].mxu0 %v1218
      %v2029 = vpop.f32.mrb[0].mxu0
      %v2030 = vadd.f32 %v789, %v2029
      %v2031 = vpop.f32.mrb[0].mxu0
      %v2032 = vadd.f32 %v793, %v2031
      %v2033 = vpop.f32.mrb[0].mxu0
      %v2034 = vadd.f32 %v789, %v2033
      %v2035 = vpop.f32.mrb[0].mxu0
      %v2036 = vadd.f32 %v793, %v2035
      %2037 = vmatprep.mubr.bf16.mxu0 %v1226
      %2038 = vmatmul.mubr.bf16.gmra.mrb[0].mxu0 %v1225
      %v2039 = vpop.f32.mrb[0].mxu0
      %v2040 = vadd.f32 %v789, %v2039
      %v2041 = vpop.f32.mrb[0].mxu0
      %v2042 = vadd.f32 %v793, %v2041
      %v2043 = vpop.f32.mrb[0].mxu0
      %v2044 = vadd.f32 %v789, %v2043
      %v2045 = vpop.f32.mrb[0].mxu0
      %v2046 = vadd.f32 %v793, %v2045
      %2047 = vmatprep.mubr.bf16.mxu0 %v1233
      %2048 = vmatmul.mubr.bf16.gmra.mrb[0].mxu0 %v1232
      %v2049 = vpop.f32.mrb[0].mxu0
      %v2050 = vadd.f32 %v789, %v2049
      %v2051 = vpop.f32.mrb[0].mxu0
      %v2052 = vadd.f32 %v793, %v2051
      %v2053 = vpop.f32.mrb[0].mxu0
      %v2054 = vadd.f32 %v789, %v2053
      %v2055 = vpop.f32.mrb[0].mxu0
      %v2056 = vadd.f32 %v793, %v2055
      %2057 = vmatprep.mubr.bf16.mxu0 %v1240
      %2058 = vmatmul.mubr.bf16.gmra.mrb[0].mxu0 %v1239
      %v2059 = vpop.f32.mrb[0].mxu0
      %v2060 = vadd.f32 %v789, %v2059
      %v2061 = vpop.f32.mrb[0].mxu0
      %v2062 = vadd.f32 %v793, %v2061
      %v2063 = vpop.f32.mrb[0].mxu0
      %v2064 = vadd.f32 %v789, %v2063
      %v2065 = vpop.f32.mrb[0].mxu0
      %v2066 = vadd.f32 %v793, %v2065
      %2067 = vmatprep.mubr.bf16.mxu0 %v1247
      %2068 = vmatmul.mubr.bf16.gmra.mrb[0].mxu0 %v1246
      %v2069 = vpop.f32.mrb[0].mxu0
      %v2070 = vadd.f32 %v789, %v2069
      %v2071 = vpop.f32.mrb[0].mxu0
      %v2072 = vadd.f32 %v793, %v2071
      %v2073 = vpop.f32.mrb[0].mxu0
      %v2074 = vadd.f32 %v789, %v2073
      %v2075 = vpop.f32.mrb[0].mxu0
      %v2076 = vadd.f32 %v793, %v2075
      %2077 = vmatprep.mubr.bf16.mxu0 %v1254
      %2078 = vmatmul.mubr.bf16.gmra.mrb[0].mxu0 %v1253
      %v2079 = vpop.f32.mrb[0].mxu0
      %v2080 = vadd.f32 %v789, %v2079
      %v2081 = vpop.f32.mrb[0].mxu0
      %v2082 = vadd.f32 %v793, %v2081
      %v2083 = vpop.f32.mrb[0].mxu0
      %v2084 = vadd.f32 %v789, %v2083
      %v2085 = vpop.f32.mrb[0].mxu0
      %v2086 = vadd.f32 %v793, %v2085
      %2087 = vdwg.mxu0
      %2088 = vmatprep.subr.bf16.mxu0 %v1683
      %2089 = vmatpush1.bf16.msra.mxu0 %v1682
      %2090 = vmatprep.subr.bf16.mxu0 %v1685
      %2091 = vmatpush1.bf16.msra.mxu0 %v1684
      %2092 = vmatprep.subr.bf16.mxu0 %v1687
      %2093 = vmatpush1.bf16.msra.mxu0 %v1686
      %2094 = vmatprep.subr.bf16.mxu0 %v1689
      %2095 = vmatpush1.bf16.msra.mxu0 %v1688
      %2096 = vmatprep.subr.bf16.mxu0 %v1691
      %2097 = vmatpush1.bf16.msra.mxu0 %v1690
      %2098 = vmatprep.subr.bf16.mxu0 %v1693
      %2099 = vmatpush1.bf16.msra.mxu0 %v1692
      %2100 = vmatprep.subr.bf16.mxu0 %v1695
      %2101 = vmatpush1.bf16.msra.mxu0 %v1694
      %2102 = vmatprep.subr.bf16.mxu0 %v1697
      %2103 = vmatpush1.bf16.msra.mxu0 %v1696
      %2104 = vmatprep.subr.bf16.mxu0 %v1699
      %2105 = vmatpush1.bf16.msra.mxu0 %v1698
      %2106 = vmatprep.subr.bf16.mxu0 %v1701
      %2107 = vmatpush1.bf16.msra.mxu0 %v1700
      %2108 = vmatprep.subr.bf16.mxu0 %v1703
      %2109 = vmatpush1.bf16.msra.mxu0 %v1702
      %2110 = vmatprep.subr.bf16.mxu0 %v1705
      %2111 = vmatpush1.bf16.msra.mxu0 %v1704
      %2112 = vmatprep.subr.bf16.mxu0 %v1707
      %2113 = vmatpush1.bf16.msra.mxu0 %v1706
      %2114 = vmatprep.subr.bf16.mxu0 %v1709
      %2115 = vmatpush1.bf16.msra.mxu0 %v1708
      %2116 = vmatprep.subr.bf16.mxu0 %v1711
      %2117 = vmatpush1.bf16.msra.mxu0 %v1710
      %2118 = vmatprep.subr.bf16.mxu0 %v1713
      %2119 = vmatpush1.bf16.msra.mxu0 %v1712
      %2120 = vmatprep.mubr.bf16.mxu0 %v1151
      %2121 = vmatmul.mubr.bf16.gmra.mrb[0].mxu0 %v1150
      %v2122 = vpop.f32.mrb[0].mxu0
      %v2123 = vadd.f32 %v1930, %v2122
      %v2124 = vpop.f32.mrb[0].mxu0
      %v2125 = vadd.f32 %v1932, %v2124
      %v2126 = vpop.f32.mrb[0].mxu0
      %v2127 = vadd.f32 %v1934, %v2126
      %v2128 = vpop.f32.mrb[0].mxu0
      %v2129 = vadd.f32 %v1936, %v2128
      %2130 = vmatprep.mubr.bf16.mxu0 %v1158
      %2131 = vmatmul.mubr.bf16.gmra.mrb[0].mxu0 %v1157
      %v2132 = vpop.f32.mrb[0].mxu0
      %v2133 = vadd.f32 %v1940, %v2132
      %v2134 = vpop.f32.mrb[0].mxu0
      %v2135 = vadd.f32 %v1942, %v2134
      %v2136 = vpop.f32.mrb[0].mxu0
      %v2137 = vadd.f32 %v1944, %v2136
      %v2138 = vpop.f32.mrb[0].mxu0
      %v2139 = vadd.f32 %v1946, %v2138
      %2140 = vmatprep.mubr.bf16.mxu0 %v1165
      %2141 = vmatmul.mubr.bf16.gmra.mrb[0].mxu0 %v1164
      %v2142 = vpop.f32.mrb[0].mxu0
      %v2143 = vadd.f32 %v1950, %v2142
      %v2144 = vpop.f32.mrb[0].mxu0
      %v2145 = vadd.f32 %v1952, %v2144
      %v2146 = vpop.f32.mrb[0].mxu0
      %v2147 = vadd.f32 %v1954, %v2146
      %v2148 = vpop.f32.mrb[0].mxu0
      %v2149 = vadd.f32 %v1956, %v2148
      %2150 = vmatprep.mubr.bf16.mxu0 %v1172
      %2151 = vmatmul.mubr.bf16.gmra.mrb[0].mxu0 %v1171
      %v2152 = vpop.f32.mrb[0].mxu0
      %v2153 = vadd.f32 %v1960, %v2152
      %v2154 = vpop.f32.mrb[0].mxu0
      %v2155 = vadd.f32 %v1962, %v2154
      %v2156 = vpop.f32.mrb[0].mxu0
      %v2157 = vadd.f32 %v1964, %v2156
      %v2158 = vpop.f32.mrb[0].mxu0
      %v2159 = vadd.f32 %v1966, %v2158
      %2160 = vmatprep.mubr.bf16.mxu0 %v1179
      %2161 = vmatmul.mubr.bf16.gmra.mrb[0].mxu0 %v1178
      %v2162 = vpop.f32.mrb[0].mxu0
      %v2163 = vadd.f32 %v1970, %v2162
      %v2164 = vpop.f32.mrb[0].mxu0
      %v2165 = vadd.f32 %v1972, %v2164
      %v2166 = vpop.f32.mrb[0].mxu0
      %v2167 = vadd.f32 %v1974, %v2166
      %v2168 = vpop.f32.mrb[0].mxu0
      %v2169 = vadd.f32 %v1976, %v2168
      %2170 = vmatprep.mubr.bf16.mxu0 %v1186
      %2171 = vmatmul.mubr.bf16.gmra.mrb[0].mxu0 %v1185
      %v2172 = vpop.f32.mrb[0].mxu0
      %v2173 = vadd.f32 %v1980, %v2172
      %v2174 = vpop.f32.mrb[0].mxu0
      %v2175 = vadd.f32 %v1982, %v2174
      %v2176 = vpop.f32.mrb[0].mxu0
      %v2177 = vadd.f32 %v1984, %v2176
      %v2178 = vpop.f32.mrb[0].mxu0
      %v2179 = vadd.f32 %v1986, %v2178
      %2180 = vmatprep.mubr.bf16.mxu0 %v1193
      %2181 = vmatmul.mubr.bf16.gmra.mrb[0].mxu0 %v1192
      %v2182 = vpop.f32.mrb[0].mxu0
      %v2183 = vadd.f32 %v1990, %v2182
      %v2184 = vpop.f32.mrb[0].mxu0
      %v2185 = vadd.f32 %v1992, %v2184
      %v2186 = vpop.f32.mrb[0].mxu0
      %v2187 = vadd.f32 %v1994, %v2186
      %v2188 = vpop.f32.mrb[0].mxu0
      %v2189 = vadd.f32 %v1996, %v2188
      %2190 = vmatprep.mubr.bf16.mxu0 %v1200
      %2191 = vmatmul.mubr.bf16.gmra.mrb[0].mxu0 %v1199
      %v2192 = vpop.f32.mrb[0].mxu0
      %v2193 = vadd.f32 %v2000, %v2192
      %v2194 = vpop.f32.mrb[0].mxu0
      %v2195 = vadd.f32 %v2002, %v2194
      %v2196 = vpop.f32.mrb[0].mxu0
      %v2197 = vadd.f32 %v2004, %v2196
      %v2198 = vpop.f32.mrb[0].mxu0
      %v2199 = vadd.f32 %v2006, %v2198
      %2200 = vmatprep.mubr.bf16.mxu0 %v1207
      %2201 = vmatmul.mubr.bf16.gmra.mrb[0].mxu0 %v1206
      %v2202 = vpop.f32.mrb[0].mxu0
      %v2203 = vadd.f32 %v2010, %v2202
      %v2204 = vpop.f32.mrb[0].mxu0
      %v2205 = vadd.f32 %v2012, %v2204
      %v2206 = vpop.f32.mrb[0].mxu0
      %v2207 = vadd.f32 %v2014, %v2206
      %v2208 = vpop.f32.mrb[0].mxu0
      %v2209 = vadd.f32 %v2016, %v2208
      %2210 = vmatprep.mubr.bf16.mxu0 %v1214
      %2211 = vmatmul.mubr.bf16.gmra.mrb[0].mxu0 %v1213
      %v2212 = vpop.f32.mrb[0].mxu0
      %v2213 = vadd.f32 %v2020, %v2212
      %v2214 = vpop.f32.mrb[0].mxu0
      %v2215 = vadd.f32 %v2022, %v2214
      %v2216 = vpop.f32.mrb[0].mxu0
      %v2217 = vadd.f32 %v2024, %v2216
      %v2218 = vpop.f32.mrb[0].mxu0
      %v2219 = vadd.f32 %v2026, %v2218
      %2220 = vmatprep.mubr.bf16.mxu0 %v1221
      %2221 = vmatmul.mubr.bf16.gmra.mrb[0].mxu0 %v1220
      %v2222 = vpop.f32.mrb[0].mxu0
      %v2223 = vadd.f32 %v2030, %v2222
      %v2224 = vpop.f32.mrb[0].mxu0
      %v2225 = vadd.f32 %v2032, %v2224
      %v2226 = vpop.f32.mrb[0].mxu0
      %v2227 = vadd.f32 %v2034, %v2226
      %v2228 = vpop.f32.mrb[0].mxu0
      %v2229 = vadd.f32 %v2036, %v2228
      %2230 = vmatprep.mubr.bf16.mxu0 %v1228
      %2231 = vmatmul.mubr.bf16.gmra.mrb[0].mxu0 %v1227
      %v2232 = vpop.f32.mrb[0].mxu0
      %v2233 = vadd.f32 %v2040, %v2232
      %v2234 = vpop.f32.mrb[0].mxu0
      %v2235 = vadd.f32 %v2042, %v2234
      %v2236 = vpop.f32.mrb[0].mxu0
      %v2237 = vadd.f32 %v2044, %v2236
      %v2238 = vpop.f32.mrb[0].mxu0
      %v2239 = vadd.f32 %v2046, %v2238
      %2240 = vmatprep.mubr.bf16.mxu0 %v1235
      %2241 = vmatmul.mubr.bf16.gmra.mrb[0].mxu0 %v1234
      %v2242 = vpop.f32.mrb[0].mxu0
      %v2243 = vadd.f32 %v2050, %v2242
      %v2244 = vpop.f32.mrb[0].mxu0
      %v2245 = vadd.f32 %v2052, %v2244
      %v2246 = vpop.f32.mrb[0].mxu0
      %v2247 = vadd.f32 %v2054, %v2246
      %v2248 = vpop.f32.mrb[0].mxu0
      %v2249 = vadd.f32 %v2056, %v2248
      %2250 = vmatprep.mubr.bf16.mxu0 %v1242
      %2251 = vmatmul.mubr.bf16.gmra.mrb[0].mxu0 %v1241
      %v2252 = vpop.f32.mrb[0].mxu0
      %v2253 = vadd.f32 %v2060, %v2252
      %v2254 = vpop.f32.mrb[0].mxu0
      %v2255 = vadd.f32 %v2062, %v2254
      %v2256 = vpop.f32.mrb[0].mxu0
      %v2257 = vadd.f32 %v2064, %v2256
      %v2258 = vpop.f32.mrb[0].mxu0
      %v2259 = vadd.f32 %v2066, %v2258
      %2260 = vmatprep.mubr.bf16.mxu0 %v1249
      %2261 = vmatmul.mubr.bf16.gmra.mrb[0].mxu0 %v1248
      %v2262 = vpop.f32.mrb[0].mxu0
      %v2263 = vadd.f32 %v2070, %v2262
      %v2264 = vpop.f32.mrb[0].mxu0
      %v2265 = vadd.f32 %v2072, %v2264
      %v2266 = vpop.f32.mrb[0].mxu0
      %v2267 = vadd.f32 %v2074, %v2266
      %v2268 = vpop.f32.mrb[0].mxu0
      %v2269 = vadd.f32 %v2076, %v2268
      %2270 = vmatprep.mubr.bf16.mxu0 %v1256
      %2271 = vmatmul.mubr.bf16.gmra.mrb[0].mxu0 %v1255
      %v2272 = vpop.f32.mrb[0].mxu0
      %v2273 = vadd.f32 %v2080, %v2272
      %v2274 = vpop.f32.mrb[0].mxu0
      %v2275 = vadd.f32 %v2082, %v2274
      %v2276 = vpop.f32.mrb[0].mxu0
      %v2277 = vadd.f32 %v2084, %v2276
      %v2278 = vpop.f32.mrb[0].mxu0
      %v2279 = vadd.f32 %v2086, %v2278
      %2280 = vdwg.mxu0
      %2281 = vmatprep.subr.bf16.mxu0 %v1715
      %2282 = vmatpush1.bf16.msra.mxu0 %v1714
      %2283 = vmatprep.subr.bf16.mxu0 %v1717
      %2284 = vmatpush1.bf16.msra.mxu0 %v1716
      %2285 = vmatprep.subr.bf16.mxu0 %v1719
      %2286 = vmatpush1.bf16.msra.mxu0 %v1718
      %2287 = vmatprep.subr.bf16.mxu0 %v1721
      %2288 = vmatpush1.bf16.msra.mxu0 %v1720
      %2289 = vmatprep.subr.bf16.mxu0 %v1723
      %2290 = vmatpush1.bf16.msra.mxu0 %v1722
      %2291 = vmatprep.subr.bf16.mxu0 %v1725
      %2292 = vmatpush1.bf16.msra.mxu0 %v1724
      %2293 = vmatprep.subr.bf16.mxu0 %v1727
      %2294 = vmatpush1.bf16.msra.mxu0 %v1726
      %2295 = vmatprep.subr.bf16.mxu0 %v1729
      %2296 = vmatpush1.bf16.msra.mxu0 %v1728
      %2297 = vmatprep.subr.bf16.mxu0 %v1731
      %2298 = vmatpush1.bf16.msra.mxu0 %v1730
      %2299 = vmatprep.subr.bf16.mxu0 %v1733
      %2300 = vmatpush1.bf16.msra.mxu0 %v1732
      %2301 = vmatprep.subr.bf16.mxu0 %v1735
      %2302 = vmatpush1.bf16.msra.mxu0 %v1734
      %2303 = vmatprep.subr.bf16.mxu0 %v1737
      %2304 = vmatpush1.bf16.msra.mxu0 %v1736
      %2305 = vmatprep.subr.bf16.mxu0 %v1739
      %2306 = vmatpush1.bf16.msra.mxu0 %v1738
      %2307 = vmatprep.subr.bf16.mxu0 %v1741
      %2308 = vmatpush1.bf16.msra.mxu0 %v1740
      %2309 = vmatprep.subr.bf16.mxu0 %v1743
      %2310 = vmatpush1.bf16.msra.mxu0 %v1742
      %2311 = vmatprep.subr.bf16.mxu0 %v1745
      %2312 = vmatpush1.bf16.msra.mxu0 %v1744
      %2313 = vmatprep.mubr.bf16.mxu0 %v1153
      %2314 = vmatmul.mubr.bf16.gmra.mrb[0].mxu0 %v1152
      %v2315 = vpop.f32.mrb[0].mxu0
      %v2316 = vadd.f32 %v2123, %v2315
      %v2317 = vpop.f32.mrb[0].mxu0
      %v2318 = vadd.f32 %v2125, %v2317
      %v2319 = vpop.f32.mrb[0].mxu0
      %v2320 = vadd.f32 %v2127, %v2319
      %v2321 = vpop.f32.mrb[0].mxu0
      %v2322 = vadd.f32 %v2129, %v2321
      %2323 = vmatprep.mubr.bf16.mxu0 %v1160
      %2324 = vmatmul.mubr.bf16.gmra.mrb[0].mxu0 %v1159
      %v2325 = vpop.f32.mrb[0].mxu0
      %v2326 = vadd.f32 %v2133, %v2325
      %v2327 = vpop.f32.mrb[0].mxu0
      %v2328 = vadd.f32 %v2135, %v2327
      %v2329 = vpop.f32.mrb[0].mxu0
      %v2330 = vadd.f32 %v2137, %v2329
      %v2331 = vpop.f32.mrb[0].mxu0
      %v2332 = vadd.f32 %v2139, %v2331
      %2333 = vmatprep.mubr.bf16.mxu0 %v1167
      %2334 = vmatmul.mubr.bf16.gmra.mrb[0].mxu0 %v1166
      %v2335 = vpop.f32.mrb[0].mxu0
      %v2336 = vadd.f32 %v2143, %v2335
      %v2337 = vpop.f32.mrb[0].mxu0
      %v2338 = vadd.f32 %v2145, %v2337
      %v2339 = vpop.f32.mrb[0].mxu0
      %v2340 = vadd.f32 %v2147, %v2339
      %v2341 = vpop.f32.mrb[0].mxu0
      %v2342 = vadd.f32 %v2149, %v2341
      %2343 = vmatprep.mubr.bf16.mxu0 %v1174
      %2344 = vmatmul.mubr.bf16.gmra.mrb[0].mxu0 %v1173
      %v2345 = vpop.f32.mrb[0].mxu0
      %v2346 = vadd.f32 %v2153, %v2345
      %v2347 = vpop.f32.mrb[0].mxu0
      %v2348 = vadd.f32 %v2155, %v2347
      %v2349 = vpop.f32.mrb[0].mxu0
      %v2350 = vadd.f32 %v2157, %v2349
      %v2351 = vpop.f32.mrb[0].mxu0
      %v2352 = vadd.f32 %v2159, %v2351
      %2353 = vmatprep.mubr.bf16.mxu0 %v1181
      %2354 = vmatmul.mubr.bf16.gmra.mrb[0].mxu0 %v1180
      %v2355 = vpop.f32.mrb[0].mxu0
      %v2356 = vadd.f32 %v2163, %v2355
      %v2357 = vpop.f32.mrb[0].mxu0
      %v2358 = vadd.f32 %v2165, %v2357
      %v2359 = vpop.f32.mrb[0].mxu0
      %v2360 = vadd.f32 %v2167, %v2359
      %v2361 = vpop.f32.mrb[0].mxu0
      %v2362 = vadd.f32 %v2169, %v2361
      %2363 = vmatprep.mubr.bf16.mxu0 %v1188
      %2364 = vmatmul.mubr.bf16.gmra.mrb[0].mxu0 %v1187
      %v2365 = vpop.f32.mrb[0].mxu0
      %v2366 = vadd.f32 %v2173, %v2365
      %v2367 = vpop.f32.mrb[0].mxu0
      %v2368 = vadd.f32 %v2175, %v2367
      %v2369 = vpop.f32.mrb[0].mxu0
      %v2370 = vadd.f32 %v2177, %v2369
      %v2371 = vpop.f32.mrb[0].mxu0
      %v2372 = vadd.f32 %v2179, %v2371
      %2373 = vmatprep.mubr.bf16.mxu0 %v1195
      %2374 = vmatmul.mubr.bf16.gmra.mrb[0].mxu0 %v1194
      %v2375 = vpop.f32.mrb[0].mxu0
      %v2376 = vadd.f32 %v2183, %v2375
      %v2377 = vpop.f32.mrb[0].mxu0
      %v2378 = vadd.f32 %v2185, %v2377
      %v2379 = vpop.f32.mrb[0].mxu0
      %v2380 = vadd.f32 %v2187, %v2379
      %v2381 = vpop.f32.mrb[0].mxu0
      %v2382 = vadd.f32 %v2189, %v2381
      %2383 = vmatprep.mubr.bf16.mxu0 %v1202
      %2384 = vmatmul.mubr.bf16.gmra.mrb[0].mxu0 %v1201
      %v2385 = vpop.f32.mrb[0].mxu0
      %v2386 = vadd.f32 %v2193, %v2385
      %v2387 = vpop.f32.mrb[0].mxu0
      %v2388 = vadd.f32 %v2195, %v2387
      %v2389 = vpop.f32.mrb[0].mxu0
      %v2390 = vadd.f32 %v2197, %v2389
      %v2391 = vpop.f32.mrb[0].mxu0
      %v2392 = vadd.f32 %v2199, %v2391
      %2393 = vmatprep.mubr.bf16.mxu0 %v1209
      %2394 = vmatmul.mubr.bf16.gmra.mrb[0].mxu0 %v1208
      %v2395 = vpop.f32.mrb[0].mxu0
      %v2396 = vadd.f32 %v2203, %v2395
      %v2397 = vpop.f32.mrb[0].mxu0
      %v2398 = vadd.f32 %v2205, %v2397
      %v2399 = vpop.f32.mrb[0].mxu0
      %v2400 = vadd.f32 %v2207, %v2399
      %v2401 = vpop.f32.mrb[0].mxu0
      %v2402 = vadd.f32 %v2209, %v2401
      %2403 = vmatprep.mubr.bf16.mxu0 %v1216
      %2404 = vmatmul.mubr.bf16.gmra.mrb[0].mxu0 %v1215
      %v2405 = vpop.f32.mrb[0].mxu0
      %v2406 = vadd.f32 %v2213, %v2405
      %v2407 = vpop.f32.mrb[0].mxu0
      %v2408 = vadd.f32 %v2215, %v2407
      %v2409 = vpop.f32.mrb[0].mxu0
      %v2410 = vadd.f32 %v2217, %v2409
      %v2411 = vpop.f32.mrb[0].mxu0
      %v2412 = vadd.f32 %v2219, %v2411
      %2413 = vmatprep.mubr.bf16.mxu0 %v1223
      %2414 = vmatmul.mubr.bf16.gmra.mrb[0].mxu0 %v1222
      %v2415 = vpop.f32.mrb[0].mxu0
      %v2416 = vadd.f32 %v2223, %v2415
      %v2417 = vpop.f32.mrb[0].mxu0
      %v2418 = vadd.f32 %v2225, %v2417
      %v2419 = vpop.f32.mrb[0].mxu0
      %v2420 = vadd.f32 %v2227, %v2419
      %v2421 = vpop.f32.mrb[0].mxu0
      %v2422 = vadd.f32 %v2229, %v2421
      %2423 = vmatprep.mubr.bf16.mxu0 %v1230
      %2424 = vmatmul.mubr.bf16.gmra.mrb[0].mxu0 %v1229
      %v2425 = vpop.f32.mrb[0].mxu0
      %v2426 = vadd.f32 %v2233, %v2425
      %v2427 = vpop.f32.mrb[0].mxu0
      %v2428 = vadd.f32 %v2235, %v2427
      %v2429 = vpop.f32.mrb[0].mxu0
      %v2430 = vadd.f32 %v2237, %v2429
      %v2431 = vpop.f32.mrb[0].mxu0
      %v2432 = vadd.f32 %v2239, %v2431
      %2433 = vmatprep.mubr.bf16.mxu0 %v1237
      %2434 = vmatmul.mubr.bf16.gmra.mrb[0].mxu0 %v1236
      %v2435 = vpop.f32.mrb[0].mxu0
      %v2436 = vadd.f32 %v2243, %v2435
      %v2437 = vpop.f32.mrb[0].mxu0
      %v2438 = vadd.f32 %v2245, %v2437
      %v2439 = vpop.f32.mrb[0].mxu0
      %v2440 = vadd.f32 %v2247, %v2439
      %v2441 = vpop.f32.mrb[0].mxu0
      %v2442 = vadd.f32 %v2249, %v2441
      %2443 = vmatprep.mubr.bf16.mxu0 %v1244
      %2444 = vmatmul.mubr.bf16.gmra.mrb[0].mxu0 %v1243
      %v2445 = vpop.f32.mrb[0].mxu0
      %v2446 = vadd.f32 %v2253, %v2445
      %v2447 = vpop.f32.mrb[0].mxu0
      %v2448 = vadd.f32 %v2255, %v2447
      %v2449 = vpop.f32.mrb[0].mxu0
      %v2450 = vadd.f32 %v2257, %v2449
      %v2451 = vpop.f32.mrb[0].mxu0
      %v2452 = vadd.f32 %v2259, %v2451
      %2453 = vmatprep.mubr.bf16.mxu0 %v1251
      %2454 = vmatmul.mubr.bf16.gmra.mrb[0].mxu0 %v1250
      %v2455 = vpop.f32.mrb[0].mxu0
      %v2456 = vadd.f32 %v2263, %v2455
      %v2457 = vpop.f32.mrb[0].mxu0
      %v2458 = vadd.f32 %v2265, %v2457
      %v2459 = vpop.f32.mrb[0].mxu0
      %v2460 = vadd.f32 %v2267, %v2459
      %v2461 = vpop.f32.mrb[0].mxu0
      %v2462 = vadd.f32 %v2269, %v2461
      %2463 = vmatprep.mubr.bf16.mxu0 %v1258
      %2464 = vmatmul.mubr.bf16.gmra.mrb[0].mxu0 %v1257
      %v2465 = vpop.f32.mrb[0].mxu0
      %v2466 = vadd.f32 %v2273, %v2465
      %v2467 = vpop.f32.mrb[0].mxu0
      %v2468 = vadd.f32 %v2275, %v2467
      %v2469 = vpop.f32.mrb[0].mxu0
      %v2470 = vadd.f32 %v2277, %v2469
      %v2471 = vpop.f32.mrb[0].mxu0
      %v2472 = vadd.f32 %v2279, %v2471
      %2473 = vdwg.mxu0
      %2474 = vmatprep.subr.bf16.mxu0 %v1747
      %2475 = vmatpush1.bf16.msra.mxu0 %v1746
      %2476 = vmatprep.subr.bf16.mxu0 0
      %2477 = vmatpush1.bf16.msra.mxu0 0
      %2478 = vmatprep.subr.bf16.mxu0 0
      %2479 = vmatpush1.bf16.msra.mxu0 0
      %2480 = vmatprep.subr.bf16.mxu0 0
      %2481 = vmatpush1.bf16.msra.mxu0 0
      %2482 = vmatprep.subr.bf16.mxu0 0
      %2483 = vmatpush1.bf16.msra.mxu0 0
      %2484 = vmatprep.subr.bf16.mxu0 0
      %2485 = vmatpush1.bf16.msra.mxu0 0
      %2486 = vmatprep.subr.bf16.mxu0 0
      %2487 = vmatpush1.bf16.msra.mxu0 0
      %2488 = vmatprep.subr.bf16.mxu0 0
      %2489 = vmatpush1.bf16.msra.mxu0 0
      %2490 = vmatprep.subr.bf16.mxu0 0
      %2491 = vmatpush1.bf16.msra.mxu0 0
      %2492 = vmatprep.subr.bf16.mxu0 0
      %2493 = vmatpush1.bf16.msra.mxu0 0
      %2494 = vmatprep.subr.bf16.mxu0 0
      %2495 = vmatpush1.bf16.msra.mxu0 0
      %2496 = vmatprep.subr.bf16.mxu0 0
      %2497 = vmatpush1.bf16.msra.mxu0 0
      %2498 = vmatprep.subr.bf16.mxu0 0
      %2499 = vmatpush1.bf16.msra.mxu0 0
      %2500 = vmatprep.subr.bf16.mxu0 0
      %2501 = vmatpush1.bf16.msra.mxu0 0
      %2502 = vmatprep.subr.bf16.mxu0 0
      %2503 = vmatpush1.bf16.msra.mxu0 0
      %2504 = vmatprep.subr.bf16.mxu0 0
      %2505 = vmatpush1.bf16.msra.mxu0 0
      %2506 = vmatprep.mubr.bf16.mxu0 0
      %2507 = vmatmul.mubr.bf16.gmra.mrb[0].mxu0 %v1848
      %v2508 = vpop.f32.mrb[0].mxu0
      %v2509 = vadd.f32 %v2316, %v2508
      %v2510 = vpop.f32.mrb[0].mxu0
      %v2511 = vadd.f32 %v2318, %v2510
      %v2512 = vpop.f32.mrb[0].mxu0
      %v2513 = vadd.f32 %v2320, %v2512
      %v2514 = vpop.f32.mrb[0].mxu0
      %v2515 = vadd.f32 %v2322, %v2514
      %2516 = vmatprep.mubr.bf16.mxu0 0
      %2517 = vmatmul.mubr.bf16.gmra.mrb[0].mxu0 %v1851
      %v2518 = vpop.f32.mrb[0].mxu0
      %v2519 = vadd.f32 %v2326, %v2518
      %v2520 = vpop.f32.mrb[0].mxu0
      %v2521 = vadd.f32 %v2328, %v2520
      %v2522 = vpop.f32.mrb[0].mxu0
      %v2523 = vadd.f32 %v2330, %v2522
      %v2524 = vpop.f32.mrb[0].mxu0
      %v2525 = vadd.f32 %v2332, %v2524
      %2526 = vmatprep.mubr.bf16.mxu0 0
      %2527 = vmatmul.mubr.bf16.gmra.mrb[0].mxu0 %v1854
      %v2528 = vpop.f32.mrb[0].mxu0
      %v2529 = vadd.f32 %v2336, %v2528
      %v2530 = vpop.f32.mrb[0].mxu0
      %v2531 = vadd.f32 %v2338, %v2530
      %v2532 = vpop.f32.mrb[0].mxu0
      %v2533 = vadd.f32 %v2340, %v2532
      %v2534 = vpop.f32.mrb[0].mxu0
      %v2535 = vadd.f32 %v2342, %v2534
      %2536 = vmatprep.mubr.bf16.mxu0 0
      %2537 = vmatmul.mubr.bf16.gmra.mrb[0].mxu0 %v1857
      %v2538 = vpop.f32.mrb[0].mxu0
      %v2539 = vadd.f32 %v2346, %v2538
      %v2540 = vpop.f32.mrb[0].mxu0
      %v2541 = vadd.f32 %v2348, %v2540
      %v2542 = vpop.f32.mrb[0].mxu0
      %v2543 = vadd.f32 %v2350, %v2542
      %v2544 = vpop.f32.mrb[0].mxu0
      %v2545 = vadd.f32 %v2352, %v2544
      %2546 = vmatprep.mubr.bf16.mxu0 0
      %2547 = vmatmul.mubr.bf16.gmra.mrb[0].mxu0 %v1860
      %v2548 = vpop.f32.mrb[0].mxu0
      %v2549 = vadd.f32 %v2356, %v2548
      %v2550 = vpop.f32.mrb[0].mxu0
      %v2551 = vadd.f32 %v2358, %v2550
      %v2552 = vpop.f32.mrb[0].mxu0
      %v2553 = vadd.f32 %v2360, %v2552
      %v2554 = vpop.f32.mrb[0].mxu0
      %v2555 = vadd.f32 %v2362, %v2554
      %2556 = vmatprep.mubr.bf16.mxu0 0
      %2557 = vmatmul.mubr.bf16.gmra.mrb[0].mxu0 %v1863
      %v2558 = vpop.f32.mrb[0].mxu0
      %v2559 = vadd.f32 %v2366, %v2558
      %v2560 = vpop.f32.mrb[0].mxu0
      %v2561 = vadd.f32 %v2368, %v2560
      %v2562 = vpop.f32.mrb[0].mxu0
      %v2563 = vadd.f32 %v2370, %v2562
      %v2564 = vpop.f32.mrb[0].mxu0
      %v2565 = vadd.f32 %v2372, %v2564
      %2566 = vmatprep.mubr.bf16.mxu0 0
      %2567 = vmatmul.mubr.bf16.gmra.mrb[0].mxu0 %v1866
      %v2568 = vpop.f32.mrb[0].mxu0
      %v2569 = vadd.f32 %v2376, %v2568
      %v2570 = vpop.f32.mrb[0].mxu0
      %v2571 = vadd.f32 %v2378, %v2570
      %v2572 = vpop.f32.mrb[0].mxu0
      %v2573 = vadd.f32 %v2380, %v2572
      %v2574 = vpop.f32.mrb[0].mxu0
      %v2575 = vadd.f32 %v2382, %v2574
      %2576 = vmatprep.mubr.bf16.mxu0 0
      %2577 = vmatmul.mubr.bf16.gmra.mrb[0].mxu0 %v1869
      %v2578 = vpop.f32.mrb[0].mxu0
      %v2579 = vadd.f32 %v2386, %v2578
      %v2580 = vpop.f32.mrb[0].mxu0
      %v2581 = vadd.f32 %v2388, %v2580
      %v2582 = vpop.f32.mrb[0].mxu0
      %v2583 = vadd.f32 %v2390, %v2582
      %v2584 = vpop.f32.mrb[0].mxu0
      %v2585 = vadd.f32 %v2392, %v2584
      %2586 = vmatprep.mubr.bf16.mxu0 0
      %2587 = vmatmul.mubr.bf16.gmra.mrb[0].mxu0 %v1872
      %v2588 = vpop.f32.mrb[0].mxu0
      %v2589 = vadd.f32 %v2396, %v2588
      %v2590 = vpop.f32.mrb[0].mxu0
      %v2591 = vadd.f32 %v2398, %v2590
      %v2592 = vpop.f32.mrb[0].mxu0
      %v2593 = vadd.f32 %v2400, %v2592
      %v2594 = vpop.f32.mrb[0].mxu0
      %v2595 = vadd.f32 %v2402, %v2594
      %2596 = vmatprep.mubr.bf16.mxu0 0
      %2597 = vmatmul.mubr.bf16.gmra.mrb[0].mxu0 %v1875
      %v2598 = vpop.f32.mrb[0].mxu0
      %v2599 = vadd.f32 %v2406, %v2598
      %v2600 = vpop.f32.mrb[0].mxu0
      %v2601 = vadd.f32 %v2408, %v2600
      %v2602 = vpop.f32.mrb[0].mxu0
      %v2603 = vadd.f32 %v2410, %v2602
      %v2604 = vpop.f32.mrb[0].mxu0
      %v2605 = vadd.f32 %v2412, %v2604
      %2606 = vmatprep.mubr.bf16.mxu0 0
      %2607 = vmatmul.mubr.bf16.gmra.mrb[0].mxu0 %v1878
      %v2608 = vpop.f32.mrb[0].mxu0
      %v2609 = vadd.f32 %v2416, %v2608
      %v2610 = vpop.f32.mrb[0].mxu0
      %v2611 = vadd.f32 %v2418, %v2610
      %v2612 = vpop.f32.mrb[0].mxu0
      %v2613 = vadd.f32 %v2420, %v2612
      %v2614 = vpop.f32.mrb[0].mxu0
      %v2615 = vadd.f32 %v2422, %v2614
      %2616 = vmatprep.mubr.bf16.mxu0 0
      %2617 = vmatmul.mubr.bf16.gmra.mrb[0].mxu0 %v1881
      %v2618 = vpop.f32.mrb[0].mxu0
      %v2619 = vadd.f32 %v2426, %v2618
      %v2620 = vpop.f32.mrb[0].mxu0
      %v2621 = vadd.f32 %v2428, %v2620
      %v2622 = vpop.f32.mrb[0].mxu0
      %v2623 = vadd.f32 %v2430, %v2622
      %v2624 = vpop.f32.mrb[0].mxu0
      %v2625 = vadd.f32 %v2432, %v2624
      %2626 = vmatprep.mubr.bf16.mxu0 0
      %2627 = vmatmul.mubr.bf16.gmra.mrb[0].mxu0 %v1884
      %v2628 = vpop.f32.mrb[0].mxu0
      %v2629 = vadd.f32 %v2436, %v2628
      %v2630 = vpop.f32.mrb[0].mxu0
      %v2631 = vadd.f32 %v2438, %v2630
      %v2632 = vpop.f32.mrb[0].mxu0
      %v2633 = vadd.f32 %v2440, %v2632
      %v2634 = vpop.f32.mrb[0].mxu0
      %v2635 = vadd.f32 %v2442, %v2634
      %2636 = vmatprep.mubr.bf16.mxu0 0
      %2637 = vmatmul.mubr.bf16.gmra.mrb[0].mxu0 %v1887
      %v2638 = vpop.f32.mrb[0].mxu0
      %v2639 = vadd.f32 %v2446, %v2638
      %v2640 = vpop.f32.mrb[0].mxu0
      %v2641 = vadd.f32 %v2448, %v2640
      %v2642 = vpop.f32.mrb[0].mxu0
      %v2643 = vadd.f32 %v2450, %v2642
      %v2644 = vpop.f32.mrb[0].mxu0
      %v2645 = vadd.f32 %v2452, %v2644
      %2646 = vmatprep.mubr.bf16.mxu0 0
      %2647 = vmatmul.mubr.bf16.gmra.mrb[0].mxu0 %v1890
      %v2648 = vpop.f32.mrb[0].mxu0
      %v2649 = vadd.f32 %v2456, %v2648
      %v2650 = vpop.f32.mrb[0].mxu0
      %v2651 = vadd.f32 %v2458, %v2650
      %v2652 = vpop.f32.mrb[0].mxu0
      %v2653 = vadd.f32 %v2460, %v2652
      %v2654 = vpop.f32.mrb[0].mxu0
      %v2655 = vadd.f32 %v2462, %v2654
      %2656 = vmatprep.mubr.bf16.mxu0 0
      %2657 = vmatmul.mubr.bf16.gmra.mrb[0].mxu0 %v1893
      %v2658 = vpop.f32.mrb[0].mxu0
      %v2659 = vadd.f32 %v2466, %v2658
      %v2660 = vpop.f32.mrb[0].mxu0
      %v2661 = vadd.f32 %v2468, %v2660
      %v2662 = vpop.f32.mrb[0].mxu0
      %v2663 = vadd.f32 %v2470, %v2662
      %v2664 = vpop.f32.mrb[0].mxu0
      %v2665 = vadd.f32 %v2472, %v2664
      %2666 = vdwg.mxu0
      %v2667 = vmax.f32 %v2509, 0.0
      %v2668 = vmax.f32 %v2511, 0.0
      %v2669 = vmax.f32 %v2513, 0.0
      %v2670 = vmax.f32 %v2515, 0.0
      %v2671 = vmax.f32 %v2519, 0.0
      %v2672 = vmax.f32 %v2521, 0.0
      %v2673 = vmax.f32 %v2523, 0.0
      %v2674 = vmax.f32 %v2525, 0.0
      %v2675 = vmax.f32 %v2529, 0.0
      %v2676 = vmax.f32 %v2531, 0.0
      %v2677 = vmax.f32 %v2533, 0.0
      %v2678 = vmax.f32 %v2535, 0.0
      %v2679 = vmax.f32 %v2539, 0.0
      %v2680 = vmax.f32 %v2541, 0.0
      %v2681 = vmax.f32 %v2543, 0.0
      %v2682 = vmax.f32 %v2545, 0.0
      %v2683 = vmax.f32 %v2549, 0.0
      %v2684 = vmax.f32 %v2551, 0.0
      %v2685 = vmax.f32 %v2553, 0.0
      %v2686 = vmax.f32 %v2555, 0.0
      %v2687 = vmax.f32 %v2559, 0.0
      %v2688 = vmax.f32 %v2561, 0.0
      %v2689 = vmax.f32 %v2563, 0.0
      %v2690 = vmax.f32 %v2565, 0.0
      %v2691 = vmax.f32 %v2569, 0.0
      %v2692 = vmax.f32 %v2571, 0.0
      %v2693 = vmax.f32 %v2573, 0.0
      %v2694 = vmax.f32 %v2575, 0.0
      %v2695 = vmax.f32 %v2579, 0.0
      %v2696 = vmax.f32 %v2581, 0.0
      %v2697 = vmax.f32 %v2583, 0.0
      %v2698 = vmax.f32 %v2585, 0.0
      %v2699 = vmax.f32 %v2589, 0.0
      %v2700 = vmax.f32 %v2591, 0.0
      %v2701 = vmax.f32 %v2593, 0.0
      %v2702 = vmax.f32 %v2595, 0.0
      %v2703 = vmax.f32 %v2599, 0.0
      %v2704 = vmax.f32 %v2601, 0.0
      %v2705 = vmax.f32 %v2603, 0.0
      %v2706 = vmax.f32 %v2605, 0.0
      %v2707 = vmax.f32 %v2609, 0.0
      %v2708 = vmax.f32 %v2611, 0.0
      %v2709 = vmax.f32 %v2613, 0.0
      %v2710 = vmax.f32 %v2615, 0.0
      %v2711 = vmax.f32 %v2619, 0.0
      %v2712 = vmax.f32 %v2621, 0.0
      %v2713 = vmax.f32 %v2623, 0.0
      %v2714 = vmax.f32 %v2625, 0.0
      %v2715 = vmax.f32 %v2629, 0.0
      %v2716 = vmax.f32 %v2631, 0.0
      %v2717 = vmax.f32 %v2633, 0.0
      %v2718 = vmax.f32 %v2635, 0.0
      %v2719 = vmax.f32 %v2639, 0.0
      %v2720 = vmax.f32 %v2641, 0.0
      %v2721 = vmax.f32 %v2643, 0.0
      %v2722 = vmax.f32 %v2645, 0.0
      %v2723 = vmax.f32 %v2649, 0.0
      %v2724 = vmax.f32 %v2651, 0.0
      %v2725 = vmax.f32 %v2653, 0.0
      %v2726 = vmax.f32 %v2655, 0.0
      %v2727 = vmax.f32 %v2659, 0.0
      %v2728 = vmax.f32 %v2661, 0.0
      %v2729 = vmax.f32 %v2663, 0.0
      %v2730 = vmax.f32 %v2665, 0.0
      %v2731 = vpack.c.bf16 %v2669, %v2667
      %v2732 = vpack.c.bf16 %v2670, %v2668
      %v2733 = vpack.c.bf16 %v2673, %v2671
      %v2734 = vpack.c.bf16 %v2674, %v2672
      %v2735 = vpack.c.bf16 %v2677, %v2675
      %v2736 = vpack.c.bf16 %v2678, %v2676
      %v2737 = vpack.c.bf16 %v2681, %v2679
      %v2738 = vpack.c.bf16 %v2682, %v2680
      %v2739 = vpack.c.bf16 %v2685, %v2683
      %v2740 = vpack.c.bf16 %v2686, %v2684
      %v2741 = vpack.c.bf16 %v2689, %v2687
      %v2742 = vpack.c.bf16 %v2690, %v2688
      %v2743 = vpack.c.bf16 %v2693, %v2691
      %v2744 = vpack.c.bf16 %v2694, %v2692
      %v2745 = vpack.c.bf16 %v2697, %v2695
      %v2746 = vpack.c.bf16 %v2698, %v2696
      %v2747 = vpack.c.bf16 %v2701, %v2699
      %v2748 = vpack.c.bf16 %v2702, %v2700
      %v2749 = vpack.c.bf16 %v2705, %v2703
      %v2750 = vpack.c.bf16 %v2706, %v2704
      %v2751 = vpack.c.bf16 %v2709, %v2707
      %v2752 = vpack.c.bf16 %v2710, %v2708
      %v2753 = vpack.c.bf16 %v2713, %v2711
      %v2754 = vpack.c.bf16 %v2714, %v2712
      %v2755 = vpack.c.bf16 %v2717, %v2715
      %v2756 = vpack.c.bf16 %v2718, %v2716
      %v2757 = vpack.c.bf16 %v2721, %v2719
      %v2758 = vpack.c.bf16 %v2722, %v2720
      %v2759 = vpack.c.bf16 %v2725, %v2723
      %v2760 = vpack.c.bf16 %v2726, %v2724
      %v2761 = vpack.c.bf16 %v2729, %v2727
      %v2762 = vpack.c.bf16 %v2730, %v2728
      %v2763 = vld [vmem:[%s3] sm:$0xf]
      %v2764 = vld [vmem:[%s3 + $0x4] sm:$0xf]
      %v2765 = vld [vmem:[%s3 + $0x8] sm:$0xf]
      %v2766 = vld [vmem:[%s3 + $0xc] sm:$0xf]
      %v2767 = vld [vmem:[%s3 + $0x10] sm:$0xf]
      %v2768 = vld [vmem:[%s3 + $0x14] sm:$0xf]
      %v2769 = vld [vmem:[%s3 + $0x18] sm:$0xf]
      %v2770 = vld [vmem:[%s3 + $0x1c] sm:$0xf]
      %v2771 = vld [vmem:[%s3 + $0x20] sm:$0xf]
      %v2772 = vld [vmem:[%s3 + $0x24] sm:$0xf]
      %v2773 = vld [vmem:[%s3 + $0x28] sm:$0xf]
      %v2774 = vld [vmem:[%s3 + $0x2c] sm:$0xf]
      %v2775 = vld [vmem:[%s3 + $0x30] sm:$0xf]
      %v2776 = vld [vmem:[%s3 + $0x34] sm:$0xf]
      %v2777 = vld [vmem:[%s3 + $0x38] sm:$0xf]
      %v2778 = vld [vmem:[%s3 + $0x3c] sm:$0xf]
      %v2779 = vld [vmem:[%s3 + $0x40] sm:$0xf]
      %v2780 = vld [vmem:[%s3 + $0x44] sm:$0xf]
      %v2781 = vld [vmem:[%s3 + $0x48] sm:$0xf]
      %v2782 = vld [vmem:[%s3 + $0x4c] sm:$0xf]
      %v2783 = vld [vmem:[%s3 + $0x50] sm:$0xf]
      %v2784 = vld [vmem:[%s3 + $0x54] sm:$0xf]
      %v2785 = vld [vmem:[%s3 + $0x58] sm:$0xf]
      %v2786 = vld [vmem:[%s3 + $0x5c] sm:$0xf]
      %v2787 = vld [vmem:[%s3 + $0x60] sm:$0xf]
      %v2788 = vld [vmem:[%s3 + $0x64] sm:$0xf]
      %v2789 = vld [vmem:[%s3 + $0x68] sm:$0xf]
      %v2790 = vld [vmem:[%s3 + $0x6c] sm:$0xf]
      %v2791 = vld [vmem:[%s3 + $0x70] sm:$0xf]
      %v2792 = vld [vmem:[%s3 + $0x74] sm:$0xf]
      %v2793 = vld [vmem:[%s3 + $0x78] sm:$0xf]
      %v2794 = vld [vmem:[%s3 + $0x7c] sm:$0xf]
      %v2795 = vld [vmem:[%s4] sm:$0x1]
      %v2797 = vlaneseq
      %v2798 = vshrl.u32 %v2797, 7
      %v2799 = vsub.s32 0, %v2798
      %v2800 = vrot.slane %v2795, %v2799
      %v2834 = vunpack.c.l.b16 %v2763
      %v2835 = vunpack.c.l.b16 %v2764
      %v2836 = vunpack.c.l.b16 %v2765
      %v2837 = vunpack.c.l.b16 %v2766
      %v2838 = vunpack.c.l.b16 %v2767
      %v2839 = vunpack.c.l.b16 %v2768
      %v2840 = vunpack.c.l.b16 %v2769
      %v2841 = vunpack.c.l.b16 %v2770
      %v2842 = vunpack.c.l.b16 %v2771
      %v2843 = vunpack.c.l.b16 %v2772
      %v2844 = vunpack.c.l.b16 %v2773
      %v2845 = vunpack.c.l.b16 %v2774
      %v2846 = vunpack.c.l.b16 %v2775
      %v2847 = vunpack.c.l.b16 %v2776
      %v2848 = vunpack.c.l.b16 %v2777
      %v2849 = vunpack.c.l.b16 %v2778
      %v2850 = vunpack.c.l.b16 %v2779
      %v2851 = vunpack.c.l.b16 %v2780
      %v2852 = vunpack.c.l.b16 %v2781
      %v2853 = vunpack.c.l.b16 %v2782
      %v2854 = vunpack.c.l.b16 %v2783
      %v2855 = vunpack.c.l.b16 %v2784
      %v2856 = vunpack.c.l.b16 %v2785
      %v2857 = vunpack.c.l.b16 %v2786
      %v2858 = vunpack.c.l.b16 %v2787
      %v2859 = vunpack.c.l.b16 %v2788
      %v2860 = vunpack.c.l.b16 %v2789
      %v2861 = vunpack.c.l.b16 %v2790
      %v2862 = vunpack.c.l.b16 %v2791
      %v2863 = vunpack.c.l.b16 %v2792
      %v2864 = vunpack.c.l.b16 %v2793
      %v2865 = vunpack.c.l.b16 %v2794
      %v2866 = vpack.c.b16 %v2835, %v2834
      %v2867 = vpack.c.b16 %v2837, %v2836
      %v2868 = vpack.c.b16 %v2839, %v2838
      %v2869 = vpack.c.b16 %v2841, %v2840
      %v2870 = vpack.c.b16 %v2843, %v2842
      %v2871 = vpack.c.b16 %v2845, %v2844
      %v2872 = vpack.c.b16 %v2847, %v2846
      %v2873 = vpack.c.b16 %v2849, %v2848
      %v2874 = vpack.c.b16 %v2851, %v2850
      %v2875 = vpack.c.b16 %v2853, %v2852
      %v2876 = vpack.c.b16 %v2855, %v2854
      %v2877 = vpack.c.b16 %v2857, %v2856
      %v2878 = vpack.c.b16 %v2859, %v2858
      %v2879 = vpack.c.b16 %v2861, %v2860
      %v2880 = vpack.c.b16 %v2863, %v2862
      %v2881 = vpack.c.b16 %v2865, %v2864
      %2898 = vmatprep.subr.bf16.mxu0 0
      %2899 = vmatpush1.bf16.msra.mxu0 %v2866
      %2900 = vmatprep.subr.bf16.mxu0 0
      %2901 = vmatpush1.bf16.msra.mxu0 %v2867
      %2902 = vmatprep.subr.bf16.mxu0 0
      %2903 = vmatpush1.bf16.msra.mxu0 %v2868
      %2904 = vmatprep.subr.bf16.mxu0 0
      %2905 = vmatpush1.bf16.msra.mxu0 %v2869
      %2906 = vmatprep.subr.bf16.mxu0 0
      %2907 = vmatpush1.bf16.msra.mxu0 %v2870
      %2908 = vmatprep.subr.bf16.mxu0 0
      %2909 = vmatpush1.bf16.msra.mxu0 %v2871
      %2910 = vmatprep.subr.bf16.mxu0 0
      %2911 = vmatpush1.bf16.msra.mxu0 %v2872
      %2912 = vmatprep.subr.bf16.mxu0 0
      %2913 = vmatpush1.bf16.msra.mxu0 %v2873
      %2914 = vmatprep.subr.bf16.mxu0 0
      %2915 = vmatpush1.bf16.msra.mxu0 %v2874
      %2916 = vmatprep.subr.bf16.mxu0 0
      %2917 = vmatpush1.bf16.msra.mxu0 %v2875
      %2918 = vmatprep.subr.bf16.mxu0 0
      %2919 = vmatpush1.bf16.msra.mxu0 %v2876
      %2920 = vmatprep.subr.bf16.mxu0 0
      %2921 = vmatpush1.bf16.msra.mxu0 %v2877
      %2922 = vmatprep.subr.bf16.mxu0 0
      %2923 = vmatpush1.bf16.msra.mxu0 %v2878
      %2924 = vmatprep.subr.bf16.mxu0 0
      %2925 = vmatpush1.bf16.msra.mxu0 %v2879
      %2926 = vmatprep.subr.bf16.mxu0 0
      %2927 = vmatpush1.bf16.msra.mxu0 %v2880
      %2928 = vmatprep.subr.bf16.mxu0 0
      %2929 = vmatpush1.bf16.msra.mxu0 %v2881
      %2930 = vmatprep.mubr.bf16.mxu0 %v2732
      %2931 = vmatmul.mubr.bf16.gmra.mrb[0].mxu0 %v2731
      %v2932 = vpop.f32.mrb[0].mxu0
      %v2933 = vadd.f32 %v2800, %v2932
      %v2934 = vpop.f32.mrb[0].mxu0
      %v2935 = vpop.f32.mrb[0].mxu0
      %v2936 = vadd.f32 %v2800, %v2935
      %v2937 = vpop.f32.mrb[0].mxu0
      %2938 = vmatprep.mubr.bf16.mxu0 %v2734
      %2939 = vmatmul.mubr.bf16.gmra.mrb[0].mxu0 %v2733
      %v2940 = vpop.f32.mrb[0].mxu0
      %v2941 = vadd.f32 %v2800, %v2940
      %v2942 = vpop.f32.mrb[0].mxu0
      %v2943 = vpop.f32.mrb[0].mxu0
      %v2944 = vadd.f32 %v2800, %v2943
      %v2945 = vpop.f32.mrb[0].mxu0
      %2946 = vmatprep.mubr.bf16.mxu0 %v2736
      %2947 = vmatmul.mubr.bf16.gmra.mrb[0].mxu0 %v2735
      %v2948 = vpop.f32.mrb[0].mxu0
      %v2949 = vadd.f32 %v2800, %v2948
      %v2950 = vpop.f32.mrb[0].mxu0
      %v2951 = vpop.f32.mrb[0].mxu0
      %v2952 = vadd.f32 %v2800, %v2951
      %v2953 = vpop.f32.mrb[0].mxu0
      %2954 = vmatprep.mubr.bf16.mxu0 %v2738
      %2955 = vmatmul.mubr.bf16.gmra.mrb[0].mxu0 %v2737
      %v2956 = vpop.f32.mrb[0].mxu0
      %v2957 = vadd.f32 %v2800, %v2956
      %v2958 = vpop.f32.mrb[0].mxu0
      %v2959 = vpop.f32.mrb[0].mxu0
      %v2960 = vadd.f32 %v2800, %v2959
      %v2961 = vpop.f32.mrb[0].mxu0
      %2962 = vmatprep.mubr.bf16.mxu0 %v2740
      %2963 = vmatmul.mubr.bf16.gmra.mrb[0].mxu0 %v2739
      %v2964 = vpop.f32.mrb[0].mxu0
      %v2965 = vadd.f32 %v2800, %v2964
      %v2966 = vpop.f32.mrb[0].mxu0
      %v2967 = vpop.f32.mrb[0].mxu0
      %v2968 = vadd.f32 %v2800, %v2967
      %v2969 = vpop.f32.mrb[0].mxu0
      %2970 = vmatprep.mubr.bf16.mxu0 %v2742
      %2971 = vmatmul.mubr.bf16.gmra.mrb[0].mxu0 %v2741
      %v2972 = vpop.f32.mrb[0].mxu0
      %v2973 = vadd.f32 %v2800, %v2972
      %v2974 = vpop.f32.mrb[0].mxu0
      %v2975 = vpop.f32.mrb[0].mxu0
      %v2976 = vadd.f32 %v2800, %v2975
      %v2977 = vpop.f32.mrb[0].mxu0
      %2978 = vmatprep.mubr.bf16.mxu0 %v2744
      %2979 = vmatmul.mubr.bf16.gmra.mrb[0].mxu0 %v2743
      %v2980 = vpop.f32.mrb[0].mxu0
      %v2981 = vadd.f32 %v2800, %v2980
      %v2982 = vpop.f32.mrb[0].mxu0
      %v2983 = vpop.f32.mrb[0].mxu0
      %v2984 = vadd.f32 %v2800, %v2983
      %v2985 = vpop.f32.mrb[0].mxu0
      %2986 = vmatprep.mubr.bf16.mxu0 %v2746
      %2987 = vmatmul.mubr.bf16.gmra.mrb[0].mxu0 %v2745
      %v2988 = vpop.f32.mrb[0].mxu0
      %v2989 = vadd.f32 %v2800, %v2988
      %v2990 = vpop.f32.mrb[0].mxu0
      %v2991 = vpop.f32.mrb[0].mxu0
      %v2992 = vadd.f32 %v2800, %v2991
      %v2993 = vpop.f32.mrb[0].mxu0
      %2994 = vmatprep.mubr.bf16.mxu0 %v2748
      %2995 = vmatmul.mubr.bf16.gmra.mrb[0].mxu0 %v2747
      %v2996 = vpop.f32.mrb[0].mxu0
      %v2997 = vadd.f32 %v2800, %v2996
      %v2998 = vpop.f32.mrb[0].mxu0
      %v2999 = vpop.f32.mrb[0].mxu0
      %v3000 = vadd.f32 %v2800, %v2999
      %v3001 = vpop.f32.mrb[0].mxu0
      %3002 = vmatprep.mubr.bf16.mxu0 %v2750
      %3003 = vmatmul.mubr.bf16.gmra.mrb[0].mxu0 %v2749
      %v3004 = vpop.f32.mrb[0].mxu0
      %v3005 = vadd.f32 %v2800, %v3004
      %v3006 = vpop.f32.mrb[0].mxu0
      %v3007 = vpop.f32.mrb[0].mxu0
      %v3008 = vadd.f32 %v2800, %v3007
      %v3009 = vpop.f32.mrb[0].mxu0
      %3010 = vmatprep.mubr.bf16.mxu0 %v2752
      %3011 = vmatmul.mubr.bf16.gmra.mrb[0].mxu0 %v2751
      %v3012 = vpop.f32.mrb[0].mxu0
      %v3013 = vadd.f32 %v2800, %v3012
      %v3014 = vpop.f32.mrb[0].mxu0
      %v3015 = vpop.f32.mrb[0].mxu0
      %v3016 = vadd.f32 %v2800, %v3015
      %v3017 = vpop.f32.mrb[0].mxu0
      %3018 = vmatprep.mubr.bf16.mxu0 %v2754
      %3019 = vmatmul.mubr.bf16.gmra.mrb[0].mxu0 %v2753
      %v3020 = vpop.f32.mrb[0].mxu0
      %v3021 = vadd.f32 %v2800, %v3020
      %v3022 = vpop.f32.mrb[0].mxu0
      %v3023 = vpop.f32.mrb[0].mxu0
      %v3024 = vadd.f32 %v2800, %v3023
      %v3025 = vpop.f32.mrb[0].mxu0
      %3026 = vmatprep.mubr.bf16.mxu0 %v2756
      %3027 = vmatmul.mubr.bf16.gmra.mrb[0].mxu0 %v2755
      %v3028 = vpop.f32.mrb[0].mxu0
      %v3029 = vadd.f32 %v2800, %v3028
      %v3030 = vpop.f32.mrb[0].mxu0
      %v3031 = vpop.f32.mrb[0].mxu0
      %v3032 = vadd.f32 %v2800, %v3031
      %v3033 = vpop.f32.mrb[0].mxu0
      %3034 = vmatprep.mubr.bf16.mxu0 %v2758
      %3035 = vmatmul.mubr.bf16.gmra.mrb[0].mxu0 %v2757
      %v3036 = vpop.f32.mrb[0].mxu0
      %v3037 = vadd.f32 %v2800, %v3036
      %v3038 = vpop.f32.mrb[0].mxu0
      %v3039 = vpop.f32.mrb[0].mxu0
      %v3040 = vadd.f32 %v2800, %v3039
      %v3041 = vpop.f32.mrb[0].mxu0
      %3042 = vmatprep.mubr.bf16.mxu0 %v2760
      %3043 = vmatmul.mubr.bf16.gmra.mrb[0].mxu0 %v2759
      %v3044 = vpop.f32.mrb[0].mxu0
      %v3045 = vadd.f32 %v2800, %v3044
      %v3046 = vpop.f32.mrb[0].mxu0
      %v3047 = vpop.f32.mrb[0].mxu0
      %v3048 = vadd.f32 %v2800, %v3047
      %v3049 = vpop.f32.mrb[0].mxu0
      %3050 = vmatprep.mubr.bf16.mxu0 %v2762
      %3051 = vmatmul.mubr.bf16.gmra.mrb[0].mxu0 %v2761
      %v3052 = vpop.f32.mrb[0].mxu0
      %v3053 = vadd.f32 %v2800, %v3052
      %v3054 = vpop.f32.mrb[0].mxu0
      %v3055 = vpop.f32.mrb[0].mxu0
      %v3056 = vadd.f32 %v2800, %v3055
      %v3057 = vpop.f32.mrb[0].mxu0
      %3058 = vdwg.mxu0
      %v3059 = vmax.f32 %v2933, 0.0
      %v3060 = vmax.f32 %v2936, 0.0
      %v3061 = vmax.f32 %v2941, 0.0
      %v3062 = vmax.f32 %v2944, 0.0
      %v3063 = vmax.f32 %v2949, 0.0
      %v3064 = vmax.f32 %v2952, 0.0
      %v3065 = vmax.f32 %v2957, 0.0
      %v3066 = vmax.f32 %v2960, 0.0
      %v3067 = vmax.f32 %v2965, 0.0
      %v3068 = vmax.f32 %v2968, 0.0
      %v3069 = vmax.f32 %v2973, 0.0
      %v3070 = vmax.f32 %v2976, 0.0
      %v3071 = vmax.f32 %v2981, 0.0
      %v3072 = vmax.f32 %v2984, 0.0
      %v3073 = vmax.f32 %v2989, 0.0
      %v3074 = vmax.f32 %v2992, 0.0
      %v3075 = vmax.f32 %v2997, 0.0
      %v3076 = vmax.f32 %v3000, 0.0
      %v3077 = vmax.f32 %v3005, 0.0
      %v3078 = vmax.f32 %v3008, 0.0
      %v3079 = vmax.f32 %v3013, 0.0
      %v3080 = vmax.f32 %v3016, 0.0
      %v3081 = vmax.f32 %v3021, 0.0
      %v3082 = vmax.f32 %v3024, 0.0
      %v3083 = vmax.f32 %v3029, 0.0
      %v3084 = vmax.f32 %v3032, 0.0
      %v3085 = vmax.f32 %v3037, 0.0
      %v3086 = vmax.f32 %v3040, 0.0
      %v3087 = vmax.f32 %v3045, 0.0
      %v3088 = vmax.f32 %v3048, 0.0
      %v3089 = vmax.f32 %v3053, 0.0
      %v3090 = vmax.f32 %v3056, 0.0
      %v3091 = vpack.c.bf16 %v3060, %v3059
      %v3092 = vpack.c.bf16 %v3062, %v3061
      %v3093 = vpack.c.bf16 %v3064, %v3063
      %v3094 = vpack.c.bf16 %v3066, %v3065
      %v3095 = vpack.c.bf16 %v3068, %v3067
      %v3096 = vpack.c.bf16 %v3070, %v3069
      %v3097 = vpack.c.bf16 %v3072, %v3071
      %v3098 = vpack.c.bf16 %v3074, %v3073
      %v3099 = vpack.c.bf16 %v3076, %v3075
      %v3100 = vpack.c.bf16 %v3078, %v3077
      %v3101 = vpack.c.bf16 %v3080, %v3079
      %v3102 = vpack.c.bf16 %v3082, %v3081
      %v3103 = vpack.c.bf16 %v3084, %v3083
      %v3104 = vpack.c.bf16 %v3086, %v3085
      %v3105 = vpack.c.bf16 %v3088, %v3087
      %v3106 = vpack.c.bf16 %v3090, %v3089
      %v3107 = vld [vmem:[%s5] sm:$0xf]
      %v3108 = vld [vmem:[%s5 + $0x4] sm:$0xf]
      %v3109 = vld [vmem:[%s5 + $0x8] sm:$0xf]
      %v3110 = vld [vmem:[%s5 + $0xc] sm:$0xf]
      %v3111 = vld [vmem:[%s5 + $0x10] sm:$0xf]
      %v3112 = vld [vmem:[%s5 + $0x14] sm:$0xf]
      %v3113 = vld [vmem:[%s5 + $0x18] sm:$0xf]
      %v3114 = vld [vmem:[%s5 + $0x1c] sm:$0xf]
      %v3115 = vld [vmem:[%s6] sm:$0x1]
      %v3117 = vlaneseq
      %v3118 = vshrl.u32 %v3117, 7
      %v3119 = vsub.s32 0, %v3118
      %v3120 = vrot.slane %v3115, %v3119
      %v3130 = vunpack.c.l.b16 %v3107
      %v3131 = vunpack.c.l.b16 %v3108
      %v3132 = vunpack.c.l.b16 %v3109
      %v3133 = vunpack.c.l.b16 %v3110
      %v3134 = vunpack.c.l.b16 %v3111
      %v3135 = vunpack.c.l.b16 %v3112
      %v3136 = vunpack.c.l.b16 %v3113
      %v3137 = vunpack.c.l.b16 %v3114
      %v3138 = vpack.c.b16 %v3131, %v3130
      %v3139 = vpack.c.b16 %v3133, %v3132
      %v3140 = vpack.c.b16 %v3135, %v3134
      %v3141 = vpack.c.b16 %v3137, %v3136
      %vm3146 = vcmask 523264
      %v3148 = vsel %vm3146, %v3091, 0
      %v3151 = vsel %vm3146, %v3092, 0
      %v3154 = vsel %vm3146, %v3093, 0
      %v3157 = vsel %vm3146, %v3094, 0
      %v3160 = vsel %vm3146, %v3095, 0
      %v3163 = vsel %vm3146, %v3096, 0
      %v3166 = vsel %vm3146, %v3097, 0
      %v3169 = vsel %vm3146, %v3098, 0
      %v3172 = vsel %vm3146, %v3099, 0
      %v3175 = vsel %vm3146, %v3100, 0
      %v3178 = vsel %vm3146, %v3101, 0
      %v3181 = vsel %vm3146, %v3102, 0
      %v3184 = vsel %vm3146, %v3103, 0
      %v3187 = vsel %vm3146, %v3104, 0
      %v3190 = vsel %vm3146, %v3105, 0
      %v3193 = vsel %vm3146, %v3106, 0
      %3195 = vmatprep.subr.bf16.mxu0 0
      %3196 = vmatpush1.bf16.msra.mxu0 %v3138
      %3197 = vmatprep.subr.bf16.mxu0 0
      %3198 = vmatpush1.bf16.msra.mxu0 %v3139
      %3199 = vmatprep.subr.bf16.mxu0 0
      %3200 = vmatpush1.bf16.msra.mxu0 %v3140
      %3201 = vmatprep.subr.bf16.mxu0 0
      %3202 = vmatpush1.bf16.msra.mxu0 %v3141
      %3203 = vmatprep.subr.bf16.mxu0 0
      %3204 = vmatpush1.bf16.msra.mxu0 0
      %3205 = vmatprep.subr.bf16.mxu0 0
      %3206 = vmatpush1.bf16.msra.mxu0 0
      %3207 = vmatprep.subr.bf16.mxu0 0
      %3208 = vmatpush1.bf16.msra.mxu0 0
      %3209 = vmatprep.subr.bf16.mxu0 0
      %3210 = vmatpush1.bf16.msra.mxu0 0
      %3211 = vmatprep.subr.bf16.mxu0 0
      %3212 = vmatpush1.bf16.msra.mxu0 0
      %3213 = vmatprep.subr.bf16.mxu0 0
      %3214 = vmatpush1.bf16.msra.mxu0 0
      %3215 = vmatprep.subr.bf16.mxu0 0
      %3216 = vmatpush1.bf16.msra.mxu0 0
      %3217 = vmatprep.subr.bf16.mxu0 0
      %3218 = vmatpush1.bf16.msra.mxu0 0
      %3219 = vmatprep.subr.bf16.mxu0 0
      %3220 = vmatpush1.bf16.msra.mxu0 0
      %3221 = vmatprep.subr.bf16.mxu0 0
      %3222 = vmatpush1.bf16.msra.mxu0 0
      %3223 = vmatprep.subr.bf16.mxu0 0
      %3224 = vmatpush1.bf16.msra.mxu0 0
      %3225 = vmatprep.subr.bf16.mxu0 0
      %3226 = vmatpush1.bf16.msra.mxu0 0
      %3227 = vmatprep.mubr.bf16.mxu0 0
      %3228 = vmatmul.mubr.bf16.gmra.mrb[0].mxu0 %v3148
      %v3229 = vpop.f32.mrb[0].mxu0
      %v3230 = vadd.f32 %v3120, %v3229
      %v3231 = vpop.f32.mrb[0].mxu0
      %v3232 = vpop.f32.mrb[0].mxu0
      %v3233 = vadd.f32 %v3120, %v3232
      %v3234 = vpop.f32.mrb[0].mxu0
      %3235 = vmatprep.mubr.bf16.mxu0 0
      %3236 = vmatmul.mubr.bf16.gmra.mrb[0].mxu0 %v3151
      %v3237 = vpop.f32.mrb[0].mxu0
      %v3238 = vadd.f32 %v3120, %v3237
      %v3239 = vpop.f32.mrb[0].mxu0
      %v3240 = vpop.f32.mrb[0].mxu0
      %v3241 = vadd.f32 %v3120, %v3240
      %v3242 = vpop.f32.mrb[0].mxu0
      %3243 = vmatprep.mubr.bf16.mxu0 0
      %3244 = vmatmul.mubr.bf16.gmra.mrb[0].mxu0 %v3154
      %v3245 = vpop.f32.mrb[0].mxu0
      %v3246 = vadd.f32 %v3120, %v3245
      %v3247 = vpop.f32.mrb[0].mxu0
      %v3248 = vpop.f32.mrb[0].mxu0
      %v3249 = vadd.f32 %v3120, %v3248
      %v3250 = vpop.f32.mrb[0].mxu0
      %3251 = vmatprep.mubr.bf16.mxu0 0
      %3252 = vmatmul.mubr.bf16.gmra.mrb[0].mxu0 %v3157
      %v3253 = vpop.f32.mrb[0].mxu0
      %v3254 = vadd.f32 %v3120, %v3253
      %v3255 = vpop.f32.mrb[0].mxu0
      %v3256 = vpop.f32.mrb[0].mxu0
      %v3257 = vadd.f32 %v3120, %v3256
      %v3258 = vpop.f32.mrb[0].mxu0
      %3259 = vmatprep.mubr.bf16.mxu0 0
      %3260 = vmatmul.mubr.bf16.gmra.mrb[0].mxu0 %v3160
      %v3261 = vpop.f32.mrb[0].mxu0
      %v3262 = vadd.f32 %v3120, %v3261
      %v3263 = vpop.f32.mrb[0].mxu0
      %v3264 = vpop.f32.mrb[0].mxu0
      %v3265 = vadd.f32 %v3120, %v3264
      %v3266 = vpop.f32.mrb[0].mxu0
      %3267 = vmatprep.mubr.bf16.mxu0 0
      %3268 = vmatmul.mubr.bf16.gmra.mrb[0].mxu0 %v3163
      %v3269 = vpop.f32.mrb[0].mxu0
      %v3270 = vadd.f32 %v3120, %v3269
      %v3271 = vpop.f32.mrb[0].mxu0
      %v3272 = vpop.f32.mrb[0].mxu0
      %v3273 = vadd.f32 %v3120, %v3272
      %v3274 = vpop.f32.mrb[0].mxu0
      %3275 = vmatprep.mubr.bf16.mxu0 0
      %3276 = vmatmul.mubr.bf16.gmra.mrb[0].mxu0 %v3166
      %v3277 = vpop.f32.mrb[0].mxu0
      %v3278 = vadd.f32 %v3120, %v3277
      %v3279 = vpop.f32.mrb[0].mxu0
      %v3280 = vpop.f32.mrb[0].mxu0
      %v3281 = vadd.f32 %v3120, %v3280
      %v3282 = vpop.f32.mrb[0].mxu0
      %3283 = vmatprep.mubr.bf16.mxu0 0
      %3284 = vmatmul.mubr.bf16.gmra.mrb[0].mxu0 %v3169
      %v3285 = vpop.f32.mrb[0].mxu0
      %v3286 = vadd.f32 %v3120, %v3285
      %v3287 = vpop.f32.mrb[0].mxu0
      %v3288 = vpop.f32.mrb[0].mxu0
      %v3289 = vadd.f32 %v3120, %v3288
      %v3290 = vpop.f32.mrb[0].mxu0
      %3291 = vmatprep.mubr.bf16.mxu0 0
      %3292 = vmatmul.mubr.bf16.gmra.mrb[0].mxu0 %v3172
      %v3293 = vpop.f32.mrb[0].mxu0
      %v3294 = vadd.f32 %v3120, %v3293
      %v3295 = vpop.f32.mrb[0].mxu0
      %v3296 = vpop.f32.mrb[0].mxu0
      %v3297 = vadd.f32 %v3120, %v3296
      %v3298 = vpop.f32.mrb[0].mxu0
      %3299 = vmatprep.mubr.bf16.mxu0 0
      %3300 = vmatmul.mubr.bf16.gmra.mrb[0].mxu0 %v3175
      %v3301 = vpop.f32.mrb[0].mxu0
      %v3302 = vadd.f32 %v3120, %v3301
      %v3303 = vpop.f32.mrb[0].mxu0
      %v3304 = vpop.f32.mrb[0].mxu0
      %v3305 = vadd.f32 %v3120, %v3304
      %v3306 = vpop.f32.mrb[0].mxu0
      %3307 = vmatprep.mubr.bf16.mxu0 0
      %3308 = vmatmul.mubr.bf16.gmra.mrb[0].mxu0 %v3178
      %v3309 = vpop.f32.mrb[0].mxu0
      %v3310 = vadd.f32 %v3120, %v3309
      %v3311 = vpop.f32.mrb[0].mxu0
      %v3312 = vpop.f32.mrb[0].mxu0
      %v3313 = vadd.f32 %v3120, %v3312
      %v3314 = vpop.f32.mrb[0].mxu0
      %3315 = vmatprep.mubr.bf16.mxu0 0
      %3316 = vmatmul.mubr.bf16.gmra.mrb[0].mxu0 %v3181
      %v3317 = vpop.f32.mrb[0].mxu0
      %v3318 = vadd.f32 %v3120, %v3317
      %v3319 = vpop.f32.mrb[0].mxu0
      %v3320 = vpop.f32.mrb[0].mxu0
      %v3321 = vadd.f32 %v3120, %v3320
      %v3322 = vpop.f32.mrb[0].mxu0
      %3323 = vmatprep.mubr.bf16.mxu0 0
      %3324 = vmatmul.mubr.bf16.gmra.mrb[0].mxu0 %v3184
      %v3325 = vpop.f32.mrb[0].mxu0
      %v3326 = vadd.f32 %v3120, %v3325
      %v3327 = vpop.f32.mrb[0].mxu0
      %v3328 = vpop.f32.mrb[0].mxu0
      %v3329 = vadd.f32 %v3120, %v3328
      %v3330 = vpop.f32.mrb[0].mxu0
      %3331 = vmatprep.mubr.bf16.mxu0 0
      %3332 = vmatmul.mubr.bf16.gmra.mrb[0].mxu0 %v3187
      %v3333 = vpop.f32.mrb[0].mxu0
      %v3334 = vadd.f32 %v3120, %v3333
      %v3335 = vpop.f32.mrb[0].mxu0
      %v3336 = vpop.f32.mrb[0].mxu0
      %v3337 = vadd.f32 %v3120, %v3336
      %v3338 = vpop.f32.mrb[0].mxu0
      %3339 = vmatprep.mubr.bf16.mxu0 0
      %3340 = vmatmul.mubr.bf16.gmra.mrb[0].mxu0 %v3190
      %v3341 = vpop.f32.mrb[0].mxu0
      %v3342 = vadd.f32 %v3120, %v3341
      %v3343 = vpop.f32.mrb[0].mxu0
      %v3344 = vpop.f32.mrb[0].mxu0
      %v3345 = vadd.f32 %v3120, %v3344
      %v3346 = vpop.f32.mrb[0].mxu0
      %3347 = vmatprep.mubr.bf16.mxu0 0
      %3348 = vmatmul.mubr.bf16.gmra.mrb[0].mxu0 %v3193
      %v3349 = vpop.f32.mrb[0].mxu0
      %v3350 = vadd.f32 %v3120, %v3349
      %v3351 = vpop.f32.mrb[0].mxu0
      %v3352 = vpop.f32.mrb[0].mxu0
      %v3353 = vadd.f32 %v3120, %v3352
      %v3354 = vpop.f32.mrb[0].mxu0
      %3355 = vdwg.mxu0
      %v3356 = vmax.f32 %v3230, 0.0
      %v3357 = vmax.f32 %v3233, 0.0
      %v3358 = vmax.f32 %v3238, 0.0
      %v3359 = vmax.f32 %v3241, 0.0
      %v3360 = vmax.f32 %v3246, 0.0
      %v3361 = vmax.f32 %v3249, 0.0
      %v3362 = vmax.f32 %v3254, 0.0
      %v3363 = vmax.f32 %v3257, 0.0
      %v3364 = vmax.f32 %v3262, 0.0
      %v3365 = vmax.f32 %v3265, 0.0
      %v3366 = vmax.f32 %v3270, 0.0
      %v3367 = vmax.f32 %v3273, 0.0
      %v3368 = vmax.f32 %v3278, 0.0
      %v3369 = vmax.f32 %v3281, 0.0
      %v3370 = vmax.f32 %v3286, 0.0
      %v3371 = vmax.f32 %v3289, 0.0
      %v3372 = vmax.f32 %v3294, 0.0
      %v3373 = vmax.f32 %v3297, 0.0
      %v3374 = vmax.f32 %v3302, 0.0
      %v3375 = vmax.f32 %v3305, 0.0
      %v3376 = vmax.f32 %v3310, 0.0
      %v3377 = vmax.f32 %v3313, 0.0
      %v3378 = vmax.f32 %v3318, 0.0
      %v3379 = vmax.f32 %v3321, 0.0
      %v3380 = vmax.f32 %v3326, 0.0
      %v3381 = vmax.f32 %v3329, 0.0
      %v3382 = vmax.f32 %v3334, 0.0
      %v3383 = vmax.f32 %v3337, 0.0
      %v3384 = vmax.f32 %v3342, 0.0
      %v3385 = vmax.f32 %v3345, 0.0
      %v3386 = vmax.f32 %v3350, 0.0
      %v3387 = vmax.f32 %v3353, 0.0
      %v3388 = vpack.c.bf16 %v3357, %v3356
      %v3389 = vpack.c.bf16 %v3359, %v3358
      %v3390 = vpack.c.bf16 %v3361, %v3360
      %v3391 = vpack.c.bf16 %v3363, %v3362
      %v3392 = vpack.c.bf16 %v3365, %v3364
      %v3393 = vpack.c.bf16 %v3367, %v3366
      %v3394 = vpack.c.bf16 %v3369, %v3368
      %v3395 = vpack.c.bf16 %v3371, %v3370
      %v3396 = vpack.c.bf16 %v3373, %v3372
      %v3397 = vpack.c.bf16 %v3375, %v3374
      %v3398 = vpack.c.bf16 %v3377, %v3376
      %v3399 = vpack.c.bf16 %v3379, %v3378
      %v3400 = vpack.c.bf16 %v3381, %v3380
      %v3401 = vpack.c.bf16 %v3383, %v3382
      %v3402 = vpack.c.bf16 %v3385, %v3384
      %v3403 = vpack.c.bf16 %v3387, %v3386
      %v3404 = vld [vmem:[%s7] sm:$0xf]
      %v3405 = vld [vmem:[%s7 + $0x4] sm:$0xf]
      %v3406 = vld [vmem:[%s7 + $0x8] sm:$0xf]
      %v3407 = vld [vmem:[%s7 + $0xc] sm:$0xf]
      %v3408 = vld [vmem:[%s8] sm:$0x1]
      %v3410 = vlaneseq
      %v3411 = vshrl.u32 %v3410, 7
      %v3412 = vsub.s32 0, %v3411
      %v3413 = vrot.slane %v3408, %v3412
      %v3419 = vunpack.c.l.b16 %v3404
      %v3420 = vunpack.c.l.b16 %v3405
      %v3421 = vunpack.c.l.b16 %v3406
      %v3422 = vunpack.c.l.b16 %v3407
      %v3423 = vpack.c.b16 %v3420, %v3419
      %v3424 = vpack.c.b16 %v3422, %v3421
      %vm3427 = vcmask 261120
      %v3429 = vsel %vm3427, %v3388, 0
      %v3432 = vsel %vm3427, %v3389, 0
      %v3435 = vsel %vm3427, %v3390, 0
      %v3438 = vsel %vm3427, %v3391, 0
      %v3441 = vsel %vm3427, %v3392, 0
      %v3444 = vsel %vm3427, %v3393, 0
      %v3447 = vsel %vm3427, %v3394, 0
      %v3450 = vsel %vm3427, %v3395, 0
      %v3453 = vsel %vm3427, %v3396, 0
      %v3456 = vsel %vm3427, %v3397, 0
      %v3459 = vsel %vm3427, %v3398, 0
      %v3462 = vsel %vm3427, %v3399, 0
      %v3465 = vsel %vm3427, %v3400, 0
      %v3468 = vsel %vm3427, %v3401, 0
      %v3471 = vsel %vm3427, %v3402, 0
      %v3474 = vsel %vm3427, %v3403, 0
      %3476 = vmatprep.subr.bf16.mxu0 0
      %3477 = vmatpush1.bf16.msra.mxu0 %v3423
      %3478 = vmatprep.subr.bf16.mxu0 0
      %3479 = vmatpush1.bf16.msra.mxu0 %v3424
      %3480 = vmatprep.subr.bf16.mxu0 0
      %3481 = vmatpush1.bf16.msra.mxu0 0
      %3482 = vmatprep.subr.bf16.mxu0 0
      %3483 = vmatpush1.bf16.msra.mxu0 0
      %3484 = vmatprep.subr.bf16.mxu0 0
      %3485 = vmatpush1.bf16.msra.mxu0 0
      %3486 = vmatprep.subr.bf16.mxu0 0
      %3487 = vmatpush1.bf16.msra.mxu0 0
      %3488 = vmatprep.subr.bf16.mxu0 0
      %3489 = vmatpush1.bf16.msra.mxu0 0
      %3490 = vmatprep.subr.bf16.mxu0 0
      %3491 = vmatpush1.bf16.msra.mxu0 0
      %3492 = vmatprep.subr.bf16.mxu0 0
      %3493 = vmatpush1.bf16.msra.mxu0 0
      %3494 = vmatprep.subr.bf16.mxu0 0
      %3495 = vmatpush1.bf16.msra.mxu0 0
      %3496 = vmatprep.subr.bf16.mxu0 0
      %3497 = vmatpush1.bf16.msra.mxu0 0
      %3498 = vmatprep.subr.bf16.mxu0 0
      %3499 = vmatpush1.bf16.msra.mxu0 0
      %3500 = vmatprep.subr.bf16.mxu0 0
      %3501 = vmatpush1.bf16.msra.mxu0 0
      %3502 = vmatprep.subr.bf16.mxu0 0
      %3503 = vmatpush1.bf16.msra.mxu0 0
      %3504 = vmatprep.subr.bf16.mxu0 0
      %3505 = vmatpush1.bf16.msra.mxu0 0
      %3506 = vmatprep.subr.bf16.mxu0 0
      %3507 = vmatpush1.bf16.msra.mxu0 0
      %3508 = vmatprep.mubr.bf16.mxu0 0
      %3509 = vmatmul.mubr.bf16.gmra.mrb[0].mxu0 %v3429
      %v3510 = vpop.f32.mrb[0].mxu0
      %v3511 = vadd.f32 %v3413, %v3510
      %v3512 = vpop.f32.mrb[0].mxu0
      %v3513 = vpop.f32.mrb[0].mxu0
      %v3514 = vadd.f32 %v3413, %v3513
      %v3515 = vpop.f32.mrb[0].mxu0
      %3516 = vmatprep.mubr.bf16.mxu0 0
      %3517 = vmatmul.mubr.bf16.gmra.mrb[0].mxu0 %v3432
      %v3518 = vpop.f32.mrb[0].mxu0
      %v3519 = vadd.f32 %v3413, %v3518
      %v3520 = vpop.f32.mrb[0].mxu0
      %v3521 = vpop.f32.mrb[0].mxu0
      %v3522 = vadd.f32 %v3413, %v3521
      %v3523 = vpop.f32.mrb[0].mxu0
      %3524 = vmatprep.mubr.bf16.mxu0 0
      %3525 = vmatmul.mubr.bf16.gmra.mrb[0].mxu0 %v3435
      %v3526 = vpop.f32.mrb[0].mxu0
      %v3527 = vadd.f32 %v3413, %v3526
      %v3528 = vpop.f32.mrb[0].mxu0
      %v3529 = vpop.f32.mrb[0].mxu0
      %v3530 = vadd.f32 %v3413, %v3529
      %v3531 = vpop.f32.mrb[0].mxu0
      %3532 = vmatprep.mubr.bf16.mxu0 0
      %3533 = vmatmul.mubr.bf16.gmra.mrb[0].mxu0 %v3438
      %v3534 = vpop.f32.mrb[0].mxu0
      %v3535 = vadd.f32 %v3413, %v3534
      %v3536 = vpop.f32.mrb[0].mxu0
      %v3537 = vpop.f32.mrb[0].mxu0
      %v3538 = vadd.f32 %v3413, %v3537
      %v3539 = vpop.f32.mrb[0].mxu0
      %3540 = vmatprep.mubr.bf16.mxu0 0
      %3541 = vmatmul.mubr.bf16.gmra.mrb[0].mxu0 %v3441
      %v3542 = vpop.f32.mrb[0].mxu0
      %v3543 = vadd.f32 %v3413, %v3542
      %v3544 = vpop.f32.mrb[0].mxu0
      %v3545 = vpop.f32.mrb[0].mxu0
      %v3546 = vadd.f32 %v3413, %v3545
      %v3547 = vpop.f32.mrb[0].mxu0
      %3548 = vmatprep.mubr.bf16.mxu0 0
      %3549 = vmatmul.mubr.bf16.gmra.mrb[0].mxu0 %v3444
      %v3550 = vpop.f32.mrb[0].mxu0
      %v3551 = vadd.f32 %v3413, %v3550
      %v3552 = vpop.f32.mrb[0].mxu0
      %v3553 = vpop.f32.mrb[0].mxu0
      %v3554 = vadd.f32 %v3413, %v3553
      %v3555 = vpop.f32.mrb[0].mxu0
      %3556 = vmatprep.mubr.bf16.mxu0 0
      %3557 = vmatmul.mubr.bf16.gmra.mrb[0].mxu0 %v3447
      %v3558 = vpop.f32.mrb[0].mxu0
      %v3559 = vadd.f32 %v3413, %v3558
      %v3560 = vpop.f32.mrb[0].mxu0
      %v3561 = vpop.f32.mrb[0].mxu0
      %v3562 = vadd.f32 %v3413, %v3561
      %v3563 = vpop.f32.mrb[0].mxu0
      %3564 = vmatprep.mubr.bf16.mxu0 0
      %3565 = vmatmul.mubr.bf16.gmra.mrb[0].mxu0 %v3450
      %v3566 = vpop.f32.mrb[0].mxu0
      %v3567 = vadd.f32 %v3413, %v3566
      %v3568 = vpop.f32.mrb[0].mxu0
      %v3569 = vpop.f32.mrb[0].mxu0
      %v3570 = vadd.f32 %v3413, %v3569
      %v3571 = vpop.f32.mrb[0].mxu0
      %3572 = vmatprep.mubr.bf16.mxu0 0
      %3573 = vmatmul.mubr.bf16.gmra.mrb[0].mxu0 %v3453
      %v3574 = vpop.f32.mrb[0].mxu0
      %v3575 = vadd.f32 %v3413, %v3574
      %v3576 = vpop.f32.mrb[0].mxu0
      %v3577 = vpop.f32.mrb[0].mxu0
      %v3578 = vadd.f32 %v3413, %v3577
      %v3579 = vpop.f32.mrb[0].mxu0
      %3580 = vmatprep.mubr.bf16.mxu0 0
      %3581 = vmatmul.mubr.bf16.gmra.mrb[0].mxu0 %v3456
      %v3582 = vpop.f32.mrb[0].mxu0
      %v3583 = vadd.f32 %v3413, %v3582
      %v3584 = vpop.f32.mrb[0].mxu0
      %v3585 = vpop.f32.mrb[0].mxu0
      %v3586 = vadd.f32 %v3413, %v3585
      %v3587 = vpop.f32.mrb[0].mxu0
      %3588 = vmatprep.mubr.bf16.mxu0 0
      %3589 = vmatmul.mubr.bf16.gmra.mrb[0].mxu0 %v3459
      %v3590 = vpop.f32.mrb[0].mxu0
      %v3591 = vadd.f32 %v3413, %v3590
      %v3592 = vpop.f32.mrb[0].mxu0
      %v3593 = vpop.f32.mrb[0].mxu0
      %v3594 = vadd.f32 %v3413, %v3593
      %v3595 = vpop.f32.mrb[0].mxu0
      %3596 = vmatprep.mubr.bf16.mxu0 0
      %3597 = vmatmul.mubr.bf16.gmra.mrb[0].mxu0 %v3462
      %v3598 = vpop.f32.mrb[0].mxu0
      %v3599 = vadd.f32 %v3413, %v3598
      %v3600 = vpop.f32.mrb[0].mxu0
      %v3601 = vpop.f32.mrb[0].mxu0
      %v3602 = vadd.f32 %v3413, %v3601
      %v3603 = vpop.f32.mrb[0].mxu0
      %3604 = vmatprep.mubr.bf16.mxu0 0
      %3605 = vmatmul.mubr.bf16.gmra.mrb[0].mxu0 %v3465
      %v3606 = vpop.f32.mrb[0].mxu0
      %v3607 = vadd.f32 %v3413, %v3606
      %v3608 = vpop.f32.mrb[0].mxu0
      %v3609 = vpop.f32.mrb[0].mxu0
      %v3610 = vadd.f32 %v3413, %v3609
      %v3611 = vpop.f32.mrb[0].mxu0
      %3612 = vmatprep.mubr.bf16.mxu0 0
      %3613 = vmatmul.mubr.bf16.gmra.mrb[0].mxu0 %v3468
      %v3614 = vpop.f32.mrb[0].mxu0
      %v3615 = vadd.f32 %v3413, %v3614
      %v3616 = vpop.f32.mrb[0].mxu0
      %v3617 = vpop.f32.mrb[0].mxu0
      %v3618 = vadd.f32 %v3413, %v3617
      %v3619 = vpop.f32.mrb[0].mxu0
      %3620 = vmatprep.mubr.bf16.mxu0 0
      %3621 = vmatmul.mubr.bf16.gmra.mrb[0].mxu0 %v3471
      %v3622 = vpop.f32.mrb[0].mxu0
      %v3623 = vadd.f32 %v3413, %v3622
      %v3624 = vpop.f32.mrb[0].mxu0
      %v3625 = vpop.f32.mrb[0].mxu0
      %v3626 = vadd.f32 %v3413, %v3625
      %v3627 = vpop.f32.mrb[0].mxu0
      %3628 = vmatprep.mubr.bf16.mxu0 0
      %3629 = vmatmul.mubr.bf16.gmra.mrb[0].mxu0 %v3474
      %v3630 = vpop.f32.mrb[0].mxu0
      %v3631 = vadd.f32 %v3413, %v3630
      %v3632 = vpop.f32.mrb[0].mxu0
      %v3633 = vpop.f32.mrb[0].mxu0
      %v3634 = vadd.f32 %v3413, %v3633
      %v3635 = vpop.f32.mrb[0].mxu0
      %3636 = vdwg.mxu0
      %v3637 = vpack.c.bf16 %v3514, %v3511
      %v3638 = vpack.c.bf16 %v3522, %v3519
      %v3639 = vpack.c.bf16 %v3530, %v3527
      %v3640 = vpack.c.bf16 %v3538, %v3535
      %v3641 = vpack.c.bf16 %v3546, %v3543
      %v3642 = vpack.c.bf16 %v3554, %v3551
      %v3643 = vpack.c.bf16 %v3562, %v3559
      %v3644 = vpack.c.bf16 %v3570, %v3567
      %v3645 = vpack.c.bf16 %v3578, %v3575
      %v3646 = vpack.c.bf16 %v3586, %v3583
      %v3647 = vpack.c.bf16 %v3594, %v3591
      %v3648 = vpack.c.bf16 %v3602, %v3599
      %v3649 = vpack.c.bf16 %v3610, %v3607
      %v3650 = vpack.c.bf16 %v3618, %v3615
      %v3651 = vpack.c.bf16 %v3626, %v3623
      %v3652 = vpack.c.bf16 %v3634, %v3631
      %v3653 = vld [vmem:[%s9] sm:$0xf]
      %v3654 = vld [vmem:[%s9 + $0x4] sm:$0xf]
      %v3655 = vld [vmem:[%s10] sm:$0x1]
      %v3657 = vlaneseq
      %v3658 = vshrl.u32 %v3657, 7
      %v3659 = vsub.s32 0, %v3658
      %v3660 = vrot.slane %v3655, %v3659
      %v3664 = vunpack.c.l.b16 %v3653
      %v3665 = vunpack.c.l.b16 %v3654
      %v3666 = vpack.c.b16 %v3665, %v3664
      %v3669 = vsel %vm1846, %v3637, 0
      %v3672 = vsel %vm1846, %v3638, 0
      %v3675 = vsel %vm1846, %v3639, 0
      %v3678 = vsel %vm1846, %v3640, 0
      %v3681 = vsel %vm1846, %v3641, 0
      %v3684 = vsel %vm1846, %v3642, 0
      %v3687 = vsel %vm1846, %v3643, 0
      %v3690 = vsel %vm1846, %v3644, 0
      %v3693 = vsel %vm1846, %v3645, 0
      %v3696 = vsel %vm1846, %v3646, 0
      %v3699 = vsel %vm1846, %v3647, 0
      %v3702 = vsel %vm1846, %v3648, 0
      %v3705 = vsel %vm1846, %v3649, 0
      %v3708 = vsel %vm1846, %v3650, 0
      %v3711 = vsel %vm1846, %v3651, 0
      %v3714 = vsel %vm1846, %v3652, 0
      %3716 = vmatprep.subr.bf16.mxu0 0
      %3717 = vmatpush1.bf16.msra.mxu0 %v3666
      %3718 = vmatprep.subr.bf16.mxu0 0
      %3719 = vmatpush1.bf16.msra.mxu0 0
      %3720 = vmatprep.subr.bf16.mxu0 0
      %3721 = vmatpush1.bf16.msra.mxu0 0
      %3722 = vmatprep.subr.bf16.mxu0 0
      %3723 = vmatpush1.bf16.msra.mxu0 0
      %3724 = vmatprep.subr.bf16.mxu0 0
      %3725 = vmatpush1.bf16.msra.mxu0 0
      %3726 = vmatprep.subr.bf16.mxu0 0
      %3727 = vmatpush1.bf16.msra.mxu0 0
      %3728 = vmatprep.subr.bf16.mxu0 0
      %3729 = vmatpush1.bf16.msra.mxu0 0
      %3730 = vmatprep.subr.bf16.mxu0 0
      %3731 = vmatpush1.bf16.msra.mxu0 0
      %3732 = vmatprep.subr.bf16.mxu0 0
      %3733 = vmatpush1.bf16.msra.mxu0 0
      %3734 = vmatprep.subr.bf16.mxu0 0
      %3735 = vmatpush1.bf16.msra.mxu0 0
      %3736 = vmatprep.subr.bf16.mxu0 0
      %3737 = vmatpush1.bf16.msra.mxu0 0
      %3738 = vmatprep.subr.bf16.mxu0 0
      %3739 = vmatpush1.bf16.msra.mxu0 0
      %3740 = vmatprep.subr.bf16.mxu0 0
      %3741 = vmatpush1.bf16.msra.mxu0 0
      %3742 = vmatprep.subr.bf16.mxu0 0
      %3743 = vmatpush1.bf16.msra.mxu0 0
      %3744 = vmatprep.subr.bf16.mxu0 0
      %3745 = vmatpush1.bf16.msra.mxu0 0
      %3746 = vmatprep.subr.bf16.mxu0 0
      %3747 = vmatpush1.bf16.msra.mxu0 0
      %3748 = vmatprep.mubr.bf16.mxu0 0
      %3749 = vmatmul.mubr.bf16.gmra.mrb[0].mxu0 %v3669
      %v3750 = vpop.f32.mrb[0].mxu0
      %v3751 = vadd.f32 %v3660, %v3750
      %v3752 = vpop.f32.mrb[0].mxu0
      %v3753 = vpop.f32.mrb[0].mxu0
      %v3754 = vadd.f32 %v3660, %v3753
      %v3755 = vpop.f32.mrb[0].mxu0
      %3756 = vmatprep.mubr.bf16.mxu0 0
      %3757 = vmatmul.mubr.bf16.gmra.mrb[0].mxu0 %v3672
      %v3758 = vpop.f32.mrb[0].mxu0
      %v3759 = vadd.f32 %v3660, %v3758
      %v3760 = vpop.f32.mrb[0].mxu0
      %v3761 = vpop.f32.mrb[0].mxu0
      %v3762 = vadd.f32 %v3660, %v3761
      %v3763 = vpop.f32.mrb[0].mxu0
      %3764 = vmatprep.mubr.bf16.mxu0 0
      %3765 = vmatmul.mubr.bf16.gmra.mrb[0].mxu0 %v3675
      %v3766 = vpop.f32.mrb[0].mxu0
      %v3767 = vadd.f32 %v3660, %v3766
      %v3768 = vpop.f32.mrb[0].mxu0
      %v3769 = vpop.f32.mrb[0].mxu0
      %v3770 = vadd.f32 %v3660, %v3769
      %v3771 = vpop.f32.mrb[0].mxu0
      %3772 = vmatprep.mubr.bf16.mxu0 0
      %3773 = vmatmul.mubr.bf16.gmra.mrb[0].mxu0 %v3678
      %v3774 = vpop.f32.mrb[0].mxu0
      %v3775 = vadd.f32 %v3660, %v3774
      %v3776 = vpop.f32.mrb[0].mxu0
      %v3777 = vpop.f32.mrb[0].mxu0
      %v3778 = vadd.f32 %v3660, %v3777
      %v3779 = vpop.f32.mrb[0].mxu0
      %3780 = vmatprep.mubr.bf16.mxu0 0
      %3781 = vmatmul.mubr.bf16.gmra.mrb[0].mxu0 %v3681
      %v3782 = vpop.f32.mrb[0].mxu0
      %v3783 = vadd.f32 %v3660, %v3782
      %v3784 = vpop.f32.mrb[0].mxu0
      %v3785 = vpop.f32.mrb[0].mxu0
      %v3786 = vadd.f32 %v3660, %v3785
      %v3787 = vpop.f32.mrb[0].mxu0
      %3788 = vmatprep.mubr.bf16.mxu0 0
      %3789 = vmatmul.mubr.bf16.gmra.mrb[0].mxu0 %v3684
      %v3790 = vpop.f32.mrb[0].mxu0
      %v3791 = vadd.f32 %v3660, %v3790
      %v3792 = vpop.f32.mrb[0].mxu0
      %v3793 = vpop.f32.mrb[0].mxu0
      %v3794 = vadd.f32 %v3660, %v3793
      %v3795 = vpop.f32.mrb[0].mxu0
      %3796 = vmatprep.mubr.bf16.mxu0 0
      %3797 = vmatmul.mubr.bf16.gmra.mrb[0].mxu0 %v3687
      %v3798 = vpop.f32.mrb[0].mxu0
      %v3799 = vadd.f32 %v3660, %v3798
      %v3800 = vpop.f32.mrb[0].mxu0
      %v3801 = vpop.f32.mrb[0].mxu0
      %v3802 = vadd.f32 %v3660, %v3801
      %v3803 = vpop.f32.mrb[0].mxu0
      %3804 = vmatprep.mubr.bf16.mxu0 0
      %3805 = vmatmul.mubr.bf16.gmra.mrb[0].mxu0 %v3690
      %v3806 = vpop.f32.mrb[0].mxu0
      %v3807 = vadd.f32 %v3660, %v3806
      %v3808 = vpop.f32.mrb[0].mxu0
      %v3809 = vpop.f32.mrb[0].mxu0
      %v3810 = vadd.f32 %v3660, %v3809
      %v3811 = vpop.f32.mrb[0].mxu0
      %3812 = vmatprep.mubr.bf16.mxu0 0
      %3813 = vmatmul.mubr.bf16.gmra.mrb[0].mxu0 %v3693
      %v3814 = vpop.f32.mrb[0].mxu0
      %v3815 = vadd.f32 %v3660, %v3814
      %v3816 = vpop.f32.mrb[0].mxu0
      %v3817 = vpop.f32.mrb[0].mxu0
      %v3818 = vadd.f32 %v3660, %v3817
      %v3819 = vpop.f32.mrb[0].mxu0
      %3820 = vmatprep.mubr.bf16.mxu0 0
      %3821 = vmatmul.mubr.bf16.gmra.mrb[0].mxu0 %v3696
      %v3822 = vpop.f32.mrb[0].mxu0
      %v3823 = vadd.f32 %v3660, %v3822
      %v3824 = vpop.f32.mrb[0].mxu0
      %v3825 = vpop.f32.mrb[0].mxu0
      %v3826 = vadd.f32 %v3660, %v3825
      %v3827 = vpop.f32.mrb[0].mxu0
      %3828 = vmatprep.mubr.bf16.mxu0 0
      %3829 = vmatmul.mubr.bf16.gmra.mrb[0].mxu0 %v3699
      %v3830 = vpop.f32.mrb[0].mxu0
      %v3831 = vadd.f32 %v3660, %v3830
      %v3832 = vpop.f32.mrb[0].mxu0
      %v3833 = vpop.f32.mrb[0].mxu0
      %v3834 = vadd.f32 %v3660, %v3833
      %v3835 = vpop.f32.mrb[0].mxu0
      %3836 = vmatprep.mubr.bf16.mxu0 0
      %3837 = vmatmul.mubr.bf16.gmra.mrb[0].mxu0 %v3702
      %v3838 = vpop.f32.mrb[0].mxu0
      %v3839 = vadd.f32 %v3660, %v3838
      %v3840 = vpop.f32.mrb[0].mxu0
      %v3841 = vpop.f32.mrb[0].mxu0
      %v3842 = vadd.f32 %v3660, %v3841
      %v3843 = vpop.f32.mrb[0].mxu0
      %3844 = vmatprep.mubr.bf16.mxu0 0
      %3845 = vmatmul.mubr.bf16.gmra.mrb[0].mxu0 %v3705
      %v3846 = vpop.f32.mrb[0].mxu0
      %v3847 = vadd.f32 %v3660, %v3846
      %v3848 = vpop.f32.mrb[0].mxu0
      %v3849 = vpop.f32.mrb[0].mxu0
      %v3850 = vadd.f32 %v3660, %v3849
      %v3851 = vpop.f32.mrb[0].mxu0
      %3852 = vmatprep.mubr.bf16.mxu0 0
      %3853 = vmatmul.mubr.bf16.gmra.mrb[0].mxu0 %v3708
      %v3854 = vpop.f32.mrb[0].mxu0
      %v3855 = vadd.f32 %v3660, %v3854
      %v3856 = vpop.f32.mrb[0].mxu0
      %v3857 = vpop.f32.mrb[0].mxu0
      %v3858 = vadd.f32 %v3660, %v3857
      %v3859 = vpop.f32.mrb[0].mxu0
      %3860 = vmatprep.mubr.bf16.mxu0 0
      %3861 = vmatmul.mubr.bf16.gmra.mrb[0].mxu0 %v3711
      %v3862 = vpop.f32.mrb[0].mxu0
      %v3863 = vadd.f32 %v3660, %v3862
      %v3864 = vpop.f32.mrb[0].mxu0
      %v3865 = vpop.f32.mrb[0].mxu0
      %v3866 = vadd.f32 %v3660, %v3865
      %v3867 = vpop.f32.mrb[0].mxu0
      %3868 = vmatprep.mubr.bf16.mxu0 0
      %3869 = vmatmul.mubr.bf16.gmra.mrb[0].mxu0 %v3714
      %v3870 = vpop.f32.mrb[0].mxu0
      %v3871 = vadd.f32 %v3660, %v3870
      %v3872 = vpop.f32.mrb[0].mxu0
      %v3873 = vpop.f32.mrb[0].mxu0
      %v3874 = vadd.f32 %v3660, %v3873
      %v3875 = vpop.f32.mrb[0].mxu0
      %3876 = vdwg.mxu0
      %v3877 = vmax.f32 %v3751, 0.0
      %v3878 = vmax.f32 %v3754, 0.0
      %v3879 = vmax.f32 %v3759, 0.0
      %v3880 = vmax.f32 %v3762, 0.0
      %v3881 = vmax.f32 %v3767, 0.0
      %v3882 = vmax.f32 %v3770, 0.0
      %v3883 = vmax.f32 %v3775, 0.0
      %v3884 = vmax.f32 %v3778, 0.0
      %v3885 = vmax.f32 %v3783, 0.0
      %v3886 = vmax.f32 %v3786, 0.0
      %v3887 = vmax.f32 %v3791, 0.0
      %v3888 = vmax.f32 %v3794, 0.0
      %v3889 = vmax.f32 %v3799, 0.0
      %v3890 = vmax.f32 %v3802, 0.0
      %v3891 = vmax.f32 %v3807, 0.0
      %v3892 = vmax.f32 %v3810, 0.0
      %v3893 = vmax.f32 %v3815, 0.0
      %v3894 = vmax.f32 %v3818, 0.0
      %v3895 = vmax.f32 %v3823, 0.0
      %v3896 = vmax.f32 %v3826, 0.0
      %v3897 = vmax.f32 %v3831, 0.0
      %v3898 = vmax.f32 %v3834, 0.0
      %v3899 = vmax.f32 %v3839, 0.0
      %v3900 = vmax.f32 %v3842, 0.0
      %v3901 = vmax.f32 %v3847, 0.0
      %v3902 = vmax.f32 %v3850, 0.0
      %v3903 = vmax.f32 %v3855, 0.0
      %v3904 = vmax.f32 %v3858, 0.0
      %v3905 = vmax.f32 %v3863, 0.0
      %v3906 = vmax.f32 %v3866, 0.0
      %v3907 = vmax.f32 %v3871, 0.0
      %v3908 = vmax.f32 %v3874, 0.0
      %v3909 = vpack.c.bf16 %v3878, %v3877
      %v3910 = vpack.c.bf16 %v3880, %v3879
      %v3911 = vpack.c.bf16 %v3882, %v3881
      %v3912 = vpack.c.bf16 %v3884, %v3883
      %v3913 = vpack.c.bf16 %v3886, %v3885
      %v3914 = vpack.c.bf16 %v3888, %v3887
      %v3915 = vpack.c.bf16 %v3890, %v3889
      %v3916 = vpack.c.bf16 %v3892, %v3891
      %v3917 = vpack.c.bf16 %v3894, %v3893
      %v3918 = vpack.c.bf16 %v3896, %v3895
      %v3919 = vpack.c.bf16 %v3898, %v3897
      %v3920 = vpack.c.bf16 %v3900, %v3899
      %v3921 = vpack.c.bf16 %v3902, %v3901
      %v3922 = vpack.c.bf16 %v3904, %v3903
      %v3923 = vpack.c.bf16 %v3906, %v3905
      %v3924 = vpack.c.bf16 %v3908, %v3907
      %v3925 = vld [vmem:[%s11] sm:$0xf]
      %v3926 = vld [vmem:[%s11 + $0x4] sm:$0xf]
      %v3927 = vld [vmem:[%s11 + $0x8] sm:$0xf]
      %v3928 = vld [vmem:[%s11 + $0xc] sm:$0xf]
      %v3929 = vld [vmem:[%s12] sm:$0x1]
      %v3931 = vlaneseq
      %v3932 = vshrl.u32 %v3931, 7
      %v3933 = vsub.s32 0, %v3932
      %v3934 = vrot.slane %v3929, %v3933
      %v3940 = vunpack.c.l.b16 %v3925
      %v3941 = vunpack.c.l.b16 %v3926
      %v3942 = vunpack.c.l.b16 %v3927
      %v3943 = vunpack.c.l.b16 %v3928
      %v3944 = vpack.c.b16 %v3941, %v3940
      %v3945 = vpack.c.b16 %v3943, %v3942
      %v3949 = vsel %vm3427, %v3909, 0
      %v3952 = vsel %vm3427, %v3910, 0
      %v3955 = vsel %vm3427, %v3911, 0
      %v3958 = vsel %vm3427, %v3912, 0
      %v3961 = vsel %vm3427, %v3913, 0
      %v3964 = vsel %vm3427, %v3914, 0
      %v3967 = vsel %vm3427, %v3915, 0
      %v3970 = vsel %vm3427, %v3916, 0
      %v3973 = vsel %vm3427, %v3917, 0
      %v3976 = vsel %vm3427, %v3918, 0
      %v3979 = vsel %vm3427, %v3919, 0
      %v3982 = vsel %vm3427, %v3920, 0
      %v3985 = vsel %vm3427, %v3921, 0
      %v3988 = vsel %vm3427, %v3922, 0
      %v3991 = vsel %vm3427, %v3923, 0
      %v3994 = vsel %vm3427, %v3924, 0
      %3996 = vmatprep.subr.bf16.mxu0 0
      %3997 = vmatpush1.bf16.msra.mxu0 %v3944
      %3998 = vmatprep.subr.bf16.mxu0 0
      %3999 = vmatpush1.bf16.msra.mxu0 %v3945
      %4000 = vmatprep.subr.bf16.mxu0 0
      %4001 = vmatpush1.bf16.msra.mxu0 0
      %4002 = vmatprep.subr.bf16.mxu0 0
      %4003 = vmatpush1.bf16.msra.mxu0 0
      %4004 = vmatprep.subr.bf16.mxu0 0
      %4005 = vmatpush1.bf16.msra.mxu0 0
      %4006 = vmatprep.subr.bf16.mxu0 0
      %4007 = vmatpush1.bf16.msra.mxu0 0
      %4008 = vmatprep.subr.bf16.mxu0 0
      %4009 = vmatpush1.bf16.msra.mxu0 0
      %4010 = vmatprep.subr.bf16.mxu0 0
      %4011 = vmatpush1.bf16.msra.mxu0 0
      %4012 = vmatprep.subr.bf16.mxu0 0
      %4013 = vmatpush1.bf16.msra.mxu0 0
      %4014 = vmatprep.subr.bf16.mxu0 0
      %4015 = vmatpush1.bf16.msra.mxu0 0
      %4016 = vmatprep.subr.bf16.mxu0 0
      %4017 = vmatpush1.bf16.msra.mxu0 0
      %4018 = vmatprep.subr.bf16.mxu0 0
      %4019 = vmatpush1.bf16.msra.mxu0 0
      %4020 = vmatprep.subr.bf16.mxu0 0
      %4021 = vmatpush1.bf16.msra.mxu0 0
      %4022 = vmatprep.subr.bf16.mxu0 0
      %4023 = vmatpush1.bf16.msra.mxu0 0
      %4024 = vmatprep.subr.bf16.mxu0 0
      %4025 = vmatpush1.bf16.msra.mxu0 0
      %4026 = vmatprep.subr.bf16.mxu0 0
      %4027 = vmatpush1.bf16.msra.mxu0 0
      %4028 = vmatprep.mubr.bf16.mxu0 0
      %4029 = vmatmul.mubr.bf16.gmra.mrb[0].mxu0 %v3949
      %v4030 = vpop.f32.mrb[0].mxu0
      %v4031 = vadd.f32 %v3934, %v4030
      %v4032 = vpop.f32.mrb[0].mxu0
      %v4033 = vpop.f32.mrb[0].mxu0
      %v4034 = vadd.f32 %v3934, %v4033
      %v4035 = vpop.f32.mrb[0].mxu0
      %4036 = vmatprep.mubr.bf16.mxu0 0
      %4037 = vmatmul.mubr.bf16.gmra.mrb[0].mxu0 %v3952
      %v4038 = vpop.f32.mrb[0].mxu0
      %v4039 = vadd.f32 %v3934, %v4038
      %v4040 = vpop.f32.mrb[0].mxu0
      %v4041 = vpop.f32.mrb[0].mxu0
      %v4042 = vadd.f32 %v3934, %v4041
      %v4043 = vpop.f32.mrb[0].mxu0
      %4044 = vmatprep.mubr.bf16.mxu0 0
      %4045 = vmatmul.mubr.bf16.gmra.mrb[0].mxu0 %v3955
      %v4046 = vpop.f32.mrb[0].mxu0
      %v4047 = vadd.f32 %v3934, %v4046
      %v4048 = vpop.f32.mrb[0].mxu0
      %v4049 = vpop.f32.mrb[0].mxu0
      %v4050 = vadd.f32 %v3934, %v4049
      %v4051 = vpop.f32.mrb[0].mxu0
      %4052 = vmatprep.mubr.bf16.mxu0 0
      %4053 = vmatmul.mubr.bf16.gmra.mrb[0].mxu0 %v3958
      %v4054 = vpop.f32.mrb[0].mxu0
      %v4055 = vadd.f32 %v3934, %v4054
      %v4056 = vpop.f32.mrb[0].mxu0
      %v4057 = vpop.f32.mrb[0].mxu0
      %v4058 = vadd.f32 %v3934, %v4057
      %v4059 = vpop.f32.mrb[0].mxu0
      %4060 = vmatprep.mubr.bf16.mxu0 0
      %4061 = vmatmul.mubr.bf16.gmra.mrb[0].mxu0 %v3961
      %v4062 = vpop.f32.mrb[0].mxu0
      %v4063 = vadd.f32 %v3934, %v4062
      %v4064 = vpop.f32.mrb[0].mxu0
      %v4065 = vpop.f32.mrb[0].mxu0
      %v4066 = vadd.f32 %v3934, %v4065
      %v4067 = vpop.f32.mrb[0].mxu0
      %4068 = vmatprep.mubr.bf16.mxu0 0
      %4069 = vmatmul.mubr.bf16.gmra.mrb[0].mxu0 %v3964
      %v4070 = vpop.f32.mrb[0].mxu0
      %v4071 = vadd.f32 %v3934, %v4070
      %v4072 = vpop.f32.mrb[0].mxu0
      %v4073 = vpop.f32.mrb[0].mxu0
      %v4074 = vadd.f32 %v3934, %v4073
      %v4075 = vpop.f32.mrb[0].mxu0
      %4076 = vmatprep.mubr.bf16.mxu0 0
      %4077 = vmatmul.mubr.bf16.gmra.mrb[0].mxu0 %v3967
      %v4078 = vpop.f32.mrb[0].mxu0
      %v4079 = vadd.f32 %v3934, %v4078
      %v4080 = vpop.f32.mrb[0].mxu0
      %v4081 = vpop.f32.mrb[0].mxu0
      %v4082 = vadd.f32 %v3934, %v4081
      %v4083 = vpop.f32.mrb[0].mxu0
      %4084 = vmatprep.mubr.bf16.mxu0 0
      %4085 = vmatmul.mubr.bf16.gmra.mrb[0].mxu0 %v3970
      %v4086 = vpop.f32.mrb[0].mxu0
      %v4087 = vadd.f32 %v3934, %v4086
      %v4088 = vpop.f32.mrb[0].mxu0
      %v4089 = vpop.f32.mrb[0].mxu0
      %v4090 = vadd.f32 %v3934, %v4089
      %v4091 = vpop.f32.mrb[0].mxu0
      %4092 = vmatprep.mubr.bf16.mxu0 0
      %4093 = vmatmul.mubr.bf16.gmra.mrb[0].mxu0 %v3973
      %v4094 = vpop.f32.mrb[0].mxu0
      %v4095 = vadd.f32 %v3934, %v4094
      %v4096 = vpop.f32.mrb[0].mxu0
      %v4097 = vpop.f32.mrb[0].mxu0
      %v4098 = vadd.f32 %v3934, %v4097
      %v4099 = vpop.f32.mrb[0].mxu0
      %4100 = vmatprep.mubr.bf16.mxu0 0
      %4101 = vmatmul.mubr.bf16.gmra.mrb[0].mxu0 %v3976
      %v4102 = vpop.f32.mrb[0].mxu0
      %v4103 = vadd.f32 %v3934, %v4102
      %v4104 = vpop.f32.mrb[0].mxu0
      %v4105 = vpop.f32.mrb[0].mxu0
      %v4106 = vadd.f32 %v3934, %v4105
      %v4107 = vpop.f32.mrb[0].mxu0
      %4108 = vmatprep.mubr.bf16.mxu0 0
      %4109 = vmatmul.mubr.bf16.gmra.mrb[0].mxu0 %v3979
      %v4110 = vpop.f32.mrb[0].mxu0
      %v4111 = vadd.f32 %v3934, %v4110
      %v4112 = vpop.f32.mrb[0].mxu0
      %v4113 = vpop.f32.mrb[0].mxu0
      %v4114 = vadd.f32 %v3934, %v4113
      %v4115 = vpop.f32.mrb[0].mxu0
      %4116 = vmatprep.mubr.bf16.mxu0 0
      %4117 = vmatmul.mubr.bf16.gmra.mrb[0].mxu0 %v3982
      %v4118 = vpop.f32.mrb[0].mxu0
      %v4119 = vadd.f32 %v3934, %v4118
      %v4120 = vpop.f32.mrb[0].mxu0
      %v4121 = vpop.f32.mrb[0].mxu0
      %v4122 = vadd.f32 %v3934, %v4121
      %v4123 = vpop.f32.mrb[0].mxu0
      %4124 = vmatprep.mubr.bf16.mxu0 0
      %4125 = vmatmul.mubr.bf16.gmra.mrb[0].mxu0 %v3985
      %v4126 = vpop.f32.mrb[0].mxu0
      %v4127 = vadd.f32 %v3934, %v4126
      %v4128 = vpop.f32.mrb[0].mxu0
      %v4129 = vpop.f32.mrb[0].mxu0
      %v4130 = vadd.f32 %v3934, %v4129
      %v4131 = vpop.f32.mrb[0].mxu0
      %4132 = vmatprep.mubr.bf16.mxu0 0
      %4133 = vmatmul.mubr.bf16.gmra.mrb[0].mxu0 %v3988
      %v4134 = vpop.f32.mrb[0].mxu0
      %v4135 = vadd.f32 %v3934, %v4134
      %v4136 = vpop.f32.mrb[0].mxu0
      %v4137 = vpop.f32.mrb[0].mxu0
      %v4138 = vadd.f32 %v3934, %v4137
      %v4139 = vpop.f32.mrb[0].mxu0
      %4140 = vmatprep.mubr.bf16.mxu0 0
      %4141 = vmatmul.mubr.bf16.gmra.mrb[0].mxu0 %v3991
      %v4142 = vpop.f32.mrb[0].mxu0
      %v4143 = vadd.f32 %v3934, %v4142
      %v4144 = vpop.f32.mrb[0].mxu0
      %v4145 = vpop.f32.mrb[0].mxu0
      %v4146 = vadd.f32 %v3934, %v4145
      %v4147 = vpop.f32.mrb[0].mxu0
      %4148 = vmatprep.mubr.bf16.mxu0 0
      %4149 = vmatmul.mubr.bf16.gmra.mrb[0].mxu0 %v3994
      %v4150 = vpop.f32.mrb[0].mxu0
      %v4151 = vadd.f32 %v3934, %v4150
      %v4152 = vpop.f32.mrb[0].mxu0
      %v4153 = vpop.f32.mrb[0].mxu0
      %v4154 = vadd.f32 %v3934, %v4153
      %v4155 = vpop.f32.mrb[0].mxu0
      %4156 = vdwg.mxu0
      %v4157 = vmax.f32 %v4031, 0.0
      %v4158 = vmax.f32 %v4034, 0.0
      %v4159 = vmax.f32 %v4039, 0.0
      %v4160 = vmax.f32 %v4042, 0.0
      %v4161 = vmax.f32 %v4047, 0.0
      %v4162 = vmax.f32 %v4050, 0.0
      %v4163 = vmax.f32 %v4055, 0.0
      %v4164 = vmax.f32 %v4058, 0.0
      %v4165 = vmax.f32 %v4063, 0.0
      %v4166 = vmax.f32 %v4066, 0.0
      %v4167 = vmax.f32 %v4071, 0.0
      %v4168 = vmax.f32 %v4074, 0.0
      %v4169 = vmax.f32 %v4079, 0.0
      %v4170 = vmax.f32 %v4082, 0.0
      %v4171 = vmax.f32 %v4087, 0.0
      %v4172 = vmax.f32 %v4090, 0.0
      %v4173 = vmax.f32 %v4095, 0.0
      %v4174 = vmax.f32 %v4098, 0.0
      %v4175 = vmax.f32 %v4103, 0.0
      %v4176 = vmax.f32 %v4106, 0.0
      %v4177 = vmax.f32 %v4111, 0.0
      %v4178 = vmax.f32 %v4114, 0.0
      %v4179 = vmax.f32 %v4119, 0.0
      %v4180 = vmax.f32 %v4122, 0.0
      %v4181 = vmax.f32 %v4127, 0.0
      %v4182 = vmax.f32 %v4130, 0.0
      %v4183 = vmax.f32 %v4135, 0.0
      %v4184 = vmax.f32 %v4138, 0.0
      %v4185 = vmax.f32 %v4143, 0.0
      %v4186 = vmax.f32 %v4146, 0.0
      %v4187 = vmax.f32 %v4151, 0.0
      %v4188 = vmax.f32 %v4154, 0.0
      %v4189 = vpack.c.bf16 %v4158, %v4157
      %v4190 = vpack.c.bf16 %v4160, %v4159
      %v4191 = vpack.c.bf16 %v4162, %v4161
      %v4192 = vpack.c.bf16 %v4164, %v4163
      %v4193 = vpack.c.bf16 %v4166, %v4165
      %v4194 = vpack.c.bf16 %v4168, %v4167
      %v4195 = vpack.c.bf16 %v4170, %v4169
      %v4196 = vpack.c.bf16 %v4172, %v4171
      %v4197 = vpack.c.bf16 %v4174, %v4173
      %v4198 = vpack.c.bf16 %v4176, %v4175
      %v4199 = vpack.c.bf16 %v4178, %v4177
      %v4200 = vpack.c.bf16 %v4180, %v4179
      %v4201 = vpack.c.bf16 %v4182, %v4181
      %v4202 = vpack.c.bf16 %v4184, %v4183
      %v4203 = vpack.c.bf16 %v4186, %v4185
      %v4204 = vpack.c.bf16 %v4188, %v4187
      %v4205 = vld [vmem:[%s13] sm:$0xff]
      %v4206 = vld [vmem:[%s13 + $0x8] sm:$0xff]
      %v4207 = vld [vmem:[%s13 + $0x10] sm:$0xff]
      %v4208 = vld [vmem:[%s13 + $0x18] sm:$0xff]
      %v4209 = vld [vmem:[%s13 + $0x20] sm:$0xff]
      %v4210 = vld [vmem:[%s13 + $0x28] sm:$0xff]
      %v4211 = vld [vmem:[%s13 + $0x30] sm:$0xff]
      %v4212 = vld [vmem:[%s13 + $0x38] sm:$0xff]
      %v4213 = vld [vmem:[%s14] sm:$0x3]
      %v4215 = vlaneseq
      %v4216 = vshrl.u32 %v4215, 7
      %v4217 = vsub.s32 0, %v4216
      %v4218 = vrot.slane %v4213, %v4217
      %v4219 = vlaneseq
      %v4220 = vshrl.u32 %v4219, 7
      %v4221 = vsub.s32 1, %v4220
      %v4222 = vrot.slane %v4213, %v4221
      %v4233 = vunpack.c.l.b16 %v4205
      %v4234 = vunpack.c.h.b16 %v4205
      %v4235 = vunpack.c.l.b16 %v4206
      %v4236 = vunpack.c.h.b16 %v4206
      %v4237 = vunpack.c.l.b16 %v4207
      %v4238 = vunpack.c.h.b16 %v4207
      %v4239 = vunpack.c.l.b16 %v4208
      %v4240 = vunpack.c.h.b16 %v4208
      %v4241 = vunpack.c.l.b16 %v4209
      %v4242 = vunpack.c.h.b16 %v4209
      %v4243 = vunpack.c.l.b16 %v4210
      %v4244 = vunpack.c.h.b16 %v4210
      %v4245 = vunpack.c.l.b16 %v4211
      %v4246 = vunpack.c.h.b16 %v4211
      %v4247 = vunpack.c.l.b16 %v4212
      %v4248 = vunpack.c.h.b16 %v4212
      %v4249 = vpack.c.b16 %v4235, %v4233
      %v4250 = vpack.c.b16 %v4236, %v4234
      %v4251 = vpack.c.b16 %v4239, %v4237
      %v4252 = vpack.c.b16 %v4240, %v4238
      %v4253 = vpack.c.b16 %v4243, %v4241
      %v4254 = vpack.c.b16 %v4244, %v4242
      %v4255 = vpack.c.b16 %v4247, %v4245
      %v4256 = vpack.c.b16 %v4248, %v4246
      %v4266 = vsel %vm3146, %v4189, 0
      %v4269 = vsel %vm3146, %v4190, 0
      %v4272 = vsel %vm3146, %v4191, 0
      %v4275 = vsel %vm3146, %v4192, 0
      %v4278 = vsel %vm3146, %v4193, 0
      %v4281 = vsel %vm3146, %v4194, 0
      %v4284 = vsel %vm3146, %v4195, 0
      %v4287 = vsel %vm3146, %v4196, 0
      %v4290 = vsel %vm3146, %v4197, 0
      %v4293 = vsel %vm3146, %v4198, 0
      %v4296 = vsel %vm3146, %v4199, 0
      %v4299 = vsel %vm3146, %v4200, 0
      %v4302 = vsel %vm3146, %v4201, 0
      %v4305 = vsel %vm3146, %v4202, 0
      %v4308 = vsel %vm3146, %v4203, 0
      %v4311 = vsel %vm3146, %v4204, 0
      %4313 = vmatprep.subr.bf16.mxu0 %v4250
      %4314 = vmatpush1.bf16.msra.mxu0 %v4249
      %4315 = vmatprep.subr.bf16.mxu0 %v4252
      %4316 = vmatpush1.bf16.msra.mxu0 %v4251
      %4317 = vmatprep.subr.bf16.mxu0 %v4254
      %4318 = vmatpush1.bf16.msra.mxu0 %v4253
      %4319 = vmatprep.subr.bf16.mxu0 %v4256
      %4320 = vmatpush1.bf16.msra.mxu0 %v4255
      %4321 = vmatprep.subr.bf16.mxu0 0
      %4322 = vmatpush1.bf16.msra.mxu0 0
      %4323 = vmatprep.subr.bf16.mxu0 0
      %4324 = vmatpush1.bf16.msra.mxu0 0
      %4325 = vmatprep.subr.bf16.mxu0 0
      %4326 = vmatpush1.bf16.msra.mxu0 0
      %4327 = vmatprep.subr.bf16.mxu0 0
      %4328 = vmatpush1.bf16.msra.mxu0 0
      %4329 = vmatprep.subr.bf16.mxu0 0
      %4330 = vmatpush1.bf16.msra.mxu0 0
      %4331 = vmatprep.subr.bf16.mxu0 0
      %4332 = vmatpush1.bf16.msra.mxu0 0
      %4333 = vmatprep.subr.bf16.mxu0 0
      %4334 = vmatpush1.bf16.msra.mxu0 0
      %4335 = vmatprep.subr.bf16.mxu0 0
      %4336 = vmatpush1.bf16.msra.mxu0 0
      %4337 = vmatprep.subr.bf16.mxu0 0
      %4338 = vmatpush1.bf16.msra.mxu0 0
      %4339 = vmatprep.subr.bf16.mxu0 0
      %4340 = vmatpush1.bf16.msra.mxu0 0
      %4341 = vmatprep.subr.bf16.mxu0 0
      %4342 = vmatpush1.bf16.msra.mxu0 0
      %4343 = vmatprep.subr.bf16.mxu0 0
      %4344 = vmatpush1.bf16.msra.mxu0 0
      %4345 = vmatprep.mubr.bf16.mxu0 0
      %4346 = vmatmul.mubr.bf16.gmra.mrb[0].mxu0 %v4266
      %v4347 = vpop.f32.mrb[0].mxu0
      %v4348 = vadd.f32 %v4218, %v4347
      %v4349 = vpop.f32.mrb[0].mxu0
      %v4350 = vadd.f32 %v4222, %v4349
      %v4351 = vpop.f32.mrb[0].mxu0
      %v4352 = vadd.f32 %v4218, %v4351
      %v4353 = vpop.f32.mrb[0].mxu0
      %v4354 = vadd.f32 %v4222, %v4353
      %4355 = vmatprep.mubr.bf16.mxu0 0
      %4356 = vmatmul.mubr.bf16.gmra.mrb[0].mxu0 %v4269
      %v4357 = vpop.f32.mrb[0].mxu0
      %v4358 = vadd.f32 %v4218, %v4357
      %v4359 = vpop.f32.mrb[0].mxu0
      %v4360 = vadd.f32 %v4222, %v4359
      %v4361 = vpop.f32.mrb[0].mxu0
      %v4362 = vadd.f32 %v4218, %v4361
      %v4363 = vpop.f32.mrb[0].mxu0
      %v4364 = vadd.f32 %v4222, %v4363
      %4365 = vmatprep.mubr.bf16.mxu0 0
      %4366 = vmatmul.mubr.bf16.gmra.mrb[0].mxu0 %v4272
      %v4367 = vpop.f32.mrb[0].mxu0
      %v4368 = vadd.f32 %v4218, %v4367
      %v4369 = vpop.f32.mrb[0].mxu0
      %v4370 = vadd.f32 %v4222, %v4369
      %v4371 = vpop.f32.mrb[0].mxu0
      %v4372 = vadd.f32 %v4218, %v4371
      %v4373 = vpop.f32.mrb[0].mxu0
      %v4374 = vadd.f32 %v4222, %v4373
      %4375 = vmatprep.mubr.bf16.mxu0 0
      %4376 = vmatmul.mubr.bf16.gmra.mrb[0].mxu0 %v4275
      %v4377 = vpop.f32.mrb[0].mxu0
      %v4378 = vadd.f32 %v4218, %v4377
      %v4379 = vpop.f32.mrb[0].mxu0
      %v4380 = vadd.f32 %v4222, %v4379
      %v4381 = vpop.f32.mrb[0].mxu0
      %v4382 = vadd.f32 %v4218, %v4381
      %v4383 = vpop.f32.mrb[0].mxu0
      %v4384 = vadd.f32 %v4222, %v4383
      %4385 = vmatprep.mubr.bf16.mxu0 0
      %4386 = vmatmul.mubr.bf16.gmra.mrb[0].mxu0 %v4278
      %v4387 = vpop.f32.mrb[0].mxu0
      %v4388 = vadd.f32 %v4218, %v4387
      %v4389 = vpop.f32.mrb[0].mxu0
      %v4390 = vadd.f32 %v4222, %v4389
      %v4391 = vpop.f32.mrb[0].mxu0
      %v4392 = vadd.f32 %v4218, %v4391
      %v4393 = vpop.f32.mrb[0].mxu0
      %v4394 = vadd.f32 %v4222, %v4393
      %4395 = vmatprep.mubr.bf16.mxu0 0
      %4396 = vmatmul.mubr.bf16.gmra.mrb[0].mxu0 %v4281
      %v4397 = vpop.f32.mrb[0].mxu0
      %v4398 = vadd.f32 %v4218, %v4397
      %v4399 = vpop.f32.mrb[0].mxu0
      %v4400 = vadd.f32 %v4222, %v4399
      %v4401 = vpop.f32.mrb[0].mxu0
      %v4402 = vadd.f32 %v4218, %v4401
      %v4403 = vpop.f32.mrb[0].mxu0
      %v4404 = vadd.f32 %v4222, %v4403
      %4405 = vmatprep.mubr.bf16.mxu0 0
      %4406 = vmatmul.mubr.bf16.gmra.mrb[0].mxu0 %v4284
      %v4407 = vpop.f32.mrb[0].mxu0
      %v4408 = vadd.f32 %v4218, %v4407
      %v4409 = vpop.f32.mrb[0].mxu0
      %v4410 = vadd.f32 %v4222, %v4409
      %v4411 = vpop.f32.mrb[0].mxu0
      %v4412 = vadd.f32 %v4218, %v4411
      %v4413 = vpop.f32.mrb[0].mxu0
      %v4414 = vadd.f32 %v4222, %v4413
      %4415 = vmatprep.mubr.bf16.mxu0 0
      %4416 = vmatmul.mubr.bf16.gmra.mrb[0].mxu0 %v4287
      %v4417 = vpop.f32.mrb[0].mxu0
      %v4418 = vadd.f32 %v4218, %v4417
      %v4419 = vpop.f32.mrb[0].mxu0
      %v4420 = vadd.f32 %v4222, %v4419
      %v4421 = vpop.f32.mrb[0].mxu0
      %v4422 = vadd.f32 %v4218, %v4421
      %v4423 = vpop.f32.mrb[0].mxu0
      %v4424 = vadd.f32 %v4222, %v4423
      %4425 = vmatprep.mubr.bf16.mxu0 0
      %4426 = vmatmul.mubr.bf16.gmra.mrb[0].mxu0 %v4290
      %v4427 = vpop.f32.mrb[0].mxu0
      %v4428 = vadd.f32 %v4218, %v4427
      %v4429 = vpop.f32.mrb[0].mxu0
      %v4430 = vadd.f32 %v4222, %v4429
      %v4431 = vpop.f32.mrb[0].mxu0
      %v4432 = vadd.f32 %v4218, %v4431
      %v4433 = vpop.f32.mrb[0].mxu0
      %v4434 = vadd.f32 %v4222, %v4433
      %4435 = vmatprep.mubr.bf16.mxu0 0
      %4436 = vmatmul.mubr.bf16.gmra.mrb[0].mxu0 %v4293
      %v4437 = vpop.f32.mrb[0].mxu0
      %v4438 = vadd.f32 %v4218, %v4437
      %v4439 = vpop.f32.mrb[0].mxu0
      %v4440 = vadd.f32 %v4222, %v4439
      %v4441 = vpop.f32.mrb[0].mxu0
      %v4442 = vadd.f32 %v4218, %v4441
      %v4443 = vpop.f32.mrb[0].mxu0
      %v4444 = vadd.f32 %v4222, %v4443
      %4445 = vmatprep.mubr.bf16.mxu0 0
      %4446 = vmatmul.mubr.bf16.gmra.mrb[0].mxu0 %v4296
      %v4447 = vpop.f32.mrb[0].mxu0
      %v4448 = vadd.f32 %v4218, %v4447
      %v4449 = vpop.f32.mrb[0].mxu0
      %v4450 = vadd.f32 %v4222, %v4449
      %v4451 = vpop.f32.mrb[0].mxu0
      %v4452 = vadd.f32 %v4218, %v4451
      %v4453 = vpop.f32.mrb[0].mxu0
      %v4454 = vadd.f32 %v4222, %v4453
      %4455 = vmatprep.mubr.bf16.mxu0 0
      %4456 = vmatmul.mubr.bf16.gmra.mrb[0].mxu0 %v4299
      %v4457 = vpop.f32.mrb[0].mxu0
      %v4458 = vadd.f32 %v4218, %v4457
      %v4459 = vpop.f32.mrb[0].mxu0
      %v4460 = vadd.f32 %v4222, %v4459
      %v4461 = vpop.f32.mrb[0].mxu0
      %v4462 = vadd.f32 %v4218, %v4461
      %v4463 = vpop.f32.mrb[0].mxu0
      %v4464 = vadd.f32 %v4222, %v4463
      %4465 = vmatprep.mubr.bf16.mxu0 0
      %4466 = vmatmul.mubr.bf16.gmra.mrb[0].mxu0 %v4302
      %v4467 = vpop.f32.mrb[0].mxu0
      %v4468 = vadd.f32 %v4218, %v4467
      %v4469 = vpop.f32.mrb[0].mxu0
      %v4470 = vadd.f32 %v4222, %v4469
      %v4471 = vpop.f32.mrb[0].mxu0
      %v4472 = vadd.f32 %v4218, %v4471
      %v4473 = vpop.f32.mrb[0].mxu0
      %v4474 = vadd.f32 %v4222, %v4473
      %4475 = vmatprep.mubr.bf16.mxu0 0
      %4476 = vmatmul.mubr.bf16.gmra.mrb[0].mxu0 %v4305
      %v4477 = vpop.f32.mrb[0].mxu0
      %v4478 = vadd.f32 %v4218, %v4477
      %v4479 = vpop.f32.mrb[0].mxu0
      %v4480 = vadd.f32 %v4222, %v4479
      %v4481 = vpop.f32.mrb[0].mxu0
      %v4482 = vadd.f32 %v4218, %v4481
      %v4483 = vpop.f32.mrb[0].mxu0
      %v4484 = vadd.f32 %v4222, %v4483
      %4485 = vmatprep.mubr.bf16.mxu0 0
      %4486 = vmatmul.mubr.bf16.gmra.mrb[0].mxu0 %v4308
      %v4487 = vpop.f32.mrb[0].mxu0
      %v4488 = vadd.f32 %v4218, %v4487
      %v4489 = vpop.f32.mrb[0].mxu0
      %v4490 = vadd.f32 %v4222, %v4489
      %v4491 = vpop.f32.mrb[0].mxu0
      %v4492 = vadd.f32 %v4218, %v4491
      %v4493 = vpop.f32.mrb[0].mxu0
      %v4494 = vadd.f32 %v4222, %v4493
      %4495 = vmatprep.mubr.bf16.mxu0 0
      %4496 = vmatmul.mubr.bf16.gmra.mrb[0].mxu0 %v4311
      %v4497 = vpop.f32.mrb[0].mxu0
      %v4498 = vadd.f32 %v4218, %v4497
      %v4499 = vpop.f32.mrb[0].mxu0
      %v4500 = vadd.f32 %v4222, %v4499
      %v4501 = vpop.f32.mrb[0].mxu0
      %v4502 = vadd.f32 %v4218, %v4501
      %v4503 = vpop.f32.mrb[0].mxu0
      %v4504 = vadd.f32 %v4222, %v4503
      %4505 = vdwg.mxu0
      %v4506 = vmax.f32 %v4348, 0.0
      %v4507 = vmax.f32 %v4350, 0.0
      %v4508 = vmax.f32 %v4352, 0.0
      %v4509 = vmax.f32 %v4354, 0.0
      %v4510 = vmax.f32 %v4358, 0.0
      %v4511 = vmax.f32 %v4360, 0.0
      %v4512 = vmax.f32 %v4362, 0.0
      %v4513 = vmax.f32 %v4364, 0.0
      %v4514 = vmax.f32 %v4368, 0.0
      %v4515 = vmax.f32 %v4370, 0.0
      %v4516 = vmax.f32 %v4372, 0.0
      %v4517 = vmax.f32 %v4374, 0.0
      %v4518 = vmax.f32 %v4378, 0.0
      %v4519 = vmax.f32 %v4380, 0.0
      %v4520 = vmax.f32 %v4382, 0.0
      %v4521 = vmax.f32 %v4384, 0.0
      %v4522 = vmax.f32 %v4388, 0.0
      %v4523 = vmax.f32 %v4390, 0.0
      %v4524 = vmax.f32 %v4392, 0.0
      %v4525 = vmax.f32 %v4394, 0.0
      %v4526 = vmax.f32 %v4398, 0.0
      %v4527 = vmax.f32 %v4400, 0.0
      %v4528 = vmax.f32 %v4402, 0.0
      %v4529 = vmax.f32 %v4404, 0.0
      %v4530 = vmax.f32 %v4408, 0.0
      %v4531 = vmax.f32 %v4410, 0.0
      %v4532 = vmax.f32 %v4412, 0.0
      %v4533 = vmax.f32 %v4414, 0.0
      %v4534 = vmax.f32 %v4418, 0.0
      %v4535 = vmax.f32 %v4420, 0.0
      %v4536 = vmax.f32 %v4422, 0.0
      %v4537 = vmax.f32 %v4424, 0.0
      %v4538 = vmax.f32 %v4428, 0.0
      %v4539 = vmax.f32 %v4430, 0.0
      %v4540 = vmax.f32 %v4432, 0.0
      %v4541 = vmax.f32 %v4434, 0.0
      %v4542 = vmax.f32 %v4438, 0.0
      %v4543 = vmax.f32 %v4440, 0.0
      %v4544 = vmax.f32 %v4442, 0.0
      %v4545 = vmax.f32 %v4444, 0.0
      %v4546 = vmax.f32 %v4448, 0.0
      %v4547 = vmax.f32 %v4450, 0.0
      %v4548 = vmax.f32 %v4452, 0.0
      %v4549 = vmax.f32 %v4454, 0.0
      %v4550 = vmax.f32 %v4458, 0.0
      %v4551 = vmax.f32 %v4460, 0.0
      %v4552 = vmax.f32 %v4462, 0.0
      %v4553 = vmax.f32 %v4464, 0.0
      %v4554 = vmax.f32 %v4468, 0.0
      %v4555 = vmax.f32 %v4470, 0.0
      %v4556 = vmax.f32 %v4472, 0.0
      %v4557 = vmax.f32 %v4474, 0.0
      %v4558 = vmax.f32 %v4478, 0.0
      %v4559 = vmax.f32 %v4480, 0.0
      %v4560 = vmax.f32 %v4482, 0.0
      %v4561 = vmax.f32 %v4484, 0.0
      %v4562 = vmax.f32 %v4488, 0.0
      %v4563 = vmax.f32 %v4490, 0.0
      %v4564 = vmax.f32 %v4492, 0.0
      %v4565 = vmax.f32 %v4494, 0.0
      %v4566 = vmax.f32 %v4498, 0.0
      %v4567 = vmax.f32 %v4500, 0.0
      %v4568 = vmax.f32 %v4502, 0.0
      %v4569 = vmax.f32 %v4504, 0.0
      %v4570 = vpack.c.bf16 %v4508, %v4506
      %v4571 = vpack.c.bf16 %v4509, %v4507
      %v4572 = vpack.c.bf16 %v4512, %v4510
      %v4573 = vpack.c.bf16 %v4513, %v4511
      %v4574 = vpack.c.bf16 %v4516, %v4514
      %v4575 = vpack.c.bf16 %v4517, %v4515
      %v4576 = vpack.c.bf16 %v4520, %v4518
      %v4577 = vpack.c.bf16 %v4521, %v4519
      %v4578 = vpack.c.bf16 %v4524, %v4522
      %v4579 = vpack.c.bf16 %v4525, %v4523
      %v4580 = vpack.c.bf16 %v4528, %v4526
      %v4581 = vpack.c.bf16 %v4529, %v4527
      %v4582 = vpack.c.bf16 %v4532, %v4530
      %v4583 = vpack.c.bf16 %v4533, %v4531
      %v4584 = vpack.c.bf16 %v4536, %v4534
      %v4585 = vpack.c.bf16 %v4537, %v4535
      %v4586 = vpack.c.bf16 %v4540, %v4538
      %v4587 = vpack.c.bf16 %v4541, %v4539
      %v4588 = vpack.c.bf16 %v4544, %v4542
      %v4589 = vpack.c.bf16 %v4545, %v4543
      %v4590 = vpack.c.bf16 %v4548, %v4546
      %v4591 = vpack.c.bf16 %v4549, %v4547
      %v4592 = vpack.c.bf16 %v4552, %v4550
      %v4593 = vpack.c.bf16 %v4553, %v4551
      %v4594 = vpack.c.bf16 %v4556, %v4554
      %v4595 = vpack.c.bf16 %v4557, %v4555
      %v4596 = vpack.c.bf16 %v4560, %v4558
      %v4597 = vpack.c.bf16 %v4561, %v4559
      %v4598 = vpack.c.bf16 %v4564, %v4562
      %v4599 = vpack.c.bf16 %v4565, %v4563
      %v4600 = vpack.c.bf16 %v4568, %v4566
      %v4601 = vpack.c.bf16 %v4569, %v4567
      %v4602 = vld [vmem:[%s15] sm:$0xff]
      %v4603 = vld [vmem:[%s15 + $0x8] sm:$0xff]
      %v4604 = vld [vmem:[%s15 + $0x10] sm:$0xff]
      %v4605 = vld [vmem:[%s15 + $0x18] sm:$0xf]
      %v4606 = vld [vmem:[%s15 + $0x1c] sm:$0xff]
      %v4607 = vld [vmem:[%s15 + $0x24] sm:$0xff]
      %v4608 = vld [vmem:[%s15 + $0x2c] sm:$0xff]
      %v4609 = vld [vmem:[%s15 + $0x34] sm:$0xf]
      %v4610 = vld [vmem:[%s15 + $0x38] sm:$0xff]
      %v4611 = vld [vmem:[%s15 + $0x40] sm:$0xff]
      %v4612 = vld [vmem:[%s15 + $0x48] sm:$0xff]
      %v4613 = vld [vmem:[%s15 + $0x50] sm:$0xf]
      %v4614 = vld [vmem:[%s15 + $0x54] sm:$0xff]
      %v4615 = vld [vmem:[%s15 + $0x5c] sm:$0xff]
      %v4616 = vld [vmem:[%s15 + $0x64] sm:$0xff]
      %v4617 = vld [vmem:[%s15 + $0x6c] sm:$0xf]
      %v4618 = vld [vmem:[%s15 + $0x70] sm:$0xff]
      %v4619 = vld [vmem:[%s15 + $0x78] sm:$0xff]
      %v4620 = vld [vmem:[%s15 + $0x80] sm:$0xff]
      %v4621 = vld [vmem:[%s15 + $0x88] sm:$0xf]
      %v4622 = vld [vmem:[%s15 + $0x8c] sm:$0xff]
      %v4623 = vld [vmem:[%s15 + $0x94] sm:$0xff]
      %v4624 = vld [vmem:[%s15 + $0x9c] sm:$0xff]
      %v4625 = vld [vmem:[%s15 + $0xa4] sm:$0xf]
      %v4626 = vld [vmem:[%s15 + $0xa8] sm:$0xff]
      %v4627 = vld [vmem:[%s15 + $0xb0] sm:$0xff]
      %v4628 = vld [vmem:[%s15 + $0xb8] sm:$0xff]
      %v4629 = vld [vmem:[%s15 + $0xc0] sm:$0xf]
      %v4630 = vld [vmem:[%s15 + $0xc4] sm:$0xff]
      %v4631 = vld [vmem:[%s15 + $0xcc] sm:$0xff]
      %v4632 = vld [vmem:[%s15 + $0xd4] sm:$0xff]
      %v4633 = vld [vmem:[%s15 + $0xdc] sm:$0xf]
      %v4634 = vld [vmem:[%s15 + $0xe0] sm:$0xff]
      %v4635 = vld [vmem:[%s15 + $0xe8] sm:$0xff]
      %v4636 = vld [vmem:[%s15 + $0xf0] sm:$0xff]
      %v4637 = vld [vmem:[%s15 + $0xf8] sm:$0xf]
      %v4638 = vld [vmem:[%s15 + $0xfc] sm:$0xff]
      %v4639 = vld [vmem:[%s15 + $0x104] sm:$0xff]
      %v4640 = vld [vmem:[%s15 + $0x10c] sm:$0xff]
      %v4641 = vld [vmem:[%s15 + $0x114] sm:$0xf]
      %v4642 = vld [vmem:[%s15 + $0x118] sm:$0xff]
      %v4643 = vld [vmem:[%s15 + $0x120] sm:$0xff]
      %v4644 = vld [vmem:[%s15 + $0x128] sm:$0xff]
      %v4645 = vld [vmem:[%s15 + $0x130] sm:$0xf]
      %v4646 = vld [vmem:[%s15 + $0x134] sm:$0xff]
      %v4647 = vld [vmem:[%s15 + $0x13c] sm:$0xff]
      %v4648 = vld [vmem:[%s15 + $0x144] sm:$0xff]
      %v4649 = vld [vmem:[%s15 + $0x14c] sm:$0xf]
      %v4650 = vld [vmem:[%s15 + $0x150] sm:$0xff]
      %v4651 = vld [vmem:[%s15 + $0x158] sm:$0xff]
      %v4652 = vld [vmem:[%s15 + $0x160] sm:$0xff]
      %v4653 = vld [vmem:[%s15 + $0x168] sm:$0xf]
      %v4654 = vld [vmem:[%s15 + $0x16c] sm:$0xff]
      %v4655 = vld [vmem:[%s15 + $0x174] sm:$0xff]
      %v4656 = vld [vmem:[%s15 + $0x17c] sm:$0xff]
      %v4657 = vld [vmem:[%s15 + $0x184] sm:$0xf]
      %v4658 = vld [vmem:[%s15 + $0x188] sm:$0xff]
      %v4659 = vld [vmem:[%s15 + $0x190] sm:$0xff]
      %v4660 = vld [vmem:[%s15 + $0x198] sm:$0xff]
      %v4661 = vld [vmem:[%s15 + $0x1a0] sm:$0xf]
      %v4662 = vld [vmem:[%s15 + $0x1a4] sm:$0xff]
      %v4663 = vld [vmem:[%s15 + $0x1ac] sm:$0xff]
      %v4664 = vld [vmem:[%s15 + $0x1b4] sm:$0xff]
      %v4665 = vld [vmem:[%s15 + $0x1bc] sm:$0xf]
      %v4666 = vld [vmem:[%s15 + $0x1c0] sm:$0xff]
      %v4667 = vld [vmem:[%s15 + $0x1c8] sm:$0xff]
      %v4668 = vld [vmem:[%s15 + $0x1d0] sm:$0xff]
      %v4669 = vld [vmem:[%s15 + $0x1d8] sm:$0xf]
      %v4670 = vld [vmem:[%s15 + $0x1dc] sm:$0xff]
      %v4671 = vld [vmem:[%s15 + $0x1e4] sm:$0xff]
      %v4672 = vld [vmem:[%s15 + $0x1ec] sm:$0xff]
      %v4673 = vld [vmem:[%s15 + $0x1f4] sm:$0xf]
      %v4674 = vld [vmem:[%s15 + $0x1f8] sm:$0xff]
      %v4675 = vld [vmem:[%s15 + $0x200] sm:$0xff]
      %v4676 = vld [vmem:[%s15 + $0x208] sm:$0xff]
      %v4677 = vld [vmem:[%s15 + $0x210] sm:$0xf]
      %v4678 = vld [vmem:[%s15 + $0x214] sm:$0xff]
      %v4679 = vld [vmem:[%s15 + $0x21c] sm:$0xff]
      %v4680 = vld [vmem:[%s15 + $0x224] sm:$0xff]
      %v4681 = vld [vmem:[%s15 + $0x22c] sm:$0xf]
      %v4682 = vld [vmem:[%s15 + $0x230] sm:$0xff]
      %v4683 = vld [vmem:[%s15 + $0x238] sm:$0xff]
      %v4684 = vld [vmem:[%s15 + $0x240] sm:$0xff]
      %v4685 = vld [vmem:[%s15 + $0x248] sm:$0xf]
      %v4686 = vld [vmem:[%s15 + $0x24c] sm:$0xff]
      %v4687 = vld [vmem:[%s15 + $0x254] sm:$0xff]
      %v4688 = vld [vmem:[%s15 + $0x25c] sm:$0xff]
      %v4689 = vld [vmem:[%s15 + $0x264] sm:$0xf]
      %v4690 = vld [vmem:[%s15 + $0x268] sm:$0xff]
      %v4691 = vld [vmem:[%s15 + $0x270] sm:$0xff]
      %v4692 = vld [vmem:[%s15 + $0x278] sm:$0xff]
      %v4693 = vld [vmem:[%s15 + $0x280] sm:$0xf]
      %v4694 = vld [vmem:[%s15 + $0x284] sm:$0xff]
      %v4695 = vld [vmem:[%s15 + $0x28c] sm:$0xff]
      %v4696 = vld [vmem:[%s15 + $0x294] sm:$0xff]
      %v4697 = vld [vmem:[%s15 + $0x29c] sm:$0xf]
      %v4698 = vld [vmem:[%s15 + $0x2a0] sm:$0xff]
      %v4699 = vld [vmem:[%s15 + $0x2a8] sm:$0xff]
      %v4700 = vld [vmem:[%s15 + $0x2b0] sm:$0xff]
      %v4701 = vld [vmem:[%s15 + $0x2b8] sm:$0xf]
      %v4702 = vld [vmem:[%s15 + $0x2bc] sm:$0xff]
      %v4703 = vld [vmem:[%s15 + $0x2c4] sm:$0xff]
      %v4704 = vld [vmem:[%s15 + $0x2cc] sm:$0xff]
      %v4705 = vld [vmem:[%s15 + $0x2d4] sm:$0xf]
      %v4706 = vld [vmem:[%s15 + $0x2d8] sm:$0xff]
      %v4707 = vld [vmem:[%s15 + $0x2e0] sm:$0xff]
      %v4708 = vld [vmem:[%s15 + $0x2e8] sm:$0xff]
      %v4709 = vld [vmem:[%s15 + $0x2f0] sm:$0xf]
      %v4710 = vld [vmem:[%s15 + $0x2f4] sm:$0xff]
      %v4711 = vld [vmem:[%s15 + $0x2fc] sm:$0xff]
      %v4712 = vld [vmem:[%s15 + $0x304] sm:$0xff]
      %v4713 = vld [vmem:[%s15 + $0x30c] sm:$0xf]
      %v4714 = vld [vmem:[%s15 + $0x310] sm:$0xff]
      %v4715 = vld [vmem:[%s15 + $0x318] sm:$0xff]
      %v4716 = vld [vmem:[%s15 + $0x320] sm:$0xff]
      %v4717 = vld [vmem:[%s15 + $0x328] sm:$0xf]
      %v4718 = vld [vmem:[%s15 + $0x32c] sm:$0xff]
      %v4719 = vld [vmem:[%s15 + $0x334] sm:$0xff]
      %v4720 = vld [vmem:[%s15 + $0x33c] sm:$0xff]
      %v4721 = vld [vmem:[%s15 + $0x344] sm:$0xf]
      %v4722 = vld [vmem:[%s15 + $0x348] sm:$0xff]
      %v4723 = vld [vmem:[%s15 + $0x350] sm:$0xff]
      %v4724 = vld [vmem:[%s15 + $0x358] sm:$0xff]
      %v4725 = vld [vmem:[%s15 + $0x360] sm:$0xf]
      %v4726 = vld [vmem:[%s15 + $0x364] sm:$0xff]
      %v4727 = vld [vmem:[%s15 + $0x36c] sm:$0xff]
      %v4728 = vld [vmem:[%s15 + $0x374] sm:$0xff]
      %v4729 = vld [vmem:[%s15 + $0x37c] sm:$0xf]
      %v4730 = vld [vmem:[%s16] sm:$0x7f]
      %v4732 = vlaneseq
      %v4733 = vshrl.u32 %v4732, 7
      %v4734 = vsub.s32 0, %v4733
      %v4735 = vrot.slane %v4730, %v4734
      %v4736 = vlaneseq
      %v4737 = vshrl.u32 %v4736, 7
      %v4738 = vsub.s32 1, %v4737
      %v4739 = vrot.slane %v4730, %v4738
      %v4740 = vlaneseq
      %v4741 = vshrl.u32 %v4740, 7
      %v4742 = vsub.s32 2, %v4741
      %v4743 = vrot.slane %v4730, %v4742
      %v4744 = vlaneseq
      %v4745 = vshrl.u32 %v4744, 7
      %v4746 = vsub.s32 3, %v4745
      %v4747 = vrot.slane %v4730, %v4746
      %v4748 = vlaneseq
      %v4749 = vshrl.u32 %v4748, 7
      %v4750 = vsub.s32 4, %v4749
      %v4751 = vrot.slane %v4730, %v4750
      %v4752 = vlaneseq
      %v4753 = vshrl.u32 %v4752, 7
      %v4754 = vsub.s32 5, %v4753
      %v4755 = vrot.slane %v4730, %v4754
      %v4756 = vlaneseq
      %v4757 = vshrl.u32 %v4756, 7
      %v4758 = vsub.s32 6, %v4757
      %v4759 = vrot.slane %v4730, %v4758
      %v4895 = vunpack.c.l.b16 %v4602
      %v4896 = vunpack.c.h.b16 %v4602
      %v4897 = vunpack.c.l.b16 %v4603
      %v4898 = vunpack.c.h.b16 %v4603
      %v4899 = vunpack.c.l.b16 %v4604
      %v4900 = vunpack.c.h.b16 %v4604
      %v4901 = vunpack.c.l.b16 %v4605
      %v4902 = vunpack.c.l.b16 %v4606
      %v4903 = vunpack.c.h.b16 %v4606
      %v4904 = vunpack.c.l.b16 %v4607
      %v4905 = vunpack.c.h.b16 %v4607
      %v4906 = vunpack.c.l.b16 %v4608
      %v4907 = vunpack.c.h.b16 %v4608
      %v4908 = vunpack.c.l.b16 %v4609
      %v4909 = vunpack.c.l.b16 %v4610
      %v4910 = vunpack.c.h.b16 %v4610
      %v4911 = vunpack.c.l.b16 %v4611
      %v4912 = vunpack.c.h.b16 %v4611
      %v4913 = vunpack.c.l.b16 %v4612
      %v4914 = vunpack.c.h.b16 %v4612
      %v4915 = vunpack.c.l.b16 %v4613
      %v4916 = vunpack.c.l.b16 %v4614
      %v4917 = vunpack.c.h.b16 %v4614
      %v4918 = vunpack.c.l.b16 %v4615
      %v4919 = vunpack.c.h.b16 %v4615
      %v4920 = vunpack.c.l.b16 %v4616
      %v4921 = vunpack.c.h.b16 %v4616
      %v4922 = vunpack.c.l.b16 %v4617
      %v4923 = vunpack.c.l.b16 %v4618
      %v4924 = vunpack.c.h.b16 %v4618
      %v4925 = vunpack.c.l.b16 %v4619
      %v4926 = vunpack.c.h.b16 %v4619
      %v4927 = vunpack.c.l.b16 %v4620
      %v4928 = vunpack.c.h.b16 %v4620
      %v4929 = vunpack.c.l.b16 %v4621
      %v4930 = vunpack.c.l.b16 %v4622
      %v4931 = vunpack.c.h.b16 %v4622
      %v4932 = vunpack.c.l.b16 %v4623
      %v4933 = vunpack.c.h.b16 %v4623
      %v4934 = vunpack.c.l.b16 %v4624
      %v4935 = vunpack.c.h.b16 %v4624
      %v4936 = vunpack.c.l.b16 %v4625
      %v4937 = vunpack.c.l.b16 %v4626
      %v4938 = vunpack.c.h.b16 %v4626
      %v4939 = vunpack.c.l.b16 %v4627
      %v4940 = vunpack.c.h.b16 %v4627
      %v4941 = vunpack.c.l.b16 %v4628
      %v4942 = vunpack.c.h.b16 %v4628
      %v4943 = vunpack.c.l.b16 %v4629
      %v4944 = vunpack.c.l.b16 %v4630
      %v4945 = vunpack.c.h.b16 %v4630
      %v4946 = vunpack.c.l.b16 %v4631
      %v4947 = vunpack.c.h.b16 %v4631
      %v4948 = vunpack.c.l.b16 %v4632
      %v4949 = vunpack.c.h.b16 %v4632
      %v4950 = vunpack.c.l.b16 %v4633
      %v4951 = vunpack.c.l.b16 %v4634
      %v4952 = vunpack.c.h.b16 %v4634
      %v4953 = vunpack.c.l.b16 %v4635
      %v4954 = vunpack.c.h.b16 %v4635
      %v4955 = vunpack.c.l.b16 %v4636
      %v4956 = vunpack.c.h.b16 %v4636
      %v4957 = vunpack.c.l.b16 %v4637
      %v4958 = vunpack.c.l.b16 %v4638
      %v4959 = vunpack.c.h.b16 %v4638
      %v4960 = vunpack.c.l.b16 %v4639
      %v4961 = vunpack.c.h.b16 %v4639
      %v4962 = vunpack.c.l.b16 %v4640
      %v4963 = vunpack.c.h.b16 %v4640
      %v4964 = vunpack.c.l.b16 %v4641
      %v4965 = vunpack.c.l.b16 %v4642
      %v4966 = vunpack.c.h.b16 %v4642
      %v4967 = vunpack.c.l.b16 %v4643
      %v4968 = vunpack.c.h.b16 %v4643
      %v4969 = vunpack.c.l.b16 %v4644
      %v4970 = vunpack.c.h.b16 %v4644
      %v4971 = vunpack.c.l.b16 %v4645
      %v4972 = vunpack.c.l.b16 %v4646
      %v4973 = vunpack.c.h.b16 %v4646
      %v4974 = vunpack.c.l.b16 %v4647
      %v4975 = vunpack.c.h.b16 %v4647
      %v4976 = vunpack.c.l.b16 %v4648
      %v4977 = vunpack.c.h.b16 %v4648
      %v4978 = vunpack.c.l.b16 %v4649
      %v4979 = vunpack.c.l.b16 %v4650
      %v4980 = vunpack.c.h.b16 %v4650
      %v4981 = vunpack.c.l.b16 %v4651
      %v4982 = vunpack.c.h.b16 %v4651
      %v4983 = vunpack.c.l.b16 %v4652
      %v4984 = vunpack.c.h.b16 %v4652
      %v4985 = vunpack.c.l.b16 %v4653
      %v4986 = vunpack.c.l.b16 %v4654
      %v4987 = vunpack.c.h.b16 %v4654
      %v4988 = vunpack.c.l.b16 %v4655
      %v4989 = vunpack.c.h.b16 %v4655
      %v4990 = vunpack.c.l.b16 %v4656
      %v4991 = vunpack.c.h.b16 %v4656
      %v4992 = vunpack.c.l.b16 %v4657
      %v4993 = vunpack.c.l.b16 %v4658
      %v4994 = vunpack.c.h.b16 %v4658
      %v4995 = vunpack.c.l.b16 %v4659
      %v4996 = vunpack.c.h.b16 %v4659
      %v4997 = vunpack.c.l.b16 %v4660
      %v4998 = vunpack.c.h.b16 %v4660
      %v4999 = vunpack.c.l.b16 %v4661
      %v5000 = vunpack.c.l.b16 %v4662
      %v5001 = vunpack.c.h.b16 %v4662
      %v5002 = vunpack.c.l.b16 %v4663
      %v5003 = vunpack.c.h.b16 %v4663
      %v5004 = vunpack.c.l.b16 %v4664
      %v5005 = vunpack.c.h.b16 %v4664
      %v5006 = vunpack.c.l.b16 %v4665
      %v5007 = vunpack.c.l.b16 %v4666
      %v5008 = vunpack.c.h.b16 %v4666
      %v5009 = vunpack.c.l.b16 %v4667
      %v5010 = vunpack.c.h.b16 %v4667
      %v5011 = vunpack.c.l.b16 %v4668
      %v5012 = vunpack.c.h.b16 %v4668
      %v5013 = vunpack.c.l.b16 %v4669
      %v5014 = vunpack.c.l.b16 %v4670
      %v5015 = vunpack.c.h.b16 %v4670
      %v5016 = vunpack.c.l.b16 %v4671
      %v5017 = vunpack.c.h.b16 %v4671
      %v5018 = vunpack.c.l.b16 %v4672
      %v5019 = vunpack.c.h.b16 %v4672
      %v5020 = vunpack.c.l.b16 %v4673
      %v5021 = vunpack.c.l.b16 %v4674
      %v5022 = vunpack.c.h.b16 %v4674
      %v5023 = vunpack.c.l.b16 %v4675
      %v5024 = vunpack.c.h.b16 %v4675
      %v5025 = vunpack.c.l.b16 %v4676
      %v5026 = vunpack.c.h.b16 %v4676
      %v5027 = vunpack.c.l.b16 %v4677
      %v5028 = vunpack.c.l.b16 %v4678
      %v5029 = vunpack.c.h.b16 %v4678
      %v5030 = vunpack.c.l.b16 %v4679
      %v5031 = vunpack.c.h.b16 %v4679
      %v5032 = vunpack.c.l.b16 %v4680
      %v5033 = vunpack.c.h.b16 %v4680
      %v5034 = vunpack.c.l.b16 %v4681
      %v5035 = vunpack.c.l.b16 %v4682
      %v5036 = vunpack.c.h.b16 %v4682
      %v5037 = vunpack.c.l.b16 %v4683
      %v5038 = vunpack.c.h.b16 %v4683
      %v5039 = vunpack.c.l.b16 %v4684
      %v5040 = vunpack.c.h.b16 %v4684
      %v5041 = vunpack.c.l.b16 %v4685
      %v5042 = vunpack.c.l.b16 %v4686
      %v5043 = vunpack.c.h.b16 %v4686
      %v5044 = vunpack.c.l.b16 %v4687
      %v5045 = vunpack.c.h.b16 %v4687
      %v5046 = vunpack.c.l.b16 %v4688
      %v5047 = vunpack.c.h.b16 %v4688
      %v5048 = vunpack.c.l.b16 %v4689
      %v5049 = vunpack.c.l.b16 %v4690
      %v5050 = vunpack.c.h.b16 %v4690
      %v5051 = vunpack.c.l.b16 %v4691
      %v5052 = vunpack.c.h.b16 %v4691
      %v5053 = vunpack.c.l.b16 %v4692
      %v5054 = vunpack.c.h.b16 %v4692
      %v5055 = vunpack.c.l.b16 %v4693
      %v5056 = vunpack.c.l.b16 %v4694
      %v5057 = vunpack.c.h.b16 %v4694
      %v5058 = vunpack.c.l.b16 %v4695
      %v5059 = vunpack.c.h.b16 %v4695
      %v5060 = vunpack.c.l.b16 %v4696
      %v5061 = vunpack.c.h.b16 %v4696
      %v5062 = vunpack.c.l.b16 %v4697
      %v5063 = vunpack.c.l.b16 %v4698
      %v5064 = vunpack.c.h.b16 %v4698
      %v5065 = vunpack.c.l.b16 %v4699
      %v5066 = vunpack.c.h.b16 %v4699
      %v5067 = vunpack.c.l.b16 %v4700
      %v5068 = vunpack.c.h.b16 %v4700
      %v5069 = vunpack.c.l.b16 %v4701
      %v5070 = vunpack.c.l.b16 %v4702
      %v5071 = vunpack.c.h.b16 %v4702
      %v5072 = vunpack.c.l.b16 %v4703
      %v5073 = vunpack.c.h.b16 %v4703
      %v5074 = vunpack.c.l.b16 %v4704
      %v5075 = vunpack.c.h.b16 %v4704
      %v5076 = vunpack.c.l.b16 %v4705
      %v5077 = vunpack.c.l.b16 %v4706
      %v5078 = vunpack.c.h.b16 %v4706
      %v5079 = vunpack.c.l.b16 %v4707
      %v5080 = vunpack.c.h.b16 %v4707
      %v5081 = vunpack.c.l.b16 %v4708
      %v5082 = vunpack.c.h.b16 %v4708
      %v5083 = vunpack.c.l.b16 %v4709
      %v5084 = vunpack.c.l.b16 %v4710
      %v5085 = vunpack.c.h.b16 %v4710
      %v5086 = vunpack.c.l.b16 %v4711
      %v5087 = vunpack.c.h.b16 %v4711
      %v5088 = vunpack.c.l.b16 %v4712
      %v5089 = vunpack.c.h.b16 %v4712
      %v5090 = vunpack.c.l.b16 %v4713
      %v5091 = vunpack.c.l.b16 %v4714
      %v5092 = vunpack.c.h.b16 %v4714
      %v5093 = vunpack.c.l.b16 %v4715
      %v5094 = vunpack.c.h.b16 %v4715
      %v5095 = vunpack.c.l.b16 %v4716
      %v5096 = vunpack.c.h.b16 %v4716
      %v5097 = vunpack.c.l.b16 %v4717
      %v5098 = vunpack.c.l.b16 %v4718
      %v5099 = vunpack.c.h.b16 %v4718
      %v5100 = vunpack.c.l.b16 %v4719
      %v5101 = vunpack.c.h.b16 %v4719
      %v5102 = vunpack.c.l.b16 %v4720
      %v5103 = vunpack.c.h.b16 %v4720
      %v5104 = vunpack.c.l.b16 %v4721
      %v5105 = vunpack.c.l.b16 %v4722
      %v5106 = vunpack.c.h.b16 %v4722
      %v5107 = vunpack.c.l.b16 %v4723
      %v5108 = vunpack.c.h.b16 %v4723
      %v5109 = vunpack.c.l.b16 %v4724
      %v5110 = vunpack.c.h.b16 %v4724
      %v5111 = vunpack.c.l.b16 %v4725
      %v5112 = vunpack.c.l.b16 %v4726
      %v5113 = vunpack.c.h.b16 %v4726
      %v5114 = vunpack.c.l.b16 %v4727
      %v5115 = vunpack.c.h.b16 %v4727
      %v5116 = vunpack.c.l.b16 %v4728
      %v5117 = vunpack.c.h.b16 %v4728
      %v5118 = vunpack.c.l.b16 %v4729
      %v5119 = vpack.c.b16 %v4902, %v4895
      %v5120 = vpack.c.b16 %v4903, %v4896
      %v5121 = vpack.c.b16 %v4904, %v4897
      %v5122 = vpack.c.b16 %v4905, %v4898
      %v5123 = vpack.c.b16 %v4906, %v4899
      %v5124 = vpack.c.b16 %v4907, %v4900
      %v5125 = vpack.c.b16 %v4908, %v4901
      %v5126 = vpack.c.b16 %v4916, %v4909
      %v5127 = vpack.c.b16 %v4917, %v4910
      %v5128 = vpack.c.b16 %v4918, %v4911
      %v5129 = vpack.c.b16 %v4919, %v4912
      %v5130 = vpack.c.b16 %v4920, %v4913
      %v5131 = vpack.c.b16 %v4921, %v4914
      %v5132 = vpack.c.b16 %v4922, %v4915
      %v5133 = vpack.c.b16 %v4930, %v4923
      %v5134 = vpack.c.b16 %v4931, %v4924
      %v5135 = vpack.c.b16 %v4932, %v4925
      %v5136 = vpack.c.b16 %v4933, %v4926
      %v5137 = vpack.c.b16 %v4934, %v4927
      %v5138 = vpack.c.b16 %v4935, %v4928
      %v5139 = vpack.c.b16 %v4936, %v4929
      %v5140 = vpack.c.b16 %v4944, %v4937
      %v5141 = vpack.c.b16 %v4945, %v4938
      %v5142 = vpack.c.b16 %v4946, %v4939
      %v5143 = vpack.c.b16 %v4947, %v4940
      %v5144 = vpack.c.b16 %v4948, %v4941
      %v5145 = vpack.c.b16 %v4949, %v4942
      %v5146 = vpack.c.b16 %v4950, %v4943
      %v5147 = vpack.c.b16 %v4958, %v4951
      %v5148 = vpack.c.b16 %v4959, %v4952
      %v5149 = vpack.c.b16 %v4960, %v4953
      %v5150 = vpack.c.b16 %v4961, %v4954
      %v5151 = vpack.c.b16 %v4962, %v4955
      %v5152 = vpack.c.b16 %v4963, %v4956
      %v5153 = vpack.c.b16 %v4964, %v4957
      %v5154 = vpack.c.b16 %v4972, %v4965
      %v5155 = vpack.c.b16 %v4973, %v4966
      %v5156 = vpack.c.b16 %v4974, %v4967
      %v5157 = vpack.c.b16 %v4975, %v4968
      %v5158 = vpack.c.b16 %v4976, %v4969
      %v5159 = vpack.c.b16 %v4977, %v4970
      %v5160 = vpack.c.b16 %v4978, %v4971
      %v5161 = vpack.c.b16 %v4986, %v4979
      %v5162 = vpack.c.b16 %v4987, %v4980
      %v5163 = vpack.c.b16 %v4988, %v4981
      %v5164 = vpack.c.b16 %v4989, %v4982
      %v5165 = vpack.c.b16 %v4990, %v4983
      %v5166 = vpack.c.b16 %v4991, %v4984
      %v5167 = vpack.c.b16 %v4992, %v4985
      %v5168 = vpack.c.b16 %v5000, %v4993
      %v5169 = vpack.c.b16 %v5001, %v4994
      %v5170 = vpack.c.b16 %v5002, %v4995
      %v5171 = vpack.c.b16 %v5003, %v4996
      %v5172 = vpack.c.b16 %v5004, %v4997
      %v5173 = vpack.c.b16 %v5005, %v4998
      %v5174 = vpack.c.b16 %v5006, %v4999
      %v5175 = vpack.c.b16 %v5014, %v5007
      %v5176 = vpack.c.b16 %v5015, %v5008
      %v5177 = vpack.c.b16 %v5016, %v5009
      %v5178 = vpack.c.b16 %v5017, %v5010
      %v5179 = vpack.c.b16 %v5018, %v5011
      %v5180 = vpack.c.b16 %v5019, %v5012
      %v5181 = vpack.c.b16 %v5020, %v5013
      %v5182 = vpack.c.b16 %v5028, %v5021
      %v5183 = vpack.c.b16 %v5029, %v5022
      %v5184 = vpack.c.b16 %v5030, %v5023
      %v5185 = vpack.c.b16 %v5031, %v5024
      %v5186 = vpack.c.b16 %v5032, %v5025
      %v5187 = vpack.c.b16 %v5033, %v5026
      %v5188 = vpack.c.b16 %v5034, %v5027
      %v5189 = vpack.c.b16 %v5042, %v5035
      %v5190 = vpack.c.b16 %v5043, %v5036
      %v5191 = vpack.c.b16 %v5044, %v5037
      %v5192 = vpack.c.b16 %v5045, %v5038
      %v5193 = vpack.c.b16 %v5046, %v5039
      %v5194 = vpack.c.b16 %v5047, %v5040
      %v5195 = vpack.c.b16 %v5048, %v5041
      %v5196 = vpack.c.b16 %v5056, %v5049
      %v5197 = vpack.c.b16 %v5057, %v5050
      %v5198 = vpack.c.b16 %v5058, %v5051
      %v5199 = vpack.c.b16 %v5059, %v5052
      %v5200 = vpack.c.b16 %v5060, %v5053
      %v5201 = vpack.c.b16 %v5061, %v5054
      %v5202 = vpack.c.b16 %v5062, %v5055
      %v5203 = vpack.c.b16 %v5070, %v5063
      %v5204 = vpack.c.b16 %v5071, %v5064
      %v5205 = vpack.c.b16 %v5072, %v5065
      %v5206 = vpack.c.b16 %v5073, %v5066
      %v5207 = vpack.c.b16 %v5074, %v5067
      %v5208 = vpack.c.b16 %v5075, %v5068
      %v5209 = vpack.c.b16 %v5076, %v5069
      %v5210 = vpack.c.b16 %v5084, %v5077
      %v5211 = vpack.c.b16 %v5085, %v5078
      %v5212 = vpack.c.b16 %v5086, %v5079
      %v5213 = vpack.c.b16 %v5087, %v5080
      %v5214 = vpack.c.b16 %v5088, %v5081
      %v5215 = vpack.c.b16 %v5089, %v5082
      %v5216 = vpack.c.b16 %v5090, %v5083
      %v5217 = vpack.c.b16 %v5098, %v5091
      %v5218 = vpack.c.b16 %v5099, %v5092
      %v5219 = vpack.c.b16 %v5100, %v5093
      %v5220 = vpack.c.b16 %v5101, %v5094
      %v5221 = vpack.c.b16 %v5102, %v5095
      %v5222 = vpack.c.b16 %v5103, %v5096
      %v5223 = vpack.c.b16 %v5104, %v5097
      %v5224 = vpack.c.b16 %v5112, %v5105
      %v5225 = vpack.c.b16 %v5113, %v5106
      %v5226 = vpack.c.b16 %v5114, %v5107
      %v5227 = vpack.c.b16 %v5115, %v5108
      %v5228 = vpack.c.b16 %v5116, %v5109
      %v5229 = vpack.c.b16 %v5117, %v5110
      %v5230 = vpack.c.b16 %v5118, %v5111
      %5343 = vmatprep.subr.bf16.mxu0 %v5120
      %5344 = vmatpush1.bf16.msra.mxu0 %v5119
      %5345 = vmatprep.subr.bf16.mxu0 %v5127
      %5346 = vmatpush1.bf16.msra.mxu0 %v5126
      %5347 = vmatprep.subr.bf16.mxu0 %v5134
      %5348 = vmatpush1.bf16.msra.mxu0 %v5133
      %5349 = vmatprep.subr.bf16.mxu0 %v5141
      %5350 = vmatpush1.bf16.msra.mxu0 %v5140
      %5351 = vmatprep.subr.bf16.mxu0 %v5148
      %5352 = vmatpush1.bf16.msra.mxu0 %v5147
      %5353 = vmatprep.subr.bf16.mxu0 %v5155
      %5354 = vmatpush1.bf16.msra.mxu0 %v5154
      %5355 = vmatprep.subr.bf16.mxu0 %v5162
      %5356 = vmatpush1.bf16.msra.mxu0 %v5161
      %5357 = vmatprep.subr.bf16.mxu0 %v5169
      %5358 = vmatpush1.bf16.msra.mxu0 %v5168
      %5359 = vmatprep.subr.bf16.mxu0 %v5176
      %5360 = vmatpush1.bf16.msra.mxu0 %v5175
      %5361 = vmatprep.subr.bf16.mxu0 %v5183
      %5362 = vmatpush1.bf16.msra.mxu0 %v5182
      %5363 = vmatprep.subr.bf16.mxu0 %v5190
      %5364 = vmatpush1.bf16.msra.mxu0 %v5189
      %5365 = vmatprep.subr.bf16.mxu0 %v5197
      %5366 = vmatpush1.bf16.msra.mxu0 %v5196
      %5367 = vmatprep.subr.bf16.mxu0 %v5204
      %5368 = vmatpush1.bf16.msra.mxu0 %v5203
      %5369 = vmatprep.subr.bf16.mxu0 %v5211
      %5370 = vmatpush1.bf16.msra.mxu0 %v5210
      %5371 = vmatprep.subr.bf16.mxu0 %v5218
      %5372 = vmatpush1.bf16.msra.mxu0 %v5217
      %5373 = vmatprep.subr.bf16.mxu0 %v5225
      %5374 = vmatpush1.bf16.msra.mxu0 %v5224
      %5375 = vmatprep.mubr.bf16.mxu0 %v4571
      %5376 = vmatmul.mubr.bf16.gmra.mrb[0].mxu0 %v4570
      %v5377 = vpop.f32.mrb[0].mxu0
      %v5378 = vadd.f32 %v4735, %v5377
      %v5379 = vpop.f32.mrb[0].mxu0
      %v5380 = vadd.f32 %v4739, %v5379
      %v5381 = vpop.f32.mrb[0].mxu0
      %v5382 = vadd.f32 %v4735, %v5381
      %v5383 = vpop.f32.mrb[0].mxu0
      %v5384 = vadd.f32 %v4739, %v5383
      %5385 = vmatprep.mubr.bf16.mxu0 %v4573
      %5386 = vmatmul.mubr.bf16.gmra.mrb[0].mxu0 %v4572
      %v5387 = vpop.f32.mrb[0].mxu0
      %v5388 = vadd.f32 %v4735, %v5387
      %v5389 = vpop.f32.mrb[0].mxu0
      %v5390 = vadd.f32 %v4739, %v5389
      %v5391 = vpop.f32.mrb[0].mxu0
      %v5392 = vadd.f32 %v4735, %v5391
      %v5393 = vpop.f32.mrb[0].mxu0
      %v5394 = vadd.f32 %v4739, %v5393
      %5395 = vmatprep.mubr.bf16.mxu0 %v4575
      %5396 = vmatmul.mubr.bf16.gmra.mrb[0].mxu0 %v4574
      %v5397 = vpop.f32.mrb[0].mxu0
      %v5398 = vadd.f32 %v4735, %v5397
      %v5399 = vpop.f32.mrb[0].mxu0
      %v5400 = vadd.f32 %v4739, %v5399
      %v5401 = vpop.f32.mrb[0].mxu0
      %v5402 = vadd.f32 %v4735, %v5401
      %v5403 = vpop.f32.mrb[0].mxu0
      %v5404 = vadd.f32 %v4739, %v5403
      %5405 = vmatprep.mubr.bf16.mxu0 %v4577
      %5406 = vmatmul.mubr.bf16.gmra.mrb[0].mxu0 %v4576
      %v5407 = vpop.f32.mrb[0].mxu0
      %v5408 = vadd.f32 %v4735, %v5407
      %v5409 = vpop.f32.mrb[0].mxu0
      %v5410 = vadd.f32 %v4739, %v5409
      %v5411 = vpop.f32.mrb[0].mxu0
      %v5412 = vadd.f32 %v4735, %v5411
      %v5413 = vpop.f32.mrb[0].mxu0
      %v5414 = vadd.f32 %v4739, %v5413
      %5415 = vmatprep.mubr.bf16.mxu0 %v4579
      %5416 = vmatmul.mubr.bf16.gmra.mrb[0].mxu0 %v4578
      %v5417 = vpop.f32.mrb[0].mxu0
      %v5418 = vadd.f32 %v4735, %v5417
      %v5419 = vpop.f32.mrb[0].mxu0
      %v5420 = vadd.f32 %v4739, %v5419
      %v5421 = vpop.f32.mrb[0].mxu0
      %v5422 = vadd.f32 %v4735, %v5421
      %v5423 = vpop.f32.mrb[0].mxu0
      %v5424 = vadd.f32 %v4739, %v5423
      %5425 = vmatprep.mubr.bf16.mxu0 %v4581
      %5426 = vmatmul.mubr.bf16.gmra.mrb[0].mxu0 %v4580
      %v5427 = vpop.f32.mrb[0].mxu0
      %v5428 = vadd.f32 %v4735, %v5427
      %v5429 = vpop.f32.mrb[0].mxu0
      %v5430 = vadd.f32 %v4739, %v5429
      %v5431 = vpop.f32.mrb[0].mxu0
      %v5432 = vadd.f32 %v4735, %v5431
      %v5433 = vpop.f32.mrb[0].mxu0
      %v5434 = vadd.f32 %v4739, %v5433
      %5435 = vmatprep.mubr.bf16.mxu0 %v4583
      %5436 = vmatmul.mubr.bf16.gmra.mrb[0].mxu0 %v4582
      %v5437 = vpop.f32.mrb[0].mxu0
      %v5438 = vadd.f32 %v4735, %v5437
      %v5439 = vpop.f32.mrb[0].mxu0
      %v5440 = vadd.f32 %v4739, %v5439
      %v5441 = vpop.f32.mrb[0].mxu0
      %v5442 = vadd.f32 %v4735, %v5441
      %v5443 = vpop.f32.mrb[0].mxu0
      %v5444 = vadd.f32 %v4739, %v5443
      %5445 = vmatprep.mubr.bf16.mxu0 %v4585
      %5446 = vmatmul.mubr.bf16.gmra.mrb[0].mxu0 %v4584
      %v5447 = vpop.f32.mrb[0].mxu0
      %v5448 = vadd.f32 %v4735, %v5447
      %v5449 = vpop.f32.mrb[0].mxu0
      %v5450 = vadd.f32 %v4739, %v5449
      %v5451 = vpop.f32.mrb[0].mxu0
      %v5452 = vadd.f32 %v4735, %v5451
      %v5453 = vpop.f32.mrb[0].mxu0
      %v5454 = vadd.f32 %v4739, %v5453
      %5455 = vmatprep.mubr.bf16.mxu0 %v4587
      %5456 = vmatmul.mubr.bf16.gmra.mrb[0].mxu0 %v4586
      %v5457 = vpop.f32.mrb[0].mxu0
      %v5458 = vadd.f32 %v4735, %v5457
      %v5459 = vpop.f32.mrb[0].mxu0
      %v5460 = vadd.f32 %v4739, %v5459
      %v5461 = vpop.f32.mrb[0].mxu0
      %v5462 = vadd.f32 %v4735, %v5461
      %v5463 = vpop.f32.mrb[0].mxu0
      %v5464 = vadd.f32 %v4739, %v5463
      %5465 = vmatprep.mubr.bf16.mxu0 %v4589
      %5466 = vmatmul.mubr.bf16.gmra.mrb[0].mxu0 %v4588
      %v5467 = vpop.f32.mrb[0].mxu0
      %v5468 = vadd.f32 %v4735, %v5467
      %v5469 = vpop.f32.mrb[0].mxu0
      %v5470 = vadd.f32 %v4739, %v5469
      %v5471 = vpop.f32.mrb[0].mxu0
      %v5472 = vadd.f32 %v4735, %v5471
      %v5473 = vpop.f32.mrb[0].mxu0
      %v5474 = vadd.f32 %v4739, %v5473
      %5475 = vmatprep.mubr.bf16.mxu0 %v4591
      %5476 = vmatmul.mubr.bf16.gmra.mrb[0].mxu0 %v4590
      %v5477 = vpop.f32.mrb[0].mxu0
      %v5478 = vadd.f32 %v4735, %v5477
      %v5479 = vpop.f32.mrb[0].mxu0
      %v5480 = vadd.f32 %v4739, %v5479
      %v5481 = vpop.f32.mrb[0].mxu0
      %v5482 = vadd.f32 %v4735, %v5481
      %v5483 = vpop.f32.mrb[0].mxu0
      %v5484 = vadd.f32 %v4739, %v5483
      %5485 = vmatprep.mubr.bf16.mxu0 %v4593
      %5486 = vmatmul.mubr.bf16.gmra.mrb[0].mxu0 %v4592
      %v5487 = vpop.f32.mrb[0].mxu0
      %v5488 = vadd.f32 %v4735, %v5487
      %v5489 = vpop.f32.mrb[0].mxu0
      %v5490 = vadd.f32 %v4739, %v5489
      %v5491 = vpop.f32.mrb[0].mxu0
      %v5492 = vadd.f32 %v4735, %v5491
      %v5493 = vpop.f32.mrb[0].mxu0
      %v5494 = vadd.f32 %v4739, %v5493
      %5495 = vmatprep.mubr.bf16.mxu0 %v4595
      %5496 = vmatmul.mubr.bf16.gmra.mrb[0].mxu0 %v4594
      %v5497 = vpop.f32.mrb[0].mxu0
      %v5498 = vadd.f32 %v4735, %v5497
      %v5499 = vpop.f32.mrb[0].mxu0
      %v5500 = vadd.f32 %v4739, %v5499
      %v5501 = vpop.f32.mrb[0].mxu0
      %v5502 = vadd.f32 %v4735, %v5501
      %v5503 = vpop.f32.mrb[0].mxu0
      %v5504 = vadd.f32 %v4739, %v5503
      %5505 = vmatprep.mubr.bf16.mxu0 %v4597
      %5506 = vmatmul.mubr.bf16.gmra.mrb[0].mxu0 %v4596
      %v5507 = vpop.f32.mrb[0].mxu0
      %v5508 = vadd.f32 %v4735, %v5507
      %v5509 = vpop.f32.mrb[0].mxu0
      %v5510 = vadd.f32 %v4739, %v5509
      %v5511 = vpop.f32.mrb[0].mxu0
      %v5512 = vadd.f32 %v4735, %v5511
      %v5513 = vpop.f32.mrb[0].mxu0
      %v5514 = vadd.f32 %v4739, %v5513
      %5515 = vmatprep.mubr.bf16.mxu0 %v4599
      %5516 = vmatmul.mubr.bf16.gmra.mrb[0].mxu0 %v4598
      %v5517 = vpop.f32.mrb[0].mxu0
      %v5518 = vadd.f32 %v4735, %v5517
      %v5519 = vpop.f32.mrb[0].mxu0
      %v5520 = vadd.f32 %v4739, %v5519
      %v5521 = vpop.f32.mrb[0].mxu0
      %v5522 = vadd.f32 %v4735, %v5521
      %v5523 = vpop.f32.mrb[0].mxu0
      %v5524 = vadd.f32 %v4739, %v5523
      %5525 = vmatprep.mubr.bf16.mxu0 %v4601
      %5526 = vmatmul.mubr.bf16.gmra.mrb[0].mxu0 %v4600
      %v5527 = vpop.f32.mrb[0].mxu0
      %v5528 = vadd.f32 %v4735, %v5527
      %v5529 = vpop.f32.mrb[0].mxu0
      %v5530 = vadd.f32 %v4739, %v5529
      %v5531 = vpop.f32.mrb[0].mxu0
      %v5532 = vadd.f32 %v4735, %v5531
      %v5533 = vpop.f32.mrb[0].mxu0
      %v5534 = vadd.f32 %v4739, %v5533
      %5535 = vdwg.mxu0
      %5536 = vmatprep.subr.bf16.mxu0 %v5122
      %5537 = vmatpush1.bf16.msra.mxu0 %v5121
      %5538 = vmatprep.subr.bf16.mxu0 %v5129
      %5539 = vmatpush1.bf16.msra.mxu0 %v5128
      %5540 = vmatprep.subr.bf16.mxu0 %v5136
      %5541 = vmatpush1.bf16.msra.mxu0 %v5135
      %5542 = vmatprep.subr.bf16.mxu0 %v5143
      %5543 = vmatpush1.bf16.msra.mxu0 %v5142
      %5544 = vmatprep.subr.bf16.mxu0 %v5150
      %5545 = vmatpush1.bf16.msra.mxu0 %v5149
      %5546 = vmatprep.subr.bf16.mxu0 %v5157
      %5547 = vmatpush1.bf16.msra.mxu0 %v5156
      %5548 = vmatprep.subr.bf16.mxu0 %v5164
      %5549 = vmatpush1.bf16.msra.mxu0 %v5163
      %5550 = vmatprep.subr.bf16.mxu0 %v5171
      %5551 = vmatpush1.bf16.msra.mxu0 %v5170
      %5552 = vmatprep.subr.bf16.mxu0 %v5178
      %5553 = vmatpush1.bf16.msra.mxu0 %v5177
      %5554 = vmatprep.subr.bf16.mxu0 %v5185
      %5555 = vmatpush1.bf16.msra.mxu0 %v5184
      %5556 = vmatprep.subr.bf16.mxu0 %v5192
      %5557 = vmatpush1.bf16.msra.mxu0 %v5191
      %5558 = vmatprep.subr.bf16.mxu0 %v5199
      %5559 = vmatpush1.bf16.msra.mxu0 %v5198
      %5560 = vmatprep.subr.bf16.mxu0 %v5206
      %5561 = vmatpush1.bf16.msra.mxu0 %v5205
      %5562 = vmatprep.subr.bf16.mxu0 %v5213
      %5563 = vmatpush1.bf16.msra.mxu0 %v5212
      %5564 = vmatprep.subr.bf16.mxu0 %v5220
      %5565 = vmatpush1.bf16.msra.mxu0 %v5219
      %5566 = vmatprep.subr.bf16.mxu0 %v5227
      %5567 = vmatpush1.bf16.msra.mxu0 %v5226
      %5568 = vmatprep.mubr.bf16.mxu0 %v4571
      %5569 = vmatmul.mubr.bf16.gmra.mrb[0].mxu0 %v4570
      %v5570 = vpop.f32.mrb[0].mxu0
      %v5571 = vadd.f32 %v4743, %v5570
      %v5572 = vpop.f32.mrb[0].mxu0
      %v5573 = vadd.f32 %v4747, %v5572
      %v5574 = vpop.f32.mrb[0].mxu0
      %v5575 = vadd.f32 %v4743, %v5574
      %v5576 = vpop.f32.mrb[0].mxu0
      %v5577 = vadd.f32 %v4747, %v5576
      %5578 = vmatprep.mubr.bf16.mxu0 %v4573
      %5579 = vmatmul.mubr.bf16.gmra.mrb[0].mxu0 %v4572
      %v5580 = vpop.f32.mrb[0].mxu0
      %v5581 = vadd.f32 %v4743, %v5580
      %v5582 = vpop.f32.mrb[0].mxu0
      %v5583 = vadd.f32 %v4747, %v5582
      %v5584 = vpop.f32.mrb[0].mxu0
      %v5585 = vadd.f32 %v4743, %v5584
      %v5586 = vpop.f32.mrb[0].mxu0
      %v5587 = vadd.f32 %v4747, %v5586
      %5588 = vmatprep.mubr.bf16.mxu0 %v4575
      %5589 = vmatmul.mubr.bf16.gmra.mrb[0].mxu0 %v4574
      %v5590 = vpop.f32.mrb[0].mxu0
      %v5591 = vadd.f32 %v4743, %v5590
      %v5592 = vpop.f32.mrb[0].mxu0
      %v5593 = vadd.f32 %v4747, %v5592
      %v5594 = vpop.f32.mrb[0].mxu0
      %v5595 = vadd.f32 %v4743, %v5594
      %v5596 = vpop.f32.mrb[0].mxu0
      %v5597 = vadd.f32 %v4747, %v5596
      %5598 = vmatprep.mubr.bf16.mxu0 %v4577
      %5599 = vmatmul.mubr.bf16.gmra.mrb[0].mxu0 %v4576
      %v5600 = vpop.f32.mrb[0].mxu0
      %v5601 = vadd.f32 %v4743, %v5600
      %v5602 = vpop.f32.mrb[0].mxu0
      %v5603 = vadd.f32 %v4747, %v5602
      %v5604 = vpop.f32.mrb[0].mxu0
      %v5605 = vadd.f32 %v4743, %v5604
      %v5606 = vpop.f32.mrb[0].mxu0
      %v5607 = vadd.f32 %v4747, %v5606
      %5608 = vmatprep.mubr.bf16.mxu0 %v4579
      %5609 = vmatmul.mubr.bf16.gmra.mrb[0].mxu0 %v4578
      %v5610 = vpop.f32.mrb[0].mxu0
      %v5611 = vadd.f32 %v4743, %v5610
      %v5612 = vpop.f32.mrb[0].mxu0
      %v5613 = vadd.f32 %v4747, %v5612
      %v5614 = vpop.f32.mrb[0].mxu0
      %v5615 = vadd.f32 %v4743, %v5614
      %v5616 = vpop.f32.mrb[0].mxu0
      %v5617 = vadd.f32 %v4747, %v5616
      %5618 = vmatprep.mubr.bf16.mxu0 %v4581
      %5619 = vmatmul.mubr.bf16.gmra.mrb[0].mxu0 %v4580
      %v5620 = vpop.f32.mrb[0].mxu0
      %v5621 = vadd.f32 %v4743, %v5620
      %v5622 = vpop.f32.mrb[0].mxu0
      %v5623 = vadd.f32 %v4747, %v5622
      %v5624 = vpop.f32.mrb[0].mxu0
      %v5625 = vadd.f32 %v4743, %v5624
      %v5626 = vpop.f32.mrb[0].mxu0
      %v5627 = vadd.f32 %v4747, %v5626
      %5628 = vmatprep.mubr.bf16.mxu0 %v4583
      %5629 = vmatmul.mubr.bf16.gmra.mrb[0].mxu0 %v4582
      %v5630 = vpop.f32.mrb[0].mxu0
      %v5631 = vadd.f32 %v4743, %v5630
      %v5632 = vpop.f32.mrb[0].mxu0
      %v5633 = vadd.f32 %v4747, %v5632
      %v5634 = vpop.f32.mrb[0].mxu0
      %v5635 = vadd.f32 %v4743, %v5634
      %v5636 = vpop.f32.mrb[0].mxu0
      %v5637 = vadd.f32 %v4747, %v5636
      %5638 = vmatprep.mubr.bf16.mxu0 %v4585
      %5639 = vmatmul.mubr.bf16.gmra.mrb[0].mxu0 %v4584
      %v5640 = vpop.f32.mrb[0].mxu0
      %v5641 = vadd.f32 %v4743, %v5640
      %v5642 = vpop.f32.mrb[0].mxu0
      %v5643 = vadd.f32 %v4747, %v5642
      %v5644 = vpop.f32.mrb[0].mxu0
      %v5645 = vadd.f32 %v4743, %v5644
      %v5646 = vpop.f32.mrb[0].mxu0
      %v5647 = vadd.f32 %v4747, %v5646
      %5648 = vmatprep.mubr.bf16.mxu0 %v4587
      %5649 = vmatmul.mubr.bf16.gmra.mrb[0].mxu0 %v4586
      %v5650 = vpop.f32.mrb[0].mxu0
      %v5651 = vadd.f32 %v4743, %v5650
      %v5652 = vpop.f32.mrb[0].mxu0
      %v5653 = vadd.f32 %v4747, %v5652
      %v5654 = vpop.f32.mrb[0].mxu0
      %v5655 = vadd.f32 %v4743, %v5654
      %v5656 = vpop.f32.mrb[0].mxu0
      %v5657 = vadd.f32 %v4747, %v5656
      %5658 = vmatprep.mubr.bf16.mxu0 %v4589
      %5659 = vmatmul.mubr.bf16.gmra.mrb[0].mxu0 %v4588
      %v5660 = vpop.f32.mrb[0].mxu0
      %v5661 = vadd.f32 %v4743, %v5660
      %v5662 = vpop.f32.mrb[0].mxu0
      %v5663 = vadd.f32 %v4747, %v5662
      %v5664 = vpop.f32.mrb[0].mxu0
      %v5665 = vadd.f32 %v4743, %v5664
      %v5666 = vpop.f32.mrb[0].mxu0
      %v5667 = vadd.f32 %v4747, %v5666
      %5668 = vmatprep.mubr.bf16.mxu0 %v4591
      %5669 = vmatmul.mubr.bf16.gmra.mrb[0].mxu0 %v4590
      %v5670 = vpop.f32.mrb[0].mxu0
      %v5671 = vadd.f32 %v4743, %v5670
      %v5672 = vpop.f32.mrb[0].mxu0
      %v5673 = vadd.f32 %v4747, %v5672
      %v5674 = vpop.f32.mrb[0].mxu0
      %v5675 = vadd.f32 %v4743, %v5674
      %v5676 = vpop.f32.mrb[0].mxu0
      %v5677 = vadd.f32 %v4747, %v5676
      %5678 = vmatprep.mubr.bf16.mxu0 %v4593
      %5679 = vmatmul.mubr.bf16.gmra.mrb[0].mxu0 %v4592
      %v5680 = vpop.f32.mrb[0].mxu0
      %v5681 = vadd.f32 %v4743, %v5680
      %v5682 = vpop.f32.mrb[0].mxu0
      %v5683 = vadd.f32 %v4747, %v5682
      %v5684 = vpop.f32.mrb[0].mxu0
      %v5685 = vadd.f32 %v4743, %v5684
      %v5686 = vpop.f32.mrb[0].mxu0
      %v5687 = vadd.f32 %v4747, %v5686
      %5688 = vmatprep.mubr.bf16.mxu0 %v4595
      %5689 = vmatmul.mubr.bf16.gmra.mrb[0].mxu0 %v4594
      %v5690 = vpop.f32.mrb[0].mxu0
      %v5691 = vadd.f32 %v4743, %v5690
      %v5692 = vpop.f32.mrb[0].mxu0
      %v5693 = vadd.f32 %v4747, %v5692
      %v5694 = vpop.f32.mrb[0].mxu0
      %v5695 = vadd.f32 %v4743, %v5694
      %v5696 = vpop.f32.mrb[0].mxu0
      %v5697 = vadd.f32 %v4747, %v5696
      %5698 = vmatprep.mubr.bf16.mxu0 %v4597
      %5699 = vmatmul.mubr.bf16.gmra.mrb[0].mxu0 %v4596
      %v5700 = vpop.f32.mrb[0].mxu0
      %v5701 = vadd.f32 %v4743, %v5700
      %v5702 = vpop.f32.mrb[0].mxu0
      %v5703 = vadd.f32 %v4747, %v5702
      %v5704 = vpop.f32.mrb[0].mxu0
      %v5705 = vadd.f32 %v4743, %v5704
      %v5706 = vpop.f32.mrb[0].mxu0
      %v5707 = vadd.f32 %v4747, %v5706
      %5708 = vmatprep.mubr.bf16.mxu0 %v4599
      %5709 = vmatmul.mubr.bf16.gmra.mrb[0].mxu0 %v4598
      %v5710 = vpop.f32.mrb[0].mxu0
      %v5711 = vadd.f32 %v4743, %v5710
      %v5712 = vpop.f32.mrb[0].mxu0
      %v5713 = vadd.f32 %v4747, %v5712
      %v5714 = vpop.f32.mrb[0].mxu0
      %v5715 = vadd.f32 %v4743, %v5714
      %v5716 = vpop.f32.mrb[0].mxu0
      %v5717 = vadd.f32 %v4747, %v5716
      %5718 = vmatprep.mubr.bf16.mxu0 %v4601
      %5719 = vmatmul.mubr.bf16.gmra.mrb[0].mxu0 %v4600
      %v5720 = vpop.f32.mrb[0].mxu0
      %v5721 = vadd.f32 %v4743, %v5720
      %v5722 = vpop.f32.mrb[0].mxu0
      %v5723 = vadd.f32 %v4747, %v5722
      %v5724 = vpop.f32.mrb[0].mxu0
      %v5725 = vadd.f32 %v4743, %v5724
      %v5726 = vpop.f32.mrb[0].mxu0
      %v5727 = vadd.f32 %v4747, %v5726
      %5728 = vdwg.mxu0
      %5729 = vmatprep.subr.bf16.mxu0 %v5124
      %5730 = vmatpush1.bf16.msra.mxu0 %v5123
      %5731 = vmatprep.subr.bf16.mxu0 %v5131
      %5732 = vmatpush1.bf16.msra.mxu0 %v5130
      %5733 = vmatprep.subr.bf16.mxu0 %v5138
      %5734 = vmatpush1.bf16.msra.mxu0 %v5137
      %5735 = vmatprep.subr.bf16.mxu0 %v5145
      %5736 = vmatpush1.bf16.msra.mxu0 %v5144
      %5737 = vmatprep.subr.bf16.mxu0 %v5152
      %5738 = vmatpush1.bf16.msra.mxu0 %v5151
      %5739 = vmatprep.subr.bf16.mxu0 %v5159
      %5740 = vmatpush1.bf16.msra.mxu0 %v5158
      %5741 = vmatprep.subr.bf16.mxu0 %v5166
      %5742 = vmatpush1.bf16.msra.mxu0 %v5165
      %5743 = vmatprep.subr.bf16.mxu0 %v5173
      %5744 = vmatpush1.bf16.msra.mxu0 %v5172
      %5745 = vmatprep.subr.bf16.mxu0 %v5180
      %5746 = vmatpush1.bf16.msra.mxu0 %v5179
      %5747 = vmatprep.subr.bf16.mxu0 %v5187
      %5748 = vmatpush1.bf16.msra.mxu0 %v5186
      %5749 = vmatprep.subr.bf16.mxu0 %v5194
      %5750 = vmatpush1.bf16.msra.mxu0 %v5193
      %5751 = vmatprep.subr.bf16.mxu0 %v5201
      %5752 = vmatpush1.bf16.msra.mxu0 %v5200
      %5753 = vmatprep.subr.bf16.mxu0 %v5208
      %5754 = vmatpush1.bf16.msra.mxu0 %v5207
      %5755 = vmatprep.subr.bf16.mxu0 %v5215
      %5756 = vmatpush1.bf16.msra.mxu0 %v5214
      %5757 = vmatprep.subr.bf16.mxu0 %v5222
      %5758 = vmatpush1.bf16.msra.mxu0 %v5221
      %5759 = vmatprep.subr.bf16.mxu0 %v5229
      %5760 = vmatpush1.bf16.msra.mxu0 %v5228
      %5761 = vmatprep.mubr.bf16.mxu0 %v4571
      %5762 = vmatmul.mubr.bf16.gmra.mrb[0].mxu0 %v4570
      %v5763 = vpop.f32.mrb[0].mxu0
      %v5764 = vadd.f32 %v4751, %v5763
      %v5765 = vpop.f32.mrb[0].mxu0
      %v5766 = vadd.f32 %v4755, %v5765
      %v5767 = vpop.f32.mrb[0].mxu0
      %v5768 = vadd.f32 %v4751, %v5767
      %v5769 = vpop.f32.mrb[0].mxu0
      %v5770 = vadd.f32 %v4755, %v5769
      %5771 = vmatprep.mubr.bf16.mxu0 %v4573
      %5772 = vmatmul.mubr.bf16.gmra.mrb[0].mxu0 %v4572
      %v5773 = vpop.f32.mrb[0].mxu0
      %v5774 = vadd.f32 %v4751, %v5773
      %v5775 = vpop.f32.mrb[0].mxu0
      %v5776 = vadd.f32 %v4755, %v5775
      %v5777 = vpop.f32.mrb[0].mxu0
      %v5778 = vadd.f32 %v4751, %v5777
      %v5779 = vpop.f32.mrb[0].mxu0
      %v5780 = vadd.f32 %v4755, %v5779
      %5781 = vmatprep.mubr.bf16.mxu0 %v4575
      %5782 = vmatmul.mubr.bf16.gmra.mrb[0].mxu0 %v4574
      %v5783 = vpop.f32.mrb[0].mxu0
      %v5784 = vadd.f32 %v4751, %v5783
      %v5785 = vpop.f32.mrb[0].mxu0
      %v5786 = vadd.f32 %v4755, %v5785
      %v5787 = vpop.f32.mrb[0].mxu0
      %v5788 = vadd.f32 %v4751, %v5787
      %v5789 = vpop.f32.mrb[0].mxu0
      %v5790 = vadd.f32 %v4755, %v5789
      %5791 = vmatprep.mubr.bf16.mxu0 %v4577
      %5792 = vmatmul.mubr.bf16.gmra.mrb[0].mxu0 %v4576
      %v5793 = vpop.f32.mrb[0].mxu0
      %v5794 = vadd.f32 %v4751, %v5793
      %v5795 = vpop.f32.mrb[0].mxu0
      %v5796 = vadd.f32 %v4755, %v5795
      %v5797 = vpop.f32.mrb[0].mxu0
      %v5798 = vadd.f32 %v4751, %v5797
      %v5799 = vpop.f32.mrb[0].mxu0
      %v5800 = vadd.f32 %v4755, %v5799
      %5801 = vmatprep.mubr.bf16.mxu0 %v4579
      %5802 = vmatmul.mubr.bf16.gmra.mrb[0].mxu0 %v4578
      %v5803 = vpop.f32.mrb[0].mxu0
      %v5804 = vadd.f32 %v4751, %v5803
      %v5805 = vpop.f32.mrb[0].mxu0
      %v5806 = vadd.f32 %v4755, %v5805
      %v5807 = vpop.f32.mrb[0].mxu0
      %v5808 = vadd.f32 %v4751, %v5807
      %v5809 = vpop.f32.mrb[0].mxu0
      %v5810 = vadd.f32 %v4755, %v5809
      %5811 = vmatprep.mubr.bf16.mxu0 %v4581
      %5812 = vmatmul.mubr.bf16.gmra.mrb[0].mxu0 %v4580
      %v5813 = vpop.f32.mrb[0].mxu0
      %v5814 = vadd.f32 %v4751, %v5813
      %v5815 = vpop.f32.mrb[0].mxu0
      %v5816 = vadd.f32 %v4755, %v5815
      %v5817 = vpop.f32.mrb[0].mxu0
      %v5818 = vadd.f32 %v4751, %v5817
      %v5819 = vpop.f32.mrb[0].mxu0
      %v5820 = vadd.f32 %v4755, %v5819
      %5821 = vmatprep.mubr.bf16.mxu0 %v4583
      %5822 = vmatmul.mubr.bf16.gmra.mrb[0].mxu0 %v4582
      %v5823 = vpop.f32.mrb[0].mxu0
      %v5824 = vadd.f32 %v4751, %v5823
      %v5825 = vpop.f32.mrb[0].mxu0
      %v5826 = vadd.f32 %v4755, %v5825
      %v5827 = vpop.f32.mrb[0].mxu0
      %v5828 = vadd.f32 %v4751, %v5827
      %v5829 = vpop.f32.mrb[0].mxu0
      %v5830 = vadd.f32 %v4755, %v5829
      %5831 = vmatprep.mubr.bf16.mxu0 %v4585
      %5832 = vmatmul.mubr.bf16.gmra.mrb[0].mxu0 %v4584
      %v5833 = vpop.f32.mrb[0].mxu0
      %v5834 = vadd.f32 %v4751, %v5833
      %v5835 = vpop.f32.mrb[0].mxu0
      %v5836 = vadd.f32 %v4755, %v5835
      %v5837 = vpop.f32.mrb[0].mxu0
      %v5838 = vadd.f32 %v4751, %v5837
      %v5839 = vpop.f32.mrb[0].mxu0
      %v5840 = vadd.f32 %v4755, %v5839
      %5841 = vmatprep.mubr.bf16.mxu0 %v4587
      %5842 = vmatmul.mubr.bf16.gmra.mrb[0].mxu0 %v4586
      %v5843 = vpop.f32.mrb[0].mxu0
      %v5844 = vadd.f32 %v4751, %v5843
      %v5845 = vpop.f32.mrb[0].mxu0
      %v5846 = vadd.f32 %v4755, %v5845
      %v5847 = vpop.f32.mrb[0].mxu0
      %v5848 = vadd.f32 %v4751, %v5847
      %v5849 = vpop.f32.mrb[0].mxu0
      %v5850 = vadd.f32 %v4755, %v5849
      %5851 = vmatprep.mubr.bf16.mxu0 %v4589
      %5852 = vmatmul.mubr.bf16.gmra.mrb[0].mxu0 %v4588
      %v5853 = vpop.f32.mrb[0].mxu0
      %v5854 = vadd.f32 %v4751, %v5853
      %v5855 = vpop.f32.mrb[0].mxu0
      %v5856 = vadd.f32 %v4755, %v5855
      %v5857 = vpop.f32.mrb[0].mxu0
      %v5858 = vadd.f32 %v4751, %v5857
      %v5859 = vpop.f32.mrb[0].mxu0
      %v5860 = vadd.f32 %v4755, %v5859
      %5861 = vmatprep.mubr.bf16.mxu0 %v4591
      %5862 = vmatmul.mubr.bf16.gmra.mrb[0].mxu0 %v4590
      %v5863 = vpop.f32.mrb[0].mxu0
      %v5864 = vadd.f32 %v4751, %v5863
      %v5865 = vpop.f32.mrb[0].mxu0
      %v5866 = vadd.f32 %v4755, %v5865
      %v5867 = vpop.f32.mrb[0].mxu0
      %v5868 = vadd.f32 %v4751, %v5867
      %v5869 = vpop.f32.mrb[0].mxu0
      %v5870 = vadd.f32 %v4755, %v5869
      %5871 = vmatprep.mubr.bf16.mxu0 %v4593
      %5872 = vmatmul.mubr.bf16.gmra.mrb[0].mxu0 %v4592
      %v5873 = vpop.f32.mrb[0].mxu0
      %v5874 = vadd.f32 %v4751, %v5873
      %v5875 = vpop.f32.mrb[0].mxu0
      %v5876 = vadd.f32 %v4755, %v5875
      %v5877 = vpop.f32.mrb[0].mxu0
      %v5878 = vadd.f32 %v4751, %v5877
      %v5879 = vpop.f32.mrb[0].mxu0
      %v5880 = vadd.f32 %v4755, %v5879
      %5881 = vmatprep.mubr.bf16.mxu0 %v4595
      %5882 = vmatmul.mubr.bf16.gmra.mrb[0].mxu0 %v4594
      %v5883 = vpop.f32.mrb[0].mxu0
      %v5884 = vadd.f32 %v4751, %v5883
      %v5885 = vpop.f32.mrb[0].mxu0
      %v5886 = vadd.f32 %v4755, %v5885
      %v5887 = vpop.f32.mrb[0].mxu0
      %v5888 = vadd.f32 %v4751, %v5887
      %v5889 = vpop.f32.mrb[0].mxu0
      %v5890 = vadd.f32 %v4755, %v5889
      %5891 = vmatprep.mubr.bf16.mxu0 %v4597
      %5892 = vmatmul.mubr.bf16.gmra.mrb[0].mxu0 %v4596
      %v5893 = vpop.f32.mrb[0].mxu0
      %v5894 = vadd.f32 %v4751, %v5893
      %v5895 = vpop.f32.mrb[0].mxu0
      %v5896 = vadd.f32 %v4755, %v5895
      %v5897 = vpop.f32.mrb[0].mxu0
      %v5898 = vadd.f32 %v4751, %v5897
      %v5899 = vpop.f32.mrb[0].mxu0
      %v5900 = vadd.f32 %v4755, %v5899
      %5901 = vmatprep.mubr.bf16.mxu0 %v4599
      %5902 = vmatmul.mubr.bf16.gmra.mrb[0].mxu0 %v4598
      %v5903 = vpop.f32.mrb[0].mxu0
      %v5904 = vadd.f32 %v4751, %v5903
      %v5905 = vpop.f32.mrb[0].mxu0
      %v5906 = vadd.f32 %v4755, %v5905
      %v5907 = vpop.f32.mrb[0].mxu0
      %v5908 = vadd.f32 %v4751, %v5907
      %v5909 = vpop.f32.mrb[0].mxu0
      %v5910 = vadd.f32 %v4755, %v5909
      %5911 = vmatprep.mubr.bf16.mxu0 %v4601
      %5912 = vmatmul.mubr.bf16.gmra.mrb[0].mxu0 %v4600
      %v5913 = vpop.f32.mrb[0].mxu0
      %v5914 = vadd.f32 %v4751, %v5913
      %v5915 = vpop.f32.mrb[0].mxu0
      %v5916 = vadd.f32 %v4755, %v5915
      %v5917 = vpop.f32.mrb[0].mxu0
      %v5918 = vadd.f32 %v4751, %v5917
      %v5919 = vpop.f32.mrb[0].mxu0
      %v5920 = vadd.f32 %v4755, %v5919
      %5921 = vdwg.mxu0
      %5922 = vmatprep.subr.bf16.mxu0 0
      %5923 = vmatpush1.bf16.msra.mxu0 %v5125
      %5924 = vmatprep.subr.bf16.mxu0 0
      %5925 = vmatpush1.bf16.msra.mxu0 %v5132
      %5926 = vmatprep.subr.bf16.mxu0 0
      %5927 = vmatpush1.bf16.msra.mxu0 %v5139
      %5928 = vmatprep.subr.bf16.mxu0 0
      %5929 = vmatpush1.bf16.msra.mxu0 %v5146
      %5930 = vmatprep.subr.bf16.mxu0 0
      %5931 = vmatpush1.bf16.msra.mxu0 %v5153
      %5932 = vmatprep.subr.bf16.mxu0 0
      %5933 = vmatpush1.bf16.msra.mxu0 %v5160
      %5934 = vmatprep.subr.bf16.mxu0 0
      %5935 = vmatpush1.bf16.msra.mxu0 %v5167
      %5936 = vmatprep.subr.bf16.mxu0 0
      %5937 = vmatpush1.bf16.msra.mxu0 %v5174
      %5938 = vmatprep.subr.bf16.mxu0 0
      %5939 = vmatpush1.bf16.msra.mxu0 %v5181
      %5940 = vmatprep.subr.bf16.mxu0 0
      %5941 = vmatpush1.bf16.msra.mxu0 %v5188
      %5942 = vmatprep.subr.bf16.mxu0 0
      %5943 = vmatpush1.bf16.msra.mxu0 %v5195
      %5944 = vmatprep.subr.bf16.mxu0 0
      %5945 = vmatpush1.bf16.msra.mxu0 %v5202
      %5946 = vmatprep.subr.bf16.mxu0 0
      %5947 = vmatpush1.bf16.msra.mxu0 %v5209
      %5948 = vmatprep.subr.bf16.mxu0 0
      %5949 = vmatpush1.bf16.msra.mxu0 %v5216
      %5950 = vmatprep.subr.bf16.mxu0 0
      %5951 = vmatpush1.bf16.msra.mxu0 %v5223
      %5952 = vmatprep.subr.bf16.mxu0 0
      %5953 = vmatpush1.bf16.msra.mxu0 %v5230
      %5954 = vmatprep.mubr.bf16.mxu0 %v4571
      %5955 = vmatmul.mubr.bf16.gmra.mrb[0].mxu0 %v4570
      %v5956 = vpop.f32.mrb[0].mxu0
      %v5957 = vadd.f32 %v4759, %v5956
      %v5958 = vpop.f32.mrb[0].mxu0
      %v5959 = vpop.f32.mrb[0].mxu0
      %v5960 = vadd.f32 %v4759, %v5959
      %v5961 = vpop.f32.mrb[0].mxu0
      %5962 = vmatprep.mubr.bf16.mxu0 %v4573
      %5963 = vmatmul.mubr.bf16.gmra.mrb[0].mxu0 %v4572
      %v5964 = vpop.f32.mrb[0].mxu0
      %v5965 = vadd.f32 %v4759, %v5964
      %v5966 = vpop.f32.mrb[0].mxu0
      %v5967 = vpop.f32.mrb[0].mxu0
      %v5968 = vadd.f32 %v4759, %v5967
      %v5969 = vpop.f32.mrb[0].mxu0
      %5970 = vmatprep.mubr.bf16.mxu0 %v4575
      %5971 = vmatmul.mubr.bf16.gmra.mrb[0].mxu0 %v4574
      %v5972 = vpop.f32.mrb[0].mxu0
      %v5973 = vadd.f32 %v4759, %v5972
      %v5974 = vpop.f32.mrb[0].mxu0
      %v5975 = vpop.f32.mrb[0].mxu0
      %v5976 = vadd.f32 %v4759, %v5975
      %v5977 = vpop.f32.mrb[0].mxu0
      %5978 = vmatprep.mubr.bf16.mxu0 %v4577
      %5979 = vmatmul.mubr.bf16.gmra.mrb[0].mxu0 %v4576
      %v5980 = vpop.f32.mrb[0].mxu0
      %v5981 = vadd.f32 %v4759, %v5980
      %v5982 = vpop.f32.mrb[0].mxu0
      %v5983 = vpop.f32.mrb[0].mxu0
      %v5984 = vadd.f32 %v4759, %v5983
      %v5985 = vpop.f32.mrb[0].mxu0
      %5986 = vmatprep.mubr.bf16.mxu0 %v4579
      %5987 = vmatmul.mubr.bf16.gmra.mrb[0].mxu0 %v4578
      %v5988 = vpop.f32.mrb[0].mxu0
      %v5989 = vadd.f32 %v4759, %v5988
      %v5990 = vpop.f32.mrb[0].mxu0
      %v5991 = vpop.f32.mrb[0].mxu0
      %v5992 = vadd.f32 %v4759, %v5991
      %v5993 = vpop.f32.mrb[0].mxu0
      %5994 = vmatprep.mubr.bf16.mxu0 %v4581
      %5995 = vmatmul.mubr.bf16.gmra.mrb[0].mxu0 %v4580
      %v5996 = vpop.f32.mrb[0].mxu0
      %v5997 = vadd.f32 %v4759, %v5996
      %v5998 = vpop.f32.mrb[0].mxu0
      %v5999 = vpop.f32.mrb[0].mxu0
      %v6000 = vadd.f32 %v4759, %v5999
      %v6001 = vpop.f32.mrb[0].mxu0
      %6002 = vmatprep.mubr.bf16.mxu0 %v4583
      %6003 = vmatmul.mubr.bf16.gmra.mrb[0].mxu0 %v4582
      %v6004 = vpop.f32.mrb[0].mxu0
      %v6005 = vadd.f32 %v4759, %v6004
      %v6006 = vpop.f32.mrb[0].mxu0
      %v6007 = vpop.f32.mrb[0].mxu0
      %v6008 = vadd.f32 %v4759, %v6007
      %v6009 = vpop.f32.mrb[0].mxu0
      %6010 = vmatprep.mubr.bf16.mxu0 %v4585
      %6011 = vmatmul.mubr.bf16.gmra.mrb[0].mxu0 %v4584
      %v6012 = vpop.f32.mrb[0].mxu0
      %v6013 = vadd.f32 %v4759, %v6012
      %v6014 = vpop.f32.mrb[0].mxu0
      %v6015 = vpop.f32.mrb[0].mxu0
      %v6016 = vadd.f32 %v4759, %v6015
      %v6017 = vpop.f32.mrb[0].mxu0
      %6018 = vmatprep.mubr.bf16.mxu0 %v4587
      %6019 = vmatmul.mubr.bf16.gmra.mrb[0].mxu0 %v4586
      %v6020 = vpop.f32.mrb[0].mxu0
      %v6021 = vadd.f32 %v4759, %v6020
      %v6022 = vpop.f32.mrb[0].mxu0
      %v6023 = vpop.f32.mrb[0].mxu0
      %v6024 = vadd.f32 %v4759, %v6023
      %v6025 = vpop.f32.mrb[0].mxu0
      %6026 = vmatprep.mubr.bf16.mxu0 %v4589
      %6027 = vmatmul.mubr.bf16.gmra.mrb[0].mxu0 %v4588
      %v6028 = vpop.f32.mrb[0].mxu0
      %v6029 = vadd.f32 %v4759, %v6028
      %v6030 = vpop.f32.mrb[0].mxu0
      %v6031 = vpop.f32.mrb[0].mxu0
      %v6032 = vadd.f32 %v4759, %v6031
      %v6033 = vpop.f32.mrb[0].mxu0
      %6034 = vmatprep.mubr.bf16.mxu0 %v4591
      %6035 = vmatmul.mubr.bf16.gmra.mrb[0].mxu0 %v4590
      %v6036 = vpop.f32.mrb[0].mxu0
      %v6037 = vadd.f32 %v4759, %v6036
      %v6038 = vpop.f32.mrb[0].mxu0
      %v6039 = vpop.f32.mrb[0].mxu0
      %v6040 = vadd.f32 %v4759, %v6039
      %v6041 = vpop.f32.mrb[0].mxu0
      %6042 = vmatprep.mubr.bf16.mxu0 %v4593
      %6043 = vmatmul.mubr.bf16.gmra.mrb[0].mxu0 %v4592
      %v6044 = vpop.f32.mrb[0].mxu0
      %v6045 = vadd.f32 %v4759, %v6044
      %v6046 = vpop.f32.mrb[0].mxu0
      %v6047 = vpop.f32.mrb[0].mxu0
      %v6048 = vadd.f32 %v4759, %v6047
      %v6049 = vpop.f32.mrb[0].mxu0
      %6050 = vmatprep.mubr.bf16.mxu0 %v4595
      %6051 = vmatmul.mubr.bf16.gmra.mrb[0].mxu0 %v4594
      %v6052 = vpop.f32.mrb[0].mxu0
      %v6053 = vadd.f32 %v4759, %v6052
      %v6054 = vpop.f32.mrb[0].mxu0
      %v6055 = vpop.f32.mrb[0].mxu0
      %v6056 = vadd.f32 %v4759, %v6055
      %v6057 = vpop.f32.mrb[0].mxu0
      %6058 = vmatprep.mubr.bf16.mxu0 %v4597
      %6059 = vmatmul.mubr.bf16.gmra.mrb[0].mxu0 %v4596
      %v6060 = vpop.f32.mrb[0].mxu0
      %v6061 = vadd.f32 %v4759, %v6060
      %v6062 = vpop.f32.mrb[0].mxu0
      %v6063 = vpop.f32.mrb[0].mxu0
      %v6064 = vadd.f32 %v4759, %v6063
      %v6065 = vpop.f32.mrb[0].mxu0
      %6066 = vmatprep.mubr.bf16.mxu0 %v4599
      %6067 = vmatmul.mubr.bf16.gmra.mrb[0].mxu0 %v4598
      %v6068 = vpop.f32.mrb[0].mxu0
      %v6069 = vadd.f32 %v4759, %v6068
      %v6070 = vpop.f32.mrb[0].mxu0
      %v6071 = vpop.f32.mrb[0].mxu0
      %v6072 = vadd.f32 %v4759, %v6071
      %v6073 = vpop.f32.mrb[0].mxu0
      %6074 = vmatprep.mubr.bf16.mxu0 %v4601
      %6075 = vmatmul.mubr.bf16.gmra.mrb[0].mxu0 %v4600
      %v6076 = vpop.f32.mrb[0].mxu0
      %v6077 = vadd.f32 %v4759, %v6076
      %v6078 = vpop.f32.mrb[0].mxu0
      %v6079 = vpop.f32.mrb[0].mxu0
      %v6080 = vadd.f32 %v4759, %v6079
      %v6081 = vpop.f32.mrb[0].mxu0
      %6082 = vdwg.mxu0
      %v6083 = vxor.u32 %v5378, 2147483648
      %v6084 = vxor.u32 %v5380, 2147483648
      %v6085 = vxor.u32 %v5571, 2147483648
      %v6086 = vxor.u32 %v5573, 2147483648
      %v6087 = vxor.u32 %v5764, 2147483648
      %v6088 = vxor.u32 %v5766, 2147483648
      %v6089 = vxor.u32 %v5957, 2147483648
      %v6090 = vxor.u32 %v5382, 2147483648
      %v6091 = vxor.u32 %v5384, 2147483648
      %v6092 = vxor.u32 %v5575, 2147483648
      %v6093 = vxor.u32 %v5577, 2147483648
      %v6094 = vxor.u32 %v5768, 2147483648
      %v6095 = vxor.u32 %v5770, 2147483648
      %v6096 = vxor.u32 %v5960, 2147483648
      %v6097 = vxor.u32 %v5388, 2147483648
      %v6098 = vxor.u32 %v5390, 2147483648
      %v6099 = vxor.u32 %v5581, 2147483648
      %v6100 = vxor.u32 %v5583, 2147483648
      %v6101 = vxor.u32 %v5774, 2147483648
      %v6102 = vxor.u32 %v5776, 2147483648
      %v6103 = vxor.u32 %v5965, 2147483648
      %v6104 = vxor.u32 %v5392, 2147483648
      %v6105 = vxor.u32 %v5394, 2147483648
      %v6106 = vxor.u32 %v5585, 2147483648
      %v6107 = vxor.u32 %v5587, 2147483648
      %v6108 = vxor.u32 %v5778, 2147483648
      %v6109 = vxor.u32 %v5780, 2147483648
      %v6110 = vxor.u32 %v5968, 2147483648
      %v6111 = vxor.u32 %v5398, 2147483648
      %v6112 = vxor.u32 %v5400, 2147483648
      %v6113 = vxor.u32 %v5591, 2147483648
      %v6114 = vxor.u32 %v5593, 2147483648
      %v6115 = vxor.u32 %v5784, 2147483648
      %v6116 = vxor.u32 %v5786, 2147483648
      %v6117 = vxor.u32 %v5973, 2147483648
      %v6118 = vxor.u32 %v5402, 2147483648
      %v6119 = vxor.u32 %v5404, 2147483648
      %v6120 = vxor.u32 %v5595, 2147483648
      %v6121 = vxor.u32 %v5597, 2147483648
      %v6122 = vxor.u32 %v5788, 2147483648
      %v6123 = vxor.u32 %v5790, 2147483648
      %v6124 = vxor.u32 %v5976, 2147483648
      %v6125 = vxor.u32 %v5408, 2147483648
      %v6126 = vxor.u32 %v5410, 2147483648
      %v6127 = vxor.u32 %v5601, 2147483648
      %v6128 = vxor.u32 %v5603, 2147483648
      %v6129 = vxor.u32 %v5794, 2147483648
      %v6130 = vxor.u32 %v5796, 2147483648
      %v6131 = vxor.u32 %v5981, 2147483648
      %v6132 = vxor.u32 %v5412, 2147483648
      %v6133 = vxor.u32 %v5414, 2147483648
      %v6134 = vxor.u32 %v5605, 2147483648
      %v6135 = vxor.u32 %v5607, 2147483648
      %v6136 = vxor.u32 %v5798, 2147483648
      %v6137 = vxor.u32 %v5800, 2147483648
      %v6138 = vxor.u32 %v5984, 2147483648
      %v6139 = vxor.u32 %v5418, 2147483648
      %v6140 = vxor.u32 %v5420, 2147483648
      %v6141 = vxor.u32 %v5611, 2147483648
      %v6142 = vxor.u32 %v5613, 2147483648
      %v6143 = vxor.u32 %v5804, 2147483648
      %v6144 = vxor.u32 %v5806, 2147483648
      %v6145 = vxor.u32 %v5989, 2147483648
      %v6146 = vxor.u32 %v5422, 2147483648
      %v6147 = vxor.u32 %v5424, 2147483648
      %v6148 = vxor.u32 %v5615, 2147483648
      %v6149 = vxor.u32 %v5617, 2147483648
      %v6150 = vxor.u32 %v5808, 2147483648
      %v6151 = vxor.u32 %v5810, 2147483648
      %v6152 = vxor.u32 %v5992, 2147483648
      %v6153 = vxor.u32 %v5428, 2147483648
      %v6154 = vxor.u32 %v5430, 2147483648
      %v6155 = vxor.u32 %v5621, 2147483648
      %v6156 = vxor.u32 %v5623, 2147483648
      %v6157 = vxor.u32 %v5814, 2147483648
      %v6158 = vxor.u32 %v5816, 2147483648
      %v6159 = vxor.u32 %v5997, 2147483648
      %v6160 = vxor.u32 %v5432, 2147483648
      %v6161 = vxor.u32 %v5434, 2147483648
      %v6162 = vxor.u32 %v5625, 2147483648
      %v6163 = vxor.u32 %v5627, 2147483648
      %v6164 = vxor.u32 %v5818, 2147483648
      %v6165 = vxor.u32 %v5820, 2147483648
      %v6166 = vxor.u32 %v6000, 2147483648
      %v6167 = vxor.u32 %v5438, 2147483648
      %v6168 = vxor.u32 %v5440, 2147483648
      %v6169 = vxor.u32 %v5631, 2147483648
      %v6170 = vxor.u32 %v5633, 2147483648
      %v6171 = vxor.u32 %v5824, 2147483648
      %v6172 = vxor.u32 %v5826, 2147483648
      %v6173 = vxor.u32 %v6005, 2147483648
      %v6174 = vxor.u32 %v5442, 2147483648
      %v6175 = vxor.u32 %v5444, 2147483648
      %v6176 = vxor.u32 %v5635, 2147483648
      %v6177 = vxor.u32 %v5637, 2147483648
      %v6178 = vxor.u32 %v5828, 2147483648
      %v6179 = vxor.u32 %v5830, 2147483648
      %v6180 = vxor.u32 %v6008, 2147483648
      %v6181 = vxor.u32 %v5448, 2147483648
      %v6182 = vxor.u32 %v5450, 2147483648
      %v6183 = vxor.u32 %v5641, 2147483648
      %v6184 = vxor.u32 %v5643, 2147483648
      %v6185 = vxor.u32 %v5834, 2147483648
      %v6186 = vxor.u32 %v5836, 2147483648
      %v6187 = vxor.u32 %v6013, 2147483648
      %v6188 = vxor.u32 %v5452, 2147483648
      %v6189 = vxor.u32 %v5454, 2147483648
      %v6190 = vxor.u32 %v5645, 2147483648
      %v6191 = vxor.u32 %v5647, 2147483648
      %v6192 = vxor.u32 %v5838, 2147483648
      %v6193 = vxor.u32 %v5840, 2147483648
      %v6194 = vxor.u32 %v6016, 2147483648
      %v6195 = vxor.u32 %v5458, 2147483648
      %v6196 = vxor.u32 %v5460, 2147483648
      %v6197 = vxor.u32 %v5651, 2147483648
      %v6198 = vxor.u32 %v5653, 2147483648
      %v6199 = vxor.u32 %v5844, 2147483648
      %v6200 = vxor.u32 %v5846, 2147483648
      %v6201 = vxor.u32 %v6021, 2147483648
      %v6202 = vxor.u32 %v5462, 2147483648
      %v6203 = vxor.u32 %v5464, 2147483648
      %v6204 = vxor.u32 %v5655, 2147483648
      %v6205 = vxor.u32 %v5657, 2147483648
      %v6206 = vxor.u32 %v5848, 2147483648
      %v6207 = vxor.u32 %v5850, 2147483648
      %v6208 = vxor.u32 %v6024, 2147483648
      %v6209 = vxor.u32 %v5468, 2147483648
      %v6210 = vxor.u32 %v5470, 2147483648
      %v6211 = vxor.u32 %v5661, 2147483648
      %v6212 = vxor.u32 %v5663, 2147483648
      %v6213 = vxor.u32 %v5854, 2147483648
      %v6214 = vxor.u32 %v5856, 2147483648
      %v6215 = vxor.u32 %v6029, 2147483648
      %v6216 = vxor.u32 %v5472, 2147483648
      %v6217 = vxor.u32 %v5474, 2147483648
      %v6218 = vxor.u32 %v5665, 2147483648
      %v6219 = vxor.u32 %v5667, 2147483648
      %v6220 = vxor.u32 %v5858, 2147483648
      %v6221 = vxor.u32 %v5860, 2147483648
      %v6222 = vxor.u32 %v6032, 2147483648
      %v6223 = vxor.u32 %v5478, 2147483648
      %v6224 = vxor.u32 %v5480, 2147483648
      %v6225 = vxor.u32 %v5671, 2147483648
      %v6226 = vxor.u32 %v5673, 2147483648
      %v6227 = vxor.u32 %v5864, 2147483648
      %v6228 = vxor.u32 %v5866, 2147483648
      %v6229 = vxor.u32 %v6037, 2147483648
      %v6230 = vxor.u32 %v5482, 2147483648
      %v6231 = vxor.u32 %v5484, 2147483648
      %v6232 = vxor.u32 %v5675, 2147483648
      %v6233 = vxor.u32 %v5677, 2147483648
      %v6234 = vxor.u32 %v5868, 2147483648
      %v6235 = vxor.u32 %v5870, 2147483648
      %v6236 = vxor.u32 %v6040, 2147483648
      %v6237 = vxor.u32 %v5488, 2147483648
      %v6238 = vxor.u32 %v5490, 2147483648
      %v6239 = vxor.u32 %v5681, 2147483648
      %v6240 = vxor.u32 %v5683, 2147483648
      %v6241 = vxor.u32 %v5874, 2147483648
      %v6242 = vxor.u32 %v5876, 2147483648
      %v6243 = vxor.u32 %v6045, 2147483648
      %v6244 = vxor.u32 %v5492, 2147483648
      %v6245 = vxor.u32 %v5494, 2147483648
      %v6246 = vxor.u32 %v5685, 2147483648
      %v6247 = vxor.u32 %v5687, 2147483648
      %v6248 = vxor.u32 %v5878, 2147483648
      %v6249 = vxor.u32 %v5880, 2147483648
      %v6250 = vxor.u32 %v6048, 2147483648
      %v6251 = vxor.u32 %v5498, 2147483648
      %v6252 = vxor.u32 %v5500, 2147483648
      %v6253 = vxor.u32 %v5691, 2147483648
      %v6254 = vxor.u32 %v5693, 2147483648
      %v6255 = vxor.u32 %v5884, 2147483648
      %v6256 = vxor.u32 %v5886, 2147483648
      %v6257 = vxor.u32 %v6053, 2147483648
      %v6258 = vxor.u32 %v5502, 2147483648
      %v6259 = vxor.u32 %v5504, 2147483648
      %v6260 = vxor.u32 %v5695, 2147483648
      %v6261 = vxor.u32 %v5697, 2147483648
      %v6262 = vxor.u32 %v5888, 2147483648
      %v6263 = vxor.u32 %v5890, 2147483648
      %v6264 = vxor.u32 %v6056, 2147483648
      %v6265 = vxor.u32 %v5508, 2147483648
      %v6266 = vxor.u32 %v5510, 2147483648
      %v6267 = vxor.u32 %v5701, 2147483648
      %v6268 = vxor.u32 %v5703, 2147483648
      %v6269 = vxor.u32 %v5894, 2147483648
      %v6270 = vxor.u32 %v5896, 2147483648
      %v6271 = vxor.u32 %v6061, 2147483648
      %v6272 = vxor.u32 %v5512, 2147483648
      %v6273 = vxor.u32 %v5514, 2147483648
      %v6274 = vxor.u32 %v5705, 2147483648
      %v6275 = vxor.u32 %v5707, 2147483648
      %v6276 = vxor.u32 %v5898, 2147483648
      %v6277 = vxor.u32 %v5900, 2147483648
      %v6278 = vxor.u32 %v6064, 2147483648
      %v6279 = vxor.u32 %v5518, 2147483648
      %v6280 = vxor.u32 %v5520, 2147483648
      %v6281 = vxor.u32 %v5711, 2147483648
      %v6282 = vxor.u32 %v5713, 2147483648
      %v6283 = vxor.u32 %v5904, 2147483648
      %v6284 = vxor.u32 %v5906, 2147483648
      %v6285 = vxor.u32 %v6069, 2147483648
      %v6286 = vxor.u32 %v5522, 2147483648
      %v6287 = vxor.u32 %v5524, 2147483648
      %v6288 = vxor.u32 %v5715, 2147483648
      %v6289 = vxor.u32 %v5717, 2147483648
      %v6290 = vxor.u32 %v5908, 2147483648
      %v6291 = vxor.u32 %v5910, 2147483648
      %v6292 = vxor.u32 %v6072, 2147483648
      %v6293 = vxor.u32 %v5528, 2147483648
      %v6294 = vxor.u32 %v5530, 2147483648
      %v6295 = vxor.u32 %v5721, 2147483648
      %v6296 = vxor.u32 %v5723, 2147483648
      %v6297 = vxor.u32 %v5914, 2147483648
      %v6298 = vxor.u32 %v5916, 2147483648
      %v6299 = vxor.u32 %v6077, 2147483648
      %v6300 = vxor.u32 %v5532, 2147483648
      %v6301 = vxor.u32 %v5534, 2147483648
      %v6302 = vxor.u32 %v5725, 2147483648
      %v6303 = vxor.u32 %v5727, 2147483648
      %v6304 = vxor.u32 %v5918, 2147483648
      %v6305 = vxor.u32 %v5920, 2147483648
      %v6306 = vxor.u32 %v6080, 2147483648
      %v6307 = vmul.f32 %v6083, 1.442695
      %v6308 = vpow.pop %v6307
      %v6309 = vmul.f32 %v6084, 1.442695
      %v6310 = vpow.pop %v6309
      %v6311 = vmul.f32 %v6085, 1.442695
      %v6312 = vpow.pop %v6311
      %v6313 = vmul.f32 %v6086, 1.442695
      %v6314 = vpow.pop %v6313
      %v6315 = vmul.f32 %v6087, 1.442695
      %v6316 = vpow.pop %v6315
      %v6317 = vmul.f32 %v6088, 1.442695
      %v6318 = vpow.pop %v6317
      %v6319 = vmul.f32 %v6089, 1.442695
      %v6320 = vpow.pop %v6319
      %v6321 = vmul.f32 %v6090, 1.442695
      %v6322 = vpow.pop %v6321
      %v6323 = vmul.f32 %v6091, 1.442695
      %v6324 = vpow.pop %v6323
      %v6325 = vmul.f32 %v6092, 1.442695
      %v6326 = vpow.pop %v6325
      %v6327 = vmul.f32 %v6093, 1.442695
      %v6328 = vpow.pop %v6327
      %v6329 = vmul.f32 %v6094, 1.442695
      %v6330 = vpow.pop %v6329
      %v6331 = vmul.f32 %v6095, 1.442695
      %v6332 = vpow.pop %v6331
      %v6333 = vmul.f32 %v6096, 1.442695
      %v6334 = vpow.pop %v6333
      %v6335 = vmul.f32 %v6097, 1.442695
      %v6336 = vpow.pop %v6335
      %v6337 = vmul.f32 %v6098, 1.442695
      %v6338 = vpow.pop %v6337
      %v6339 = vmul.f32 %v6099, 1.442695
      %v6340 = vpow.pop %v6339
      %v6341 = vmul.f32 %v6100, 1.442695
      %v6342 = vpow.pop %v6341
      %v6343 = vmul.f32 %v6101, 1.442695
      %v6344 = vpow.pop %v6343
      %v6345 = vmul.f32 %v6102, 1.442695
      %v6346 = vpow.pop %v6345
      %v6347 = vmul.f32 %v6103, 1.442695
      %v6348 = vpow.pop %v6347
      %v6349 = vmul.f32 %v6104, 1.442695
      %v6350 = vpow.pop %v6349
      %v6351 = vmul.f32 %v6105, 1.442695
      %v6352 = vpow.pop %v6351
      %v6353 = vmul.f32 %v6106, 1.442695
      %v6354 = vpow.pop %v6353
      %v6355 = vmul.f32 %v6107, 1.442695
      %v6356 = vpow.pop %v6355
      %v6357 = vmul.f32 %v6108, 1.442695
      %v6358 = vpow.pop %v6357
      %v6359 = vmul.f32 %v6109, 1.442695
      %v6360 = vpow.pop %v6359
      %v6361 = vmul.f32 %v6110, 1.442695
      %v6362 = vpow.pop %v6361
      %v6363 = vmul.f32 %v6111, 1.442695
      %v6364 = vpow.pop %v6363
      %v6365 = vmul.f32 %v6112, 1.442695
      %v6366 = vpow.pop %v6365
      %v6367 = vmul.f32 %v6113, 1.442695
      %v6368 = vpow.pop %v6367
      %v6369 = vmul.f32 %v6114, 1.442695
      %v6370 = vpow.pop %v6369
      %v6371 = vmul.f32 %v6115, 1.442695
      %v6372 = vpow.pop %v6371
      %v6373 = vmul.f32 %v6116, 1.442695
      %v6374 = vpow.pop %v6373
      %v6375 = vmul.f32 %v6117, 1.442695
      %v6376 = vpow.pop %v6375
      %v6377 = vmul.f32 %v6118, 1.442695
      %v6378 = vpow.pop %v6377
      %v6379 = vmul.f32 %v6119, 1.442695
      %v6380 = vpow.pop %v6379
      %v6381 = vmul.f32 %v6120, 1.442695
      %v6382 = vpow.pop %v6381
      %v6383 = vmul.f32 %v6121, 1.442695
      %v6384 = vpow.pop %v6383
      %v6385 = vmul.f32 %v6122, 1.442695
      %v6386 = vpow.pop %v6385
      %v6387 = vmul.f32 %v6123, 1.442695
      %v6388 = vpow.pop %v6387
      %v6389 = vmul.f32 %v6124, 1.442695
      %v6390 = vpow.pop %v6389
      %v6391 = vmul.f32 %v6125, 1.442695
      %v6392 = vpow.pop %v6391
      %v6393 = vmul.f32 %v6126, 1.442695
      %v6394 = vpow.pop %v6393
      %v6395 = vmul.f32 %v6127, 1.442695
      %v6396 = vpow.pop %v6395
      %v6397 = vmul.f32 %v6128, 1.442695
      %v6398 = vpow.pop %v6397
      %v6399 = vmul.f32 %v6129, 1.442695
      %v6400 = vpow.pop %v6399
      %v6401 = vmul.f32 %v6130, 1.442695
      %v6402 = vpow.pop %v6401
      %v6403 = vmul.f32 %v6131, 1.442695
      %v6404 = vpow.pop %v6403
      %v6405 = vmul.f32 %v6132, 1.442695
      %v6406 = vpow.pop %v6405
      %v6407 = vmul.f32 %v6133, 1.442695
      %v6408 = vpow.pop %v6407
      %v6409 = vmul.f32 %v6134, 1.442695
      %v6410 = vpow.pop %v6409
      %v6411 = vmul.f32 %v6135, 1.442695
      %v6412 = vpow.pop %v6411
      %v6413 = vmul.f32 %v6136, 1.442695
      %v6414 = vpow.pop %v6413
      %v6415 = vmul.f32 %v6137, 1.442695
      %v6416 = vpow.pop %v6415
      %v6417 = vmul.f32 %v6138, 1.442695
      %v6418 = vpow.pop %v6417
      %v6419 = vmul.f32 %v6139, 1.442695
      %v6420 = vpow.pop %v6419
      %v6421 = vmul.f32 %v6140, 1.442695
      %v6422 = vpow.pop %v6421
      %v6423 = vmul.f32 %v6141, 1.442695
      %v6424 = vpow.pop %v6423
      %v6425 = vmul.f32 %v6142, 1.442695
      %v6426 = vpow.pop %v6425
      %v6427 = vmul.f32 %v6143, 1.442695
      %v6428 = vpow.pop %v6427
      %v6429 = vmul.f32 %v6144, 1.442695
      %v6430 = vpow.pop %v6429
      %v6431 = vmul.f32 %v6145, 1.442695
      %v6432 = vpow.pop %v6431
      %v6433 = vmul.f32 %v6146, 1.442695
      %v6434 = vpow.pop %v6433
      %v6435 = vmul.f32 %v6147, 1.442695
      %v6436 = vpow.pop %v6435
      %v6437 = vmul.f32 %v6148, 1.442695
      %v6438 = vpow.pop %v6437
      %v6439 = vmul.f32 %v6149, 1.442695
      %v6440 = vpow.pop %v6439
      %v6441 = vmul.f32 %v6150, 1.442695
      %v6442 = vpow.pop %v6441
      %v6443 = vmul.f32 %v6151, 1.442695
      %v6444 = vpow.pop %v6443
      %v6445 = vmul.f32 %v6152, 1.442695
      %v6446 = vpow.pop %v6445
      %v6447 = vmul.f32 %v6153, 1.442695
      %v6448 = vpow.pop %v6447
      %v6449 = vmul.f32 %v6154, 1.442695
      %v6450 = vpow.pop %v6449
      %v6451 = vmul.f32 %v6155, 1.442695
      %v6452 = vpow.pop %v6451
      %v6453 = vmul.f32 %v6156, 1.442695
      %v6454 = vpow.pop %v6453
      %v6455 = vmul.f32 %v6157, 1.442695
      %v6456 = vpow.pop %v6455
      %v6457 = vmul.f32 %v6158, 1.442695
      %v6458 = vpow.pop %v6457
      %v6459 = vmul.f32 %v6159, 1.442695
      %v6460 = vpow.pop %v6459
      %v6461 = vmul.f32 %v6160, 1.442695
      %v6462 = vpow.pop %v6461
      %v6463 = vmul.f32 %v6161, 1.442695
      %v6464 = vpow.pop %v6463
      %v6465 = vmul.f32 %v6162, 1.442695
      %v6466 = vpow.pop %v6465
      %v6467 = vmul.f32 %v6163, 1.442695
      %v6468 = vpow.pop %v6467
      %v6469 = vmul.f32 %v6164, 1.442695
      %v6470 = vpow.pop %v6469
      %v6471 = vmul.f32 %v6165, 1.442695
      %v6472 = vpow.pop %v6471
      %v6473 = vmul.f32 %v6166, 1.442695
      %v6474 = vpow.pop %v6473
      %v6475 = vmul.f32 %v6167, 1.442695
      %v6476 = vpow.pop %v6475
      %v6477 = vmul.f32 %v6168, 1.442695
      %v6478 = vpow.pop %v6477
      %v6479 = vmul.f32 %v6169, 1.442695
      %v6480 = vpow.pop %v6479
      %v6481 = vmul.f32 %v6170, 1.442695
      %v6482 = vpow.pop %v6481
      %v6483 = vmul.f32 %v6171, 1.442695
      %v6484 = vpow.pop %v6483
      %v6485 = vmul.f32 %v6172, 1.442695
      %v6486 = vpow.pop %v6485
      %v6487 = vmul.f32 %v6173, 1.442695
      %v6488 = vpow.pop %v6487
      %v6489 = vmul.f32 %v6174, 1.442695
      %v6490 = vpow.pop %v6489
      %v6491 = vmul.f32 %v6175, 1.442695
      %v6492 = vpow.pop %v6491
      %v6493 = vmul.f32 %v6176, 1.442695
      %v6494 = vpow.pop %v6493
      %v6495 = vmul.f32 %v6177, 1.442695
      %v6496 = vpow.pop %v6495
      %v6497 = vmul.f32 %v6178, 1.442695
      %v6498 = vpow.pop %v6497
      %v6499 = vmul.f32 %v6179, 1.442695
      %v6500 = vpow.pop %v6499
      %v6501 = vmul.f32 %v6180, 1.442695
      %v6502 = vpow.pop %v6501
      %v6503 = vmul.f32 %v6181, 1.442695
      %v6504 = vpow.pop %v6503
      %v6505 = vmul.f32 %v6182, 1.442695
      %v6506 = vpow.pop %v6505
      %v6507 = vmul.f32 %v6183, 1.442695
      %v6508 = vpow.pop %v6507
      %v6509 = vmul.f32 %v6184, 1.442695
      %v6510 = vpow.pop %v6509
      %v6511 = vmul.f32 %v6185, 1.442695
      %v6512 = vpow.pop %v6511
      %v6513 = vmul.f32 %v6186, 1.442695
      %v6514 = vpow.pop %v6513
      %v6515 = vmul.f32 %v6187, 1.442695
      %v6516 = vpow.pop %v6515
      %v6517 = vmul.f32 %v6188, 1.442695
      %v6518 = vpow.pop %v6517
      %v6519 = vmul.f32 %v6189, 1.442695
      %v6520 = vpow.pop %v6519
      %v6521 = vmul.f32 %v6190, 1.442695
      %v6522 = vpow.pop %v6521
      %v6523 = vmul.f32 %v6191, 1.442695
      %v6524 = vpow.pop %v6523
      %v6525 = vmul.f32 %v6192, 1.442695
      %v6526 = vpow.pop %v6525
      %v6527 = vmul.f32 %v6193, 1.442695
      %v6528 = vpow.pop %v6527
      %v6529 = vmul.f32 %v6194, 1.442695
      %v6530 = vpow.pop %v6529
      %v6531 = vmul.f32 %v6195, 1.442695
      %v6532 = vpow.pop %v6531
      %v6533 = vmul.f32 %v6196, 1.442695
      %v6534 = vpow.pop %v6533
      %v6535 = vmul.f32 %v6197, 1.442695
      %v6536 = vpow.pop %v6535
      %v6537 = vmul.f32 %v6198, 1.442695
      %v6538 = vpow.pop %v6537
      %v6539 = vmul.f32 %v6199, 1.442695
      %v6540 = vpow.pop %v6539
      %v6541 = vmul.f32 %v6200, 1.442695
      %v6542 = vpow.pop %v6541
      %v6543 = vmul.f32 %v6201, 1.442695
      %v6544 = vpow.pop %v6543
      %v6545 = vmul.f32 %v6202, 1.442695
      %v6546 = vpow.pop %v6545
      %v6547 = vmul.f32 %v6203, 1.442695
      %v6548 = vpow.pop %v6547
      %v6549 = vmul.f32 %v6204, 1.442695
      %v6550 = vpow.pop %v6549
      %v6551 = vmul.f32 %v6205, 1.442695
      %v6552 = vpow.pop %v6551
      %v6553 = vmul.f32 %v6206, 1.442695
      %v6554 = vpow.pop %v6553
      %v6555 = vmul.f32 %v6207, 1.442695
      %v6556 = vpow.pop %v6555
      %v6557 = vmul.f32 %v6208, 1.442695
      %v6558 = vpow.pop %v6557
      %v6559 = vmul.f32 %v6209, 1.442695
      %v6560 = vpow.pop %v6559
      %v6561 = vmul.f32 %v6210, 1.442695
      %v6562 = vpow.pop %v6561
      %v6563 = vmul.f32 %v6211, 1.442695
      %v6564 = vpow.pop %v6563
      %v6565 = vmul.f32 %v6212, 1.442695
      %v6566 = vpow.pop %v6565
      %v6567 = vmul.f32 %v6213, 1.442695
      %v6568 = vpow.pop %v6567
      %v6569 = vmul.f32 %v6214, 1.442695
      %v6570 = vpow.pop %v6569
      %v6571 = vmul.f32 %v6215, 1.442695
      %v6572 = vpow.pop %v6571
      %v6573 = vmul.f32 %v6216, 1.442695
      %v6574 = vpow.pop %v6573
      %v6575 = vmul.f32 %v6217, 1.442695
      %v6576 = vpow.pop %v6575
      %v6577 = vmul.f32 %v6218, 1.442695
      %v6578 = vpow.pop %v6577
      %v6579 = vmul.f32 %v6219, 1.442695
      %v6580 = vpow.pop %v6579
      %v6581 = vmul.f32 %v6220, 1.442695
      %v6582 = vpow.pop %v6581
      %v6583 = vmul.f32 %v6221, 1.442695
      %v6584 = vpow.pop %v6583
      %v6585 = vmul.f32 %v6222, 1.442695
      %v6586 = vpow.pop %v6585
      %v6587 = vmul.f32 %v6223, 1.442695
      %v6588 = vpow.pop %v6587
      %v6589 = vmul.f32 %v6224, 1.442695
      %v6590 = vpow.pop %v6589
      %v6591 = vmul.f32 %v6225, 1.442695
      %v6592 = vpow.pop %v6591
      %v6593 = vmul.f32 %v6226, 1.442695
      %v6594 = vpow.pop %v6593
      %v6595 = vmul.f32 %v6227, 1.442695
      %v6596 = vpow.pop %v6595
      %v6597 = vmul.f32 %v6228, 1.442695
      %v6598 = vpow.pop %v6597
      %v6599 = vmul.f32 %v6229, 1.442695
      %v6600 = vpow.pop %v6599
      %v6601 = vmul.f32 %v6230, 1.442695
      %v6602 = vpow.pop %v6601
      %v6603 = vmul.f32 %v6231, 1.442695
      %v6604 = vpow.pop %v6603
      %v6605 = vmul.f32 %v6232, 1.442695
      %v6606 = vpow.pop %v6605
      %v6607 = vmul.f32 %v6233, 1.442695
      %v6608 = vpow.pop %v6607
      %v6609 = vmul.f32 %v6234, 1.442695
      %v6610 = vpow.pop %v6609
      %v6611 = vmul.f32 %v6235, 1.442695
      %v6612 = vpow.pop %v6611
      %v6613 = vmul.f32 %v6236, 1.442695
      %v6614 = vpow.pop %v6613
      %v6615 = vmul.f32 %v6237, 1.442695
      %v6616 = vpow.pop %v6615
      %v6617 = vmul.f32 %v6238, 1.442695
      %v6618 = vpow.pop %v6617
      %v6619 = vmul.f32 %v6239, 1.442695
      %v6620 = vpow.pop %v6619
      %v6621 = vmul.f32 %v6240, 1.442695
      %v6622 = vpow.pop %v6621
      %v6623 = vmul.f32 %v6241, 1.442695
      %v6624 = vpow.pop %v6623
      %v6625 = vmul.f32 %v6242, 1.442695
      %v6626 = vpow.pop %v6625
      %v6627 = vmul.f32 %v6243, 1.442695
      %v6628 = vpow.pop %v6627
      %v6629 = vmul.f32 %v6244, 1.442695
      %v6630 = vpow.pop %v6629
      %v6631 = vmul.f32 %v6245, 1.442695
      %v6632 = vpow.pop %v6631
      %v6633 = vmul.f32 %v6246, 1.442695
      %v6634 = vpow.pop %v6633
      %v6635 = vmul.f32 %v6247, 1.442695
      %v6636 = vpow.pop %v6635
      %v6637 = vmul.f32 %v6248, 1.442695
      %v6638 = vpow.pop %v6637
      %v6639 = vmul.f32 %v6249, 1.442695
      %v6640 = vpow.pop %v6639
      %v6641 = vmul.f32 %v6250, 1.442695
      %v6642 = vpow.pop %v6641
      %v6643 = vmul.f32 %v6251, 1.442695
      %v6644 = vpow.pop %v6643
      %v6645 = vmul.f32 %v6252, 1.442695
      %v6646 = vpow.pop %v6645
      %v6647 = vmul.f32 %v6253, 1.442695
      %v6648 = vpow.pop %v6647
      %v6649 = vmul.f32 %v6254, 1.442695
      %v6650 = vpow.pop %v6649
      %v6651 = vmul.f32 %v6255, 1.442695
      %v6652 = vpow.pop %v6651
      %v6653 = vmul.f32 %v6256, 1.442695
      %v6654 = vpow.pop %v6653
      %v6655 = vmul.f32 %v6257, 1.442695
      %v6656 = vpow.pop %v6655
      %v6657 = vmul.f32 %v6258, 1.442695
      %v6658 = vpow.pop %v6657
      %v6659 = vmul.f32 %v6259, 1.442695
      %v6660 = vpow.pop %v6659
      %v6661 = vmul.f32 %v6260, 1.442695
      %v6662 = vpow.pop %v6661
      %v6663 = vmul.f32 %v6261, 1.442695
      %v6664 = vpow.pop %v6663
      %v6665 = vmul.f32 %v6262, 1.442695
      %v6666 = vpow.pop %v6665
      %v6667 = vmul.f32 %v6263, 1.442695
      %v6668 = vpow.pop %v6667
      %v6669 = vmul.f32 %v6264, 1.442695
      %v6670 = vpow.pop %v6669
      %v6671 = vmul.f32 %v6265, 1.442695
      %v6672 = vpow.pop %v6671
      %v6673 = vmul.f32 %v6266, 1.442695
      %v6674 = vpow.pop %v6673
      %v6675 = vmul.f32 %v6267, 1.442695
      %v6676 = vpow.pop %v6675
      %v6677 = vmul.f32 %v6268, 1.442695
      %v6678 = vpow.pop %v6677
      %v6679 = vmul.f32 %v6269, 1.442695
      %v6680 = vpow.pop %v6679
      %v6681 = vmul.f32 %v6270, 1.442695
      %v6682 = vpow.pop %v6681
      %v6683 = vmul.f32 %v6271, 1.442695
      %v6684 = vpow.pop %v6683
      %v6685 = vmul.f32 %v6272, 1.442695
      %v6686 = vpow.pop %v6685
      %v6687 = vmul.f32 %v6273, 1.442695
      %v6688 = vpow.pop %v6687
      %v6689 = vmul.f32 %v6274, 1.442695
      %v6690 = vpow.pop %v6689
      %v6691 = vmul.f32 %v6275, 1.442695
      %v6692 = vpow.pop %v6691
      %v6693 = vmul.f32 %v6276, 1.442695
      %v6694 = vpow.pop %v6693
      %v6695 = vmul.f32 %v6277, 1.442695
      %v6696 = vpow.pop %v6695
      %v6697 = vmul.f32 %v6278, 1.442695
      %v6698 = vpow.pop %v6697
      %v6699 = vmul.f32 %v6279, 1.442695
      %v6700 = vpow.pop %v6699
      %v6701 = vmul.f32 %v6280, 1.442695
      %v6702 = vpow.pop %v6701
      %v6703 = vmul.f32 %v6281, 1.442695
      %v6704 = vpow.pop %v6703
      %v6705 = vmul.f32 %v6282, 1.442695
      %v6706 = vpow.pop %v6705
      %v6707 = vmul.f32 %v6283, 1.442695
      %v6708 = vpow.pop %v6707
      %v6709 = vmul.f32 %v6284, 1.442695
      %v6710 = vpow.pop %v6709
      %v6711 = vmul.f32 %v6285, 1.442695
      %v6712 = vpow.pop %v6711
      %v6713 = vmul.f32 %v6286, 1.442695
      %v6714 = vpow.pop %v6713
      %v6715 = vmul.f32 %v6287, 1.442695
      %v6716 = vpow.pop %v6715
      %v6717 = vmul.f32 %v6288, 1.442695
      %v6718 = vpow.pop %v6717
      %v6719 = vmul.f32 %v6289, 1.442695
      %v6720 = vpow.pop %v6719
      %v6721 = vmul.f32 %v6290, 1.442695
      %v6722 = vpow.pop %v6721
      %v6723 = vmul.f32 %v6291, 1.442695
      %v6724 = vpow.pop %v6723
      %v6725 = vmul.f32 %v6292, 1.442695
      %v6726 = vpow.pop %v6725
      %v6727 = vmul.f32 %v6293, 1.442695
      %v6728 = vpow.pop %v6727
      %v6729 = vmul.f32 %v6294, 1.442695
      %v6730 = vpow.pop %v6729
      %v6731 = vmul.f32 %v6295, 1.442695
      %v6732 = vpow.pop %v6731
      %v6733 = vmul.f32 %v6296, 1.442695
      %v6734 = vpow.pop %v6733
      %v6735 = vmul.f32 %v6297, 1.442695
      %v6736 = vpow.pop %v6735
      %v6737 = vmul.f32 %v6298, 1.442695
      %v6738 = vpow.pop %v6737
      %v6739 = vmul.f32 %v6299, 1.442695
      %v6740 = vpow.pop %v6739
      %v6741 = vmul.f32 %v6300, 1.442695
      %v6742 = vpow.pop %v6741
      %v6743 = vmul.f32 %v6301, 1.442695
      %v6744 = vpow.pop %v6743
      %v6745 = vmul.f32 %v6302, 1.442695
      %v6746 = vpow.pop %v6745
      %v6747 = vmul.f32 %v6303, 1.442695
      %v6748 = vpow.pop %v6747
      %v6749 = vmul.f32 %v6304, 1.442695
      %v6750 = vpow.pop %v6749
      %v6751 = vmul.f32 %v6305, 1.442695
      %v6752 = vpow.pop %v6751
      %v6753 = vmul.f32 %v6306, 1.442695
      %v6754 = vpow.pop %v6753
      %v6755 = vadd.f32 %v6308, 1.0
      %v6756 = vadd.f32 %v6310, 1.0
      %v6757 = vadd.f32 %v6312, 1.0
      %v6758 = vadd.f32 %v6314, 1.0
      %v6759 = vadd.f32 %v6316, 1.0
      %v6760 = vadd.f32 %v6318, 1.0
      %v6761 = vadd.f32 %v6320, 1.0
      %v6762 = vadd.f32 %v6322, 1.0
      %v6763 = vadd.f32 %v6324, 1.0
      %v6764 = vadd.f32 %v6326, 1.0
      %v6765 = vadd.f32 %v6328, 1.0
      %v6766 = vadd.f32 %v6330, 1.0
      %v6767 = vadd.f32 %v6332, 1.0
      %v6768 = vadd.f32 %v6334, 1.0
      %v6769 = vadd.f32 %v6336, 1.0
      %v6770 = vadd.f32 %v6338, 1.0
      %v6771 = vadd.f32 %v6340, 1.0
      %v6772 = vadd.f32 %v6342, 1.0
      %v6773 = vadd.f32 %v6344, 1.0
      %v6774 = vadd.f32 %v6346, 1.0
      %v6775 = vadd.f32 %v6348, 1.0
      %v6776 = vadd.f32 %v6350, 1.0
      %v6777 = vadd.f32 %v6352, 1.0
      %v6778 = vadd.f32 %v6354, 1.0
      %v6779 = vadd.f32 %v6356, 1.0
      %v6780 = vadd.f32 %v6358, 1.0
      %v6781 = vadd.f32 %v6360, 1.0
      %v6782 = vadd.f32 %v6362, 1.0
      %v6783 = vadd.f32 %v6364, 1.0
      %v6784 = vadd.f32 %v6366, 1.0
      %v6785 = vadd.f32 %v6368, 1.0
      %v6786 = vadd.f32 %v6370, 1.0
      %v6787 = vadd.f32 %v6372, 1.0
      %v6788 = vadd.f32 %v6374, 1.0
      %v6789 = vadd.f32 %v6376, 1.0
      %v6790 = vadd.f32 %v6378, 1.0
      %v6791 = vadd.f32 %v6380, 1.0
      %v6792 = vadd.f32 %v6382, 1.0
      %v6793 = vadd.f32 %v6384, 1.0
      %v6794 = vadd.f32 %v6386, 1.0
      %v6795 = vadd.f32 %v6388, 1.0
      %v6796 = vadd.f32 %v6390, 1.0
      %v6797 = vadd.f32 %v6392, 1.0
      %v6798 = vadd.f32 %v6394, 1.0
      %v6799 = vadd.f32 %v6396, 1.0
      %v6800 = vadd.f32 %v6398, 1.0
      %v6801 = vadd.f32 %v6400, 1.0
      %v6802 = vadd.f32 %v6402, 1.0
      %v6803 = vadd.f32 %v6404, 1.0
      %v6804 = vadd.f32 %v6406, 1.0
      %v6805 = vadd.f32 %v6408, 1.0
      %v6806 = vadd.f32 %v6410, 1.0
      %v6807 = vadd.f32 %v6412, 1.0
      %v6808 = vadd.f32 %v6414, 1.0
      %v6809 = vadd.f32 %v6416, 1.0
      %v6810 = vadd.f32 %v6418, 1.0
      %v6811 = vadd.f32 %v6420, 1.0
      %v6812 = vadd.f32 %v6422, 1.0
      %v6813 = vadd.f32 %v6424, 1.0
      %v6814 = vadd.f32 %v6426, 1.0
      %v6815 = vadd.f32 %v6428, 1.0
      %v6816 = vadd.f32 %v6430, 1.0
      %v6817 = vadd.f32 %v6432, 1.0
      %v6818 = vadd.f32 %v6434, 1.0
      %v6819 = vadd.f32 %v6436, 1.0
      %v6820 = vadd.f32 %v6438, 1.0
      %v6821 = vadd.f32 %v6440, 1.0
      %v6822 = vadd.f32 %v6442, 1.0
      %v6823 = vadd.f32 %v6444, 1.0
      %v6824 = vadd.f32 %v6446, 1.0
      %v6825 = vadd.f32 %v6448, 1.0
      %v6826 = vadd.f32 %v6450, 1.0
      %v6827 = vadd.f32 %v6452, 1.0
      %v6828 = vadd.f32 %v6454, 1.0
      %v6829 = vadd.f32 %v6456, 1.0
      %v6830 = vadd.f32 %v6458, 1.0
      %v6831 = vadd.f32 %v6460, 1.0
      %v6832 = vadd.f32 %v6462, 1.0
      %v6833 = vadd.f32 %v6464, 1.0
      %v6834 = vadd.f32 %v6466, 1.0
      %v6835 = vadd.f32 %v6468, 1.0
      %v6836 = vadd.f32 %v6470, 1.0
      %v6837 = vadd.f32 %v6472, 1.0
      %v6838 = vadd.f32 %v6474, 1.0
      %v6839 = vadd.f32 %v6476, 1.0
      %v6840 = vadd.f32 %v6478, 1.0
      %v6841 = vadd.f32 %v6480, 1.0
      %v6842 = vadd.f32 %v6482, 1.0
      %v6843 = vadd.f32 %v6484, 1.0
      %v6844 = vadd.f32 %v6486, 1.0
      %v6845 = vadd.f32 %v6488, 1.0
      %v6846 = vadd.f32 %v6490, 1.0
      %v6847 = vadd.f32 %v6492, 1.0
      %v6848 = vadd.f32 %v6494, 1.0
      %v6849 = vadd.f32 %v6496, 1.0
      %v6850 = vadd.f32 %v6498, 1.0
      %v6851 = vadd.f32 %v6500, 1.0
      %v6852 = vadd.f32 %v6502, 1.0
      %v6853 = vadd.f32 %v6504, 1.0
      %v6854 = vadd.f32 %v6506, 1.0
      %v6855 = vadd.f32 %v6508, 1.0
      %v6856 = vadd.f32 %v6510, 1.0
      %v6857 = vadd.f32 %v6512, 1.0
      %v6858 = vadd.f32 %v6514, 1.0
      %v6859 = vadd.f32 %v6516, 1.0
      %v6860 = vadd.f32 %v6518, 1.0
      %v6861 = vadd.f32 %v6520, 1.0
      %v6862 = vadd.f32 %v6522, 1.0
      %v6863 = vadd.f32 %v6524, 1.0
      %v6864 = vadd.f32 %v6526, 1.0
      %v6865 = vadd.f32 %v6528, 1.0
      %v6866 = vadd.f32 %v6530, 1.0
      %v6867 = vadd.f32 %v6532, 1.0
      %v6868 = vadd.f32 %v6534, 1.0
      %v6869 = vadd.f32 %v6536, 1.0
      %v6870 = vadd.f32 %v6538, 1.0
      %v6871 = vadd.f32 %v6540, 1.0
      %v6872 = vadd.f32 %v6542, 1.0
      %v6873 = vadd.f32 %v6544, 1.0
      %v6874 = vadd.f32 %v6546, 1.0
      %v6875 = vadd.f32 %v6548, 1.0
      %v6876 = vadd.f32 %v6550, 1.0
      %v6877 = vadd.f32 %v6552, 1.0
      %v6878 = vadd.f32 %v6554, 1.0
      %v6879 = vadd.f32 %v6556, 1.0
      %v6880 = vadd.f32 %v6558, 1.0
      %v6881 = vadd.f32 %v6560, 1.0
      %v6882 = vadd.f32 %v6562, 1.0
      %v6883 = vadd.f32 %v6564, 1.0
      %v6884 = vadd.f32 %v6566, 1.0
      %v6885 = vadd.f32 %v6568, 1.0
      %v6886 = vadd.f32 %v6570, 1.0
      %v6887 = vadd.f32 %v6572, 1.0
      %v6888 = vadd.f32 %v6574, 1.0
      %v6889 = vadd.f32 %v6576, 1.0
      %v6890 = vadd.f32 %v6578, 1.0
      %v6891 = vadd.f32 %v6580, 1.0
      %v6892 = vadd.f32 %v6582, 1.0
      %v6893 = vadd.f32 %v6584, 1.0
      %v6894 = vadd.f32 %v6586, 1.0
      %v6895 = vadd.f32 %v6588, 1.0
      %v6896 = vadd.f32 %v6590, 1.0
      %v6897 = vadd.f32 %v6592, 1.0
      %v6898 = vadd.f32 %v6594, 1.0
      %v6899 = vadd.f32 %v6596, 1.0
      %v6900 = vadd.f32 %v6598, 1.0
      %v6901 = vadd.f32 %v6600, 1.0
      %v6902 = vadd.f32 %v6602, 1.0
      %v6903 = vadd.f32 %v6604, 1.0
      %v6904 = vadd.f32 %v6606, 1.0
      %v6905 = vadd.f32 %v6608, 1.0
      %v6906 = vadd.f32 %v6610, 1.0
      %v6907 = vadd.f32 %v6612, 1.0
      %v6908 = vadd.f32 %v6614, 1.0
      %v6909 = vadd.f32 %v6616, 1.0
      %v6910 = vadd.f32 %v6618, 1.0
      %v6911 = vadd.f32 %v6620, 1.0
      %v6912 = vadd.f32 %v6622, 1.0
      %v6913 = vadd.f32 %v6624, 1.0
      %v6914 = vadd.f32 %v6626, 1.0
      %v6915 = vadd.f32 %v6628, 1.0
      %v6916 = vadd.f32 %v6630, 1.0
      %v6917 = vadd.f32 %v6632, 1.0
      %v6918 = vadd.f32 %v6634, 1.0
      %v6919 = vadd.f32 %v6636, 1.0
      %v6920 = vadd.f32 %v6638, 1.0
      %v6921 = vadd.f32 %v6640, 1.0
      %v6922 = vadd.f32 %v6642, 1.0
      %v6923 = vadd.f32 %v6644, 1.0
      %v6924 = vadd.f32 %v6646, 1.0
      %v6925 = vadd.f32 %v6648, 1.0
      %v6926 = vadd.f32 %v6650, 1.0
      %v6927 = vadd.f32 %v6652, 1.0
      %v6928 = vadd.f32 %v6654, 1.0
      %v6929 = vadd.f32 %v6656, 1.0
      %v6930 = vadd.f32 %v6658, 1.0
      %v6931 = vadd.f32 %v6660, 1.0
      %v6932 = vadd.f32 %v6662, 1.0
      %v6933 = vadd.f32 %v6664, 1.0
      %v6934 = vadd.f32 %v6666, 1.0
      %v6935 = vadd.f32 %v6668, 1.0
      %v6936 = vadd.f32 %v6670, 1.0
      %v6937 = vadd.f32 %v6672, 1.0
      %v6938 = vadd.f32 %v6674, 1.0
      %v6939 = vadd.f32 %v6676, 1.0
      %v6940 = vadd.f32 %v6678, 1.0
      %v6941 = vadd.f32 %v6680, 1.0
      %v6942 = vadd.f32 %v6682, 1.0
      %v6943 = vadd.f32 %v6684, 1.0
      %v6944 = vadd.f32 %v6686, 1.0
      %v6945 = vadd.f32 %v6688, 1.0
      %v6946 = vadd.f32 %v6690, 1.0
      %v6947 = vadd.f32 %v6692, 1.0
      %v6948 = vadd.f32 %v6694, 1.0
      %v6949 = vadd.f32 %v6696, 1.0
      %v6950 = vadd.f32 %v6698, 1.0
      %v6951 = vadd.f32 %v6700, 1.0
      %v6952 = vadd.f32 %v6702, 1.0
      %v6953 = vadd.f32 %v6704, 1.0
      %v6954 = vadd.f32 %v6706, 1.0
      %v6955 = vadd.f32 %v6708, 1.0
      %v6956 = vadd.f32 %v6710, 1.0
      %v6957 = vadd.f32 %v6712, 1.0
      %v6958 = vadd.f32 %v6714, 1.0
      %v6959 = vadd.f32 %v6716, 1.0
      %v6960 = vadd.f32 %v6718, 1.0
      %v6961 = vadd.f32 %v6720, 1.0
      %v6962 = vadd.f32 %v6722, 1.0
      %v6963 = vadd.f32 %v6724, 1.0
      %v6964 = vadd.f32 %v6726, 1.0
      %v6965 = vadd.f32 %v6728, 1.0
      %v6966 = vadd.f32 %v6730, 1.0
      %v6967 = vadd.f32 %v6732, 1.0
      %v6968 = vadd.f32 %v6734, 1.0
      %v6969 = vadd.f32 %v6736, 1.0
      %v6970 = vadd.f32 %v6738, 1.0
      %v6971 = vadd.f32 %v6740, 1.0
      %v6972 = vadd.f32 %v6742, 1.0
      %v6973 = vadd.f32 %v6744, 1.0
      %v6974 = vadd.f32 %v6746, 1.0
      %v6975 = vadd.f32 %v6748, 1.0
      %v6976 = vadd.f32 %v6750, 1.0
      %v6977 = vadd.f32 %v6752, 1.0
      %v6978 = vadd.f32 %v6754, 1.0
      %v6979 = vrcp.pop %v6755
      %v6980 = vmul.f32 1.0, %v6979
      %v6981 = vrcp.pop %v6756
      %v6982 = vmul.f32 1.0, %v6981
      %v6983 = vrcp.pop %v6757
      %v6984 = vmul.f32 1.0, %v6983
      %v6985 = vrcp.pop %v6758
      %v6986 = vmul.f32 1.0, %v6985
      %v6987 = vrcp.pop %v6759
      %v6988 = vmul.f32 1.0, %v6987
      %v6989 = vrcp.pop %v6760
      %v6990 = vmul.f32 1.0, %v6989
      %v6991 = vrcp.pop %v6761
      %v6992 = vmul.f32 1.0, %v6991
      %v6993 = vrcp.pop %v6762
      %v6994 = vmul.f32 1.0, %v6993
      %v6995 = vrcp.pop %v6763
      %v6996 = vmul.f32 1.0, %v6995
      %v6997 = vrcp.pop %v6764
      %v6998 = vmul.f32 1.0, %v6997
      %v6999 = vrcp.pop %v6765
      %v7000 = vmul.f32 1.0, %v6999
      %v7001 = vrcp.pop %v6766
      %v7002 = vmul.f32 1.0, %v7001
      %v7003 = vrcp.pop %v6767
      %v7004 = vmul.f32 1.0, %v7003
      %v7005 = vrcp.pop %v6768
      %v7006 = vmul.f32 1.0, %v7005
      %v7007 = vrcp.pop %v6769
      %v7008 = vmul.f32 1.0, %v7007
      %v7009 = vrcp.pop %v6770
      %v7010 = vmul.f32 1.0, %v7009
      %v7011 = vrcp.pop %v6771
      %v7012 = vmul.f32 1.0, %v7011
      %v7013 = vrcp.pop %v6772
      %v7014 = vmul.f32 1.0, %v7013
      %v7015 = vrcp.pop %v6773
      %v7016 = vmul.f32 1.0, %v7015
      %v7017 = vrcp.pop %v6774
      %v7018 = vmul.f32 1.0, %v7017
      %v7019 = vrcp.pop %v6775
      %v7020 = vmul.f32 1.0, %v7019
      %v7021 = vrcp.pop %v6776
      %v7022 = vmul.f32 1.0, %v7021
      %v7023 = vrcp.pop %v6777
      %v7024 = vmul.f32 1.0, %v7023
      %v7025 = vrcp.pop %v6778
      %v7026 = vmul.f32 1.0, %v7025
      %v7027 = vrcp.pop %v6779
      %v7028 = vmul.f32 1.0, %v7027
      %v7029 = vrcp.pop %v6780
      %v7030 = vmul.f32 1.0, %v7029
      %v7031 = vrcp.pop %v6781
      %v7032 = vmul.f32 1.0, %v7031
      %v7033 = vrcp.pop %v6782
      %v7034 = vmul.f32 1.0, %v7033
      %v7035 = vrcp.pop %v6783
      %v7036 = vmul.f32 1.0, %v7035
      %v7037 = vrcp.pop %v6784
      %v7038 = vmul.f32 1.0, %v7037
      %v7039 = vrcp.pop %v6785
      %v7040 = vmul.f32 1.0, %v7039
      %v7041 = vrcp.pop %v6786
      %v7042 = vmul.f32 1.0, %v7041
      %v7043 = vrcp.pop %v6787
      %v7044 = vmul.f32 1.0, %v7043
      %v7045 = vrcp.pop %v6788
      %v7046 = vmul.f32 1.0, %v7045
      %v7047 = vrcp.pop %v6789
      %v7048 = vmul.f32 1.0, %v7047
      %v7049 = vrcp.pop %v6790
      %v7050 = vmul.f32 1.0, %v7049
      %v7051 = vrcp.pop %v6791
      %v7052 = vmul.f32 1.0, %v7051
      %v7053 = vrcp.pop %v6792
      %v7054 = vmul.f32 1.0, %v7053
      %v7055 = vrcp.pop %v6793
      %v7056 = vmul.f32 1.0, %v7055
      %v7057 = vrcp.pop %v6794
      %v7058 = vmul.f32 1.0, %v7057
      %v7059 = vrcp.pop %v6795
      %v7060 = vmul.f32 1.0, %v7059
      %v7061 = vrcp.pop %v6796
      %v7062 = vmul.f32 1.0, %v7061
      %v7063 = vrcp.pop %v6797
      %v7064 = vmul.f32 1.0, %v7063
      %v7065 = vrcp.pop %v6798
      %v7066 = vmul.f32 1.0, %v7065
      %v7067 = vrcp.pop %v6799
      %v7068 = vmul.f32 1.0, %v7067
      %v7069 = vrcp.pop %v6800
      %v7070 = vmul.f32 1.0, %v7069
      %v7071 = vrcp.pop %v6801
      %v7072 = vmul.f32 1.0, %v7071
      %v7073 = vrcp.pop %v6802
      %v7074 = vmul.f32 1.0, %v7073
      %v7075 = vrcp.pop %v6803
      %v7076 = vmul.f32 1.0, %v7075
      %v7077 = vrcp.pop %v6804
      %v7078 = vmul.f32 1.0, %v7077
      %v7079 = vrcp.pop %v6805
      %v7080 = vmul.f32 1.0, %v7079
      %v7081 = vrcp.pop %v6806
      %v7082 = vmul.f32 1.0, %v7081
      %v7083 = vrcp.pop %v6807
      %v7084 = vmul.f32 1.0, %v7083
      %v7085 = vrcp.pop %v6808
      %v7086 = vmul.f32 1.0, %v7085
      %v7087 = vrcp.pop %v6809
      %v7088 = vmul.f32 1.0, %v7087
      %v7089 = vrcp.pop %v6810
      %v7090 = vmul.f32 1.0, %v7089
      %v7091 = vrcp.pop %v6811
      %v7092 = vmul.f32 1.0, %v7091
      %v7093 = vrcp.pop %v6812
      %v7094 = vmul.f32 1.0, %v7093
      %v7095 = vrcp.pop %v6813
      %v7096 = vmul.f32 1.0, %v7095
      %v7097 = vrcp.pop %v6814
      %v7098 = vmul.f32 1.0, %v7097
      %v7099 = vrcp.pop %v6815
      %v7100 = vmul.f32 1.0, %v7099
      %v7101 = vrcp.pop %v6816
      %v7102 = vmul.f32 1.0, %v7101
      %v7103 = vrcp.pop %v6817
      %v7104 = vmul.f32 1.0, %v7103
      %v7105 = vrcp.pop %v6818
      %v7106 = vmul.f32 1.0, %v7105
      %v7107 = vrcp.pop %v6819
      %v7108 = vmul.f32 1.0, %v7107
      %v7109 = vrcp.pop %v6820
      %v7110 = vmul.f32 1.0, %v7109
      %v7111 = vrcp.pop %v6821
      %v7112 = vmul.f32 1.0, %v7111
      %v7113 = vrcp.pop %v6822
      %v7114 = vmul.f32 1.0, %v7113
      %v7115 = vrcp.pop %v6823
      %v7116 = vmul.f32 1.0, %v7115
      %v7117 = vrcp.pop %v6824
      %v7118 = vmul.f32 1.0, %v7117
      %v7119 = vrcp.pop %v6825
      %v7120 = vmul.f32 1.0, %v7119
      %v7121 = vrcp.pop %v6826
      %v7122 = vmul.f32 1.0, %v7121
      %v7123 = vrcp.pop %v6827
      %v7124 = vmul.f32 1.0, %v7123
      %v7125 = vrcp.pop %v6828
      %v7126 = vmul.f32 1.0, %v7125
      %v7127 = vrcp.pop %v6829
      %v7128 = vmul.f32 1.0, %v7127
      %v7129 = vrcp.pop %v6830
      %v7130 = vmul.f32 1.0, %v7129
      %v7131 = vrcp.pop %v6831
      %v7132 = vmul.f32 1.0, %v7131
      %v7133 = vrcp.pop %v6832
      %v7134 = vmul.f32 1.0, %v7133
      %v7135 = vrcp.pop %v6833
      %v7136 = vmul.f32 1.0, %v7135
      %v7137 = vrcp.pop %v6834
      %v7138 = vmul.f32 1.0, %v7137
      %v7139 = vrcp.pop %v6835
      %v7140 = vmul.f32 1.0, %v7139
      %v7141 = vrcp.pop %v6836
      %v7142 = vmul.f32 1.0, %v7141
      %v7143 = vrcp.pop %v6837
      %v7144 = vmul.f32 1.0, %v7143
      %v7145 = vrcp.pop %v6838
      %v7146 = vmul.f32 1.0, %v7145
      %v7147 = vrcp.pop %v6839
      %v7148 = vmul.f32 1.0, %v7147
      %v7149 = vrcp.pop %v6840
      %v7150 = vmul.f32 1.0, %v7149
      %v7151 = vrcp.pop %v6841
      %v7152 = vmul.f32 1.0, %v7151
      %v7153 = vrcp.pop %v6842
      %v7154 = vmul.f32 1.0, %v7153
      %v7155 = vrcp.pop %v6843
      %v7156 = vmul.f32 1.0, %v7155
      %v7157 = vrcp.pop %v6844
      %v7158 = vmul.f32 1.0, %v7157
      %v7159 = vrcp.pop %v6845
      %v7160 = vmul.f32 1.0, %v7159
      %v7161 = vrcp.pop %v6846
      %v7162 = vmul.f32 1.0, %v7161
      %v7163 = vrcp.pop %v6847
      %v7164 = vmul.f32 1.0, %v7163
      %v7165 = vrcp.pop %v6848
      %v7166 = vmul.f32 1.0, %v7165
      %v7167 = vrcp.pop %v6849
      %v7168 = vmul.f32 1.0, %v7167
      %v7169 = vrcp.pop %v6850
      %v7170 = vmul.f32 1.0, %v7169
      %v7171 = vrcp.pop %v6851
      %v7172 = vmul.f32 1.0, %v7171
      %v7173 = vrcp.pop %v6852
      %v7174 = vmul.f32 1.0, %v7173
      %v7175 = vrcp.pop %v6853
      %v7176 = vmul.f32 1.0, %v7175
      %v7177 = vrcp.pop %v6854
      %v7178 = vmul.f32 1.0, %v7177
      %v7179 = vrcp.pop %v6855
      %v7180 = vmul.f32 1.0, %v7179
      %v7181 = vrcp.pop %v6856
      %v7182 = vmul.f32 1.0, %v7181
      %v7183 = vrcp.pop %v6857
      %v7184 = vmul.f32 1.0, %v7183
      %v7185 = vrcp.pop %v6858
      %v7186 = vmul.f32 1.0, %v7185
      %v7187 = vrcp.pop %v6859
      %v7188 = vmul.f32 1.0, %v7187
      %v7189 = vrcp.pop %v6860
      %v7190 = vmul.f32 1.0, %v7189
      %v7191 = vrcp.pop %v6861
      %v7192 = vmul.f32 1.0, %v7191
      %v7193 = vrcp.pop %v6862
      %v7194 = vmul.f32 1.0, %v7193
      %v7195 = vrcp.pop %v6863
      %v7196 = vmul.f32 1.0, %v7195
      %v7197 = vrcp.pop %v6864
      %v7198 = vmul.f32 1.0, %v7197
      %v7199 = vrcp.pop %v6865
      %v7200 = vmul.f32 1.0, %v7199
      %v7201 = vrcp.pop %v6866
      %v7202 = vmul.f32 1.0, %v7201
      %v7203 = vrcp.pop %v6867
      %v7204 = vmul.f32 1.0, %v7203
      %v7205 = vrcp.pop %v6868
      %v7206 = vmul.f32 1.0, %v7205
      %v7207 = vrcp.pop %v6869
      %v7208 = vmul.f32 1.0, %v7207
      %v7209 = vrcp.pop %v6870
      %v7210 = vmul.f32 1.0, %v7209
      %v7211 = vrcp.pop %v6871
      %v7212 = vmul.f32 1.0, %v7211
      %v7213 = vrcp.pop %v6872
      %v7214 = vmul.f32 1.0, %v7213
      %v7215 = vrcp.pop %v6873
      %v7216 = vmul.f32 1.0, %v7215
      %v7217 = vrcp.pop %v6874
      %v7218 = vmul.f32 1.0, %v7217
      %v7219 = vrcp.pop %v6875
      %v7220 = vmul.f32 1.0, %v7219
      %v7221 = vrcp.pop %v6876
      %v7222 = vmul.f32 1.0, %v7221
      %v7223 = vrcp.pop %v6877
      %v7224 = vmul.f32 1.0, %v7223
      %v7225 = vrcp.pop %v6878
      %v7226 = vmul.f32 1.0, %v7225
      %v7227 = vrcp.pop %v6879
      %v7228 = vmul.f32 1.0, %v7227
      %v7229 = vrcp.pop %v6880
      %v7230 = vmul.f32 1.0, %v7229
      %v7231 = vrcp.pop %v6881
      %v7232 = vmul.f32 1.0, %v7231
      %v7233 = vrcp.pop %v6882
      %v7234 = vmul.f32 1.0, %v7233
      %v7235 = vrcp.pop %v6883
      %v7236 = vmul.f32 1.0, %v7235
      %v7237 = vrcp.pop %v6884
      %v7238 = vmul.f32 1.0, %v7237
      %v7239 = vrcp.pop %v6885
      %v7240 = vmul.f32 1.0, %v7239
      %v7241 = vrcp.pop %v6886
      %v7242 = vmul.f32 1.0, %v7241
      %v7243 = vrcp.pop %v6887
      %v7244 = vmul.f32 1.0, %v7243
      %v7245 = vrcp.pop %v6888
      %v7246 = vmul.f32 1.0, %v7245
      %v7247 = vrcp.pop %v6889
      %v7248 = vmul.f32 1.0, %v7247
      %v7249 = vrcp.pop %v6890
      %v7250 = vmul.f32 1.0, %v7249
      %v7251 = vrcp.pop %v6891
      %v7252 = vmul.f32 1.0, %v7251
      %v7253 = vrcp.pop %v6892
      %v7254 = vmul.f32 1.0, %v7253
      %v7255 = vrcp.pop %v6893
      %v7256 = vmul.f32 1.0, %v7255
      %v7257 = vrcp.pop %v6894
      %v7258 = vmul.f32 1.0, %v7257
      %v7259 = vrcp.pop %v6895
      %v7260 = vmul.f32 1.0, %v7259
      %v7261 = vrcp.pop %v6896
      %v7262 = vmul.f32 1.0, %v7261
      %v7263 = vrcp.pop %v6897
      %v7264 = vmul.f32 1.0, %v7263
      %v7265 = vrcp.pop %v6898
      %v7266 = vmul.f32 1.0, %v7265
      %v7267 = vrcp.pop %v6899
      %v7268 = vmul.f32 1.0, %v7267
      %v7269 = vrcp.pop %v6900
      %v7270 = vmul.f32 1.0, %v7269
      %v7271 = vrcp.pop %v6901
      %v7272 = vmul.f32 1.0, %v7271
      %v7273 = vrcp.pop %v6902
      %v7274 = vmul.f32 1.0, %v7273
      %v7275 = vrcp.pop %v6903
      %v7276 = vmul.f32 1.0, %v7275
      %v7277 = vrcp.pop %v6904
      %v7278 = vmul.f32 1.0, %v7277
      %v7279 = vrcp.pop %v6905
      %v7280 = vmul.f32 1.0, %v7279
      %v7281 = vrcp.pop %v6906
      %v7282 = vmul.f32 1.0, %v7281
      %v7283 = vrcp.pop %v6907
      %v7284 = vmul.f32 1.0, %v7283
      %v7285 = vrcp.pop %v6908
      %v7286 = vmul.f32 1.0, %v7285
      %v7287 = vrcp.pop %v6909
      %v7288 = vmul.f32 1.0, %v7287
      %v7289 = vrcp.pop %v6910
      %v7290 = vmul.f32 1.0, %v7289
      %v7291 = vrcp.pop %v6911
      %v7292 = vmul.f32 1.0, %v7291
      %v7293 = vrcp.pop %v6912
      %v7294 = vmul.f32 1.0, %v7293
      %v7295 = vrcp.pop %v6913
      %v7296 = vmul.f32 1.0, %v7295
      %v7297 = vrcp.pop %v6914
      %v7298 = vmul.f32 1.0, %v7297
      %v7299 = vrcp.pop %v6915
      %v7300 = vmul.f32 1.0, %v7299
      %v7301 = vrcp.pop %v6916
      %v7302 = vmul.f32 1.0, %v7301
      %v7303 = vrcp.pop %v6917
      %v7304 = vmul.f32 1.0, %v7303
      %v7305 = vrcp.pop %v6918
      %v7306 = vmul.f32 1.0, %v7305
      %v7307 = vrcp.pop %v6919
      %v7308 = vmul.f32 1.0, %v7307
      %v7309 = vrcp.pop %v6920
      %v7310 = vmul.f32 1.0, %v7309
      %v7311 = vrcp.pop %v6921
      %v7312 = vmul.f32 1.0, %v7311
      %v7313 = vrcp.pop %v6922
      %v7314 = vmul.f32 1.0, %v7313
      %v7315 = vrcp.pop %v6923
      %v7316 = vmul.f32 1.0, %v7315
      %v7317 = vrcp.pop %v6924
      %v7318 = vmul.f32 1.0, %v7317
      %v7319 = vrcp.pop %v6925
      %v7320 = vmul.f32 1.0, %v7319
      %v7321 = vrcp.pop %v6926
      %v7322 = vmul.f32 1.0, %v7321
      %v7323 = vrcp.pop %v6927
      %v7324 = vmul.f32 1.0, %v7323
      %v7325 = vrcp.pop %v6928
      %v7326 = vmul.f32 1.0, %v7325
      %v7327 = vrcp.pop %v6929
      %v7328 = vmul.f32 1.0, %v7327
      %v7329 = vrcp.pop %v6930
      %v7330 = vmul.f32 1.0, %v7329
      %v7331 = vrcp.pop %v6931
      %v7332 = vmul.f32 1.0, %v7331
      %v7333 = vrcp.pop %v6932
      %v7334 = vmul.f32 1.0, %v7333
      %v7335 = vrcp.pop %v6933
      %v7336 = vmul.f32 1.0, %v7335
      %v7337 = vrcp.pop %v6934
      %v7338 = vmul.f32 1.0, %v7337
      %v7339 = vrcp.pop %v6935
      %v7340 = vmul.f32 1.0, %v7339
      %v7341 = vrcp.pop %v6936
      %v7342 = vmul.f32 1.0, %v7341
      %v7343 = vrcp.pop %v6937
      %v7344 = vmul.f32 1.0, %v7343
      %v7345 = vrcp.pop %v6938
      %v7346 = vmul.f32 1.0, %v7345
      %v7347 = vrcp.pop %v6939
      %v7348 = vmul.f32 1.0, %v7347
      %v7349 = vrcp.pop %v6940
      %v7350 = vmul.f32 1.0, %v7349
      %v7351 = vrcp.pop %v6941
      %v7352 = vmul.f32 1.0, %v7351
      %v7353 = vrcp.pop %v6942
      %v7354 = vmul.f32 1.0, %v7353
      %v7355 = vrcp.pop %v6943
      %v7356 = vmul.f32 1.0, %v7355
      %v7357 = vrcp.pop %v6944
      %v7358 = vmul.f32 1.0, %v7357
      %v7359 = vrcp.pop %v6945
      %v7360 = vmul.f32 1.0, %v7359
      %v7361 = vrcp.pop %v6946
      %v7362 = vmul.f32 1.0, %v7361
      %v7363 = vrcp.pop %v6947
      %v7364 = vmul.f32 1.0, %v7363
      %v7365 = vrcp.pop %v6948
      %v7366 = vmul.f32 1.0, %v7365
      %v7367 = vrcp.pop %v6949
      %v7368 = vmul.f32 1.0, %v7367
      %v7369 = vrcp.pop %v6950
      %v7370 = vmul.f32 1.0, %v7369
      %v7371 = vrcp.pop %v6951
      %v7372 = vmul.f32 1.0, %v7371
      %v7373 = vrcp.pop %v6952
      %v7374 = vmul.f32 1.0, %v7373
      %v7375 = vrcp.pop %v6953
      %v7376 = vmul.f32 1.0, %v7375
      %v7377 = vrcp.pop %v6954
      %v7378 = vmul.f32 1.0, %v7377
      %v7379 = vrcp.pop %v6955
      %v7380 = vmul.f32 1.0, %v7379
      %v7381 = vrcp.pop %v6956
      %v7382 = vmul.f32 1.0, %v7381
      %v7383 = vrcp.pop %v6957
      %v7384 = vmul.f32 1.0, %v7383
      %v7385 = vrcp.pop %v6958
      %v7386 = vmul.f32 1.0, %v7385
      %v7387 = vrcp.pop %v6959
      %v7388 = vmul.f32 1.0, %v7387
      %v7389 = vrcp.pop %v6960
      %v7390 = vmul.f32 1.0, %v7389
      %v7391 = vrcp.pop %v6961
      %v7392 = vmul.f32 1.0, %v7391
      %v7393 = vrcp.pop %v6962
      %v7394 = vmul.f32 1.0, %v7393
      %v7395 = vrcp.pop %v6963
      %v7396 = vmul.f32 1.0, %v7395
      %v7397 = vrcp.pop %v6964
      %v7398 = vmul.f32 1.0, %v7397
      %v7399 = vrcp.pop %v6965
      %v7400 = vmul.f32 1.0, %v7399
      %v7401 = vrcp.pop %v6966
      %v7402 = vmul.f32 1.0, %v7401
      %v7403 = vrcp.pop %v6967
      %v7404 = vmul.f32 1.0, %v7403
      %v7405 = vrcp.pop %v6968
      %v7406 = vmul.f32 1.0, %v7405
      %v7407 = vrcp.pop %v6969
      %v7408 = vmul.f32 1.0, %v7407
      %v7409 = vrcp.pop %v6970
      %v7410 = vmul.f32 1.0, %v7409
      %v7411 = vrcp.pop %v6971
      %v7412 = vmul.f32 1.0, %v7411
      %v7413 = vrcp.pop %v6972
      %v7414 = vmul.f32 1.0, %v7413
      %v7415 = vrcp.pop %v6973
      %v7416 = vmul.f32 1.0, %v7415
      %v7417 = vrcp.pop %v6974
      %v7418 = vmul.f32 1.0, %v7417
      %v7419 = vrcp.pop %v6975
      %v7420 = vmul.f32 1.0, %v7419
      %v7421 = vrcp.pop %v6976
      %v7422 = vmul.f32 1.0, %v7421
      %v7423 = vrcp.pop %v6977
      %v7424 = vmul.f32 1.0, %v7423
      %v7425 = vrcp.pop %v6978
      %v7426 = vmul.f32 1.0, %v7425
      %v7427 = vpack.c.bf16 %v6994, %v6980
      %v7428 = vpack.c.bf16 %v6996, %v6982
      %v7429 = vpack.c.bf16 %v6998, %v6984
      %v7430 = vpack.c.bf16 %v7000, %v6986
      %v7431 = vpack.c.bf16 %v7002, %v6988
      %v7432 = vpack.c.bf16 %v7004, %v6990
      %v7433 = vpack.c.bf16 %v7006, %v6992
      %v7434 = vpack.c.bf16 %v7022, %v7008
      %v7435 = vpack.c.bf16 %v7024, %v7010
      %v7436 = vpack.c.bf16 %v7026, %v7012
      %v7437 = vpack.c.bf16 %v7028, %v7014
      %v7438 = vpack.c.bf16 %v7030, %v7016
      %v7439 = vpack.c.bf16 %v7032, %v7018
      %v7440 = vpack.c.bf16 %v7034, %v7020
      %v7441 = vpack.c.bf16 %v7050, %v7036
      %v7442 = vpack.c.bf16 %v7052, %v7038
      %v7443 = vpack.c.bf16 %v7054, %v7040
      %v7444 = vpack.c.bf16 %v7056, %v7042
      %v7445 = vpack.c.bf16 %v7058, %v7044
      %v7446 = vpack.c.bf16 %v7060, %v7046
      %v7447 = vpack.c.bf16 %v7062, %v7048
      %v7448 = vpack.c.bf16 %v7078, %v7064
      %v7449 = vpack.c.bf16 %v7080, %v7066
      %v7450 = vpack.c.bf16 %v7082, %v7068
      %v7451 = vpack.c.bf16 %v7084, %v7070
      %v7452 = vpack.c.bf16 %v7086, %v7072
      %v7453 = vpack.c.bf16 %v7088, %v7074
      %v7454 = vpack.c.bf16 %v7090, %v7076
      %v7455 = vpack.c.bf16 %v7106, %v7092
      %v7456 = vpack.c.bf16 %v7108, %v7094
      %v7457 = vpack.c.bf16 %v7110, %v7096
      %v7458 = vpack.c.bf16 %v7112, %v7098
      %v7459 = vpack.c.bf16 %v7114, %v7100
      %v7460 = vpack.c.bf16 %v7116, %v7102
      %v7461 = vpack.c.bf16 %v7118, %v7104
      %v7462 = vpack.c.bf16 %v7134, %v7120
      %v7463 = vpack.c.bf16 %v7136, %v7122
      %v7464 = vpack.c.bf16 %v7138, %v7124
      %v7465 = vpack.c.bf16 %v7140, %v7126
      %v7466 = vpack.c.bf16 %v7142, %v7128
      %v7467 = vpack.c.bf16 %v7144, %v7130
      %v7468 = vpack.c.bf16 %v7146, %v7132
      %v7469 = vpack.c.bf16 %v7162, %v7148
      %v7470 = vpack.c.bf16 %v7164, %v7150
      %v7471 = vpack.c.bf16 %v7166, %v7152
      %v7472 = vpack.c.bf16 %v7168, %v7154
      %v7473 = vpack.c.bf16 %v7170, %v7156
      %v7474 = vpack.c.bf16 %v7172, %v7158
      %v7475 = vpack.c.bf16 %v7174, %v7160
      %v7476 = vpack.c.bf16 %v7190, %v7176
      %v7477 = vpack.c.bf16 %v7192, %v7178
      %v7478 = vpack.c.bf16 %v7194, %v7180
      %v7479 = vpack.c.bf16 %v7196, %v7182
      %v7480 = vpack.c.bf16 %v7198, %v7184
      %v7481 = vpack.c.bf16 %v7200, %v7186
      %v7482 = vpack.c.bf16 %v7202, %v7188
      %v7483 = vpack.c.bf16 %v7218, %v7204
      %v7484 = vpack.c.bf16 %v7220, %v7206
      %v7485 = vpack.c.bf16 %v7222, %v7208
      %v7486 = vpack.c.bf16 %v7224, %v7210
      %v7487 = vpack.c.bf16 %v7226, %v7212
      %v7488 = vpack.c.bf16 %v7228, %v7214
      %v7489 = vpack.c.bf16 %v7230, %v7216
      %v7490 = vpack.c.bf16 %v7246, %v7232
      %v7491 = vpack.c.bf16 %v7248, %v7234
      %v7492 = vpack.c.bf16 %v7250, %v7236
      %v7493 = vpack.c.bf16 %v7252, %v7238
      %v7494 = vpack.c.bf16 %v7254, %v7240
      %v7495 = vpack.c.bf16 %v7256, %v7242
      %v7496 = vpack.c.bf16 %v7258, %v7244
      %v7497 = vpack.c.bf16 %v7274, %v7260
      %v7498 = vpack.c.bf16 %v7276, %v7262
      %v7499 = vpack.c.bf16 %v7278, %v7264
      %v7500 = vpack.c.bf16 %v7280, %v7266
      %v7501 = vpack.c.bf16 %v7282, %v7268
      %v7502 = vpack.c.bf16 %v7284, %v7270
      %v7503 = vpack.c.bf16 %v7286, %v7272
      %v7504 = vpack.c.bf16 %v7302, %v7288
      %v7505 = vpack.c.bf16 %v7304, %v7290
      %v7506 = vpack.c.bf16 %v7306, %v7292
      %v7507 = vpack.c.bf16 %v7308, %v7294
      %v7508 = vpack.c.bf16 %v7310, %v7296
      %v7509 = vpack.c.bf16 %v7312, %v7298
      %v7510 = vpack.c.bf16 %v7314, %v7300
      %v7511 = vpack.c.bf16 %v7330, %v7316
      %v7512 = vpack.c.bf16 %v7332, %v7318
      %v7513 = vpack.c.bf16 %v7334, %v7320
      %v7514 = vpack.c.bf16 %v7336, %v7322
      %v7515 = vpack.c.bf16 %v7338, %v7324
      %v7516 = vpack.c.bf16 %v7340, %v7326
      %v7517 = vpack.c.bf16 %v7342, %v7328
      %v7518 = vpack.c.bf16 %v7358, %v7344
      %v7519 = vpack.c.bf16 %v7360, %v7346
      %v7520 = vpack.c.bf16 %v7362, %v7348
      %v7521 = vpack.c.bf16 %v7364, %v7350
      %v7522 = vpack.c.bf16 %v7366, %v7352
      %v7523 = vpack.c.bf16 %v7368, %v7354
      %v7524 = vpack.c.bf16 %v7370, %v7356
      %v7525 = vpack.c.bf16 %v7386, %v7372
      %v7526 = vpack.c.bf16 %v7388, %v7374
      %v7527 = vpack.c.bf16 %v7390, %v7376
      %v7528 = vpack.c.bf16 %v7392, %v7378
      %v7529 = vpack.c.bf16 %v7394, %v7380
      %v7530 = vpack.c.bf16 %v7396, %v7382
      %v7531 = vpack.c.bf16 %v7398, %v7384
      %v7532 = vpack.c.bf16 %v7414, %v7400
      %v7533 = vpack.c.bf16 %v7416, %v7402
      %v7534 = vpack.c.bf16 %v7418, %v7404
      %v7535 = vpack.c.bf16 %v7420, %v7406
      %v7536 = vpack.c.bf16 %v7422, %v7408
      %v7537 = vpack.c.bf16 %v7424, %v7410
      %v7538 = vpack.c.bf16 %v7426, %v7412
      %v7651 = vunpack.c.l.b16 %v7427
      %v7652 = vunpack.c.l.b16 %v7428
      %v7653 = vunpack.c.l.b16 %v7429
      %v7654 = vunpack.c.l.b16 %v7430
      %v7655 = vunpack.c.l.b16 %v7431
      %v7656 = vunpack.c.l.b16 %v7432
      %v7657 = vunpack.c.l.b16 %v7433
      %v7658 = vunpack.c.h.b16 %v7427
      %v7659 = vunpack.c.h.b16 %v7428
      %v7660 = vunpack.c.h.b16 %v7429
      %v7661 = vunpack.c.h.b16 %v7430
      %v7662 = vunpack.c.h.b16 %v7431
      %v7663 = vunpack.c.h.b16 %v7432
      %v7664 = vunpack.c.h.b16 %v7433
      %v7665 = vunpack.c.l.b16 %v7434
      %v7666 = vunpack.c.l.b16 %v7435
      %v7667 = vunpack.c.l.b16 %v7436
      %v7668 = vunpack.c.l.b16 %v7437
      %v7669 = vunpack.c.l.b16 %v7438
      %v7670 = vunpack.c.l.b16 %v7439
      %v7671 = vunpack.c.l.b16 %v7440
      %v7672 = vunpack.c.h.b16 %v7434
      %v7673 = vunpack.c.h.b16 %v7435
      %v7674 = vunpack.c.h.b16 %v7436
      %v7675 = vunpack.c.h.b16 %v7437
      %v7676 = vunpack.c.h.b16 %v7438
      %v7677 = vunpack.c.h.b16 %v7439
      %v7678 = vunpack.c.h.b16 %v7440
      %v7679 = vunpack.c.l.b16 %v7441
      %v7680 = vunpack.c.l.b16 %v7442
      %v7681 = vunpack.c.l.b16 %v7443
      %v7682 = vunpack.c.l.b16 %v7444
      %v7683 = vunpack.c.l.b16 %v7445
      %v7684 = vunpack.c.l.b16 %v7446
      %v7685 = vunpack.c.l.b16 %v7447
      %v7686 = vunpack.c.h.b16 %v7441
      %v7687 = vunpack.c.h.b16 %v7442
      %v7688 = vunpack.c.h.b16 %v7443
      %v7689 = vunpack.c.h.b16 %v7444
      %v7690 = vunpack.c.h.b16 %v7445
      %v7691 = vunpack.c.h.b16 %v7446
      %v7692 = vunpack.c.h.b16 %v7447
      %v7693 = vunpack.c.l.b16 %v7448
      %v7694 = vunpack.c.l.b16 %v7449
      %v7695 = vunpack.c.l.b16 %v7450
      %v7696 = vunpack.c.l.b16 %v7451
      %v7697 = vunpack.c.l.b16 %v7452
      %v7698 = vunpack.c.l.b16 %v7453
      %v7699 = vunpack.c.l.b16 %v7454
      %v7700 = vunpack.c.h.b16 %v7448
      %v7701 = vunpack.c.h.b16 %v7449
      %v7702 = vunpack.c.h.b16 %v7450
      %v7703 = vunpack.c.h.b16 %v7451
      %v7704 = vunpack.c.h.b16 %v7452
      %v7705 = vunpack.c.h.b16 %v7453
      %v7706 = vunpack.c.h.b16 %v7454
      %v7707 = vunpack.c.l.b16 %v7455
      %v7708 = vunpack.c.l.b16 %v7456
      %v7709 = vunpack.c.l.b16 %v7457
      %v7710 = vunpack.c.l.b16 %v7458
      %v7711 = vunpack.c.l.b16 %v7459
      %v7712 = vunpack.c.l.b16 %v7460
      %v7713 = vunpack.c.l.b16 %v7461
      %v7714 = vunpack.c.h.b16 %v7455
      %v7715 = vunpack.c.h.b16 %v7456
      %v7716 = vunpack.c.h.b16 %v7457
      %v7717 = vunpack.c.h.b16 %v7458
      %v7718 = vunpack.c.h.b16 %v7459
      %v7719 = vunpack.c.h.b16 %v7460
      %v7720 = vunpack.c.h.b16 %v7461
      %v7721 = vunpack.c.l.b16 %v7462
      %v7722 = vunpack.c.l.b16 %v7463
      %v7723 = vunpack.c.l.b16 %v7464
      %v7724 = vunpack.c.l.b16 %v7465
      %v7725 = vunpack.c.l.b16 %v7466
      %v7726 = vunpack.c.l.b16 %v7467
      %v7727 = vunpack.c.l.b16 %v7468
      %v7728 = vunpack.c.h.b16 %v7462
      %v7729 = vunpack.c.h.b16 %v7463
      %v7730 = vunpack.c.h.b16 %v7464
      %v7731 = vunpack.c.h.b16 %v7465
      %v7732 = vunpack.c.h.b16 %v7466
      %v7733 = vunpack.c.h.b16 %v7467
      %v7734 = vunpack.c.h.b16 %v7468
      %v7735 = vunpack.c.l.b16 %v7469
      %v7736 = vunpack.c.l.b16 %v7470
      %v7737 = vunpack.c.l.b16 %v7471
      %v7738 = vunpack.c.l.b16 %v7472
      %v7739 = vunpack.c.l.b16 %v7473
      %v7740 = vunpack.c.l.b16 %v7474
      %v7741 = vunpack.c.l.b16 %v7475
      %v7742 = vunpack.c.h.b16 %v7469
      %v7743 = vunpack.c.h.b16 %v7470
      %v7744 = vunpack.c.h.b16 %v7471
      %v7745 = vunpack.c.h.b16 %v7472
      %v7746 = vunpack.c.h.b16 %v7473
      %v7747 = vunpack.c.h.b16 %v7474
      %v7748 = vunpack.c.h.b16 %v7475
      %v7749 = vunpack.c.l.b16 %v7476
      %v7750 = vunpack.c.l.b16 %v7477
      %v7751 = vunpack.c.l.b16 %v7478
      %v7752 = vunpack.c.l.b16 %v7479
      %v7753 = vunpack.c.l.b16 %v7480
      %v7754 = vunpack.c.l.b16 %v7481
      %v7755 = vunpack.c.l.b16 %v7482
      %v7756 = vunpack.c.h.b16 %v7476
      %v7757 = vunpack.c.h.b16 %v7477
      %v7758 = vunpack.c.h.b16 %v7478
      %v7759 = vunpack.c.h.b16 %v7479
      %v7760 = vunpack.c.h.b16 %v7480
      %v7761 = vunpack.c.h.b16 %v7481
      %v7762 = vunpack.c.h.b16 %v7482
      %v7763 = vunpack.c.l.b16 %v7483
      %v7764 = vunpack.c.l.b16 %v7484
      %v7765 = vunpack.c.l.b16 %v7485
      %v7766 = vunpack.c.l.b16 %v7486
      %v7767 = vunpack.c.l.b16 %v7487
      %v7768 = vunpack.c.l.b16 %v7488
      %v7769 = vunpack.c.l.b16 %v7489
      %v7770 = vunpack.c.h.b16 %v7483
      %v7771 = vunpack.c.h.b16 %v7484
      %v7772 = vunpack.c.h.b16 %v7485
      %v7773 = vunpack.c.h.b16 %v7486
      %v7774 = vunpack.c.h.b16 %v7487
      %v7775 = vunpack.c.h.b16 %v7488
      %v7776 = vunpack.c.h.b16 %v7489
      %v7777 = vunpack.c.l.b16 %v7490
      %v7778 = vunpack.c.l.b16 %v7491
      %v7779 = vunpack.c.l.b16 %v7492
      %v7780 = vunpack.c.l.b16 %v7493
      %v7781 = vunpack.c.l.b16 %v7494
      %v7782 = vunpack.c.l.b16 %v7495
      %v7783 = vunpack.c.l.b16 %v7496
      %v7784 = vunpack.c.h.b16 %v7490
      %v7785 = vunpack.c.h.b16 %v7491
      %v7786 = vunpack.c.h.b16 %v7492
      %v7787 = vunpack.c.h.b16 %v7493
      %v7788 = vunpack.c.h.b16 %v7494
      %v7789 = vunpack.c.h.b16 %v7495
      %v7790 = vunpack.c.h.b16 %v7496
      %v7791 = vunpack.c.l.b16 %v7497
      %v7792 = vunpack.c.l.b16 %v7498
      %v7793 = vunpack.c.l.b16 %v7499
      %v7794 = vunpack.c.l.b16 %v7500
      %v7795 = vunpack.c.l.b16 %v7501
      %v7796 = vunpack.c.l.b16 %v7502
      %v7797 = vunpack.c.l.b16 %v7503
      %v7798 = vunpack.c.h.b16 %v7497
      %v7799 = vunpack.c.h.b16 %v7498
      %v7800 = vunpack.c.h.b16 %v7499
      %v7801 = vunpack.c.h.b16 %v7500
      %v7802 = vunpack.c.h.b16 %v7501
      %v7803 = vunpack.c.h.b16 %v7502
      %v7804 = vunpack.c.h.b16 %v7503
      %v7805 = vunpack.c.l.b16 %v7504
      %v7806 = vunpack.c.l.b16 %v7505
      %v7807 = vunpack.c.l.b16 %v7506
      %v7808 = vunpack.c.l.b16 %v7507
      %v7809 = vunpack.c.l.b16 %v7508
      %v7810 = vunpack.c.l.b16 %v7509
      %v7811 = vunpack.c.l.b16 %v7510
      %v7812 = vunpack.c.h.b16 %v7504
      %v7813 = vunpack.c.h.b16 %v7505
      %v7814 = vunpack.c.h.b16 %v7506
      %v7815 = vunpack.c.h.b16 %v7507
      %v7816 = vunpack.c.h.b16 %v7508
      %v7817 = vunpack.c.h.b16 %v7509
      %v7818 = vunpack.c.h.b16 %v7510
      %v7819 = vunpack.c.l.b16 %v7511
      %v7820 = vunpack.c.l.b16 %v7512
      %v7821 = vunpack.c.l.b16 %v7513
      %v7822 = vunpack.c.l.b16 %v7514
      %v7823 = vunpack.c.l.b16 %v7515
      %v7824 = vunpack.c.l.b16 %v7516
      %v7825 = vunpack.c.l.b16 %v7517
      %v7826 = vunpack.c.h.b16 %v7511
      %v7827 = vunpack.c.h.b16 %v7512
      %v7828 = vunpack.c.h.b16 %v7513
      %v7829 = vunpack.c.h.b16 %v7514
      %v7830 = vunpack.c.h.b16 %v7515
      %v7831 = vunpack.c.h.b16 %v7516
      %v7832 = vunpack.c.h.b16 %v7517
      %v7833 = vunpack.c.l.b16 %v7518
      %v7834 = vunpack.c.l.b16 %v7519
      %v7835 = vunpack.c.l.b16 %v7520
      %v7836 = vunpack.c.l.b16 %v7521
      %v7837 = vunpack.c.l.b16 %v7522
      %v7838 = vunpack.c.l.b16 %v7523
      %v7839 = vunpack.c.l.b16 %v7524
      %v7840 = vunpack.c.h.b16 %v7518
      %v7841 = vunpack.c.h.b16 %v7519
      %v7842 = vunpack.c.h.b16 %v7520
      %v7843 = vunpack.c.h.b16 %v7521
      %v7844 = vunpack.c.h.b16 %v7522
      %v7845 = vunpack.c.h.b16 %v7523
      %v7846 = vunpack.c.h.b16 %v7524
      %v7847 = vunpack.c.l.b16 %v7525
      %v7848 = vunpack.c.l.b16 %v7526
      %v7849 = vunpack.c.l.b16 %v7527
      %v7850 = vunpack.c.l.b16 %v7528
      %v7851 = vunpack.c.l.b16 %v7529
      %v7852 = vunpack.c.l.b16 %v7530
      %v7853 = vunpack.c.l.b16 %v7531
      %v7854 = vunpack.c.h.b16 %v7525
      %v7855 = vunpack.c.h.b16 %v7526
      %v7856 = vunpack.c.h.b16 %v7527
      %v7857 = vunpack.c.h.b16 %v7528
      %v7858 = vunpack.c.h.b16 %v7529
      %v7859 = vunpack.c.h.b16 %v7530
      %v7860 = vunpack.c.h.b16 %v7531
      %v7861 = vunpack.c.l.b16 %v7532
      %v7862 = vunpack.c.l.b16 %v7533
      %v7863 = vunpack.c.l.b16 %v7534
      %v7864 = vunpack.c.l.b16 %v7535
      %v7865 = vunpack.c.l.b16 %v7536
      %v7866 = vunpack.c.l.b16 %v7537
      %v7867 = vunpack.c.l.b16 %v7538
      %v7868 = vunpack.c.h.b16 %v7532
      %v7869 = vunpack.c.h.b16 %v7533
      %v7870 = vunpack.c.h.b16 %v7534
      %v7871 = vunpack.c.h.b16 %v7535
      %v7872 = vunpack.c.h.b16 %v7536
      %v7873 = vunpack.c.h.b16 %v7537
      %v7874 = vunpack.c.h.b16 %v7538
      %v7875 = vpack.c.b16 %v7652, %v7651
      %v7876 = vpack.c.b16 %v7654, %v7653
      %v7877 = vpack.c.b16 %v7656, %v7655
      %v7878 = vpack.c.b16 %v7657, %v7657
      %v7879 = vpack.c.b16 %v7659, %v7658
      %v7880 = vpack.c.b16 %v7661, %v7660
      %v7881 = vpack.c.b16 %v7663, %v7662
      %v7882 = vpack.c.b16 %v7664, %v7664
      %v7883 = vpack.c.b16 %v7666, %v7665
      %v7884 = vpack.c.b16 %v7668, %v7667
      %v7885 = vpack.c.b16 %v7670, %v7669
      %v7886 = vpack.c.b16 %v7671, %v7671
      %v7887 = vpack.c.b16 %v7673, %v7672
      %v7888 = vpack.c.b16 %v7675, %v7674
      %v7889 = vpack.c.b16 %v7677, %v7676
      %v7890 = vpack.c.b16 %v7678, %v7678
      %v7891 = vpack.c.b16 %v7680, %v7679
      %v7892 = vpack.c.b16 %v7682, %v7681
      %v7893 = vpack.c.b16 %v7684, %v7683
      %v7894 = vpack.c.b16 %v7685, %v7685
      %v7895 = vpack.c.b16 %v7687, %v7686
      %v7896 = vpack.c.b16 %v7689, %v7688
      %v7897 = vpack.c.b16 %v7691, %v7690
      %v7898 = vpack.c.b16 %v7692, %v7692
      %v7899 = vpack.c.b16 %v7694, %v7693
      %v7900 = vpack.c.b16 %v7696, %v7695
      %v7901 = vpack.c.b16 %v7698, %v7697
      %v7902 = vpack.c.b16 %v7699, %v7699
      %v7903 = vpack.c.b16 %v7701, %v7700
      %v7904 = vpack.c.b16 %v7703, %v7702
      %v7905 = vpack.c.b16 %v7705, %v7704
      %v7906 = vpack.c.b16 %v7706, %v7706
      %v7907 = vpack.c.b16 %v7708, %v7707
      %v7908 = vpack.c.b16 %v7710, %v7709
      %v7909 = vpack.c.b16 %v7712, %v7711
      %v7910 = vpack.c.b16 %v7713, %v7713
      %v7911 = vpack.c.b16 %v7715, %v7714
      %v7912 = vpack.c.b16 %v7717, %v7716
      %v7913 = vpack.c.b16 %v7719, %v7718
      %v7914 = vpack.c.b16 %v7720, %v7720
      %v7915 = vpack.c.b16 %v7722, %v7721
      %v7916 = vpack.c.b16 %v7724, %v7723
      %v7917 = vpack.c.b16 %v7726, %v7725
      %v7918 = vpack.c.b16 %v7727, %v7727
      %v7919 = vpack.c.b16 %v7729, %v7728
      %v7920 = vpack.c.b16 %v7731, %v7730
      %v7921 = vpack.c.b16 %v7733, %v7732
      %v7922 = vpack.c.b16 %v7734, %v7734
      %v7923 = vpack.c.b16 %v7736, %v7735
      %v7924 = vpack.c.b16 %v7738, %v7737
      %v7925 = vpack.c.b16 %v7740, %v7739
      %v7926 = vpack.c.b16 %v7741, %v7741
      %v7927 = vpack.c.b16 %v7743, %v7742
      %v7928 = vpack.c.b16 %v7745, %v7744
      %v7929 = vpack.c.b16 %v7747, %v7746
      %v7930 = vpack.c.b16 %v7748, %v7748
      %v7931 = vpack.c.b16 %v7750, %v7749
      %v7932 = vpack.c.b16 %v7752, %v7751
      %v7933 = vpack.c.b16 %v7754, %v7753
      %v7934 = vpack.c.b16 %v7755, %v7755
      %v7935 = vpack.c.b16 %v7757, %v7756
      %v7936 = vpack.c.b16 %v7759, %v7758
      %v7937 = vpack.c.b16 %v7761, %v7760
      %v7938 = vpack.c.b16 %v7762, %v7762
      %v7939 = vpack.c.b16 %v7764, %v7763
      %v7940 = vpack.c.b16 %v7766, %v7765
      %v7941 = vpack.c.b16 %v7768, %v7767
      %v7942 = vpack.c.b16 %v7769, %v7769
      %v7943 = vpack.c.b16 %v7771, %v7770
      %v7944 = vpack.c.b16 %v7773, %v7772
      %v7945 = vpack.c.b16 %v7775, %v7774
      %v7946 = vpack.c.b16 %v7776, %v7776
      %v7947 = vpack.c.b16 %v7778, %v7777
      %v7948 = vpack.c.b16 %v7780, %v7779
      %v7949 = vpack.c.b16 %v7782, %v7781
      %v7950 = vpack.c.b16 %v7783, %v7783
      %v7951 = vpack.c.b16 %v7785, %v7784
      %v7952 = vpack.c.b16 %v7787, %v7786
      %v7953 = vpack.c.b16 %v7789, %v7788
      %v7954 = vpack.c.b16 %v7790, %v7790
      %v7955 = vpack.c.b16 %v7792, %v7791
      %v7956 = vpack.c.b16 %v7794, %v7793
      %v7957 = vpack.c.b16 %v7796, %v7795
      %v7958 = vpack.c.b16 %v7797, %v7797
      %v7959 = vpack.c.b16 %v7799, %v7798
      %v7960 = vpack.c.b16 %v7801, %v7800
      %v7961 = vpack.c.b16 %v7803, %v7802
      %v7962 = vpack.c.b16 %v7804, %v7804
      %v7963 = vpack.c.b16 %v7806, %v7805
      %v7964 = vpack.c.b16 %v7808, %v7807
      %v7965 = vpack.c.b16 %v7810, %v7809
      %v7966 = vpack.c.b16 %v7811, %v7811
      %v7967 = vpack.c.b16 %v7813, %v7812
      %v7968 = vpack.c.b16 %v7815, %v7814
      %v7969 = vpack.c.b16 %v7817, %v7816
      %v7970 = vpack.c.b16 %v7818, %v7818
      %v7971 = vpack.c.b16 %v7820, %v7819
      %v7972 = vpack.c.b16 %v7822, %v7821
      %v7973 = vpack.c.b16 %v7824, %v7823
      %v7974 = vpack.c.b16 %v7825, %v7825
      %v7975 = vpack.c.b16 %v7827, %v7826
      %v7976 = vpack.c.b16 %v7829, %v7828
      %v7977 = vpack.c.b16 %v7831, %v7830
      %v7978 = vpack.c.b16 %v7832, %v7832
      %v7979 = vpack.c.b16 %v7834, %v7833
      %v7980 = vpack.c.b16 %v7836, %v7835
      %v7981 = vpack.c.b16 %v7838, %v7837
      %v7982 = vpack.c.b16 %v7839, %v7839
      %v7983 = vpack.c.b16 %v7841, %v7840
      %v7984 = vpack.c.b16 %v7843, %v7842
      %v7985 = vpack.c.b16 %v7845, %v7844
      %v7986 = vpack.c.b16 %v7846, %v7846
      %v7987 = vpack.c.b16 %v7848, %v7847
      %v7988 = vpack.c.b16 %v7850, %v7849
      %v7989 = vpack.c.b16 %v7852, %v7851
      %v7990 = vpack.c.b16 %v7853, %v7853
      %v7991 = vpack.c.b16 %v7855, %v7854
      %v7992 = vpack.c.b16 %v7857, %v7856
      %v7993 = vpack.c.b16 %v7859, %v7858
      %v7994 = vpack.c.b16 %v7860, %v7860
      %v7995 = vpack.c.b16 %v7862, %v7861
      %v7996 = vpack.c.b16 %v7864, %v7863
      %v7997 = vpack.c.b16 %v7866, %v7865
      %v7998 = vpack.c.b16 %v7867, %v7867
      %v7999 = vpack.c.b16 %v7869, %v7868
      %v8000 = vpack.c.b16 %v7871, %v7870
      %v8001 = vpack.c.b16 %v7873, %v7872
      %v8002 = vpack.c.b16 %v7874, %v7874
      %8131 = vst [vmem:[%s555] sm:$0xff] %v7875
      %8132 = vst [vmem:[%s555 + $0x8] sm:$0xff] %v7876
      %8133 = vst [vmem:[%s555 + $0x10] sm:$0xff] %v7877
      %vm8134 = vcmask 125952
      %8135 = vst.msk [vmem:[%s555 + $0x18] sm:$0xf] %vm8134, %v7878
      %8136 = vst [vmem:[%s555 + $0x1c] sm:$0xff] %v7879
      %8137 = vst [vmem:[%s555 + $0x24] sm:$0xff] %v7880
      %8138 = vst [vmem:[%s555 + $0x2c] sm:$0xff] %v7881
      %8139 = vst.msk [vmem:[%s555 + $0x34] sm:$0xf] %vm8134, %v7882
      %8140 = vst [vmem:[%s555 + $0x38] sm:$0xff] %v7883
      %8141 = vst [vmem:[%s555 + $0x40] sm:$0xff] %v7884
      %8142 = vst [vmem:[%s555 + $0x48] sm:$0xff] %v7885
      %8143 = vst.msk [vmem:[%s555 + $0x50] sm:$0xf] %vm8134, %v7886
      %8144 = vst [vmem:[%s555 + $0x54] sm:$0xff] %v7887
      %8145 = vst [vmem:[%s555 + $0x5c] sm:$0xff] %v7888
      %8146 = vst [vmem:[%s555 + $0x64] sm:$0xff] %v7889
      %8147 = vst.msk [vmem:[%s555 + $0x6c] sm:$0xf] %vm8134, %v7890
      %8148 = vst [vmem:[%s555 + $0x70] sm:$0xff] %v7891
      %8149 = vst [vmem:[%s555 + $0x78] sm:$0xff] %v7892
      %8150 = vst [vmem:[%s555 + $0x80] sm:$0xff] %v7893
      %8151 = vst.msk [vmem:[%s555 + $0x88] sm:$0xf] %vm8134, %v7894
      %8152 = vst [vmem:[%s555 + $0x8c] sm:$0xff] %v7895
      %8153 = vst [vmem:[%s555 + $0x94] sm:$0xff] %v7896
      %8154 = vst [vmem:[%s555 + $0x9c] sm:$0xff] %v7897
      %8155 = vst.msk [vmem:[%s555 + $0xa4] sm:$0xf] %vm8134, %v7898
      %8156 = vst [vmem:[%s555 + $0xa8] sm:$0xff] %v7899
      %8157 = vst [vmem:[%s555 + $0xb0] sm:$0xff] %v7900
      %8158 = vst [vmem:[%s555 + $0xb8] sm:$0xff] %v7901
      %8159 = vst.msk [vmem:[%s555 + $0xc0] sm:$0xf] %vm8134, %v7902
      %8160 = vst [vmem:[%s555 + $0xc4] sm:$0xff] %v7903
      %8161 = vst [vmem:[%s555 + $0xcc] sm:$0xff] %v7904
      %8162 = vst [vmem:[%s555 + $0xd4] sm:$0xff] %v7905
      %8163 = vst.msk [vmem:[%s555 + $0xdc] sm:$0xf] %vm8134, %v7906
      %8164 = vst [vmem:[%s555 + $0xe0] sm:$0xff] %v7907
      %8165 = vst [vmem:[%s555 + $0xe8] sm:$0xff] %v7908
      %8166 = vst [vmem:[%s555 + $0xf0] sm:$0xff] %v7909
      %8167 = vst.msk [vmem:[%s555 + $0xf8] sm:$0xf] %vm8134, %v7910
      %8168 = vst [vmem:[%s555 + $0xfc] sm:$0xff] %v7911
      %8169 = vst [vmem:[%s555 + $0x104] sm:$0xff] %v7912
      %8170 = vst [vmem:[%s555 + $0x10c] sm:$0xff] %v7913
      %8171 = vst.msk [vmem:[%s555 + $0x114] sm:$0xf] %vm8134, %v7914
      %8172 = vst [vmem:[%s555 + $0x118] sm:$0xff] %v7915
      %8173 = vst [vmem:[%s555 + $0x120] sm:$0xff] %v7916
      %8174 = vst [vmem:[%s555 + $0x128] sm:$0xff] %v7917
      %8175 = vst.msk [vmem:[%s555 + $0x130] sm:$0xf] %vm8134, %v7918
      %8176 = vst [vmem:[%s555 + $0x134] sm:$0xff] %v7919
      %8177 = vst [vmem:[%s555 + $0x13c] sm:$0xff] %v7920
      %8178 = vst [vmem:[%s555 + $0x144] sm:$0xff] %v7921
      %8179 = vst.msk [vmem:[%s555 + $0x14c] sm:$0xf] %vm8134, %v7922
      %8180 = vst [vmem:[%s555 + $0x150] sm:$0xff] %v7923
      %8181 = vst [vmem:[%s555 + $0x158] sm:$0xff] %v7924
      %8182 = vst [vmem:[%s555 + $0x160] sm:$0xff] %v7925
      %8183 = vst.msk [vmem:[%s555 + $0x168] sm:$0xf] %vm8134, %v7926
      %8184 = vst [vmem:[%s555 + $0x16c] sm:$0xff] %v7927
      %8185 = vst [vmem:[%s555 + $0x174] sm:$0xff] %v7928
      %8186 = vst [vmem:[%s555 + $0x17c] sm:$0xff] %v7929
      %8187 = vst.msk [vmem:[%s555 + $0x184] sm:$0xf] %vm8134, %v7930
      %8188 = vst [vmem:[%s555 + $0x188] sm:$0xff] %v7931
      %8189 = vst [vmem:[%s555 + $0x190] sm:$0xff] %v7932
      %8190 = vst [vmem:[%s555 + $0x198] sm:$0xff] %v7933
      %8191 = vst.msk [vmem:[%s555 + $0x1a0] sm:$0xf] %vm8134, %v7934
      %8192 = vst [vmem:[%s555 + $0x1a4] sm:$0xff] %v7935
      %8193 = vst [vmem:[%s555 + $0x1ac] sm:$0xff] %v7936
      %8194 = vst [vmem:[%s555 + $0x1b4] sm:$0xff] %v7937
      %8195 = vst.msk [vmem:[%s555 + $0x1bc] sm:$0xf] %vm8134, %v7938
      %8196 = vst [vmem:[%s555 + $0x1c0] sm:$0xff] %v7939
      %8197 = vst [vmem:[%s555 + $0x1c8] sm:$0xff] %v7940
      %8198 = vst [vmem:[%s555 + $0x1d0] sm:$0xff] %v7941
      %8199 = vst.msk [vmem:[%s555 + $0x1d8] sm:$0xf] %vm8134, %v7942
      %8200 = vst [vmem:[%s555 + $0x1dc] sm:$0xff] %v7943
      %8201 = vst [vmem:[%s555 + $0x1e4] sm:$0xff] %v7944
      %8202 = vst [vmem:[%s555 + $0x1ec] sm:$0xff] %v7945
      %8203 = vst.msk [vmem:[%s555 + $0x1f4] sm:$0xf] %vm8134, %v7946
      %8204 = vst [vmem:[%s555 + $0x1f8] sm:$0xff] %v7947
      %8205 = vst [vmem:[%s555 + $0x200] sm:$0xff] %v7948
      %8206 = vst [vmem:[%s555 + $0x208] sm:$0xff] %v7949
      %8207 = vst.msk [vmem:[%s555 + $0x210] sm:$0xf] %vm8134, %v7950
      %8208 = vst [vmem:[%s555 + $0x214] sm:$0xff] %v7951
      %8209 = vst [vmem:[%s555 + $0x21c] sm:$0xff] %v7952
      %8210 = vst [vmem:[%s555 + $0x224] sm:$0xff] %v7953
      %8211 = vst.msk [vmem:[%s555 + $0x22c] sm:$0xf] %vm8134, %v7954
      %8212 = vst [vmem:[%s555 + $0x230] sm:$0xff] %v7955
      %8213 = vst [vmem:[%s555 + $0x238] sm:$0xff] %v7956
      %8214 = vst [vmem:[%s555 + $0x240] sm:$0xff] %v7957
      %8215 = vst.msk [vmem:[%s555 + $0x248] sm:$0xf] %vm8134, %v7958
      %8216 = vst [vmem:[%s555 + $0x24c] sm:$0xff] %v7959
      %8217 = vst [vmem:[%s555 + $0x254] sm:$0xff] %v7960
      %8218 = vst [vmem:[%s555 + $0x25c] sm:$0xff] %v7961
      %8219 = vst.msk [vmem:[%s555 + $0x264] sm:$0xf] %vm8134, %v7962
      %8220 = vst [vmem:[%s555 + $0x268] sm:$0xff] %v7963
      %8221 = vst [vmem:[%s555 + $0x270] sm:$0xff] %v7964
      %8222 = vst [vmem:[%s555 + $0x278] sm:$0xff] %v7965
      %8223 = vst.msk [vmem:[%s555 + $0x280] sm:$0xf] %vm8134, %v7966
      %8224 = vst [vmem:[%s555 + $0x284] sm:$0xff] %v7967
      %8225 = vst [vmem:[%s555 + $0x28c] sm:$0xff] %v7968
      %8226 = vst [vmem:[%s555 + $0x294] sm:$0xff] %v7969
      %8227 = vst.msk [vmem:[%s555 + $0x29c] sm:$0xf] %vm8134, %v7970
      %8228 = vst [vmem:[%s555 + $0x2a0] sm:$0xff] %v7971
      %8229 = vst [vmem:[%s555 + $0x2a8] sm:$0xff] %v7972
      %8230 = vst [vmem:[%s555 + $0x2b0] sm:$0xff] %v7973
      %8231 = vst.msk [vmem:[%s555 + $0x2b8] sm:$0xf] %vm8134, %v7974
      %8232 = vst [vmem:[%s555 + $0x2bc] sm:$0xff] %v7975
      %8233 = vst [vmem:[%s555 + $0x2c4] sm:$0xff] %v7976
      %8234 = vst [vmem:[%s555 + $0x2cc] sm:$0xff] %v7977
      %8235 = vst.msk [vmem:[%s555 + $0x2d4] sm:$0xf] %vm8134, %v7978
      %8236 = vst [vmem:[%s555 + $0x2d8] sm:$0xff] %v7979
      %8237 = vst [vmem:[%s555 + $0x2e0] sm:$0xff] %v7980
      %8238 = vst [vmem:[%s555 + $0x2e8] sm:$0xff] %v7981
      %8239 = vst.msk [vmem:[%s555 + $0x2f0] sm:$0xf] %vm8134, %v7982
      %8240 = vst [vmem:[%s555 + $0x2f4] sm:$0xff] %v7983
      %8241 = vst [vmem:[%s555 + $0x2fc] sm:$0xff] %v7984
      %8242 = vst [vmem:[%s555 + $0x304] sm:$0xff] %v7985
      %8243 = vst.msk [vmem:[%s555 + $0x30c] sm:$0xf] %vm8134, %v7986
      %8244 = vst [vmem:[%s555 + $0x310] sm:$0xff] %v7987
      %8245 = vst [vmem:[%s555 + $0x318] sm:$0xff] %v7988
      %8246 = vst [vmem:[%s555 + $0x320] sm:$0xff] %v7989
      %8247 = vst.msk [vmem:[%s555 + $0x328] sm:$0xf] %vm8134, %v7990
      %8248 = vst [vmem:[%s555 + $0x32c] sm:$0xff] %v7991
      %8249 = vst [vmem:[%s555 + $0x334] sm:$0xff] %v7992
      %8250 = vst [vmem:[%s555 + $0x33c] sm:$0xff] %v7993
      %8251 = vst.msk [vmem:[%s555 + $0x344] sm:$0xf] %vm8134, %v7994
      %8252 = vst [vmem:[%s555 + $0x348] sm:$0xff] %v7995
      %8253 = vst [vmem:[%s555 + $0x350] sm:$0xff] %v7996
      %8254 = vst [vmem:[%s555 + $0x358] sm:$0xff] %v7997
      %8255 = vst.msk [vmem:[%s555 + $0x360] sm:$0xf] %vm8134, %v7998
      %8256 = vst [vmem:[%s555 + $0x364] sm:$0xff] %v7999
      %8257 = vst [vmem:[%s555 + $0x36c] sm:$0xff] %v8000
      %8258 = vst [vmem:[%s555 + $0x374] sm:$0xff] %v8001
      %8259 = vst.msk [vmem:[%s555 + $0x37c] sm:$0xf] %vm8134, %v8002
      %s8260 = smul.u32 32, %s28
      %p8261 = scmp.lt.s32.totalorder %s8260, 127
      %s8262 = scalar_select %p8261, %s8260, 127
      %s8263 = smul.addr %s8262, 7
      %s8264 = smul.addr %s8263, 4
      %s8265 = scalar_lea.vmem %s17, %s8264
      // Predicated region
      $region89: #{tpu_custom_call.1} parent=87 // pred_check
        %p8266 = pneg %p408
      $region90: #{tpu_custom_call.1} parent=87 // pred_check_branch
        %8268 = sbr.rel (%p8266) target = $region92
      $region91: #{tpu_custom_call.1} parent=87 // pred_region
        %s8269 = smul.u32 32, %s28
      $region92: #{tpu_custom_call.1} parent=87 // pred_fallthru
        _
    $region88: #{tpu_custom_call.1} parent=5 // pred_fallthru
      _
    %p8270 = scmp.le.s32.totalorder 2, %s23
    // Predicated region
    $region93: #{tpu_custom_call.1} parent=5 // pred_check
      %p8271 = pneg %p8270
    $region94: #{tpu_custom_call.1} parent=5 // pred_check_branch
      %8273 = sbr.rel (%p8271) target = $region96
    $region95: #{tpu_custom_call.1} parent=5 // pred_region
      %s8274 = ssub.s32 %s23, 2
      // Predicated region
      $region97: #{tpu_custom_call.1} parent=95 // pred_check
        %p8275 = pneg %p414
      $region98: #{tpu_custom_call.1} parent=95 // pred_check_branch
        %8277 = sbr.rel (%p8275) target = $region100
      $region99: #{tpu_custom_call.1} parent=95 // pred_region
        %s8278 = smul.u32 32, %s29
        %p8279 = scmp.lt.s32.totalorder %s8278, 127
        %s8280 = scalar_select %p8279, %s8278, 127
        %s8281 = smul.addr %s8280, 7
        %s8282 = smul.addr %s8281, 4
        %s8283 = scalar_lea.vmem %s17, %s8282
      $region100: #{tpu_custom_call.1} parent=95 // pred_fallthru
        _
    $region96: #{tpu_custom_call.1} parent=5 // pred_fallthru
      _
  $region6: #{tpu_custom_call.1} parent=0 // loop_footer
    %s27 = sadd.s32 1, %s23
  $region7: #{tpu_custom_call.1} parent=0 // loop_footer_branch
    %22 = sbr.rel target = $region3
  $region8: #{tpu_custom_call.1} parent=0 // loop_exit
    _

</llo_original>
